<compile_context>
chip_gen: v7x
topology: tpu7x:2x2x1
jax: 0.10.0
libtpu: 0.0.40
codegen_flags: <defaults>
</compile_context>

<pallas_src>
from functools import partial

import numpy as np
import jax
import jax.numpy as jnp
from jax.experimental import pallas as pl
from jax.experimental.pallas import tpu as pltpu

TB_MAX = 64  # boards per grid step (safe on v5e/v6e/v7x VMEM per review)


def _round_up(v, m):
    return ((v + m - 1) // m) * m


# ----------------------------------------------------------------------------
# Fused kernel: conv1 -> conv2 -> 2x2 maxpool -> fc1 -> fc2 -> fc3
# ----------------------------------------------------------------------------
def _fused_kernel(x_ref, w1_ref, b1_ref, w2_ref, b2_ref,
                  wf1_ref, bf1_ref, wf2_ref, bf2_ref, wf3_ref, bf3_ref,
                  out_ref, *, tb):
    f32 = jnp.float32

    # conv1 as one Toeplitz matmul: (tb,100) @ (100,2560).
    # Result lanes = h_pad*256 + w*32 + c with h_pad in [0,10); the h_pad=0 and
    # h_pad=9 blocks have zero weights/bias, so relu gives the zero h-halo
    # conv2 needs -- no scratch, no explicit padding.
    c1p = jnp.maximum(
        jnp.dot(x_ref[...], w1_ref[...], preferred_element_type=f32)
        + b1_ref[...], 0.0)                                      # (tb, 2560)

    w2 = w2_ref[...]                                             # (768, 512)
    b2 = b2_ref[...]                                             # (1, 512)

    # conv2 (8 row-strip matmuls, shared weight) + ReLU + 2x2 maxpool + fc1,
    # processed per pooled-row pair j so temporaries stay small.
    acc1 = jnp.zeros((tb, 128), f32)
    for j in range(4):
        sa = (2 * j) * 256
        sb = (2 * j + 1) * 256
        ha = jnp.maximum(
            jnp.dot(c1p[:, sa:sa + 768], w2, preferred_element_type=f32) + b2,
            0.0)                                                 # (tb, 512)
        hb = jnp.maximum(
            jnp.dot(c1p[:, sb:sb + 768], w2, preferred_element_type=f32) + b2,
            0.0)                                                 # (tb, 512)
        hm = jnp.maximum(ha, hb)                                 # max over h pair
        # conv2 output lanes are (wp, w2, c): w-pair max is two 256-lane slices.
        pooled = jnp.maximum(hm[:, 0:256], hm[:, 256:512])       # (tb, 256)
        acc1 = acc1 + jnp.dot(pooled, wf1_ref[j],
                              preferred_element_type=f32)        # K=256 fc1 block

    z1 = jnp.maximum(acc1 + bf1_ref[...], 0.0)                   # (tb, 128)
    z2 = jnp.maximum(
        jnp.dot(z1, wf2_ref[...], preferred_element_type=f32) + bf2_ref[...],
        0.0)                                                     # (tb, 64)
    # fc3 padded to 128 output lanes -> lane-dense (unmasked) output store.
    out_ref[...] = (jnp.dot(z2, wf3_ref[...], preferred_element_type=f32)
                    + bf3_ref[...])                              # (tb, 128)


# ----------------------------------------------------------------------------
# One-time parameter layout preparation (matches PyTorch semantics exactly)
# ----------------------------------------------------------------------------
def prepare_params(params):
    w1 = np.asarray(params["conv1_w"], np.float32)   # (32, 1, 3, 3)
    b1 = np.asarray(params["conv1_b"], np.float32)   # (32,)
    w2 = np.asarray(params["conv2_w"], np.float32)   # (64, 32, 3, 3)
    b2 = np.asarray(params["conv2_b"], np.float32)   # (64,)
    f1w = np.asarray(params["fc1_w"], np.float32)    # (128, 1024)
    f1b = np.asarray(params["fc1_b"], np.float32)
    f2w = np.asarray(params["fc2_w"], np.float32)    # (64, 128)
    f2b = np.asarray(params["fc2_b"], np.float32)
    f3w = np.asarray(params["fc3_w"], np.float32)    # (64, 64)
    f3b = np.asarray(params["fc3_b"], np.float32)

    # conv1 Toeplitz: row = padded pixel h_in*10 + w_in, col = h_pad*256+w*32+c
    # with h_pad = h_out + 1; h_pad in {0,9} columns stay zero (the h-halo).
    W1pad = np.zeros((100, 2560), np.float32)
    b1pad = np.zeros((1, 2560), np.float32)
    for h in range(8):
        for w in range(8):
            col = (h + 1) * 256 + w * 32
            b1pad[0, col:col + 32] = b1
            for kh in range(3):
                for kw in range(3):
                    row = (h + kh) * 10 + (w + kw)
                    W1pad[row, col:col + 32] = w1[:, 0, kh, kw]

    # conv2 row-strip weight shared by all 8 output rows:
    #   K lanes = kh*256 + w_in*32 + c_in   (w_in = conv1 output column)
    #   N lanes = wp*256 + w2*64 + c_out    with w_out = 2*w2 + wp (pool-friendly)
    W2strip = np.zeros((768, 512), np.float32)
    for kh in range(3):
        for wout in range(8):
            w2i, wp = wout // 2, wout % 2
            for kw in range(3):
                wi = wout + kw - 1
                if 0 <= wi < 8:
                    W2strip[kh * 256 + wi * 32: kh * 256 + wi * 32 + 32,
                            wp * 256 + w2i * 64: wp * 256 + w2i * 64 + 64] = \
                        w2[:, :, kh, kw].T
    b2full = np.tile(b2, 8).reshape(1, 512)

    # fc1 split into 4 K=256 blocks (one per pooled row h2=j); pooled lanes are
    # w2*64 + c while torch's flat index is c*16 + h2*4 + w2.
    wf1 = f1w.reshape(128, 64, 4, 4).transpose(2, 3, 1, 0).reshape(4, 256, 128)

    # fc3 padded to 128 output lanes (lane-dense output store).
    wf3 = np.zeros((64, 128), np.float32)
    wf3[:, :64] = f3w.T
    bf3 = np.zeros((1, 128), np.float32)
    bf3[0, :64] = f3b

    return dict(
        w1=jnp.asarray(W1pad), b1=jnp.asarray(b1pad),
        w2=jnp.asarray(W2strip), b2=jnp.asarray(b2full),
        wf1=jnp.asarray(wf1), bf1=jnp.asarray(f1b.reshape(1, 128)),
        wf2=jnp.asarray(f2w.T), bf2=jnp.asarray(f2b.reshape(1, 64)),
        wf3=jnp.asarray(wf3), bf3=jnp.asarray(bf3),
    )


# ----------------------------------------------------------------------------
# Forward
# ----------------------------------------------------------------------------
@partial(jax.jit, static_argnames=("block_boards",))
def model_sl1_forward(prepped, x, block_boards=None):
    """x: (N, 1, 8, 8) float32  ->  (N, 64) float32."""
    n = x.shape[0]
    tb = block_boards if block_boards is not None else min(TB_MAX, _round_up(n, 8))
    n_pad = _round_up(n, tb)

    # Only wrapper-side work: zero-pad the raw 1-channel board and flatten.
    xpad = jnp.pad(x[:, 0].astype(jnp.float32),
                   ((0, n_pad - n), (1, 1), (1, 1)))             # (n_pad, 10, 10)
    x100 = xpad.reshape(n_pad, 100)

    def full(ndim):
        return lambda i: (0,) * ndim

    flops = 2 * n_pad * (100 * 2560 + 8 * 768 * 512 + 4 * 256 * 128
                         + 128 * 64 + 64 * 128)
    bytes_acc = (n_pad * (100 + 128) * 4
                 + sum(int(v.size) * 4 for v in prepped.values()))

    out = pl.pallas_call(
        partial(_fused_kernel, tb=tb),
        out_shape=jax.ShapeDtypeStruct((n_pad, 128), jnp.float32),
        grid=(n_pad // tb,),
        in_specs=[
            pl.BlockSpec((tb, 100), lambda i: (i, 0)),           # padded boards
            pl.BlockSpec((100, 2560), full(2)),                  # conv1 Toeplitz
            pl.BlockSpec((1, 2560), full(2)),                    # conv1 bias
            pl.BlockSpec((768, 512), full(2)),                   # conv2 strip w
            pl.BlockSpec((1, 512), full(2)),                     # conv2 bias
            pl.BlockSpec((4, 256, 128), full(3)),                # fc1 w blocks
            pl.BlockSpec((1, 128), full(2)),                     # fc1 b
            pl.BlockSpec((128, 64), full(2)),                    # fc2 w
            pl.BlockSpec((1, 64), full(2)),                      # fc2 b
            pl.BlockSpec((64, 128), full(2)),                    # fc3 w (padded)
            pl.BlockSpec((1, 128), full(2)),                     # fc3 b (padded)
        ],
        out_specs=pl.BlockSpec((tb, 128), lambda i: (i, 0)),
        compiler_params=pltpu.CompilerParams(
            dimension_semantics=("parallel",),
            vmem_limit_bytes=32 * 1024 * 1024),
        cost_estimate=pl.CostEstimate(flops=flops, transcendentals=0,
                                      bytes_accessed=bytes_acc),
    )(x100, prepped["w1"], prepped["b1"], prepped["w2"], prepped["b2"],
      prepped["wf1"], prepped["bf1"], prepped["wf2"], prepped["bf2"],
      prepped["wf3"], prepped["bf3"])
    return out[:n, :64]


# ----------------------------------------------------------------------------
# Parameter init + pure-JAX reference (for the self-check)
# ----------------------------------------------------------------------------
def init_params(key):
    ks = jax.random.split(key, 10)

    def u(k, shape, fan_in):
        bound = 1.0 / jnp.sqrt(fan_in)
        return jax.random.uniform(k, shape, jnp.float32, -bound, bound)

    return dict(
        conv1_w=u(ks[0], (32, 1, 3, 3), 1 * 9),
        conv1_b=u(ks[1], (32,), 1 * 9),
        conv2_w=u(ks[2], (64, 32, 3, 3), 32 * 9),
        conv2_b=u(ks[3], (64,), 32 * 9),
        fc1_w=u(ks[4], (128, 1024), 1024),
        fc1_b=u(ks[5], (128,), 1024),
        fc2_w=u(ks[6], (64, 128), 128),
        fc2_b=u(ks[7], (64,), 128),
        fc3_w=u(ks[8], (64, 64), 64),
        fc3_b=u(ks[9], (64,), 64),
    )


def reference_forward(params, x):
    dn = jax.lax.conv_dimension_numbers(x.shape, params["conv1_w"].shape,
                                        ("NCHW", "OIHW", "NCHW"))
    y = jax.lax.conv_general_dilated(x, params["conv1_w"], (1, 1), "SAME",
                                     dimension_numbers=dn)
    y = jax.nn.relu(y + params["conv1_b"][None, :, None, None])
    dn2 = jax.lax.conv_dimension_numbers(y.shape, params["conv2_w"].shape,
                                         ("NCHW", "OIHW", "NCHW"))
    y = jax.lax.conv_general_dilated(y, params["conv2_w"], (1, 1), "SAME",
                                     dimension_numbers=dn2)
    y = jax.nn.relu(y + params["conv2_b"][None, :, None, None])
    y = y.reshape(y.shape[0], 64, 4, 2, 4, 2).max(axis=(3, 5))
    y = y.reshape(-1, 64 * 4 * 4)
    y = jax.nn.relu(y @ params["fc1_w"].T + params["fc1_b"])
    y = jax.nn.relu(y @ params["fc2_w"].T + params["fc2_b"])
    return y @ params["fc3_w"].T + params["fc3_b"]


if __name__ == "__main__":
    key = jax.random.PRNGKey(0)
    kp, kx = jax.random.split(key)
    params = init_params(kp)
    prepped = prepare_params(params)   # one-time weight layout prep (outside jit)

    # Reversi board: batch=2, 1 channel, 8x8 spatial (required by 64*4*4 flatten).
    x = jax.random.normal(kx, (2, 1, 8, 8), dtype=jnp.float32)
    out = jax.block_until_ready(model_sl1_forward(prepped, x))
    assert out.shape == (2, 64), out.shape
    ref = reference_forward(params, x)
    assert jnp.allclose(out, ref, rtol=1e-3, atol=1e-3), \
        float(jnp.max(jnp.abs(out - ref)))

    # Also exercise batch padding + a multi-step grid with a small block size.
    x2 = jax.random.normal(jax.random.PRNGKey(1), (10, 1, 8, 8), dtype=jnp.float32)
    out2 = jax.block_until_ready(model_sl1_forward(prepped, x2, block_boards=8))
    ref2 = reference_forward(params, x2)
    assert out2.shape == (10, 64), out2.shape
    assert jnp.allclose(out2, ref2, rtol=1e-3, atol=1e-3), \
        float(jnp.max(jnp.abs(out2 - ref2)))

    print("KERNEL_OK")
</pallas_src>

<mosaic_0001>
module attributes {stable_mosaic.version = 11 : i64} {
  func.func @_fused_kernel(%arg0: i32, %arg1: memref<8x100xf32, #tpu.memory_space<vmem>>, %arg2: memref<100x2560xf32, #tpu.memory_space<vmem>>, %arg3: memref<1x2560xf32, #tpu.memory_space<vmem>>, %arg4: memref<768x512xf32, #tpu.memory_space<vmem>>, %arg5: memref<1x512xf32, #tpu.memory_space<vmem>>, %arg6: memref<4x256x128xf32, #tpu.memory_space<vmem>>, %arg7: memref<1x128xf32, #tpu.memory_space<vmem>>, %arg8: memref<128x64xf32, #tpu.memory_space<vmem>>, %arg9: memref<1x64xf32, #tpu.memory_space<vmem>>, %arg10: memref<64x128xf32, #tpu.memory_space<vmem>>, %arg11: memref<1x128xf32, #tpu.memory_space<vmem>>, %arg12: memref<8x128xf32, #tpu.memory_space<vmem>>) attributes {dimension_semantics = [#tpu.dimension_semantics<parallel>], iteration_bounds = array<i64: 1>, scalar_prefetch = 0 : i64, scratch_operands = 0 : i64, tpu.core_type = #tpu.core_type<tc>, window_params = [{transform_indices = @transform_0, window_bounds = array<i64: 8, 100>}, {pipeline_mode = #tpu.pipeline_mode<synchronous>, transform_indices = @transform_1, window_bounds = array<i64: 100, 2560>}, {pipeline_mode = #tpu.pipeline_mode<synchronous>, transform_indices = @transform_2, window_bounds = array<i64: 1, 2560>}, {pipeline_mode = #tpu.pipeline_mode<synchronous>, transform_indices = @transform_3, window_bounds = array<i64: 768, 512>}, {pipeline_mode = #tpu.pipeline_mode<synchronous>, transform_indices = @transform_4, window_bounds = array<i64: 1, 512>}, {pipeline_mode = #tpu.pipeline_mode<synchronous>, transform_indices = @transform_5, window_bounds = array<i64: 4, 256, 128>}, {pipeline_mode = #tpu.pipeline_mode<synchronous>, transform_indices = @transform_6, window_bounds = array<i64: 1, 128>}, {pipeline_mode = #tpu.pipeline_mode<synchronous>, transform_indices = @transform_7, window_bounds = array<i64: 128, 64>}, {pipeline_mode = #tpu.pipeline_mode<synchronous>, transform_indices = @transform_8, window_bounds = array<i64: 1, 64>}, {pipeline_mode = #tpu.pipeline_mode<synchronous>, transform_indices = @transform_9, window_bounds = array<i64: 64, 128>}, {pipeline_mode = #tpu.pipeline_mode<synchronous>, transform_indices = @transform_10, window_bounds = array<i64: 1, 128>}, {transform_indices = @transform_11, window_bounds = array<i64: 8, 128>}]} {
    %c0 = arith.constant 0 : index
    %c0_0 = arith.constant 0 : index
    %0 = vector.load %arg1[%c0, %c0_0] : memref<8x100xf32, #tpu.memory_space<vmem>>, vector<8x100xf32>
    %c0_1 = arith.constant 0 : index
    %c0_2 = arith.constant 0 : index
    %1 = vector.load %arg2[%c0_1, %c0_2] : memref<100x2560xf32, #tpu.memory_space<vmem>>, vector<100x2560xf32>
    %cst = arith.constant dense<0.000000e+00> : vector<8x2560xf32>
    %2 = tpu.matmul %0, %1, %cst {dimension_numbers = #tpu.dot_dimension_numbers<[1], [0], [0], [1], [0, 0, 1, 1], [], []>} : vector<8x100xf32>, vector<100x2560xf32>, vector<8x2560xf32> -> vector<8x2560xf32>
    %c0_3 = arith.constant 0 : index
    %c0_4 = arith.constant 0 : index
    %3 = vector.load %arg3[%c0_3, %c0_4] : memref<1x2560xf32, #tpu.memory_space<vmem>>, vector<1x2560xf32>
    %4 = vector.broadcast %3 : vector<1x2560xf32> to vector<8x2560xf32>
    %5 = arith.addf %2, %4 : vector<8x2560xf32>
    %cst_5 = arith.constant 0.000000e+00 : f32
    %6 = vector.broadcast %cst_5 : f32 to vector<8x2560xf32>
    %7 = arith.maximumf %5, %6 : vector<8x2560xf32>
    %c0_6 = arith.constant 0 : index
    %c0_7 = arith.constant 0 : index
    %8 = vector.load %arg4[%c0_6, %c0_7] : memref<768x512xf32, #tpu.memory_space<vmem>>, vector<768x512xf32>
    %c0_8 = arith.constant 0 : index
    %c0_9 = arith.constant 0 : index
    %9 = vector.load %arg5[%c0_8, %c0_9] : memref<1x512xf32, #tpu.memory_space<vmem>>, vector<1x512xf32>
    %cst_10 = arith.constant 0.000000e+00 : f32
    %10 = vector.broadcast %cst_10 : f32 to vector<8x128xf32>
    %11 = vector.extract_strided_slice %7 {offsets = [0, 0], sizes = [8, 768], strides = [1, 1]} : vector<8x2560xf32> to vector<8x768xf32>
    %cst_11 = arith.constant dense<0.000000e+00> : vector<8x512xf32>
    %12 = tpu.matmul %11, %8, %cst_11 {dimension_numbers = #tpu.dot_dimension_numbers<[1], [0], [0], [1], [0, 0, 1, 1], [], []>} : vector<8x768xf32>, vector<768x512xf32>, vector<8x512xf32> -> vector<8x512xf32>
    %13 = vector.broadcast %9 : vector<1x512xf32> to vector<8x512xf32>
    %14 = arith.addf %12, %13 : vector<8x512xf32>
    %cst_12 = arith.constant 0.000000e+00 : f32
    %15 = vector.broadcast %cst_12 : f32 to vector<8x512xf32>
    %16 = arith.maximumf %14, %15 : vector<8x512xf32>
    %17 = vector.extract_strided_slice %7 {offsets = [0, 256], sizes = [8, 768], strides = [1, 1]} : vector<8x2560xf32> to vector<8x768xf32>
    %cst_13 = arith.constant dense<0.000000e+00> : vector<8x512xf32>
    %18 = tpu.matmul %17, %8, %cst_13 {dimension_numbers = #tpu.dot_dimension_numbers<[1], [0], [0], [1], [0, 0, 1, 1], [], []>} : vector<8x768xf32>, vector<768x512xf32>, vector<8x512xf32> -> vector<8x512xf32>
    %19 = vector.broadcast %9 : vector<1x512xf32> to vector<8x512xf32>
    %20 = arith.addf %18, %19 : vector<8x512xf32>
    %cst_14 = arith.constant 0.000000e+00 : f32
    %21 = vector.broadcast %cst_14 : f32 to vector<8x512xf32>
    %22 = arith.maximumf %20, %21 : vector<8x512xf32>
    %23 = arith.maximumf %16, %22 : vector<8x512xf32>
    %24 = vector.extract_strided_slice %23 {offsets = [0, 0], sizes = [8, 256], strides = [1, 1]} : vector<8x512xf32> to vector<8x256xf32>
    %25 = vector.extract_strided_slice %23 {offsets = [0, 256], sizes = [8, 256], strides = [1, 1]} : vector<8x512xf32> to vector<8x256xf32>
    %26 = arith.maximumf %24, %25 : vector<8x256xf32>
    %c0_15 = arith.constant 0 : index
    %c0_16 = arith.constant 0 : index
    %c0_17 = arith.constant 0 : index
    %27 = vector.load %arg6[%c0_15, %c0_16, %c0_17] : memref<4x256x128xf32, #tpu.memory_space<vmem>>, vector<1x256x128xf32>
    %28 = vector.shape_cast %27 : vector<1x256x128xf32> to vector<256x128xf32>
    %cst_18 = arith.constant dense<0.000000e+00> : vector<8x128xf32>
    %29 = tpu.matmul %26, %28, %cst_18 {dimension_numbers = #tpu.dot_dimension_numbers<[1], [0], [0], [1], [0, 0, 1, 1], [], []>} : vector<8x256xf32>, vector<256x128xf32>, vector<8x128xf32> -> vector<8x128xf32>
    %30 = arith.addf %10, %29 : vector<8x128xf32>
    %31 = vector.extract_strided_slice %7 {offsets = [0, 512], sizes = [8, 768], strides = [1, 1]} : vector<8x2560xf32> to vector<8x768xf32>
    %cst_19 = arith.constant dense<0.000000e+00> : vector<8x512xf32>
    %32 = tpu.matmul %31, %8, %cst_19 {dimension_numbers = #tpu.dot_dimension_numbers<[1], [0], [0], [1], [0, 0, 1, 1], [], []>} : vector<8x768xf32>, vector<768x512xf32>, vector<8x512xf32> -> vector<8x512xf32>
    %33 = vector.broadcast %9 : vector<1x512xf32> to vector<8x512xf32>
    %34 = arith.addf %32, %33 : vector<8x512xf32>
    %cst_20 = arith.constant 0.000000e+00 : f32
    %35 = vector.broadcast %cst_20 : f32 to vector<8x512xf32>
    %36 = arith.maximumf %34, %35 : vector<8x512xf32>
    %37 = vector.extract_strided_slice %7 {offsets = [0, 768], sizes = [8, 768], strides = [1, 1]} : vector<8x2560xf32> to vector<8x768xf32>
    %cst_21 = arith.constant dense<0.000000e+00> : vector<8x512xf32>
    %38 = tpu.matmul %37, %8, %cst_21 {dimension_numbers = #tpu.dot_dimension_numbers<[1], [0], [0], [1], [0, 0, 1, 1], [], []>} : vector<8x768xf32>, vector<768x512xf32>, vector<8x512xf32> -> vector<8x512xf32>
    %39 = vector.broadcast %9 : vector<1x512xf32> to vector<8x512xf32>
    %40 = arith.addf %38, %39 : vector<8x512xf32>
    %cst_22 = arith.constant 0.000000e+00 : f32
    %41 = vector.broadcast %cst_22 : f32 to vector<8x512xf32>
    %42 = arith.maximumf %40, %41 : vector<8x512xf32>
    %43 = arith.maximumf %36, %42 : vector<8x512xf32>
    %44 = vector.extract_strided_slice %43 {offsets = [0, 0], sizes = [8, 256], strides = [1, 1]} : vector<8x512xf32> to vector<8x256xf32>
    %45 = vector.extract_strided_slice %43 {offsets = [0, 256], sizes = [8, 256], strides = [1, 1]} : vector<8x512xf32> to vector<8x256xf32>
    %46 = arith.maximumf %44, %45 : vector<8x256xf32>
    %c1 = arith.constant 1 : index
    %c0_23 = arith.constant 0 : index
    %c0_24 = arith.constant 0 : index
    %47 = vector.load %arg6[%c1, %c0_23, %c0_24] : memref<4x256x128xf32, #tpu.memory_space<vmem>>, vector<1x256x128xf32>
    %48 = vector.shape_cast %47 : vector<1x256x128xf32> to vector<256x128xf32>
    %cst_25 = arith.constant dense<0.000000e+00> : vector<8x128xf32>
    %49 = tpu.matmul %46, %48, %cst_25 {dimension_numbers = #tpu.dot_dimension_numbers<[1], [0], [0], [1], [0, 0, 1, 1], [], []>} : vector<8x256xf32>, vector<256x128xf32>, vector<8x128xf32> -> vector<8x128xf32>
    %50 = arith.addf %30, %49 : vector<8x128xf32>
    %51 = vector.extract_strided_slice %7 {offsets = [0, 1024], sizes = [8, 768], strides = [1, 1]} : vector<8x2560xf32> to vector<8x768xf32>
    %cst_26 = arith.constant dense<0.000000e+00> : vector<8x512xf32>
    %52 = tpu.matmul %51, %8, %cst_26 {dimension_numbers = #tpu.dot_dimension_numbers<[1], [0], [0], [1], [0, 0, 1, 1], [], []>} : vector<8x768xf32>, vector<768x512xf32>, vector<8x512xf32> -> vector<8x512xf32>
    %53 = vector.broadcast %9 : vector<1x512xf32> to vector<8x512xf32>
    %54 = arith.addf %52, %53 : vector<8x512xf32>
    %cst_27 = arith.constant 0.000000e+00 : f32
    %55 = vector.broadcast %cst_27 : f32 to vector<8x512xf32>
    %56 = arith.maximumf %54, %55 : vector<8x512xf32>
    %57 = vector.extract_strided_slice %7 {offsets = [0, 1280], sizes = [8, 768], strides = [1, 1]} : vector<8x2560xf32> to vector<8x768xf32>
    %cst_28 = arith.constant dense<0.000000e+00> : vector<8x512xf32>
    %58 = tpu.matmul %57, %8, %cst_28 {dimension_numbers = #tpu.dot_dimension_numbers<[1], [0], [0], [1], [0, 0, 1, 1], [], []>} : vector<8x768xf32>, vector<768x512xf32>, vector<8x512xf32> -> vector<8x512xf32>
    %59 = vector.broadcast %9 : vector<1x512xf32> to vector<8x512xf32>
    %60 = arith.addf %58, %59 : vector<8x512xf32>
    %cst_29 = arith.constant 0.000000e+00 : f32
    %61 = vector.broadcast %cst_29 : f32 to vector<8x512xf32>
    %62 = arith.maximumf %60, %61 : vector<8x512xf32>
    %63 = arith.maximumf %56, %62 : vector<8x512xf32>
    %64 = vector.extract_strided_slice %63 {offsets = [0, 0], sizes = [8, 256], strides = [1, 1]} : vector<8x512xf32> to vector<8x256xf32>
    %65 = vector.extract_strided_slice %63 {offsets = [0, 256], sizes = [8, 256], strides = [1, 1]} : vector<8x512xf32> to vector<8x256xf32>
    %66 = arith.maximumf %64, %65 : vector<8x256xf32>
    %c2 = arith.constant 2 : index
    %c0_30 = arith.constant 0 : index
    %c0_31 = arith.constant 0 : index
    %67 = vector.load %arg6[%c2, %c0_30, %c0_31] : memref<4x256x128xf32, #tpu.memory_space<vmem>>, vector<1x256x128xf32>
    %68 = vector.shape_cast %67 : vector<1x256x128xf32> to vector<256x128xf32>
    %cst_32 = arith.constant dense<0.000000e+00> : vector<8x128xf32>
    %69 = tpu.matmul %66, %68, %cst_32 {dimension_numbers = #tpu.dot_dimension_numbers<[1], [0], [0], [1], [0, 0, 1, 1], [], []>} : vector<8x256xf32>, vector<256x128xf32>, vector<8x128xf32> -> vector<8x128xf32>
    %70 = arith.addf %50, %69 : vector<8x128xf32>
    %71 = vector.extract_strided_slice %7 {offsets = [0, 1536], sizes = [8, 768], strides = [1, 1]} : vector<8x2560xf32> to vector<8x768xf32>
    %cst_33 = arith.constant dense<0.000000e+00> : vector<8x512xf32>
    %72 = tpu.matmul %71, %8, %cst_33 {dimension_numbers = #tpu.dot_dimension_numbers<[1], [0], [0], [1], [0, 0, 1, 1], [], []>} : vector<8x768xf32>, vector<768x512xf32>, vector<8x512xf32> -> vector<8x512xf32>
    %73 = vector.broadcast %9 : vector<1x512xf32> to vector<8x512xf32>
    %74 = arith.addf %72, %73 : vector<8x512xf32>
    %cst_34 = arith.constant 0.000000e+00 : f32
    %75 = vector.broadcast %cst_34 : f32 to vector<8x512xf32>
    %76 = arith.maximumf %74, %75 : vector<8x512xf32>
    %77 = vector.extract_strided_slice %7 {offsets = [0, 1792], sizes = [8, 768], strides = [1, 1]} : vector<8x2560xf32> to vector<8x768xf32>
    %cst_35 = arith.constant dense<0.000000e+00> : vector<8x512xf32>
    %78 = tpu.matmul %77, %8, %cst_35 {dimension_numbers = #tpu.dot_dimension_numbers<[1], [0], [0], [1], [0, 0, 1, 1], [], []>} : vector<8x768xf32>, vector<768x512xf32>, vector<8x512xf32> -> vector<8x512xf32>
    %79 = vector.broadcast %9 : vector<1x512xf32> to vector<8x512xf32>
    %80 = arith.addf %78, %79 : vector<8x512xf32>
    %cst_36 = arith.constant 0.000000e+00 : f32
    %81 = vector.broadcast %cst_36 : f32 to vector<8x512xf32>
    %82 = arith.maximumf %80, %81 : vector<8x512xf32>
    %83 = arith.maximumf %76, %82 : vector<8x512xf32>
    %84 = vector.extract_strided_slice %83 {offsets = [0, 0], sizes = [8, 256], strides = [1, 1]} : vector<8x512xf32> to vector<8x256xf32>
    %85 = vector.extract_strided_slice %83 {offsets = [0, 256], sizes = [8, 256], strides = [1, 1]} : vector<8x512xf32> to vector<8x256xf32>
    %86 = arith.maximumf %84, %85 : vector<8x256xf32>
    %c3 = arith.constant 3 : index
    %c0_37 = arith.constant 0 : index
    %c0_38 = arith.constant 0 : index
    %87 = vector.load %arg6[%c3, %c0_37, %c0_38] : memref<4x256x128xf32, #tpu.memory_space<vmem>>, vector<1x256x128xf32>
    %88 = vector.shape_cast %87 : vector<1x256x128xf32> to vector<256x128xf32>
    %cst_39 = arith.constant dense<0.000000e+00> : vector<8x128xf32>
    %89 = tpu.matmul %86, %88, %cst_39 {dimension_numbers = #tpu.dot_dimension_numbers<[1], [0], [0], [1], [0, 0, 1, 1], [], []>} : vector<8x256xf32>, vector<256x128xf32>, vector<8x128xf32> -> vector<8x128xf32>
    %90 = arith.addf %70, %89 : vector<8x128xf32>
    %c0_40 = arith.constant 0 : index
    %c0_41 = arith.constant 0 : index
    %91 = vector.load %arg7[%c0_40, %c0_41] : memref<1x128xf32, #tpu.memory_space<vmem>>, vector<1x128xf32>
    %92 = vector.broadcast %91 : vector<1x128xf32> to vector<8x128xf32>
    %93 = arith.addf %90, %92 : vector<8x128xf32>
    %cst_42 = arith.constant 0.000000e+00 : f32
    %94 = vector.broadcast %cst_42 : f32 to vector<8x128xf32>
    %95 = arith.maximumf %93, %94 : vector<8x128xf32>
    %c0_43 = arith.constant 0 : index
    %c0_44 = arith.constant 0 : index
    %96 = vector.load %arg8[%c0_43, %c0_44] : memref<128x64xf32, #tpu.memory_space<vmem>>, vector<128x64xf32>
    %cst_45 = arith.constant dense<0.000000e+00> : vector<8x64xf32>
    %97 = tpu.matmul %95, %96, %cst_45 {dimension_numbers = #tpu.dot_dimension_numbers<[1], [0], [0], [1], [0, 0, 1, 1], [], []>} : vector<8x128xf32>, vector<128x64xf32>, vector<8x64xf32> -> vector<8x64xf32>
    %c0_46 = arith.constant 0 : index
    %c0_47 = arith.constant 0 : index
    %98 = vector.load %arg9[%c0_46, %c0_47] : memref<1x64xf32, #tpu.memory_space<vmem>>, vector<1x64xf32>
    %99 = vector.broadcast %98 : vector<1x64xf32> to vector<8x64xf32>
    %100 = arith.addf %97, %99 : vector<8x64xf32>
    %cst_48 = arith.constant 0.000000e+00 : f32
    %101 = vector.broadcast %cst_48 : f32 to vector<8x64xf32>
    %102 = arith.maximumf %100, %101 : vector<8x64xf32>
    %c0_49 = arith.constant 0 : index
    %c0_50 = arith.constant 0 : index
    %103 = vector.load %arg10[%c0_49, %c0_50] : memref<64x128xf32, #tpu.memory_space<vmem>>, vector<64x128xf32>
    %cst_51 = arith.constant dense<0.000000e+00> : vector<8x128xf32>
    %104 = tpu.matmul %102, %103, %cst_51 {dimension_numbers = #tpu.dot_dimension_numbers<[1], [0], [0], [1], [0, 0, 1, 1], [], []>} : vector<8x64xf32>, vector<64x128xf32>, vector<8x128xf32> -> vector<8x128xf32>
    %c0_52 = arith.constant 0 : index
    %c0_53 = arith.constant 0 : index
    %105 = vector.load %arg11[%c0_52, %c0_53] : memref<1x128xf32, #tpu.memory_space<vmem>>, vector<1x128xf32>
    %106 = vector.broadcast %105 : vector<1x128xf32> to vector<8x128xf32>
    %107 = arith.addf %104, %106 : vector<8x128xf32>
    %c0_54 = arith.constant 0 : index
    %c0_55 = arith.constant 0 : index
    %108 = vector.load %arg12[%c0_54, %c0_55] : memref<8x128xf32, #tpu.memory_space<vmem>>, vector<8x128xf32>
    tpu.vector_store %arg12[%c0_54, %c0_55], %107 {strides = array<i32>} : memref<8x128xf32, #tpu.memory_space<vmem>>, vector<8x128xf32>,
    return
  }
  func.func @transform_0(%arg0: i32) -> (i32, i32) {
    %c0_i32 = arith.constant 0 : i32
    %c0_i32_0 = arith.constant 0 : i32
    return %arg0, %c0_i32 : i32, i32
  }
  func.func @transform_1(%arg0: i32) -> (i32, i32) {
    %c0_i32 = arith.constant 0 : i32
    %c0_i32_0 = arith.constant 0 : i32
    %c0_i32_1 = arith.constant 0 : i32
    return %c0_i32, %c0_i32_0 : i32, i32
  }
  func.func @transform_2(%arg0: i32) -> (i32, i32) {
    %c0_i32 = arith.constant 0 : i32
    %c0_i32_0 = arith.constant 0 : i32
    %c0_i32_1 = arith.constant 0 : i32
    return %c0_i32, %c0_i32_0 : i32, i32
  }
  func.func @transform_3(%arg0: i32) -> (i32, i32) {
    %c0_i32 = arith.constant 0 : i32
    %c0_i32_0 = arith.constant 0 : i32
    %c0_i32_1 = arith.constant 0 : i32
    return %c0_i32, %c0_i32_0 : i32, i32
  }
  func.func @transform_4(%arg0: i32) -> (i32, i32) {
    %c0_i32 = arith.constant 0 : i32
    %c0_i32_0 = arith.constant 0 : i32
    %c0_i32_1 = arith.constant 0 : i32
    return %c0_i32, %c0_i32_0 : i32, i32
  }
  func.func @transform_5(%arg0: i32) -> (i32, i32, i32) {
    %c0_i32 = arith.constant 0 : i32
    %c0_i32_0 = arith.constant 0 : i32
    %c0_i32_1 = arith.constant 0 : i32
    %c0_i32_2 = arith.constant 0 : i32
    return %c0_i32, %c0_i32_0, %c0_i32_1 : i32, i32, i32
  }
  func.func @transform_6(%arg0: i32) -> (i32, i32) {
    %c0_i32 = arith.constant 0 : i32
    %c0_i32_0 = arith.constant 0 : i32
    %c0_i32_1 = arith.constant 0 : i32
    return %c0_i32, %c0_i32_0 : i32, i32
  }
  func.func @transform_7(%arg0: i32) -> (i32, i32) {
    %c0_i32 = arith.constant 0 : i32
    %c0_i32_0 = arith.constant 0 : i32
    %c0_i32_1 = arith.constant 0 : i32
    return %c0_i32, %c0_i32_0 : i32, i32
  }
  func.func @transform_8(%arg0: i32) -> (i32, i32) {
    %c0_i32 = arith.constant 0 : i32
    %c0_i32_0 = arith.constant 0 : i32
    %c0_i32_1 = arith.constant 0 : i32
    return %c0_i32, %c0_i32_0 : i32, i32
  }
  func.func @transform_9(%arg0: i32) -> (i32, i32) {
    %c0_i32 = arith.constant 0 : i32
    %c0_i32_0 = arith.constant 0 : i32
    %c0_i32_1 = arith.constant 0 : i32
    return %c0_i32, %c0_i32_0 : i32, i32
  }
  func.func @transform_10(%arg0: i32) -> (i32, i32) {
    %c0_i32 = arith.constant 0 : i32
    %c0_i32_0 = arith.constant 0 : i32
    %c0_i32_1 = arith.constant 0 : i32
    return %c0_i32, %c0_i32_0 : i32, i32
  }
  func.func @transform_11(%arg0: i32) -> (i32, i32) {
    %c0_i32 = arith.constant 0 : i32
    %c0_i32_0 = arith.constant 0 : i32
    return %arg0, %c0_i32 : i32, i32
  }
}

</mosaic_0001>

<llo_original>
// kernel: model_sl1_forward.1
$region0: #{model_sl1_forward.1}
  #allocation0 [shape = 'u32[]', space=smem, size = 0x4, offset = 0x4, fixed_abs, tag = 'smem constant byte address 0x4 - core index']
  #allocation1 [shape = 'u32[144,128]{1,0:T(1,128)}', space=vmem, size = 0x12000, scoped, tag = 'internal scratch']
  %s0 = inlined_call_operand.vmem [shape: f32[8,100], index: 0, kind: input, shape index: {}]
  %s1 = inlined_call_operand.hbm [shape: f32[100,2560], index: 1, kind: input, shape index: {}]
  %s2 = inlined_call_operand.hbm [shape: f32[1,2560], index: 2, kind: input, shape index: {}]
  %s3 = inlined_call_operand.hbm [shape: f32[768,512], index: 3, kind: input, shape index: {}]
  %s4 = inlined_call_operand.hbm [shape: f32[1,512], index: 4, kind: input, shape index: {}]
  %s5 = inlined_call_operand.hbm [shape: f32[4,256,128], index: 5, kind: input, shape index: {}]
  %s6 = inlined_call_operand.hbm [shape: f32[1,128], index: 6, kind: input, shape index: {}]
  %s7 = inlined_call_operand.vmem [shape: f32[128,64], index: 7, kind: input, shape index: {}]
  %s8 = inlined_call_operand.hbm [shape: f32[1,64], index: 8, kind: input, shape index: {}]
  %s9 = inlined_call_operand.hbm [shape: f32[64,128], index: 9, kind: input, shape index: {}]
  %s10 = inlined_call_operand.hbm [shape: f32[1,128], index: 10, kind: input, shape index: {}]
  %s11 = inlined_call_operand.vmem [shape: f32[8,128], index: 11, kind: output, shape index: {}]
  %s12 = sld [smem:[#allocation0]]
  $region90: #{model_sl1_forward.1} parent=0
    _
  %s14 = ssub.s32 1, %s12
  %s15 = scalar_select 0, %s14, %s12
  $region1: #{model_sl1_forward.1} parent=0
    #allocation2 [shape = 'u8[1064960]{0}', space=vmem, size = 0x104000, scoped, tag = 'input window, operand 1, single buffered']
    #allocation3 [shape = 's32[1]{0}', space=sflag, size = 0x4, scoped, tag = 'scoped memory for model_sl1_forward.1']
    #allocation4 [shape = 'u8[10240]{0}', space=vmem, size = 0x2800, scoped, tag = 'input window, operand 2, single buffered']
    #allocation5 [shape = 's32[1]{0}', space=sflag, size = 0x4, scoped, tag = 'scoped memory for model_sl1_forward.1']
    #allocation6 [shape = 'u8[1572864]{0}', space=vmem, size = 0x180000, scoped, tag = 'input window, operand 3, single buffered']
    #allocation7 [shape = 'u8[2048]{0}', space=vmem, size = 0x800, scoped, tag = 'input window, operand 4, single buffered']
    #allocation8 [shape = 's32[1]{0}', space=sflag, size = 0x4, scoped, tag = 'scoped memory for model_sl1_forward.1']
    #allocation9 [shape = 'u8[524288]{0}', space=vmem, size = 0x80000, scoped, tag = 'input window, operand 5, single buffered']
    #allocation10 [shape = 'u8[512]{0}', space=vmem, size = 0x400, scoped, tag = 'input window, operand 6, single buffered']
    #allocation11 [shape = 's32[1]{0}', space=sflag, size = 0x4, scoped, tag = 'scoped memory for model_sl1_forward.1']
    #allocation12 [shape = 'u8[512]{0}', space=vmem, size = 0x400, scoped, tag = 'input window, operand 8, single buffered']
    #allocation13 [shape = 'u8[32768]{0}', space=vmem, size = 0x8000, scoped, tag = 'input window, operand 9, single buffered']
    #allocation14 [shape = 's32[1]{0}', space=sflag, size = 0x4, scoped, tag = 'scoped memory for model_sl1_forward.1']
    #allocation15 [shape = 'u8[512]{0}', space=vmem, size = 0x400, scoped, tag = 'input window, operand 10, single buffered']
    %16 = vsyncpa [#allocation3], 0
    %17 = vsyncpa [#allocation5], 0
    %18 = vsyncpa [#allocation8], 0
    %19 = vsyncpa [#allocation11], 0
    %20 = vsyncpa [#allocation14], 0
    // Predicated region
    $region2: #{model_sl1_forward.1} parent=1 // pred_check
      _
    $region3: #{model_sl1_forward.1} parent=1 // pred_check_branch
      %22 = sbr.rel (0) target = $region5
    $region4: #{model_sl1_forward.1} parent=1 // pred_region
      _
    $region5: #{model_sl1_forward.1} parent=1 // pred_fallthru
      _
    // Predicated region
    $region6: #{model_sl1_forward.1} parent=1 // pred_check
      _
    $region7: #{model_sl1_forward.1} parent=1 // pred_check_branch
      %24 = sbr.rel (0) target = $region9
    $region8: #{model_sl1_forward.1} parent=1 // pred_region
      %s26 = ssub.s32 33280, 33280
      %27 = vsyncadd [#allocation3], %s26
      %s28 = sshll.u32 [#allocation2], 4
      %s29 = int_to_ptr.vmem [resolvable:$true] %s28
      %34 = dma.hbm_to_vmem [thread:$0]  %s1, 33280, %s29, [#allocation3], 2560, 2560, 160
    $region9: #{model_sl1_forward.1} parent=1 // pred_fallthru
      _
    // Predicated region
    $region10: #{model_sl1_forward.1} parent=1 // pred_check
      _
    $region11: #{model_sl1_forward.1} parent=1 // pred_check_branch
      %36 = sbr.rel (0) target = $region13
    $region12: #{model_sl1_forward.1} parent=1 // pred_region
      %s38 = ssub.s32 320, 320
      %39 = vsyncadd [#allocation5], %s38
      %s41 = sshll.u32 [#allocation4], 4
      %s42 = int_to_ptr.vmem [resolvable:$true] %s41
      %44 = dma.hbm_to_vmem [thread:$0]  %s2, 320, %s42, [#allocation5]
    $region13: #{model_sl1_forward.1} parent=1 // pred_fallthru
      _
    // Predicated region
    $region14: #{model_sl1_forward.1} parent=1 // pred_check
      _
    $region15: #{model_sl1_forward.1} parent=1 // pred_check_branch
      %46 = sbr.rel (0) target = $region17
    $region16: #{model_sl1_forward.1} parent=1 // pred_region
      %s48 = ssub.s32 49152, 49152
      %49 = vsyncadd [#allocation5], %s48
      %s50 = sshll.u32 [#allocation6], 4
      %s51 = int_to_ptr.vmem [resolvable:$true] %s50
      %56 = dma.hbm_to_vmem [thread:$0]  %s3, 49152, %s51, [#allocation5], 512, 512, 32
    $region17: #{model_sl1_forward.1} parent=1 // pred_fallthru
      _
    // Predicated region
    $region18: #{model_sl1_forward.1} parent=1 // pred_check
      _
    $region19: #{model_sl1_forward.1} parent=1 // pred_check_branch
      %58 = sbr.rel (0) target = $region21
    $region20: #{model_sl1_forward.1} parent=1 // pred_region
      %s60 = ssub.s32 64, 64
      %61 = vsyncadd [#allocation8], %s60
      %s63 = sshll.u32 [#allocation7], 4
      %s64 = int_to_ptr.vmem [resolvable:$true] %s63
      %66 = dma.hbm_to_vmem [thread:$0]  %s4, 64, %s64, [#allocation8]
    $region21: #{model_sl1_forward.1} parent=1 // pred_fallthru
      _
    // Predicated region
    $region22: #{model_sl1_forward.1} parent=1 // pred_check
      _
    $region23: #{model_sl1_forward.1} parent=1 // pred_check_branch
      %68 = sbr.rel (0) target = $region25
    $region24: #{model_sl1_forward.1} parent=1 // pred_region
      %s70 = ssub.s32 16384, 16384
      %71 = vsyncadd [#allocation8], %s70
      %s72 = sshll.u32 [#allocation9], 4
      %s73 = int_to_ptr.vmem [resolvable:$true] %s72
      %78 = dma.hbm_to_vmem [thread:$0]  %s5, 16384, %s73, [#allocation8], 128, 128, 8
    $region25: #{model_sl1_forward.1} parent=1 // pred_fallthru
      _
    // Predicated region
    $region26: #{model_sl1_forward.1} parent=1 // pred_check
      _
    $region27: #{model_sl1_forward.1} parent=1 // pred_check_branch
      %80 = sbr.rel (0) target = $region29
    $region28: #{model_sl1_forward.1} parent=1 // pred_region
      %s82 = ssub.s32 16, 16
      %83 = vsyncadd [#allocation11], %s82
      %s85 = sshll.u32 [#allocation10], 4
      %s86 = int_to_ptr.vmem [resolvable:$true] %s85
      %88 = dma.hbm_to_vmem [thread:$0]  %s6, 16, %s86, [#allocation11]
    $region29: #{model_sl1_forward.1} parent=1 // pred_fallthru
      _
    // Predicated region
    $region30: #{model_sl1_forward.1} parent=1 // pred_check
      _
    $region31: #{model_sl1_forward.1} parent=1 // pred_check_branch
      %90 = sbr.rel (0) target = $region33
    $region32: #{model_sl1_forward.1} parent=1 // pred_region
      _
    $region33: #{model_sl1_forward.1} parent=1 // pred_fallthru
      _
    // Predicated region
    $region34: #{model_sl1_forward.1} parent=1 // pred_check
      _
    $region35: #{model_sl1_forward.1} parent=1 // pred_check_branch
      %92 = sbr.rel (0) target = $region37
    $region36: #{model_sl1_forward.1} parent=1 // pred_region
      %s94 = ssub.s32 16, 16
      %95 = vsyncadd [#allocation11], %s94
      %s97 = sshll.u32 [#allocation12], 4
      %s98 = int_to_ptr.vmem [resolvable:$true] %s97
      %100 = dma.hbm_to_vmem [thread:$0]  %s8, 16, %s98, [#allocation11]
    $region37: #{model_sl1_forward.1} parent=1 // pred_fallthru
      _
    // Predicated region
    $region38: #{model_sl1_forward.1} parent=1 // pred_check
      _
    $region39: #{model_sl1_forward.1} parent=1 // pred_check_branch
      %102 = sbr.rel (0) target = $region41
    $region40: #{model_sl1_forward.1} parent=1 // pred_region
      %s104 = ssub.s32 1024, 1024
      %105 = vsyncadd [#allocation14], %s104
      %s106 = sshll.u32 [#allocation13], 4
      %s107 = int_to_ptr.vmem [resolvable:$true] %s106
      %112 = dma.hbm_to_vmem [thread:$0]  %s9, 1024, %s107, [#allocation14], 128, 128, 8
    $region41: #{model_sl1_forward.1} parent=1 // pred_fallthru
      _
    // Predicated region
    $region42: #{model_sl1_forward.1} parent=1 // pred_check
      _
    $region43: #{model_sl1_forward.1} parent=1 // pred_check_branch
      %114 = sbr.rel (0) target = $region45
    $region44: #{model_sl1_forward.1} parent=1 // pred_region
      %s116 = ssub.s32 16, 16
      %117 = vsyncadd [#allocation14], %s116
      %s119 = sshll.u32 [#allocation15], 4
      %s120 = int_to_ptr.vmem [resolvable:$true] %s119
      %122 = dma.hbm_to_vmem [thread:$0]  %s10, 16, %s120, [#allocation14]
    $region45: #{model_sl1_forward.1} parent=1 // pred_fallthru
      _
    // Predicated region
    $region46: #{model_sl1_forward.1} parent=1 // pred_check
      _
    $region47: #{model_sl1_forward.1} parent=1 // pred_check_branch
      %124 = sbr.rel (0) target = $region49
    $region48: #{model_sl1_forward.1} parent=1 // pred_region
      %125 = dma.done [#allocation3], 33280
    $region49: #{model_sl1_forward.1} parent=1 // pred_fallthru
      _
    // Predicated region
    $region50: #{model_sl1_forward.1} parent=1 // pred_check
      _
    $region51: #{model_sl1_forward.1} parent=1 // pred_check_branch
      %127 = sbr.rel (0) target = $region53
    $region52: #{model_sl1_forward.1} parent=1 // pred_region
      %128 = dma.done [#allocation5], 320
    $region53: #{model_sl1_forward.1} parent=1 // pred_fallthru
      _
    // Predicated region
    $region54: #{model_sl1_forward.1} parent=1 // pred_check
      _
    $region55: #{model_sl1_forward.1} parent=1 // pred_check_branch
      %130 = sbr.rel (0) target = $region57
    $region56: #{model_sl1_forward.1} parent=1 // pred_region
      %131 = dma.done [#allocation5], 49152
    $region57: #{model_sl1_forward.1} parent=1 // pred_fallthru
      _
    // Predicated region
    $region58: #{model_sl1_forward.1} parent=1 // pred_check
      _
    $region59: #{model_sl1_forward.1} parent=1 // pred_check_branch
      %133 = sbr.rel (0) target = $region61
    $region60: #{model_sl1_forward.1} parent=1 // pred_region
      %134 = dma.done [#allocation8], 64
    $region61: #{model_sl1_forward.1} parent=1 // pred_fallthru
      _
    // Predicated region
    $region62: #{model_sl1_forward.1} parent=1 // pred_check
      _
    $region63: #{model_sl1_forward.1} parent=1 // pred_check_branch
      %136 = sbr.rel (0) target = $region65
    $region64: #{model_sl1_forward.1} parent=1 // pred_region
      %137 = dma.done [#allocation8], 16384
    $region65: #{model_sl1_forward.1} parent=1 // pred_fallthru
      _
    // Predicated region
    $region66: #{model_sl1_forward.1} parent=1 // pred_check
      _
    $region67: #{model_sl1_forward.1} parent=1 // pred_check_branch
      %139 = sbr.rel (0) target = $region69
    $region68: #{model_sl1_forward.1} parent=1 // pred_region
      %140 = dma.done [#allocation11], 16
    $region69: #{model_sl1_forward.1} parent=1 // pred_fallthru
      _
    // Predicated region
    $region70: #{model_sl1_forward.1} parent=1 // pred_check
      _
    $region71: #{model_sl1_forward.1} parent=1 // pred_check_branch
      %142 = sbr.rel (0) target = $region73
    $region72: #{model_sl1_forward.1} parent=1 // pred_region
      %143 = dma.done [#allocation11], 16
    $region73: #{model_sl1_forward.1} parent=1 // pred_fallthru
      _
    // Predicated region
    $region74: #{model_sl1_forward.1} parent=1 // pred_check
      _
    $region75: #{model_sl1_forward.1} parent=1 // pred_check_branch
      %145 = sbr.rel (0) target = $region77
    $region76: #{model_sl1_forward.1} parent=1 // pred_region
      %146 = dma.done [#allocation14], 1024
    $region77: #{model_sl1_forward.1} parent=1 // pred_fallthru
      _
    // Predicated region
    $region78: #{model_sl1_forward.1} parent=1 // pred_check
      _
    $region79: #{model_sl1_forward.1} parent=1 // pred_check_branch
      %148 = sbr.rel (0) target = $region81
    $region80: #{model_sl1_forward.1} parent=1 // pred_region
      %149 = dma.done [#allocation14], 16
    $region81: #{model_sl1_forward.1} parent=1 // pred_fallthru
      _
    %v150 = vld [vmem:[%s0] sm:$0xff]
    %v151 = vld [vmem:[#allocation2] sm:$0xff]
    %v152 = vld [vmem:[#allocation2 + $0x8] sm:$0xff]
    %v153 = vld [vmem:[#allocation2 + $0x10] sm:$0xff]
    %v154 = vld [vmem:[#allocation2 + $0x18] sm:$0xff]
    %v155 = vld [vmem:[#allocation2 + $0x20] sm:$0xff]
    %v156 = vld [vmem:[#allocation2 + $0x28] sm:$0xff]
    %v157 = vld [vmem:[#allocation2 + $0x30] sm:$0xff]
    %v158 = vld [vmem:[#allocation2 + $0x38] sm:$0xff]
    %v159 = vld [vmem:[#allocation2 + $0x40] sm:$0xff]
    %v160 = vld [vmem:[#allocation2 + $0x48] sm:$0xff]
    %v161 = vld [vmem:[#allocation2 + $0x50] sm:$0xff]
    %v162 = vld [vmem:[#allocation2 + $0x58] sm:$0xff]
    %v163 = vld [vmem:[#allocation2 + $0x60] sm:$0xff]
    %v164 = vld [vmem:[#allocation2 + $0x68] sm:$0xff]
    %v165 = vld [vmem:[#allocation2 + $0x70] sm:$0xff]
    %v166 = vld [vmem:[#allocation2 + $0x78] sm:$0xff]
    %v167 = vld [vmem:[#allocation2 + $0x80] sm:$0xff]
    %v168 = vld [vmem:[#allocation2 + $0x88] sm:$0xff]
    %v169 = vld [vmem:[#allocation2 + $0x90] sm:$0xff]
    %v170 = vld [vmem:[#allocation2 + $0x98] sm:$0xff]
    %v171 = vld [vmem:[#allocation2 + $0xa0] sm:$0xff]
    %v172 = vld [vmem:[#allocation2 + $0xa8] sm:$0xff]
    %v173 = vld [vmem:[#allocation2 + $0xb0] sm:$0xff]
    %v174 = vld [vmem:[#allocation2 + $0xb8] sm:$0xff]
    %v175 = vld [vmem:[#allocation2 + $0xc0] sm:$0xff]
    %v176 = vld [vmem:[#allocation2 + $0xc8] sm:$0xff]
    %v177 = vld [vmem:[#allocation2 + $0xd0] sm:$0xff]
    %v178 = vld [vmem:[#allocation2 + $0xd8] sm:$0xff]
    %v179 = vld [vmem:[#allocation2 + $0xe0] sm:$0xff]
    %v180 = vld [vmem:[#allocation2 + $0xe8] sm:$0xff]
    %v181 = vld [vmem:[#allocation2 + $0xf0] sm:$0xff]
    %v182 = vld [vmem:[#allocation2 + $0xf8] sm:$0xff]
    %v183 = vld [vmem:[#allocation2 + $0x100] sm:$0xff]
    %v184 = vld [vmem:[#allocation2 + $0x108] sm:$0xff]
    %v185 = vld [vmem:[#allocation2 + $0x110] sm:$0xff]
    %v186 = vld [vmem:[#allocation2 + $0x118] sm:$0xff]
    %v187 = vld [vmem:[#allocation2 + $0x120] sm:$0xff]
    %v188 = vld [vmem:[#allocation2 + $0x128] sm:$0xff]
    %v189 = vld [vmem:[#allocation2 + $0x130] sm:$0xff]
    %v190 = vld [vmem:[#allocation2 + $0x138] sm:$0xff]
    %v191 = vld [vmem:[#allocation2 + $0x140] sm:$0xff]
    %v192 = vld [vmem:[#allocation2 + $0x148] sm:$0xff]
    %v193 = vld [vmem:[#allocation2 + $0x150] sm:$0xff]
    %v194 = vld [vmem:[#allocation2 + $0x158] sm:$0xff]
    %v195 = vld [vmem:[#allocation2 + $0x160] sm:$0xff]
    %v196 = vld [vmem:[#allocation2 + $0x168] sm:$0xff]
    %v197 = vld [vmem:[#allocation2 + $0x170] sm:$0xff]
    %v198 = vld [vmem:[#allocation2 + $0x178] sm:$0xff]
    %v199 = vld [vmem:[#allocation2 + $0x180] sm:$0xff]
    %v200 = vld [vmem:[#allocation2 + $0x188] sm:$0xff]
    %v201 = vld [vmem:[#allocation2 + $0x190] sm:$0xff]
    %v202 = vld [vmem:[#allocation2 + $0x198] sm:$0xff]
    %v203 = vld [vmem:[#allocation2 + $0x1a0] sm:$0xff]
    %v204 = vld [vmem:[#allocation2 + $0x1a8] sm:$0xff]
    %v205 = vld [vmem:[#allocation2 + $0x1b0] sm:$0xff]
    %v206 = vld [vmem:[#allocation2 + $0x1b8] sm:$0xff]
    %v207 = vld [vmem:[#allocation2 + $0x1c0] sm:$0xff]
    %v208 = vld [vmem:[#allocation2 + $0x1c8] sm:$0xff]
    %v209 = vld [vmem:[#allocation2 + $0x1d0] sm:$0xff]
    %v210 = vld [vmem:[#allocation2 + $0x1d8] sm:$0xff]
    %v211 = vld [vmem:[#allocation2 + $0x1e0] sm:$0xff]
    %v212 = vld [vmem:[#allocation2 + $0x1e8] sm:$0xff]
    %v213 = vld [vmem:[#allocation2 + $0x1f0] sm:$0xff]
    %v214 = vld [vmem:[#allocation2 + $0x1f8] sm:$0xff]
    %v215 = vld [vmem:[#allocation2 + $0x200] sm:$0xff]
    %v216 = vld [vmem:[#allocation2 + $0x208] sm:$0xff]
    %v217 = vld [vmem:[#allocation2 + $0x210] sm:$0xff]
    %v218 = vld [vmem:[#allocation2 + $0x218] sm:$0xff]
    %v219 = vld [vmem:[#allocation2 + $0x220] sm:$0xff]
    %v220 = vld [vmem:[#allocation2 + $0x228] sm:$0xff]
    %v221 = vld [vmem:[#allocation2 + $0x230] sm:$0xff]
    %v222 = vld [vmem:[#allocation2 + $0x238] sm:$0xff]
    %v223 = vld [vmem:[#allocation2 + $0x240] sm:$0xff]
    %v224 = vld [vmem:[#allocation2 + $0x248] sm:$0xff]
    %v225 = vld [vmem:[#allocation2 + $0x250] sm:$0xff]
    %v226 = vld [vmem:[#allocation2 + $0x258] sm:$0xff]
    %v227 = vld [vmem:[#allocation2 + $0x260] sm:$0xff]
    %v228 = vld [vmem:[#allocation2 + $0x268] sm:$0xff]
    %v229 = vld [vmem:[#allocation2 + $0x270] sm:$0xff]
    %v230 = vld [vmem:[#allocation2 + $0x278] sm:$0xff]
    %v231 = vld [vmem:[#allocation2 + $0x280] sm:$0xff]
    %v232 = vld [vmem:[#allocation2 + $0x288] sm:$0xff]
    %v233 = vld [vmem:[#allocation2 + $0x290] sm:$0xff]
    %v234 = vld [vmem:[#allocation2 + $0x298] sm:$0xff]
    %v235 = vld [vmem:[#allocation2 + $0x2a0] sm:$0xff]
    %v236 = vld [vmem:[#allocation2 + $0x2a8] sm:$0xff]
    %v237 = vld [vmem:[#allocation2 + $0x2b0] sm:$0xff]
    %v238 = vld [vmem:[#allocation2 + $0x2b8] sm:$0xff]
    %v239 = vld [vmem:[#allocation2 + $0x2c0] sm:$0xff]
    %v240 = vld [vmem:[#allocation2 + $0x2c8] sm:$0xff]
    %v241 = vld [vmem:[#allocation2 + $0x2d0] sm:$0xff]
    %v242 = vld [vmem:[#allocation2 + $0x2d8] sm:$0xff]
    %v243 = vld [vmem:[#allocation2 + $0x2e0] sm:$0xff]
    %v244 = vld [vmem:[#allocation2 + $0x2e8] sm:$0xff]
    %v245 = vld [vmem:[#allocation2 + $0x2f0] sm:$0xff]
    %v246 = vld [vmem:[#allocation2 + $0x2f8] sm:$0xff]
    %v247 = vld [vmem:[#allocation2 + $0x300] sm:$0xff]
    %v248 = vld [vmem:[#allocation2 + $0x308] sm:$0xff]
    %v249 = vld [vmem:[#allocation2 + $0x310] sm:$0xff]
    %v250 = vld [vmem:[#allocation2 + $0x318] sm:$0xff]
    %v251 = vld [vmem:[#allocation2 + $0x320] sm:$0xff]
    %v252 = vld [vmem:[#allocation2 + $0x328] sm:$0xff]
    %v253 = vld [vmem:[#allocation2 + $0x330] sm:$0xff]
    %v254 = vld [vmem:[#allocation2 + $0x338] sm:$0xff]
    %v255 = vld [vmem:[#allocation2 + $0x340] sm:$0xff]
    %v256 = vld [vmem:[#allocation2 + $0x348] sm:$0xff]
    %v257 = vld [vmem:[#allocation2 + $0x350] sm:$0xff]
    %v258 = vld [vmem:[#allocation2 + $0x358] sm:$0xff]
    %v259 = vld [vmem:[#allocation2 + $0x360] sm:$0xff]
    %v260 = vld [vmem:[#allocation2 + $0x368] sm:$0xff]
    %v261 = vld [vmem:[#allocation2 + $0x370] sm:$0xff]
    %v262 = vld [vmem:[#allocation2 + $0x378] sm:$0xff]
    %v263 = vld [vmem:[#allocation2 + $0x380] sm:$0xff]
    %v264 = vld [vmem:[#allocation2 + $0x388] sm:$0xff]
    %v265 = vld [vmem:[#allocation2 + $0x390] sm:$0xff]
    %v266 = vld [vmem:[#allocation2 + $0x398] sm:$0xff]
    %v267 = vld [vmem:[#allocation2 + $0x3a0] sm:$0xff]
    %v268 = vld [vmem:[#allocation2 + $0x3a8] sm:$0xff]
    %v269 = vld [vmem:[#allocation2 + $0x3b0] sm:$0xff]
    %v270 = vld [vmem:[#allocation2 + $0x3b8] sm:$0xff]
    %v271 = vld [vmem:[#allocation2 + $0x3c0] sm:$0xff]
    %v272 = vld [vmem:[#allocation2 + $0x3c8] sm:$0xff]
    %v273 = vld [vmem:[#allocation2 + $0x3d0] sm:$0xff]
    %v274 = vld [vmem:[#allocation2 + $0x3d8] sm:$0xff]
    %v275 = vld [vmem:[#allocation2 + $0x3e0] sm:$0xff]
    %v276 = vld [vmem:[#allocation2 + $0x3e8] sm:$0xff]
    %v277 = vld [vmem:[#allocation2 + $0x3f0] sm:$0xff]
    %v278 = vld [vmem:[#allocation2 + $0x3f8] sm:$0xff]
    %v279 = vld [vmem:[#allocation2 + $0x400] sm:$0xff]
    %v280 = vld [vmem:[#allocation2 + $0x408] sm:$0xff]
    %v281 = vld [vmem:[#allocation2 + $0x410] sm:$0xff]
    %v282 = vld [vmem:[#allocation2 + $0x418] sm:$0xff]
    %v283 = vld [vmem:[#allocation2 + $0x420] sm:$0xff]
    %v284 = vld [vmem:[#allocation2 + $0x428] sm:$0xff]
    %v285 = vld [vmem:[#allocation2 + $0x430] sm:$0xff]
    %v286 = vld [vmem:[#allocation2 + $0x438] sm:$0xff]
    %v287 = vld [vmem:[#allocation2 + $0x440] sm:$0xff]
    %v288 = vld [vmem:[#allocation2 + $0x448] sm:$0xff]
    %v289 = vld [vmem:[#allocation2 + $0x450] sm:$0xff]
    %v290 = vld [vmem:[#allocation2 + $0x458] sm:$0xff]
    %v291 = vld [vmem:[#allocation2 + $0x460] sm:$0xff]
    %v292 = vld [vmem:[#allocation2 + $0x468] sm:$0xff]
    %v293 = vld [vmem:[#allocation2 + $0x470] sm:$0xff]
    %v294 = vld [vmem:[#allocation2 + $0x478] sm:$0xff]
    %v295 = vld [vmem:[#allocation2 + $0x480] sm:$0xff]
    %v296 = vld [vmem:[#allocation2 + $0x488] sm:$0xff]
    %v297 = vld [vmem:[#allocation2 + $0x490] sm:$0xff]
    %v298 = vld [vmem:[#allocation2 + $0x498] sm:$0xff]
    %v299 = vld [vmem:[#allocation2 + $0x4a0] sm:$0xff]
    %v300 = vld [vmem:[#allocation2 + $0x4a8] sm:$0xff]
    %v301 = vld [vmem:[#allocation2 + $0x4b0] sm:$0xff]
    %v302 = vld [vmem:[#allocation2 + $0x4b8] sm:$0xff]
    %v303 = vld [vmem:[#allocation2 + $0x4c0] sm:$0xff]
    %v304 = vld [vmem:[#allocation2 + $0x4c8] sm:$0xff]
    %v305 = vld [vmem:[#allocation2 + $0x4d0] sm:$0xff]
    %v306 = vld [vmem:[#allocation2 + $0x4d8] sm:$0xff]
    %v307 = vld [vmem:[#allocation2 + $0x4e0] sm:$0xff]
    %v308 = vld [vmem:[#allocation2 + $0x4e8] sm:$0xff]
    %v309 = vld [vmem:[#allocation2 + $0x4f0] sm:$0xff]
    %v310 = vld [vmem:[#allocation2 + $0x4f8] sm:$0xff]
    %v311 = vld [vmem:[#allocation2 + $0x500] sm:$0xff]
    %v312 = vld [vmem:[#allocation2 + $0x508] sm:$0xff]
    %v313 = vld [vmem:[#allocation2 + $0x510] sm:$0xff]
    %v314 = vld [vmem:[#allocation2 + $0x518] sm:$0xff]
    %v315 = vld [vmem:[#allocation2 + $0x520] sm:$0xff]
    %v316 = vld [vmem:[#allocation2 + $0x528] sm:$0xff]
    %v317 = vld [vmem:[#allocation2 + $0x530] sm:$0xff]
    %v318 = vld [vmem:[#allocation2 + $0x538] sm:$0xff]
    %v319 = vld [vmem:[#allocation2 + $0x540] sm:$0xff]
    %v320 = vld [vmem:[#allocation2 + $0x548] sm:$0xff]
    %v321 = vld [vmem:[#allocation2 + $0x550] sm:$0xff]
    %v322 = vld [vmem:[#allocation2 + $0x558] sm:$0xff]
    %v323 = vld [vmem:[#allocation2 + $0x560] sm:$0xff]
    %v324 = vld [vmem:[#allocation2 + $0x568] sm:$0xff]
    %v325 = vld [vmem:[#allocation2 + $0x570] sm:$0xff]
    %v326 = vld [vmem:[#allocation2 + $0x578] sm:$0xff]
    %v327 = vld [vmem:[#allocation2 + $0x580] sm:$0xff]
    %v328 = vld [vmem:[#allocation2 + $0x588] sm:$0xff]
    %v329 = vld [vmem:[#allocation2 + $0x590] sm:$0xff]
    %v330 = vld [vmem:[#allocation2 + $0x598] sm:$0xff]
    %v331 = vld [vmem:[#allocation2 + $0x5a0] sm:$0xff]
    %v332 = vld [vmem:[#allocation2 + $0x5a8] sm:$0xff]
    %v333 = vld [vmem:[#allocation2 + $0x5b0] sm:$0xff]
    %v334 = vld [vmem:[#allocation2 + $0x5b8] sm:$0xff]
    %v335 = vld [vmem:[#allocation2 + $0x5c0] sm:$0xff]
    %v336 = vld [vmem:[#allocation2 + $0x5c8] sm:$0xff]
    %v337 = vld [vmem:[#allocation2 + $0x5d0] sm:$0xff]
    %v338 = vld [vmem:[#allocation2 + $0x5d8] sm:$0xff]
    %v339 = vld [vmem:[#allocation2 + $0x5e0] sm:$0xff]
    %v340 = vld [vmem:[#allocation2 + $0x5e8] sm:$0xff]
    %v341 = vld [vmem:[#allocation2 + $0x5f0] sm:$0xff]
    %v342 = vld [vmem:[#allocation2 + $0x5f8] sm:$0xff]
    %v343 = vld [vmem:[#allocation2 + $0x600] sm:$0xff]
    %v344 = vld [vmem:[#allocation2 + $0x608] sm:$0xff]
    %v345 = vld [vmem:[#allocation2 + $0x610] sm:$0xff]
    %v346 = vld [vmem:[#allocation2 + $0x618] sm:$0xff]
    %v347 = vld [vmem:[#allocation2 + $0x620] sm:$0xff]
    %v348 = vld [vmem:[#allocation2 + $0x628] sm:$0xff]
    %v349 = vld [vmem:[#allocation2 + $0x630] sm:$0xff]
    %v350 = vld [vmem:[#allocation2 + $0x638] sm:$0xff]
    %v351 = vld [vmem:[#allocation2 + $0x640] sm:$0xff]
    %v352 = vld [vmem:[#allocation2 + $0x648] sm:$0xff]
    %v353 = vld [vmem:[#allocation2 + $0x650] sm:$0xff]
    %v354 = vld [vmem:[#allocation2 + $0x658] sm:$0xff]
    %v355 = vld [vmem:[#allocation2 + $0x660] sm:$0xff]
    %v356 = vld [vmem:[#allocation2 + $0x668] sm:$0xff]
    %v357 = vld [vmem:[#allocation2 + $0x670] sm:$0xff]
    %v358 = vld [vmem:[#allocation2 + $0x678] sm:$0xff]
    %v359 = vld [vmem:[#allocation2 + $0x680] sm:$0xff]
    %v360 = vld [vmem:[#allocation2 + $0x688] sm:$0xff]
    %v361 = vld [vmem:[#allocation2 + $0x690] sm:$0xff]
    %v362 = vld [vmem:[#allocation2 + $0x698] sm:$0xff]
    %v363 = vld [vmem:[#allocation2 + $0x6a0] sm:$0xff]
    %v364 = vld [vmem:[#allocation2 + $0x6a8] sm:$0xff]
    %v365 = vld [vmem:[#allocation2 + $0x6b0] sm:$0xff]
    %v366 = vld [vmem:[#allocation2 + $0x6b8] sm:$0xff]
    %v367 = vld [vmem:[#allocation2 + $0x6c0] sm:$0xff]
    %v368 = vld [vmem:[#allocation2 + $0x6c8] sm:$0xff]
    %v369 = vld [vmem:[#allocation2 + $0x6d0] sm:$0xff]
    %v370 = vld [vmem:[#allocation2 + $0x6d8] sm:$0xff]
    %v371 = vld [vmem:[#allocation2 + $0x6e0] sm:$0xff]
    %v372 = vld [vmem:[#allocation2 + $0x6e8] sm:$0xff]
    %v373 = vld [vmem:[#allocation2 + $0x6f0] sm:$0xff]
    %v374 = vld [vmem:[#allocation2 + $0x6f8] sm:$0xff]
    %v375 = vld [vmem:[#allocation2 + $0x700] sm:$0xff]
    %v376 = vld [vmem:[#allocation2 + $0x708] sm:$0xff]
    %v377 = vld [vmem:[#allocation2 + $0x710] sm:$0xff]
    %v378 = vld [vmem:[#allocation2 + $0x718] sm:$0xff]
    %v379 = vld [vmem:[#allocation2 + $0x720] sm:$0xff]
    %v380 = vld [vmem:[#allocation2 + $0x728] sm:$0xff]
    %v381 = vld [vmem:[#allocation2 + $0x730] sm:$0xff]
    %v382 = vld [vmem:[#allocation2 + $0x738] sm:$0xff]
    %v383 = vld [vmem:[#allocation2 + $0x740] sm:$0xff]
    %v384 = vld [vmem:[#allocation2 + $0x748] sm:$0xff]
    %v385 = vld [vmem:[#allocation2 + $0x750] sm:$0xff]
    %v386 = vld [vmem:[#allocation2 + $0x758] sm:$0xff]
    %v387 = vld [vmem:[#allocation2 + $0x760] sm:$0xff]
    %v388 = vld [vmem:[#allocation2 + $0x768] sm:$0xff]
    %v389 = vld [vmem:[#allocation2 + $0x770] sm:$0xff]
    %v390 = vld [vmem:[#allocation2 + $0x778] sm:$0xff]
    %v391 = vld [vmem:[#allocation2 + $0x780] sm:$0xf]
    %v392 = vld [vmem:[#allocation2 + $0x788] sm:$0xf]
    %v393 = vld [vmem:[#allocation2 + $0x790] sm:$0xf]
    %v394 = vld [vmem:[#allocation2 + $0x798] sm:$0xf]
    %v395 = vld [vmem:[#allocation2 + $0x7a0] sm:$0xf]
    %v396 = vld [vmem:[#allocation2 + $0x7a8] sm:$0xf]
    %v397 = vld [vmem:[#allocation2 + $0x7b0] sm:$0xf]
    %v398 = vld [vmem:[#allocation2 + $0x7b8] sm:$0xf]
    %v399 = vld [vmem:[#allocation2 + $0x7c0] sm:$0xf]
    %v400 = vld [vmem:[#allocation2 + $0x7c8] sm:$0xf]
    %v401 = vld [vmem:[#allocation2 + $0x7d0] sm:$0xf]
    %v402 = vld [vmem:[#allocation2 + $0x7d8] sm:$0xf]
    %v403 = vld [vmem:[#allocation2 + $0x7e0] sm:$0xf]
    %v404 = vld [vmem:[#allocation2 + $0x7e8] sm:$0xf]
    %v405 = vld [vmem:[#allocation2 + $0x7f0] sm:$0xf]
    %v406 = vld [vmem:[#allocation2 + $0x7f8] sm:$0xf]
    %v407 = vld [vmem:[#allocation2 + $0x800] sm:$0xf]
    %v408 = vld [vmem:[#allocation2 + $0x808] sm:$0xf]
    %v409 = vld [vmem:[#allocation2 + $0x810] sm:$0xf]
    %v410 = vld [vmem:[#allocation2 + $0x818] sm:$0xf]
    %v411 = vld [vmem:[#allocation4] sm:$0xff]
    %v412 = vld [vmem:[#allocation4 + $0x8] sm:$0xff]
    %v413 = vld [vmem:[#allocation4 + $0x10] sm:$0xf]
    %v417 = vlaneseq
    %v418 = vshrl.u32 %v417, 7
    %v419 = vsub.s32 0, %v418
    %v420 = vrot.slane %v411, %v419
    %v421 = vlaneseq
    %v422 = vshrl.u32 %v421, 7
    %v423 = vsub.s32 1, %v422
    %v424 = vrot.slane %v411, %v423
    %v425 = vlaneseq
    %v426 = vshrl.u32 %v425, 7
    %v427 = vsub.s32 2, %v426
    %v428 = vrot.slane %v411, %v427
    %v429 = vlaneseq
    %v430 = vshrl.u32 %v429, 7
    %v431 = vsub.s32 3, %v430
    %v432 = vrot.slane %v411, %v431
    %v433 = vlaneseq
    %v434 = vshrl.u32 %v433, 7
    %v435 = vsub.s32 4, %v434
    %v436 = vrot.slane %v411, %v435
    %v437 = vlaneseq
    %v438 = vshrl.u32 %v437, 7
    %v439 = vsub.s32 5, %v438
    %v440 = vrot.slane %v411, %v439
    %v441 = vlaneseq
    %v442 = vshrl.u32 %v441, 7
    %v443 = vsub.s32 6, %v442
    %v444 = vrot.slane %v411, %v443
    %v445 = vlaneseq
    %v446 = vshrl.u32 %v445, 7
    %v447 = vsub.s32 7, %v446
    %v448 = vrot.slane %v411, %v447
    %v449 = vlaneseq
    %v450 = vshrl.u32 %v449, 7
    %v451 = vsub.s32 0, %v450
    %v452 = vrot.slane %v412, %v451
    %v453 = vlaneseq
    %v454 = vshrl.u32 %v453, 7
    %v455 = vsub.s32 1, %v454
    %v456 = vrot.slane %v412, %v455
    %v457 = vlaneseq
    %v458 = vshrl.u32 %v457, 7
    %v459 = vsub.s32 2, %v458
    %v460 = vrot.slane %v412, %v459
    %v461 = vlaneseq
    %v462 = vshrl.u32 %v461, 7
    %v463 = vsub.s32 3, %v462
    %v464 = vrot.slane %v412, %v463
    %v465 = vlaneseq
    %v466 = vshrl.u32 %v465, 7
    %v467 = vsub.s32 4, %v466
    %v468 = vrot.slane %v412, %v467
    %v469 = vlaneseq
    %v470 = vshrl.u32 %v469, 7
    %v471 = vsub.s32 5, %v470
    %v472 = vrot.slane %v412, %v471
    %v473 = vlaneseq
    %v474 = vshrl.u32 %v473, 7
    %v475 = vsub.s32 6, %v474
    %v476 = vrot.slane %v412, %v475
    %v477 = vlaneseq
    %v478 = vshrl.u32 %v477, 7
    %v479 = vsub.s32 7, %v478
    %v480 = vrot.slane %v412, %v479
    %v481 = vlaneseq
    %v482 = vshrl.u32 %v481, 7
    %v483 = vsub.s32 0, %v482
    %v484 = vrot.slane %v413, %v483
    %v485 = vlaneseq
    %v486 = vshrl.u32 %v485, 7
    %v487 = vsub.s32 1, %v486
    %v488 = vrot.slane %v413, %v487
    %v489 = vlaneseq
    %v490 = vshrl.u32 %v489, 7
    %v491 = vsub.s32 2, %v490
    %v492 = vrot.slane %v413, %v491
    %v493 = vlaneseq
    %v494 = vshrl.u32 %v493, 7
    %v495 = vsub.s32 3, %v494
    %v496 = vrot.slane %v413, %v495
    %vm517 = vcmask 818176
    %v519 = vsel %vm517, %v150, 0
    %vm521 = vcmask 1043456
    %v523 = vsel %vm521, %v391, 0
    %v526 = vsel %vm521, %v392, 0
    %v529 = vsel %vm521, %v393, 0
    %v532 = vsel %vm521, %v394, 0
    %v535 = vsel %vm521, %v395, 0
    %v538 = vsel %vm521, %v396, 0
    %v541 = vsel %vm521, %v397, 0
    %v544 = vsel %vm521, %v398, 0
    %v547 = vsel %vm521, %v399, 0
    %v550 = vsel %vm521, %v400, 0
    %v553 = vsel %vm521, %v401, 0
    %v556 = vsel %vm521, %v402, 0
    %v559 = vsel %vm521, %v403, 0
    %v562 = vsel %vm521, %v404, 0
    %v565 = vsel %vm521, %v405, 0
    %v568 = vsel %vm521, %v406, 0
    %v571 = vsel %vm521, %v407, 0
    %v574 = vsel %vm521, %v408, 0
    %v577 = vsel %vm521, %v409, 0
    %v580 = vsel %vm521, %v410, 0
    %582 = vmatprep.subr.mxu0 %v152
    %583 = vmatpush1.msra.mxu0 %v151
    %584 = vmatprep.subr.mxu0 %v172
    %585 = vmatpush1.msra.mxu0 %v171
    %586 = vmatprep.subr.mxu0 %v192
    %587 = vmatpush1.msra.mxu0 %v191
    %588 = vmatprep.subr.mxu0 %v212
    %589 = vmatpush1.msra.mxu0 %v211
    %590 = vmatprep.subr.mxu0 %v232
    %591 = vmatpush1.msra.mxu0 %v231
    %592 = vmatprep.subr.mxu0 %v252
    %593 = vmatpush1.msra.mxu0 %v251
    %594 = vmatprep.subr.mxu0 %v272
    %595 = vmatpush1.msra.mxu0 %v271
    %596 = vmatprep.subr.mxu0 %v292
    %597 = vmatpush1.msra.mxu0 %v291
    %598 = vmatprep.subr.mxu0 %v312
    %599 = vmatpush1.msra.mxu0 %v311
    %600 = vmatprep.subr.mxu0 %v332
    %601 = vmatpush1.msra.mxu0 %v331
    %602 = vmatprep.subr.mxu0 %v352
    %603 = vmatpush1.msra.mxu0 %v351
    %604 = vmatprep.subr.mxu0 %v372
    %605 = vmatpush1.msra.mxu0 %v371
    %606 = vmatprep.subr.mxu0 %v526
    %607 = vmatpush1.msra.mxu0 %v523
    %608 = vmatprep.subr.mxu0 0.0
    %609 = vmatpush1.msra.mxu0 0.0
    %610 = vmatprep.subr.mxu0 0.0
    %611 = vmatpush1.msra.mxu0 0.0
    %612 = vmatprep.subr.mxu0 0.0
    %613 = vmatpush1.msra.mxu0 0.0
    %614 = vmatprep.subr.mxu0 0.0
    %615 = vmatpush1.msra.mxu0 0.0
    %616 = vmatprep.subr.mxu0 0.0
    %617 = vmatpush1.msra.mxu0 0.0
    %618 = vmatprep.subr.mxu0 0.0
    %619 = vmatpush1.msra.mxu0 0.0
    %620 = vmatprep.subr.mxu0 0.0
    %621 = vmatpush1.msra.mxu0 0.0
    %622 = vmatprep.subr.mxu0 0.0
    %623 = vmatpush1.msra.mxu0 0.0
    %624 = vmatprep.subr.mxu0 0.0
    %625 = vmatpush1.msra.mxu0 0.0
    %626 = vmatprep.subr.mxu0 0.0
    %627 = vmatpush1.msra.mxu0 0.0
    %628 = vmatprep.subr.mxu0 0.0
    %629 = vmatpush1.msra.mxu0 0.0
    %630 = vmatprep.subr.mxu0 0.0
    %631 = vmatpush1.msra.mxu0 0.0
    %632 = vmatprep.subr.mxu0 0.0
    %633 = vmatpush1.msra.mxu0 0.0
    %634 = vmatprep.subr.mxu0 0.0
    %635 = vmatpush1.msra.mxu0 0.0
    %636 = vmatprep.subr.mxu0 0.0
    %637 = vmatpush1.msra.mxu0 0.0
    %638 = vmatprep.subr.mxu0 0.0
    %639 = vmatpush1.msra.mxu0 0.0
    %640 = vmatprep.subr.mxu0 0.0
    %641 = vmatpush1.msra.mxu0 0.0
    %642 = vmatprep.subr.mxu0 0.0
    %643 = vmatpush1.msra.mxu0 0.0
    %644 = vmatprep.subr.mxu0 0.0
    %645 = vmatpush1.msra.mxu0 0.0
    %646 = vmatprep.mubr.f32.mxu0 0.0
    %647 = vmatmul.mubr.f32.gmra.mrb[0].mxu0 %v519
    %v648 = vpop.f32.mrb[0].mxu0
    %v649 = vadd.f32 %v420, %v648
    %v650 = vpop.f32.mrb[0].mxu0
    %v651 = vadd.f32 %v424, %v650
    %652 = vdwg.mxu0
    %653 = vmatprep.subr.mxu0 %v154
    %654 = vmatpush1.msra.mxu0 %v153
    %655 = vmatprep.subr.mxu0 %v174
    %656 = vmatpush1.msra.mxu0 %v173
    %657 = vmatprep.subr.mxu0 %v194
    %658 = vmatpush1.msra.mxu0 %v193
    %659 = vmatprep.subr.mxu0 %v214
    %660 = vmatpush1.msra.mxu0 %v213
    %661 = vmatprep.subr.mxu0 %v234
    %662 = vmatpush1.msra.mxu0 %v233
    %663 = vmatprep.subr.mxu0 %v254
    %664 = vmatpush1.msra.mxu0 %v253
    %665 = vmatprep.subr.mxu0 %v274
    %666 = vmatpush1.msra.mxu0 %v273
    %667 = vmatprep.subr.mxu0 %v294
    %668 = vmatpush1.msra.mxu0 %v293
    %669 = vmatprep.subr.mxu0 %v314
    %670 = vmatpush1.msra.mxu0 %v313
    %671 = vmatprep.subr.mxu0 %v334
    %672 = vmatpush1.msra.mxu0 %v333
    %673 = vmatprep.subr.mxu0 %v354
    %674 = vmatpush1.msra.mxu0 %v353
    %675 = vmatprep.subr.mxu0 %v374
    %676 = vmatpush1.msra.mxu0 %v373
    %677 = vmatprep.subr.mxu0 %v532
    %678 = vmatpush1.msra.mxu0 %v529
    %679 = vmatprep.subr.mxu0 0.0
    %680 = vmatpush1.msra.mxu0 0.0
    %681 = vmatprep.subr.mxu0 0.0
    %682 = vmatpush1.msra.mxu0 0.0
    %683 = vmatprep.subr.mxu0 0.0
    %684 = vmatpush1.msra.mxu0 0.0
    %685 = vmatprep.subr.mxu0 0.0
    %686 = vmatpush1.msra.mxu0 0.0
    %687 = vmatprep.subr.mxu0 0.0
    %688 = vmatpush1.msra.mxu0 0.0
    %689 = vmatprep.subr.mxu0 0.0
    %690 = vmatpush1.msra.mxu0 0.0
    %691 = vmatprep.subr.mxu0 0.0
    %692 = vmatpush1.msra.mxu0 0.0
    %693 = vmatprep.subr.mxu0 0.0
    %694 = vmatpush1.msra.mxu0 0.0
    %695 = vmatprep.subr.mxu0 0.0
    %696 = vmatpush1.msra.mxu0 0.0
    %697 = vmatprep.subr.mxu0 0.0
    %698 = vmatpush1.msra.mxu0 0.0
    %699 = vmatprep.subr.mxu0 0.0
    %700 = vmatpush1.msra.mxu0 0.0
    %701 = vmatprep.subr.mxu0 0.0
    %702 = vmatpush1.msra.mxu0 0.0
    %703 = vmatprep.subr.mxu0 0.0
    %704 = vmatpush1.msra.mxu0 0.0
    %705 = vmatprep.subr.mxu0 0.0
    %706 = vmatpush1.msra.mxu0 0.0
    %707 = vmatprep.subr.mxu0 0.0
    %708 = vmatpush1.msra.mxu0 0.0
    %709 = vmatprep.subr.mxu0 0.0
    %710 = vmatpush1.msra.mxu0 0.0
    %711 = vmatprep.subr.mxu0 0.0
    %712 = vmatpush1.msra.mxu0 0.0
    %713 = vmatprep.subr.mxu0 0.0
    %714 = vmatpush1.msra.mxu0 0.0
    %715 = vmatprep.subr.mxu0 0.0
    %716 = vmatpush1.msra.mxu0 0.0
    %717 = vmatprep.mubr.f32.mxu0 0.0
    %718 = vmatmul.mubr.f32.gmra.mrb[0].mxu0 %v519
    %v719 = vpop.f32.mrb[0].mxu0
    %v720 = vadd.f32 %v428, %v719
    %v721 = vpop.f32.mrb[0].mxu0
    %v722 = vadd.f32 %v432, %v721
    %723 = vdwg.mxu0
    %724 = vmatprep.subr.mxu0 %v156
    %725 = vmatpush1.msra.mxu0 %v155
    %726 = vmatprep.subr.mxu0 %v176
    %727 = vmatpush1.msra.mxu0 %v175
    %728 = vmatprep.subr.mxu0 %v196
    %729 = vmatpush1.msra.mxu0 %v195
    %730 = vmatprep.subr.mxu0 %v216
    %731 = vmatpush1.msra.mxu0 %v215
    %732 = vmatprep.subr.mxu0 %v236
    %733 = vmatpush1.msra.mxu0 %v235
    %734 = vmatprep.subr.mxu0 %v256
    %735 = vmatpush1.msra.mxu0 %v255
    %736 = vmatprep.subr.mxu0 %v276
    %737 = vmatpush1.msra.mxu0 %v275
    %738 = vmatprep.subr.mxu0 %v296
    %739 = vmatpush1.msra.mxu0 %v295
    %740 = vmatprep.subr.mxu0 %v316
    %741 = vmatpush1.msra.mxu0 %v315
    %742 = vmatprep.subr.mxu0 %v336
    %743 = vmatpush1.msra.mxu0 %v335
    %744 = vmatprep.subr.mxu0 %v356
    %745 = vmatpush1.msra.mxu0 %v355
    %746 = vmatprep.subr.mxu0 %v376
    %747 = vmatpush1.msra.mxu0 %v375
    %748 = vmatprep.subr.mxu0 %v538
    %749 = vmatpush1.msra.mxu0 %v535
    %750 = vmatprep.subr.mxu0 0.0
    %751 = vmatpush1.msra.mxu0 0.0
    %752 = vmatprep.subr.mxu0 0.0
    %753 = vmatpush1.msra.mxu0 0.0
    %754 = vmatprep.subr.mxu0 0.0
    %755 = vmatpush1.msra.mxu0 0.0
    %756 = vmatprep.subr.mxu0 0.0
    %757 = vmatpush1.msra.mxu0 0.0
    %758 = vmatprep.subr.mxu0 0.0
    %759 = vmatpush1.msra.mxu0 0.0
    %760 = vmatprep.subr.mxu0 0.0
    %761 = vmatpush1.msra.mxu0 0.0
    %762 = vmatprep.subr.mxu0 0.0
    %763 = vmatpush1.msra.mxu0 0.0
    %764 = vmatprep.subr.mxu0 0.0
    %765 = vmatpush1.msra.mxu0 0.0
    %766 = vmatprep.subr.mxu0 0.0
    %767 = vmatpush1.msra.mxu0 0.0
    %768 = vmatprep.subr.mxu0 0.0
    %769 = vmatpush1.msra.mxu0 0.0
    %770 = vmatprep.subr.mxu0 0.0
    %771 = vmatpush1.msra.mxu0 0.0
    %772 = vmatprep.subr.mxu0 0.0
    %773 = vmatpush1.msra.mxu0 0.0
    %774 = vmatprep.subr.mxu0 0.0
    %775 = vmatpush1.msra.mxu0 0.0
    %776 = vmatprep.subr.mxu0 0.0
    %777 = vmatpush1.msra.mxu0 0.0
    %778 = vmatprep.subr.mxu0 0.0
    %779 = vmatpush1.msra.mxu0 0.0
    %780 = vmatprep.subr.mxu0 0.0
    %781 = vmatpush1.msra.mxu0 0.0
    %782 = vmatprep.subr.mxu0 0.0
    %783 = vmatpush1.msra.mxu0 0.0
    %784 = vmatprep.subr.mxu0 0.0
    %785 = vmatpush1.msra.mxu0 0.0
    %786 = vmatprep.subr.mxu0 0.0
    %787 = vmatpush1.msra.mxu0 0.0
    %788 = vmatprep.mubr.f32.mxu0 0.0
    %789 = vmatmul.mubr.f32.gmra.mrb[0].mxu0 %v519
    %v790 = vpop.f32.mrb[0].mxu0
    %v791 = vadd.f32 %v436, %v790
    %v792 = vpop.f32.mrb[0].mxu0
    %v793 = vadd.f32 %v440, %v792
    %794 = vdwg.mxu0
    %795 = vmatprep.subr.mxu0 %v158
    %796 = vmatpush1.msra.mxu0 %v157
    %797 = vmatprep.subr.mxu0 %v178
    %798 = vmatpush1.msra.mxu0 %v177
    %799 = vmatprep.subr.mxu0 %v198
    %800 = vmatpush1.msra.mxu0 %v197
    %801 = vmatprep.subr.mxu0 %v218
    %802 = vmatpush1.msra.mxu0 %v217
    %803 = vmatprep.subr.mxu0 %v238
    %804 = vmatpush1.msra.mxu0 %v237
    %805 = vmatprep.subr.mxu0 %v258
    %806 = vmatpush1.msra.mxu0 %v257
    %807 = vmatprep.subr.mxu0 %v278
    %808 = vmatpush1.msra.mxu0 %v277
    %809 = vmatprep.subr.mxu0 %v298
    %810 = vmatpush1.msra.mxu0 %v297
    %811 = vmatprep.subr.mxu0 %v318
    %812 = vmatpush1.msra.mxu0 %v317
    %813 = vmatprep.subr.mxu0 %v338
    %814 = vmatpush1.msra.mxu0 %v337
    %815 = vmatprep.subr.mxu0 %v358
    %816 = vmatpush1.msra.mxu0 %v357
    %817 = vmatprep.subr.mxu0 %v378
    %818 = vmatpush1.msra.mxu0 %v377
    %819 = vmatprep.subr.mxu0 %v544
    %820 = vmatpush1.msra.mxu0 %v541
    %821 = vmatprep.subr.mxu0 0.0
    %822 = vmatpush1.msra.mxu0 0.0
    %823 = vmatprep.subr.mxu0 0.0
    %824 = vmatpush1.msra.mxu0 0.0
    %825 = vmatprep.subr.mxu0 0.0
    %826 = vmatpush1.msra.mxu0 0.0
    %827 = vmatprep.subr.mxu0 0.0
    %828 = vmatpush1.msra.mxu0 0.0
    %829 = vmatprep.subr.mxu0 0.0
    %830 = vmatpush1.msra.mxu0 0.0
    %831 = vmatprep.subr.mxu0 0.0
    %832 = vmatpush1.msra.mxu0 0.0
    %833 = vmatprep.subr.mxu0 0.0
    %834 = vmatpush1.msra.mxu0 0.0
    %835 = vmatprep.subr.mxu0 0.0
    %836 = vmatpush1.msra.mxu0 0.0
    %837 = vmatprep.subr.mxu0 0.0
    %838 = vmatpush1.msra.mxu0 0.0
    %839 = vmatprep.subr.mxu0 0.0
    %840 = vmatpush1.msra.mxu0 0.0
    %841 = vmatprep.subr.mxu0 0.0
    %842 = vmatpush1.msra.mxu0 0.0
    %843 = vmatprep.subr.mxu0 0.0
    %844 = vmatpush1.msra.mxu0 0.0
    %845 = vmatprep.subr.mxu0 0.0
    %846 = vmatpush1.msra.mxu0 0.0
    %847 = vmatprep.subr.mxu0 0.0
    %848 = vmatpush1.msra.mxu0 0.0
    %849 = vmatprep.subr.mxu0 0.0
    %850 = vmatpush1.msra.mxu0 0.0
    %851 = vmatprep.subr.mxu0 0.0
    %852 = vmatpush1.msra.mxu0 0.0
    %853 = vmatprep.subr.mxu0 0.0
    %854 = vmatpush1.msra.mxu0 0.0
    %855 = vmatprep.subr.mxu0 0.0
    %856 = vmatpush1.msra.mxu0 0.0
    %857 = vmatprep.subr.mxu0 0.0
    %858 = vmatpush1.msra.mxu0 0.0
    %859 = vmatprep.mubr.f32.mxu0 0.0
    %860 = vmatmul.mubr.f32.gmra.mrb[0].mxu0 %v519
    %v861 = vpop.f32.mrb[0].mxu0
    %v862 = vadd.f32 %v444, %v861
    %v863 = vpop.f32.mrb[0].mxu0
    %v864 = vadd.f32 %v448, %v863
    %865 = vdwg.mxu0
    %866 = vmatprep.subr.mxu0 %v160
    %867 = vmatpush1.msra.mxu0 %v159
    %868 = vmatprep.subr.mxu0 %v180
    %869 = vmatpush1.msra.mxu0 %v179
    %870 = vmatprep.subr.mxu0 %v200
    %871 = vmatpush1.msra.mxu0 %v199
    %872 = vmatprep.subr.mxu0 %v220
    %873 = vmatpush1.msra.mxu0 %v219
    %874 = vmatprep.subr.mxu0 %v240
    %875 = vmatpush1.msra.mxu0 %v239
    %876 = vmatprep.subr.mxu0 %v260
    %877 = vmatpush1.msra.mxu0 %v259
    %878 = vmatprep.subr.mxu0 %v280
    %879 = vmatpush1.msra.mxu0 %v279
    %880 = vmatprep.subr.mxu0 %v300
    %881 = vmatpush1.msra.mxu0 %v299
    %882 = vmatprep.subr.mxu0 %v320
    %883 = vmatpush1.msra.mxu0 %v319
    %884 = vmatprep.subr.mxu0 %v340
    %885 = vmatpush1.msra.mxu0 %v339
    %886 = vmatprep.subr.mxu0 %v360
    %887 = vmatpush1.msra.mxu0 %v359
    %888 = vmatprep.subr.mxu0 %v380
    %889 = vmatpush1.msra.mxu0 %v379
    %890 = vmatprep.subr.mxu0 %v550
    %891 = vmatpush1.msra.mxu0 %v547
    %892 = vmatprep.subr.mxu0 0.0
    %893 = vmatpush1.msra.mxu0 0.0
    %894 = vmatprep.subr.mxu0 0.0
    %895 = vmatpush1.msra.mxu0 0.0
    %896 = vmatprep.subr.mxu0 0.0
    %897 = vmatpush1.msra.mxu0 0.0
    %898 = vmatprep.subr.mxu0 0.0
    %899 = vmatpush1.msra.mxu0 0.0
    %900 = vmatprep.subr.mxu0 0.0
    %901 = vmatpush1.msra.mxu0 0.0
    %902 = vmatprep.subr.mxu0 0.0
    %903 = vmatpush1.msra.mxu0 0.0
    %904 = vmatprep.subr.mxu0 0.0
    %905 = vmatpush1.msra.mxu0 0.0
    %906 = vmatprep.subr.mxu0 0.0
    %907 = vmatpush1.msra.mxu0 0.0
    %908 = vmatprep.subr.mxu0 0.0
    %909 = vmatpush1.msra.mxu0 0.0
    %910 = vmatprep.subr.mxu0 0.0
    %911 = vmatpush1.msra.mxu0 0.0
    %912 = vmatprep.subr.mxu0 0.0
    %913 = vmatpush1.msra.mxu0 0.0
    %914 = vmatprep.subr.mxu0 0.0
    %915 = vmatpush1.msra.mxu0 0.0
    %916 = vmatprep.subr.mxu0 0.0
    %917 = vmatpush1.msra.mxu0 0.0
    %918 = vmatprep.subr.mxu0 0.0
    %919 = vmatpush1.msra.mxu0 0.0
    %920 = vmatprep.subr.mxu0 0.0
    %921 = vmatpush1.msra.mxu0 0.0
    %922 = vmatprep.subr.mxu0 0.0
    %923 = vmatpush1.msra.mxu0 0.0
    %924 = vmatprep.subr.mxu0 0.0
    %925 = vmatpush1.msra.mxu0 0.0
    %926 = vmatprep.subr.mxu0 0.0
    %927 = vmatpush1.msra.mxu0 0.0
    %928 = vmatprep.subr.mxu0 0.0
    %929 = vmatpush1.msra.mxu0 0.0
    %930 = vmatprep.mubr.f32.mxu0 0.0
    %931 = vmatmul.mubr.f32.gmra.mrb[0].mxu0 %v519
    %v932 = vpop.f32.mrb[0].mxu0
    %v933 = vadd.f32 %v452, %v932
    %v934 = vpop.f32.mrb[0].mxu0
    %v935 = vadd.f32 %v456, %v934
    %936 = vdwg.mxu0
    %937 = vmatprep.subr.mxu0 %v162
    %938 = vmatpush1.msra.mxu0 %v161
    %939 = vmatprep.subr.mxu0 %v182
    %940 = vmatpush1.msra.mxu0 %v181
    %941 = vmatprep.subr.mxu0 %v202
    %942 = vmatpush1.msra.mxu0 %v201
    %943 = vmatprep.subr.mxu0 %v222
    %944 = vmatpush1.msra.mxu0 %v221
    %945 = vmatprep.subr.mxu0 %v242
    %946 = vmatpush1.msra.mxu0 %v241
    %947 = vmatprep.subr.mxu0 %v262
    %948 = vmatpush1.msra.mxu0 %v261
    %949 = vmatprep.subr.mxu0 %v282
    %950 = vmatpush1.msra.mxu0 %v281
    %951 = vmatprep.subr.mxu0 %v302
    %952 = vmatpush1.msra.mxu0 %v301
    %953 = vmatprep.subr.mxu0 %v322
    %954 = vmatpush1.msra.mxu0 %v321
    %955 = vmatprep.subr.mxu0 %v342
    %956 = vmatpush1.msra.mxu0 %v341
    %957 = vmatprep.subr.mxu0 %v362
    %958 = vmatpush1.msra.mxu0 %v361
    %959 = vmatprep.subr.mxu0 %v382
    %960 = vmatpush1.msra.mxu0 %v381
    %961 = vmatprep.subr.mxu0 %v556
    %962 = vmatpush1.msra.mxu0 %v553
    %963 = vmatprep.subr.mxu0 0.0
    %964 = vmatpush1.msra.mxu0 0.0
    %965 = vmatprep.subr.mxu0 0.0
    %966 = vmatpush1.msra.mxu0 0.0
    %967 = vmatprep.subr.mxu0 0.0
    %968 = vmatpush1.msra.mxu0 0.0
    %969 = vmatprep.subr.mxu0 0.0
    %970 = vmatpush1.msra.mxu0 0.0
    %971 = vmatprep.subr.mxu0 0.0
    %972 = vmatpush1.msra.mxu0 0.0
    %973 = vmatprep.subr.mxu0 0.0
    %974 = vmatpush1.msra.mxu0 0.0
    %975 = vmatprep.subr.mxu0 0.0
    %976 = vmatpush1.msra.mxu0 0.0
    %977 = vmatprep.subr.mxu0 0.0
    %978 = vmatpush1.msra.mxu0 0.0
    %979 = vmatprep.subr.mxu0 0.0
    %980 = vmatpush1.msra.mxu0 0.0
    %981 = vmatprep.subr.mxu0 0.0
    %982 = vmatpush1.msra.mxu0 0.0
    %983 = vmatprep.subr.mxu0 0.0
    %984 = vmatpush1.msra.mxu0 0.0
    %985 = vmatprep.subr.mxu0 0.0
    %986 = vmatpush1.msra.mxu0 0.0
    %987 = vmatprep.subr.mxu0 0.0
    %988 = vmatpush1.msra.mxu0 0.0
    %989 = vmatprep.subr.mxu0 0.0
    %990 = vmatpush1.msra.mxu0 0.0
    %991 = vmatprep.subr.mxu0 0.0
    %992 = vmatpush1.msra.mxu0 0.0
    %993 = vmatprep.subr.mxu0 0.0
    %994 = vmatpush1.msra.mxu0 0.0
    %995 = vmatprep.subr.mxu0 0.0
    %996 = vmatpush1.msra.mxu0 0.0
    %997 = vmatprep.subr.mxu0 0.0
    %998 = vmatpush1.msra.mxu0 0.0
    %999 = vmatprep.subr.mxu0 0.0
    %1000 = vmatpush1.msra.mxu0 0.0
    %1001 = vmatprep.mubr.f32.mxu0 0.0
    %1002 = vmatmul.mubr.f32.gmra.mrb[0].mxu0 %v519
    %v1003 = vpop.f32.mrb[0].mxu0
    %v1004 = vadd.f32 %v460, %v1003
    %v1005 = vpop.f32.mrb[0].mxu0
    %v1006 = vadd.f32 %v464, %v1005
    %1007 = vdwg.mxu0
    %1008 = vmatprep.subr.mxu0 %v164
    %1009 = vmatpush1.msra.mxu0 %v163
    %1010 = vmatprep.subr.mxu0 %v184
    %1011 = vmatpush1.msra.mxu0 %v183
    %1012 = vmatprep.subr.mxu0 %v204
    %1013 = vmatpush1.msra.mxu0 %v203
    %1014 = vmatprep.subr.mxu0 %v224
    %1015 = vmatpush1.msra.mxu0 %v223
    %1016 = vmatprep.subr.mxu0 %v244
    %1017 = vmatpush1.msra.mxu0 %v243
    %1018 = vmatprep.subr.mxu0 %v264
    %1019 = vmatpush1.msra.mxu0 %v263
    %1020 = vmatprep.subr.mxu0 %v284
    %1021 = vmatpush1.msra.mxu0 %v283
    %1022 = vmatprep.subr.mxu0 %v304
    %1023 = vmatpush1.msra.mxu0 %v303
    %1024 = vmatprep.subr.mxu0 %v324
    %1025 = vmatpush1.msra.mxu0 %v323
    %1026 = vmatprep.subr.mxu0 %v344
    %1027 = vmatpush1.msra.mxu0 %v343
    %1028 = vmatprep.subr.mxu0 %v364
    %1029 = vmatpush1.msra.mxu0 %v363
    %1030 = vmatprep.subr.mxu0 %v384
    %1031 = vmatpush1.msra.mxu0 %v383
    %1032 = vmatprep.subr.mxu0 %v562
    %1033 = vmatpush1.msra.mxu0 %v559
    %1034 = vmatprep.subr.mxu0 0.0
    %1035 = vmatpush1.msra.mxu0 0.0
    %1036 = vmatprep.subr.mxu0 0.0
    %1037 = vmatpush1.msra.mxu0 0.0
    %1038 = vmatprep.subr.mxu0 0.0
    %1039 = vmatpush1.msra.mxu0 0.0
    %1040 = vmatprep.subr.mxu0 0.0
    %1041 = vmatpush1.msra.mxu0 0.0
    %1042 = vmatprep.subr.mxu0 0.0
    %1043 = vmatpush1.msra.mxu0 0.0
    %1044 = vmatprep.subr.mxu0 0.0
    %1045 = vmatpush1.msra.mxu0 0.0
    %1046 = vmatprep.subr.mxu0 0.0
    %1047 = vmatpush1.msra.mxu0 0.0
    %1048 = vmatprep.subr.mxu0 0.0
    %1049 = vmatpush1.msra.mxu0 0.0
    %1050 = vmatprep.subr.mxu0 0.0
    %1051 = vmatpush1.msra.mxu0 0.0
    %1052 = vmatprep.subr.mxu0 0.0
    %1053 = vmatpush1.msra.mxu0 0.0
    %1054 = vmatprep.subr.mxu0 0.0
    %1055 = vmatpush1.msra.mxu0 0.0
    %1056 = vmatprep.subr.mxu0 0.0
    %1057 = vmatpush1.msra.mxu0 0.0
    %1058 = vmatprep.subr.mxu0 0.0
    %1059 = vmatpush1.msra.mxu0 0.0
    %1060 = vmatprep.subr.mxu0 0.0
    %1061 = vmatpush1.msra.mxu0 0.0
    %1062 = vmatprep.subr.mxu0 0.0
    %1063 = vmatpush1.msra.mxu0 0.0
    %1064 = vmatprep.subr.mxu0 0.0
    %1065 = vmatpush1.msra.mxu0 0.0
    %1066 = vmatprep.subr.mxu0 0.0
    %1067 = vmatpush1.msra.mxu0 0.0
    %1068 = vmatprep.subr.mxu0 0.0
    %1069 = vmatpush1.msra.mxu0 0.0
    %1070 = vmatprep.subr.mxu0 0.0
    %1071 = vmatpush1.msra.mxu0 0.0
    %1072 = vmatprep.mubr.f32.mxu0 0.0
    %1073 = vmatmul.mubr.f32.gmra.mrb[0].mxu0 %v519
    %v1074 = vpop.f32.mrb[0].mxu0
    %v1075 = vadd.f32 %v468, %v1074
    %v1076 = vpop.f32.mrb[0].mxu0
    %v1077 = vadd.f32 %v472, %v1076
    %1078 = vdwg.mxu0
    %1079 = vmatprep.subr.mxu0 %v166
    %1080 = vmatpush1.msra.mxu0 %v165
    %1081 = vmatprep.subr.mxu0 %v186
    %1082 = vmatpush1.msra.mxu0 %v185
    %1083 = vmatprep.subr.mxu0 %v206
    %1084 = vmatpush1.msra.mxu0 %v205
    %1085 = vmatprep.subr.mxu0 %v226
    %1086 = vmatpush1.msra.mxu0 %v225
    %1087 = vmatprep.subr.mxu0 %v246
    %1088 = vmatpush1.msra.mxu0 %v245
    %1089 = vmatprep.subr.mxu0 %v266
    %1090 = vmatpush1.msra.mxu0 %v265
    %1091 = vmatprep.subr.mxu0 %v286
    %1092 = vmatpush1.msra.mxu0 %v285
    %1093 = vmatprep.subr.mxu0 %v306
    %1094 = vmatpush1.msra.mxu0 %v305
    %1095 = vmatprep.subr.mxu0 %v326
    %1096 = vmatpush1.msra.mxu0 %v325
    %1097 = vmatprep.subr.mxu0 %v346
    %1098 = vmatpush1.msra.mxu0 %v345
    %1099 = vmatprep.subr.mxu0 %v366
    %1100 = vmatpush1.msra.mxu0 %v365
    %1101 = vmatprep.subr.mxu0 %v386
    %1102 = vmatpush1.msra.mxu0 %v385
    %1103 = vmatprep.subr.mxu0 %v568
    %1104 = vmatpush1.msra.mxu0 %v565
    %1105 = vmatprep.subr.mxu0 0.0
    %1106 = vmatpush1.msra.mxu0 0.0
    %1107 = vmatprep.subr.mxu0 0.0
    %1108 = vmatpush1.msra.mxu0 0.0
    %1109 = vmatprep.subr.mxu0 0.0
    %1110 = vmatpush1.msra.mxu0 0.0
    %1111 = vmatprep.subr.mxu0 0.0
    %1112 = vmatpush1.msra.mxu0 0.0
    %1113 = vmatprep.subr.mxu0 0.0
    %1114 = vmatpush1.msra.mxu0 0.0
    %1115 = vmatprep.subr.mxu0 0.0
    %1116 = vmatpush1.msra.mxu0 0.0
    %1117 = vmatprep.subr.mxu0 0.0
    %1118 = vmatpush1.msra.mxu0 0.0
    %1119 = vmatprep.subr.mxu0 0.0
    %1120 = vmatpush1.msra.mxu0 0.0
    %1121 = vmatprep.subr.mxu0 0.0
    %1122 = vmatpush1.msra.mxu0 0.0
    %1123 = vmatprep.subr.mxu0 0.0
    %1124 = vmatpush1.msra.mxu0 0.0
    %1125 = vmatprep.subr.mxu0 0.0
    %1126 = vmatpush1.msra.mxu0 0.0
    %1127 = vmatprep.subr.mxu0 0.0
    %1128 = vmatpush1.msra.mxu0 0.0
    %1129 = vmatprep.subr.mxu0 0.0
    %1130 = vmatpush1.msra.mxu0 0.0
    %1131 = vmatprep.subr.mxu0 0.0
    %1132 = vmatpush1.msra.mxu0 0.0
    %1133 = vmatprep.subr.mxu0 0.0
    %1134 = vmatpush1.msra.mxu0 0.0
    %1135 = vmatprep.subr.mxu0 0.0
    %1136 = vmatpush1.msra.mxu0 0.0
    %1137 = vmatprep.subr.mxu0 0.0
    %1138 = vmatpush1.msra.mxu0 0.0
    %1139 = vmatprep.subr.mxu0 0.0
    %1140 = vmatpush1.msra.mxu0 0.0
    %1141 = vmatprep.subr.mxu0 0.0
    %1142 = vmatpush1.msra.mxu0 0.0
    %1143 = vmatprep.mubr.f32.mxu0 0.0
    %1144 = vmatmul.mubr.f32.gmra.mrb[0].mxu0 %v519
    %v1145 = vpop.f32.mrb[0].mxu0
    %v1146 = vadd.f32 %v476, %v1145
    %v1147 = vpop.f32.mrb[0].mxu0
    %v1148 = vadd.f32 %v480, %v1147
    %1149 = vdwg.mxu0
    %1150 = vmatprep.subr.mxu0 %v168
    %1151 = vmatpush1.msra.mxu0 %v167
    %1152 = vmatprep.subr.mxu0 %v188
    %1153 = vmatpush1.msra.mxu0 %v187
    %1154 = vmatprep.subr.mxu0 %v208
    %1155 = vmatpush1.msra.mxu0 %v207
    %1156 = vmatprep.subr.mxu0 %v228
    %1157 = vmatpush1.msra.mxu0 %v227
    %1158 = vmatprep.subr.mxu0 %v248
    %1159 = vmatpush1.msra.mxu0 %v247
    %1160 = vmatprep.subr.mxu0 %v268
    %1161 = vmatpush1.msra.mxu0 %v267
    %1162 = vmatprep.subr.mxu0 %v288
    %1163 = vmatpush1.msra.mxu0 %v287
    %1164 = vmatprep.subr.mxu0 %v308
    %1165 = vmatpush1.msra.mxu0 %v307
    %1166 = vmatprep.subr.mxu0 %v328
    %1167 = vmatpush1.msra.mxu0 %v327
    %1168 = vmatprep.subr.mxu0 %v348
    %1169 = vmatpush1.msra.mxu0 %v347
    %1170 = vmatprep.subr.mxu0 %v368
    %1171 = vmatpush1.msra.mxu0 %v367
    %1172 = vmatprep.subr.mxu0 %v388
    %1173 = vmatpush1.msra.mxu0 %v387
    %1174 = vmatprep.subr.mxu0 %v574
    %1175 = vmatpush1.msra.mxu0 %v571
    %1176 = vmatprep.subr.mxu0 0.0
    %1177 = vmatpush1.msra.mxu0 0.0
    %1178 = vmatprep.subr.mxu0 0.0
    %1179 = vmatpush1.msra.mxu0 0.0
    %1180 = vmatprep.subr.mxu0 0.0
    %1181 = vmatpush1.msra.mxu0 0.0
    %1182 = vmatprep.subr.mxu0 0.0
    %1183 = vmatpush1.msra.mxu0 0.0
    %1184 = vmatprep.subr.mxu0 0.0
    %1185 = vmatpush1.msra.mxu0 0.0
    %1186 = vmatprep.subr.mxu0 0.0
    %1187 = vmatpush1.msra.mxu0 0.0
    %1188 = vmatprep.subr.mxu0 0.0
    %1189 = vmatpush1.msra.mxu0 0.0
    %1190 = vmatprep.subr.mxu0 0.0
    %1191 = vmatpush1.msra.mxu0 0.0
    %1192 = vmatprep.subr.mxu0 0.0
    %1193 = vmatpush1.msra.mxu0 0.0
    %1194 = vmatprep.subr.mxu0 0.0
    %1195 = vmatpush1.msra.mxu0 0.0
    %1196 = vmatprep.subr.mxu0 0.0
    %1197 = vmatpush1.msra.mxu0 0.0
    %1198 = vmatprep.subr.mxu0 0.0
    %1199 = vmatpush1.msra.mxu0 0.0
    %1200 = vmatprep.subr.mxu0 0.0
    %1201 = vmatpush1.msra.mxu0 0.0
    %1202 = vmatprep.subr.mxu0 0.0
    %1203 = vmatpush1.msra.mxu0 0.0
    %1204 = vmatprep.subr.mxu0 0.0
    %1205 = vmatpush1.msra.mxu0 0.0
    %1206 = vmatprep.subr.mxu0 0.0
    %1207 = vmatpush1.msra.mxu0 0.0
    %1208 = vmatprep.subr.mxu0 0.0
    %1209 = vmatpush1.msra.mxu0 0.0
    %1210 = vmatprep.subr.mxu0 0.0
    %1211 = vmatpush1.msra.mxu0 0.0
    %1212 = vmatprep.subr.mxu0 0.0
    %1213 = vmatpush1.msra.mxu0 0.0
    %1214 = vmatprep.mubr.f32.mxu0 0.0
    %1215 = vmatmul.mubr.f32.gmra.mrb[0].mxu0 %v519
    %v1216 = vpop.f32.mrb[0].mxu0
    %v1217 = vadd.f32 %v484, %v1216
    %v1218 = vpop.f32.mrb[0].mxu0
    %v1219 = vadd.f32 %v488, %v1218
    %1220 = vdwg.mxu0
    %1221 = vmatprep.subr.mxu0 %v170
    %1222 = vmatpush1.msra.mxu0 %v169
    %1223 = vmatprep.subr.mxu0 %v190
    %1224 = vmatpush1.msra.mxu0 %v189
    %1225 = vmatprep.subr.mxu0 %v210
    %1226 = vmatpush1.msra.mxu0 %v209
    %1227 = vmatprep.subr.mxu0 %v230
    %1228 = vmatpush1.msra.mxu0 %v229
    %1229 = vmatprep.subr.mxu0 %v250
    %1230 = vmatpush1.msra.mxu0 %v249
    %1231 = vmatprep.subr.mxu0 %v270
    %1232 = vmatpush1.msra.mxu0 %v269
    %1233 = vmatprep.subr.mxu0 %v290
    %1234 = vmatpush1.msra.mxu0 %v289
    %1235 = vmatprep.subr.mxu0 %v310
    %1236 = vmatpush1.msra.mxu0 %v309
    %1237 = vmatprep.subr.mxu0 %v330
    %1238 = vmatpush1.msra.mxu0 %v329
    %1239 = vmatprep.subr.mxu0 %v350
    %1240 = vmatpush1.msra.mxu0 %v349
    %1241 = vmatprep.subr.mxu0 %v370
    %1242 = vmatpush1.msra.mxu0 %v369
    %1243 = vmatprep.subr.mxu0 %v390
    %1244 = vmatpush1.msra.mxu0 %v389
    %1245 = vmatprep.subr.mxu0 %v580
    %1246 = vmatpush1.msra.mxu0 %v577
    %1247 = vmatprep.subr.mxu0 0.0
    %1248 = vmatpush1.msra.mxu0 0.0
    %1249 = vmatprep.subr.mxu0 0.0
    %1250 = vmatpush1.msra.mxu0 0.0
    %1251 = vmatprep.subr.mxu0 0.0
    %1252 = vmatpush1.msra.mxu0 0.0
    %1253 = vmatprep.subr.mxu0 0.0
    %1254 = vmatpush1.msra.mxu0 0.0
    %1255 = vmatprep.subr.mxu0 0.0
    %1256 = vmatpush1.msra.mxu0 0.0
    %1257 = vmatprep.subr.mxu0 0.0
    %1258 = vmatpush1.msra.mxu0 0.0
    %1259 = vmatprep.subr.mxu0 0.0
    %1260 = vmatpush1.msra.mxu0 0.0
    %1261 = vmatprep.subr.mxu0 0.0
    %1262 = vmatpush1.msra.mxu0 0.0
    %1263 = vmatprep.subr.mxu0 0.0
    %1264 = vmatpush1.msra.mxu0 0.0
    %1265 = vmatprep.subr.mxu0 0.0
    %1266 = vmatpush1.msra.mxu0 0.0
    %1267 = vmatprep.subr.mxu0 0.0
    %1268 = vmatpush1.msra.mxu0 0.0
    %1269 = vmatprep.subr.mxu0 0.0
    %1270 = vmatpush1.msra.mxu0 0.0
    %1271 = vmatprep.subr.mxu0 0.0
    %1272 = vmatpush1.msra.mxu0 0.0
    %1273 = vmatprep.subr.mxu0 0.0
    %1274 = vmatpush1.msra.mxu0 0.0
    %1275 = vmatprep.subr.mxu0 0.0
    %1276 = vmatpush1.msra.mxu0 0.0
    %1277 = vmatprep.subr.mxu0 0.0
    %1278 = vmatpush1.msra.mxu0 0.0
    %1279 = vmatprep.subr.mxu0 0.0
    %1280 = vmatpush1.msra.mxu0 0.0
    %1281 = vmatprep.subr.mxu0 0.0
    %1282 = vmatpush1.msra.mxu0 0.0
    %1283 = vmatprep.subr.mxu0 0.0
    %1284 = vmatpush1.msra.mxu0 0.0
    %1285 = vmatprep.mubr.f32.mxu0 0.0
    %1286 = vmatmul.mubr.f32.gmra.mrb[0].mxu0 %v519
    %v1287 = vpop.f32.mrb[0].mxu0
    %v1288 = vadd.f32 %v492, %v1287
    %v1289 = vpop.f32.mrb[0].mxu0
    %v1290 = vadd.f32 %v496, %v1289
    %1291 = vdwg.mxu0
    %v1292 = vmax.f32 %v649, 0.0
    %v1293 = vmax.f32 %v651, 0.0
    %v1294 = vmax.f32 %v720, 0.0
    %v1295 = vmax.f32 %v722, 0.0
    %v1296 = vmax.f32 %v791, 0.0
    %v1297 = vmax.f32 %v793, 0.0
    %v1298 = vmax.f32 %v862, 0.0
    %v1299 = vmax.f32 %v864, 0.0
    %v1300 = vmax.f32 %v933, 0.0
    %v1301 = vmax.f32 %v935, 0.0
    %v1302 = vmax.f32 %v1004, 0.0
    %v1303 = vmax.f32 %v1006, 0.0
    %v1304 = vmax.f32 %v1075, 0.0
    %v1305 = vmax.f32 %v1077, 0.0
    %v1306 = vmax.f32 %v1146, 0.0
    %v1307 = vmax.f32 %v1148, 0.0
    %v1308 = vmax.f32 %v1217, 0.0
    %v1309 = vmax.f32 %v1219, 0.0
    %v1310 = vmax.f32 %v1288, 0.0
    %v1311 = vmax.f32 %v1290, 0.0
    %v1312 = vld [vmem:[#allocation6] sm:$0xff]
    %v1313 = vld [vmem:[#allocation6 + $0x8] sm:$0xff]
    %v1314 = vld [vmem:[#allocation6 + $0x10] sm:$0xff]
    %v1315 = vld [vmem:[#allocation6 + $0x18] sm:$0xff]
    %v1316 = vld [vmem:[#allocation6 + $0x20] sm:$0xff]
    %v1317 = vld [vmem:[#allocation6 + $0x28] sm:$0xff]
    %v1318 = vld [vmem:[#allocation6 + $0x30] sm:$0xff]
    %v1319 = vld [vmem:[#allocation6 + $0x38] sm:$0xff]
    %v1320 = vld [vmem:[#allocation6 + $0x40] sm:$0xff]
    %v1321 = vld [vmem:[#allocation6 + $0x48] sm:$0xff]
    %v1322 = vld [vmem:[#allocation6 + $0x50] sm:$0xff]
    %v1323 = vld [vmem:[#allocation6 + $0x58] sm:$0xff]
    %v1324 = vld [vmem:[#allocation6 + $0x60] sm:$0xff]
    %v1325 = vld [vmem:[#allocation6 + $0x68] sm:$0xff]
    %v1326 = vld [vmem:[#allocation6 + $0x70] sm:$0xff]
    %v1327 = vld [vmem:[#allocation6 + $0x78] sm:$0xff]
    %v1328 = vld [vmem:[#allocation6 + $0x80] sm:$0xff]
    %v1329 = vld [vmem:[#allocation6 + $0x88] sm:$0xff]
    %v1330 = vld [vmem:[#allocation6 + $0x90] sm:$0xff]
    %v1331 = vld [vmem:[#allocation6 + $0x98] sm:$0xff]
    %v1332 = vld [vmem:[#allocation6 + $0xa0] sm:$0xff]
    %v1333 = vld [vmem:[#allocation6 + $0xa8] sm:$0xff]
    %v1334 = vld [vmem:[#allocation6 + $0xb0] sm:$0xff]
    %v1335 = vld [vmem:[#allocation6 + $0xb8] sm:$0xff]
    %v1336 = vld [vmem:[#allocation6 + $0xc0] sm:$0xff]
    %v1337 = vld [vmem:[#allocation6 + $0xc8] sm:$0xff]
    %v1338 = vld [vmem:[#allocation6 + $0xd0] sm:$0xff]
    %v1339 = vld [vmem:[#allocation6 + $0xd8] sm:$0xff]
    %v1340 = vld [vmem:[#allocation6 + $0xe0] sm:$0xff]
    %v1341 = vld [vmem:[#allocation6 + $0xe8] sm:$0xff]
    %v1342 = vld [vmem:[#allocation6 + $0xf0] sm:$0xff]
    %v1343 = vld [vmem:[#allocation6 + $0xf8] sm:$0xff]
    %v1344 = vld [vmem:[#allocation6 + $0x100] sm:$0xff]
    %v1345 = vld [vmem:[#allocation6 + $0x108] sm:$0xff]
    %v1346 = vld [vmem:[#allocation6 + $0x110] sm:$0xff]
    %v1347 = vld [vmem:[#allocation6 + $0x118] sm:$0xff]
    %v1348 = vld [vmem:[#allocation6 + $0x120] sm:$0xff]
    %v1349 = vld [vmem:[#allocation6 + $0x128] sm:$0xff]
    %v1350 = vld [vmem:[#allocation6 + $0x130] sm:$0xff]
    %v1351 = vld [vmem:[#allocation6 + $0x138] sm:$0xff]
    %v1352 = vld [vmem:[#allocation6 + $0x140] sm:$0xff]
    %v1353 = vld [vmem:[#allocation6 + $0x148] sm:$0xff]
    %v1354 = vld [vmem:[#allocation6 + $0x150] sm:$0xff]
    %v1355 = vld [vmem:[#allocation6 + $0x158] sm:$0xff]
    %v1356 = vld [vmem:[#allocation6 + $0x160] sm:$0xff]
    %v1357 = vld [vmem:[#allocation6 + $0x168] sm:$0xff]
    %v1358 = vld [vmem:[#allocation6 + $0x170] sm:$0xff]
    %v1359 = vld [vmem:[#allocation6 + $0x178] sm:$0xff]
    %v1360 = vld [vmem:[#allocation6 + $0x180] sm:$0xff]
    %v1361 = vld [vmem:[#allocation6 + $0x188] sm:$0xff]
    %v1362 = vld [vmem:[#allocation6 + $0x190] sm:$0xff]
    %v1363 = vld [vmem:[#allocation6 + $0x198] sm:$0xff]
    %v1364 = vld [vmem:[#allocation6 + $0x1a0] sm:$0xff]
    %v1365 = vld [vmem:[#allocation6 + $0x1a8] sm:$0xff]
    %v1366 = vld [vmem:[#allocation6 + $0x1b0] sm:$0xff]
    %v1367 = vld [vmem:[#allocation6 + $0x1b8] sm:$0xff]
    %v1368 = vld [vmem:[#allocation6 + $0x1c0] sm:$0xff]
    %v1369 = vld [vmem:[#allocation6 + $0x1c8] sm:$0xff]
    %v1370 = vld [vmem:[#allocation6 + $0x1d0] sm:$0xff]
    %v1371 = vld [vmem:[#allocation6 + $0x1d8] sm:$0xff]
    %v1372 = vld [vmem:[#allocation6 + $0x1e0] sm:$0xff]
    %v1373 = vld [vmem:[#allocation6 + $0x1e8] sm:$0xff]
    %v1374 = vld [vmem:[#allocation6 + $0x1f0] sm:$0xff]
    %v1375 = vld [vmem:[#allocation6 + $0x1f8] sm:$0xff]
    %v1376 = vld [vmem:[#allocation6 + $0x200] sm:$0xff]
    %v1377 = vld [vmem:[#allocation6 + $0x208] sm:$0xff]
    %v1378 = vld [vmem:[#allocation6 + $0x210] sm:$0xff]
    %v1379 = vld [vmem:[#allocation6 + $0x218] sm:$0xff]
    %v1380 = vld [vmem:[#allocation6 + $0x220] sm:$0xff]
    %v1381 = vld [vmem:[#allocation6 + $0x228] sm:$0xff]
    %v1382 = vld [vmem:[#allocation6 + $0x230] sm:$0xff]
    %v1383 = vld [vmem:[#allocation6 + $0x238] sm:$0xff]
    %v1384 = vld [vmem:[#allocation6 + $0x240] sm:$0xff]
    %v1385 = vld [vmem:[#allocation6 + $0x248] sm:$0xff]
    %v1386 = vld [vmem:[#allocation6 + $0x250] sm:$0xff]
    %v1387 = vld [vmem:[#allocation6 + $0x258] sm:$0xff]
    %v1388 = vld [vmem:[#allocation6 + $0x260] sm:$0xff]
    %v1389 = vld [vmem:[#allocation6 + $0x268] sm:$0xff]
    %v1390 = vld [vmem:[#allocation6 + $0x270] sm:$0xff]
    %v1391 = vld [vmem:[#allocation6 + $0x278] sm:$0xff]
    %v1392 = vld [vmem:[#allocation6 + $0x280] sm:$0xff]
    %v1393 = vld [vmem:[#allocation6 + $0x288] sm:$0xff]
    %v1394 = vld [vmem:[#allocation6 + $0x290] sm:$0xff]
    %v1395 = vld [vmem:[#allocation6 + $0x298] sm:$0xff]
    %v1396 = vld [vmem:[#allocation6 + $0x2a0] sm:$0xff]
    %v1397 = vld [vmem:[#allocation6 + $0x2a8] sm:$0xff]
    %v1398 = vld [vmem:[#allocation6 + $0x2b0] sm:$0xff]
    %v1399 = vld [vmem:[#allocation6 + $0x2b8] sm:$0xff]
    %v1400 = vld [vmem:[#allocation6 + $0x2c0] sm:$0xff]
    %v1401 = vld [vmem:[#allocation6 + $0x2c8] sm:$0xff]
    %v1402 = vld [vmem:[#allocation6 + $0x2d0] sm:$0xff]
    %v1403 = vld [vmem:[#allocation6 + $0x2d8] sm:$0xff]
    %v1404 = vld [vmem:[#allocation6 + $0x2e0] sm:$0xff]
    %v1405 = vld [vmem:[#allocation6 + $0x2e8] sm:$0xff]
    %v1406 = vld [vmem:[#allocation6 + $0x2f0] sm:$0xff]
    %v1407 = vld [vmem:[#allocation6 + $0x2f8] sm:$0xff]
    %v1408 = vld [vmem:[#allocation6 + $0x300] sm:$0xff]
    %v1409 = vld [vmem:[#allocation6 + $0x308] sm:$0xff]
    %v1410 = vld [vmem:[#allocation6 + $0x310] sm:$0xff]
    %v1411 = vld [vmem:[#allocation6 + $0x318] sm:$0xff]
    %v1412 = vld [vmem:[#allocation6 + $0x320] sm:$0xff]
    %v1413 = vld [vmem:[#allocation6 + $0x328] sm:$0xff]
    %v1414 = vld [vmem:[#allocation6 + $0x330] sm:$0xff]
    %v1415 = vld [vmem:[#allocation6 + $0x338] sm:$0xff]
    %v1416 = vld [vmem:[#allocation6 + $0x340] sm:$0xff]
    %v1417 = vld [vmem:[#allocation6 + $0x348] sm:$0xff]
    %v1418 = vld [vmem:[#allocation6 + $0x350] sm:$0xff]
    %v1419 = vld [vmem:[#allocation6 + $0x358] sm:$0xff]
    %v1420 = vld [vmem:[#allocation6 + $0x360] sm:$0xff]
    %v1421 = vld [vmem:[#allocation6 + $0x368] sm:$0xff]
    %v1422 = vld [vmem:[#allocation6 + $0x370] sm:$0xff]
    %v1423 = vld [vmem:[#allocation6 + $0x378] sm:$0xff]
    %v1424 = vld [vmem:[#allocation6 + $0x380] sm:$0xff]
    %v1425 = vld [vmem:[#allocation6 + $0x388] sm:$0xff]
    %v1426 = vld [vmem:[#allocation6 + $0x390] sm:$0xff]
    %v1427 = vld [vmem:[#allocation6 + $0x398] sm:$0xff]
    %v1428 = vld [vmem:[#allocation6 + $0x3a0] sm:$0xff]
    %v1429 = vld [vmem:[#allocation6 + $0x3a8] sm:$0xff]
    %v1430 = vld [vmem:[#allocation6 + $0x3b0] sm:$0xff]
    %v1431 = vld [vmem:[#allocation6 + $0x3b8] sm:$0xff]
    %v1432 = vld [vmem:[#allocation6 + $0x3c0] sm:$0xff]
    %v1433 = vld [vmem:[#allocation6 + $0x3c8] sm:$0xff]
    %v1434 = vld [vmem:[#allocation6 + $0x3d0] sm:$0xff]
    %v1435 = vld [vmem:[#allocation6 + $0x3d8] sm:$0xff]
    %v1436 = vld [vmem:[#allocation6 + $0x3e0] sm:$0xff]
    %v1437 = vld [vmem:[#allocation6 + $0x3e8] sm:$0xff]
    %v1438 = vld [vmem:[#allocation6 + $0x3f0] sm:$0xff]
    %v1439 = vld [vmem:[#allocation6 + $0x3f8] sm:$0xff]
    %v1440 = vld [vmem:[#allocation6 + $0x400] sm:$0xff]
    %v1441 = vld [vmem:[#allocation6 + $0x408] sm:$0xff]
    %v1442 = vld [vmem:[#allocation6 + $0x410] sm:$0xff]
    %v1443 = vld [vmem:[#allocation6 + $0x418] sm:$0xff]
    %v1444 = vld [vmem:[#allocation6 + $0x420] sm:$0xff]
    %v1445 = vld [vmem:[#allocation6 + $0x428] sm:$0xff]
    %v1446 = vld [vmem:[#allocation6 + $0x430] sm:$0xff]
    %v1447 = vld [vmem:[#allocation6 + $0x438] sm:$0xff]
    %v1448 = vld [vmem:[#allocation6 + $0x440] sm:$0xff]
    %v1449 = vld [vmem:[#allocation6 + $0x448] sm:$0xff]
    %v1450 = vld [vmem:[#allocation6 + $0x450] sm:$0xff]
    %v1451 = vld [vmem:[#allocation6 + $0x458] sm:$0xff]
    %v1452 = vld [vmem:[#allocation6 + $0x460] sm:$0xff]
    %v1453 = vld [vmem:[#allocation6 + $0x468] sm:$0xff]
    %v1454 = vld [vmem:[#allocation6 + $0x470] sm:$0xff]
    %v1455 = vld [vmem:[#allocation6 + $0x478] sm:$0xff]
    %v1456 = vld [vmem:[#allocation6 + $0x480] sm:$0xff]
    %v1457 = vld [vmem:[#allocation6 + $0x488] sm:$0xff]
    %v1458 = vld [vmem:[#allocation6 + $0x490] sm:$0xff]
    %v1459 = vld [vmem:[#allocation6 + $0x498] sm:$0xff]
    %v1460 = vld [vmem:[#allocation6 + $0x4a0] sm:$0xff]
    %v1461 = vld [vmem:[#allocation6 + $0x4a8] sm:$0xff]
    %v1462 = vld [vmem:[#allocation6 + $0x4b0] sm:$0xff]
    %v1463 = vld [vmem:[#allocation6 + $0x4b8] sm:$0xff]
    %v1464 = vld [vmem:[#allocation6 + $0x4c0] sm:$0xff]
    %v1465 = vld [vmem:[#allocation6 + $0x4c8] sm:$0xff]
    %v1466 = vld [vmem:[#allocation6 + $0x4d0] sm:$0xff]
    %v1467 = vld [vmem:[#allocation6 + $0x4d8] sm:$0xff]
    %v1468 = vld [vmem:[#allocation6 + $0x4e0] sm:$0xff]
    %v1469 = vld [vmem:[#allocation6 + $0x4e8] sm:$0xff]
    %v1470 = vld [vmem:[#allocation6 + $0x4f0] sm:$0xff]
    %v1471 = vld [vmem:[#allocation6 + $0x4f8] sm:$0xff]
    %v1472 = vld [vmem:[#allocation6 + $0x500] sm:$0xff]
    %v1473 = vld [vmem:[#allocation6 + $0x508] sm:$0xff]
    %v1474 = vld [vmem:[#allocation6 + $0x510] sm:$0xff]
    %v1475 = vld [vmem:[#allocation6 + $0x518] sm:$0xff]
    %v1476 = vld [vmem:[#allocation6 + $0x520] sm:$0xff]
    %v1477 = vld [vmem:[#allocation6 + $0x528] sm:$0xff]
    %v1478 = vld [vmem:[#allocation6 + $0x530] sm:$0xff]
    %v1479 = vld [vmem:[#allocation6 + $0x538] sm:$0xff]
    %v1480 = vld [vmem:[#allocation6 + $0x540] sm:$0xff]
    %v1481 = vld [vmem:[#allocation6 + $0x548] sm:$0xff]
    %v1482 = vld [vmem:[#allocation6 + $0x550] sm:$0xff]
    %v1483 = vld [vmem:[#allocation6 + $0x558] sm:$0xff]
    %v1484 = vld [vmem:[#allocation6 + $0x560] sm:$0xff]
    %v1485 = vld [vmem:[#allocation6 + $0x568] sm:$0xff]
    %v1486 = vld [vmem:[#allocation6 + $0x570] sm:$0xff]
    %v1487 = vld [vmem:[#allocation6 + $0x578] sm:$0xff]
    %v1488 = vld [vmem:[#allocation6 + $0x580] sm:$0xff]
    %v1489 = vld [vmem:[#allocation6 + $0x588] sm:$0xff]
    %v1490 = vld [vmem:[#allocation6 + $0x590] sm:$0xff]
    %v1491 = vld [vmem:[#allocation6 + $0x598] sm:$0xff]
    %v1492 = vld [vmem:[#allocation6 + $0x5a0] sm:$0xff]
    %v1493 = vld [vmem:[#allocation6 + $0x5a8] sm:$0xff]
    %v1494 = vld [vmem:[#allocation6 + $0x5b0] sm:$0xff]
    %v1495 = vld [vmem:[#allocation6 + $0x5b8] sm:$0xff]
    %v1496 = vld [vmem:[#allocation6 + $0x5c0] sm:$0xff]
    %v1497 = vld [vmem:[#allocation6 + $0x5c8] sm:$0xff]
    %v1498 = vld [vmem:[#allocation6 + $0x5d0] sm:$0xff]
    %v1499 = vld [vmem:[#allocation6 + $0x5d8] sm:$0xff]
    %v1500 = vld [vmem:[#allocation6 + $0x5e0] sm:$0xff]
    %v1501 = vld [vmem:[#allocation6 + $0x5e8] sm:$0xff]
    %v1502 = vld [vmem:[#allocation6 + $0x5f0] sm:$0xff]
    %v1503 = vld [vmem:[#allocation6 + $0x5f8] sm:$0xff]
    %v1504 = vld [vmem:[#allocation6 + $0x600] sm:$0xff]
    %v1505 = vld [vmem:[#allocation6 + $0x608] sm:$0xff]
    %v1506 = vld [vmem:[#allocation6 + $0x610] sm:$0xff]
    %v1507 = vld [vmem:[#allocation6 + $0x618] sm:$0xff]
    %v1508 = vld [vmem:[#allocation6 + $0x620] sm:$0xff]
    %v1509 = vld [vmem:[#allocation6 + $0x628] sm:$0xff]
    %v1510 = vld [vmem:[#allocation6 + $0x630] sm:$0xff]
    %v1511 = vld [vmem:[#allocation6 + $0x638] sm:$0xff]
    %v1512 = vld [vmem:[#allocation6 + $0x640] sm:$0xff]
    %v1513 = vld [vmem:[#allocation6 + $0x648] sm:$0xff]
    %v1514 = vld [vmem:[#allocation6 + $0x650] sm:$0xff]
    %v1515 = vld [vmem:[#allocation6 + $0x658] sm:$0xff]
    %v1516 = vld [vmem:[#allocation6 + $0x660] sm:$0xff]
    %v1517 = vld [vmem:[#allocation6 + $0x668] sm:$0xff]
    %v1518 = vld [vmem:[#allocation6 + $0x670] sm:$0xff]
    %v1519 = vld [vmem:[#allocation6 + $0x678] sm:$0xff]
    %v1520 = vld [vmem:[#allocation6 + $0x680] sm:$0xff]
    %v1521 = vld [vmem:[#allocation6 + $0x688] sm:$0xff]
    %v1522 = vld [vmem:[#allocation6 + $0x690] sm:$0xff]
    %v1523 = vld [vmem:[#allocation6 + $0x698] sm:$0xff]
    %v1524 = vld [vmem:[#allocation6 + $0x6a0] sm:$0xff]
    %v1525 = vld [vmem:[#allocation6 + $0x6a8] sm:$0xff]
    %v1526 = vld [vmem:[#allocation6 + $0x6b0] sm:$0xff]
    %v1527 = vld [vmem:[#allocation6 + $0x6b8] sm:$0xff]
    %v1528 = vld [vmem:[#allocation6 + $0x6c0] sm:$0xff]
    %v1529 = vld [vmem:[#allocation6 + $0x6c8] sm:$0xff]
    %v1530 = vld [vmem:[#allocation6 + $0x6d0] sm:$0xff]
    %v1531 = vld [vmem:[#allocation6 + $0x6d8] sm:$0xff]
    %v1532 = vld [vmem:[#allocation6 + $0x6e0] sm:$0xff]
    %v1533 = vld [vmem:[#allocation6 + $0x6e8] sm:$0xff]
    %v1534 = vld [vmem:[#allocation6 + $0x6f0] sm:$0xff]
    %v1535 = vld [vmem:[#allocation6 + $0x6f8] sm:$0xff]
    %v1536 = vld [vmem:[#allocation6 + $0x700] sm:$0xff]
    %v1537 = vld [vmem:[#allocation6 + $0x708] sm:$0xff]
    %v1538 = vld [vmem:[#allocation6 + $0x710] sm:$0xff]
    %v1539 = vld [vmem:[#allocation6 + $0x718] sm:$0xff]
    %v1540 = vld [vmem:[#allocation6 + $0x720] sm:$0xff]
    %v1541 = vld [vmem:[#allocation6 + $0x728] sm:$0xff]
    %v1542 = vld [vmem:[#allocation6 + $0x730] sm:$0xff]
    %v1543 = vld [vmem:[#allocation6 + $0x738] sm:$0xff]
    %v1544 = vld [vmem:[#allocation6 + $0x740] sm:$0xff]
    %v1545 = vld [vmem:[#allocation6 + $0x748] sm:$0xff]
    %v1546 = vld [vmem:[#allocation6 + $0x750] sm:$0xff]
    %v1547 = vld [vmem:[#allocation6 + $0x758] sm:$0xff]
    %v1548 = vld [vmem:[#allocation6 + $0x760] sm:$0xff]
    %v1549 = vld [vmem:[#allocation6 + $0x768] sm:$0xff]
    %v1550 = vld [vmem:[#allocation6 + $0x770] sm:$0xff]
    %v1551 = vld [vmem:[#allocation6 + $0x778] sm:$0xff]
    %v1552 = vld [vmem:[#allocation6 + $0x780] sm:$0xff]
    %v1553 = vld [vmem:[#allocation6 + $0x788] sm:$0xff]
    %v1554 = vld [vmem:[#allocation6 + $0x790] sm:$0xff]
    %v1555 = vld [vmem:[#allocation6 + $0x798] sm:$0xff]
    %v1556 = vld [vmem:[#allocation6 + $0x7a0] sm:$0xff]
    %v1557 = vld [vmem:[#allocation6 + $0x7a8] sm:$0xff]
    %v1558 = vld [vmem:[#allocation6 + $0x7b0] sm:$0xff]
    %v1559 = vld [vmem:[#allocation6 + $0x7b8] sm:$0xff]
    %v1560 = vld [vmem:[#allocation6 + $0x7c0] sm:$0xff]
    %v1561 = vld [vmem:[#allocation6 + $0x7c8] sm:$0xff]
    %v1562 = vld [vmem:[#allocation6 + $0x7d0] sm:$0xff]
    %v1563 = vld [vmem:[#allocation6 + $0x7d8] sm:$0xff]
    %v1564 = vld [vmem:[#allocation6 + $0x7e0] sm:$0xff]
    %v1565 = vld [vmem:[#allocation6 + $0x7e8] sm:$0xff]
    %v1566 = vld [vmem:[#allocation6 + $0x7f0] sm:$0xff]
    %v1567 = vld [vmem:[#allocation6 + $0x7f8] sm:$0xff]
    %v1568 = vld [vmem:[#allocation6 + $0x800] sm:$0xff]
    %v1569 = vld [vmem:[#allocation6 + $0x808] sm:$0xff]
    %v1570 = vld [vmem:[#allocation6 + $0x810] sm:$0xff]
    %v1571 = vld [vmem:[#allocation6 + $0x818] sm:$0xff]
    %v1572 = vld [vmem:[#allocation6 + $0x820] sm:$0xff]
    %v1573 = vld [vmem:[#allocation6 + $0x828] sm:$0xff]
    %v1574 = vld [vmem:[#allocation6 + $0x830] sm:$0xff]
    %v1575 = vld [vmem:[#allocation6 + $0x838] sm:$0xff]
    %v1576 = vld [vmem:[#allocation6 + $0x840] sm:$0xff]
    %v1577 = vld [vmem:[#allocation6 + $0x848] sm:$0xff]
    %v1578 = vld [vmem:[#allocation6 + $0x850] sm:$0xff]
    %v1579 = vld [vmem:[#allocation6 + $0x858] sm:$0xff]
    %v1580 = vld [vmem:[#allocation6 + $0x860] sm:$0xff]
    %v1581 = vld [vmem:[#allocation6 + $0x868] sm:$0xff]
    %v1582 = vld [vmem:[#allocation6 + $0x870] sm:$0xff]
    %v1583 = vld [vmem:[#allocation6 + $0x878] sm:$0xff]
    %v1584 = vld [vmem:[#allocation6 + $0x880] sm:$0xff]
    %v1585 = vld [vmem:[#allocation6 + $0x888] sm:$0xff]
    %v1586 = vld [vmem:[#allocation6 + $0x890] sm:$0xff]
    %v1587 = vld [vmem:[#allocation6 + $0x898] sm:$0xff]
    %v1588 = vld [vmem:[#allocation6 + $0x8a0] sm:$0xff]
    %v1589 = vld [vmem:[#allocation6 + $0x8a8] sm:$0xff]
    %v1590 = vld [vmem:[#allocation6 + $0x8b0] sm:$0xff]
    %v1591 = vld [vmem:[#allocation6 + $0x8b8] sm:$0xff]
    %v1592 = vld [vmem:[#allocation6 + $0x8c0] sm:$0xff]
    %v1593 = vld [vmem:[#allocation6 + $0x8c8] sm:$0xff]
    %v1594 = vld [vmem:[#allocation6 + $0x8d0] sm:$0xff]
    %v1595 = vld [vmem:[#allocation6 + $0x8d8] sm:$0xff]
    %v1596 = vld [vmem:[#allocation6 + $0x8e0] sm:$0xff]
    %v1597 = vld [vmem:[#allocation6 + $0x8e8] sm:$0xff]
    %v1598 = vld [vmem:[#allocation6 + $0x8f0] sm:$0xff]
    %v1599 = vld [vmem:[#allocation6 + $0x8f8] sm:$0xff]
    %v1600 = vld [vmem:[#allocation6 + $0x900] sm:$0xff]
    %v1601 = vld [vmem:[#allocation6 + $0x908] sm:$0xff]
    %v1602 = vld [vmem:[#allocation6 + $0x910] sm:$0xff]
    %v1603 = vld [vmem:[#allocation6 + $0x918] sm:$0xff]
    %v1604 = vld [vmem:[#allocation6 + $0x920] sm:$0xff]
    %v1605 = vld [vmem:[#allocation6 + $0x928] sm:$0xff]
    %v1606 = vld [vmem:[#allocation6 + $0x930] sm:$0xff]
    %v1607 = vld [vmem:[#allocation6 + $0x938] sm:$0xff]
    %v1608 = vld [vmem:[#allocation6 + $0x940] sm:$0xff]
    %v1609 = vld [vmem:[#allocation6 + $0x948] sm:$0xff]
    %v1610 = vld [vmem:[#allocation6 + $0x950] sm:$0xff]
    %v1611 = vld [vmem:[#allocation6 + $0x958] sm:$0xff]
    %v1612 = vld [vmem:[#allocation6 + $0x960] sm:$0xff]
    %v1613 = vld [vmem:[#allocation6 + $0x968] sm:$0xff]
    %v1614 = vld [vmem:[#allocation6 + $0x970] sm:$0xff]
    %v1615 = vld [vmem:[#allocation6 + $0x978] sm:$0xff]
    %v1616 = vld [vmem:[#allocation6 + $0x980] sm:$0xff]
    %v1617 = vld [vmem:[#allocation6 + $0x988] sm:$0xff]
    %v1618 = vld [vmem:[#allocation6 + $0x990] sm:$0xff]
    %v1619 = vld [vmem:[#allocation6 + $0x998] sm:$0xff]
    %v1620 = vld [vmem:[#allocation6 + $0x9a0] sm:$0xff]
    %v1621 = vld [vmem:[#allocation6 + $0x9a8] sm:$0xff]
    %v1622 = vld [vmem:[#allocation6 + $0x9b0] sm:$0xff]
    %v1623 = vld [vmem:[#allocation6 + $0x9b8] sm:$0xff]
    %v1624 = vld [vmem:[#allocation6 + $0x9c0] sm:$0xff]
    %v1625 = vld [vmem:[#allocation6 + $0x9c8] sm:$0xff]
    %v1626 = vld [vmem:[#allocation6 + $0x9d0] sm:$0xff]
    %v1627 = vld [vmem:[#allocation6 + $0x9d8] sm:$0xff]
    %v1628 = vld [vmem:[#allocation6 + $0x9e0] sm:$0xff]
    %v1629 = vld [vmem:[#allocation6 + $0x9e8] sm:$0xff]
    %v1630 = vld [vmem:[#allocation6 + $0x9f0] sm:$0xff]
    %v1631 = vld [vmem:[#allocation6 + $0x9f8] sm:$0xff]
    %v1632 = vld [vmem:[#allocation6 + $0xa00] sm:$0xff]
    %v1633 = vld [vmem:[#allocation6 + $0xa08] sm:$0xff]
    %v1634 = vld [vmem:[#allocation6 + $0xa10] sm:$0xff]
    %v1635 = vld [vmem:[#allocation6 + $0xa18] sm:$0xff]
    %v1636 = vld [vmem:[#allocation6 + $0xa20] sm:$0xff]
    %v1637 = vld [vmem:[#allocation6 + $0xa28] sm:$0xff]
    %v1638 = vld [vmem:[#allocation6 + $0xa30] sm:$0xff]
    %v1639 = vld [vmem:[#allocation6 + $0xa38] sm:$0xff]
    %v1640 = vld [vmem:[#allocation6 + $0xa40] sm:$0xff]
    %v1641 = vld [vmem:[#allocation6 + $0xa48] sm:$0xff]
    %v1642 = vld [vmem:[#allocation6 + $0xa50] sm:$0xff]
    %v1643 = vld [vmem:[#allocation6 + $0xa58] sm:$0xff]
    %v1644 = vld [vmem:[#allocation6 + $0xa60] sm:$0xff]
    %v1645 = vld [vmem:[#allocation6 + $0xa68] sm:$0xff]
    %v1646 = vld [vmem:[#allocation6 + $0xa70] sm:$0xff]
    %v1647 = vld [vmem:[#allocation6 + $0xa78] sm:$0xff]
    %v1648 = vld [vmem:[#allocation6 + $0xa80] sm:$0xff]
    %v1649 = vld [vmem:[#allocation6 + $0xa88] sm:$0xff]
    %v1650 = vld [vmem:[#allocation6 + $0xa90] sm:$0xff]
    %v1651 = vld [vmem:[#allocation6 + $0xa98] sm:$0xff]
    %v1652 = vld [vmem:[#allocation6 + $0xaa0] sm:$0xff]
    %v1653 = vld [vmem:[#allocation6 + $0xaa8] sm:$0xff]
    %v1654 = vld [vmem:[#allocation6 + $0xab0] sm:$0xff]
    %v1655 = vld [vmem:[#allocation6 + $0xab8] sm:$0xff]
    %v1656 = vld [vmem:[#allocation6 + $0xac0] sm:$0xff]
    %v1657 = vld [vmem:[#allocation6 + $0xac8] sm:$0xff]
    %v1658 = vld [vmem:[#allocation6 + $0xad0] sm:$0xff]
    %v1659 = vld [vmem:[#allocation6 + $0xad8] sm:$0xff]
    %v1660 = vld [vmem:[#allocation6 + $0xae0] sm:$0xff]
    %v1661 = vld [vmem:[#allocation6 + $0xae8] sm:$0xff]
    %v1662 = vld [vmem:[#allocation6 + $0xaf0] sm:$0xff]
    %v1663 = vld [vmem:[#allocation6 + $0xaf8] sm:$0xff]
    %v1664 = vld [vmem:[#allocation6 + $0xb00] sm:$0xff]
    %v1665 = vld [vmem:[#allocation6 + $0xb08] sm:$0xff]
    %v1666 = vld [vmem:[#allocation6 + $0xb10] sm:$0xff]
    %v1667 = vld [vmem:[#allocation6 + $0xb18] sm:$0xff]
    %v1668 = vld [vmem:[#allocation6 + $0xb20] sm:$0xff]
    %v1669 = vld [vmem:[#allocation6 + $0xb28] sm:$0xff]
    %v1670 = vld [vmem:[#allocation6 + $0xb30] sm:$0xff]
    %v1671 = vld [vmem:[#allocation6 + $0xb38] sm:$0xff]
    %v1672 = vld [vmem:[#allocation6 + $0xb40] sm:$0xff]
    %v1673 = vld [vmem:[#allocation6 + $0xb48] sm:$0xff]
    %v1674 = vld [vmem:[#allocation6 + $0xb50] sm:$0xff]
    %v1675 = vld [vmem:[#allocation6 + $0xb58] sm:$0xff]
    %v1676 = vld [vmem:[#allocation6 + $0xb60] sm:$0xff]
    %v1677 = vld [vmem:[#allocation6 + $0xb68] sm:$0xff]
    %v1678 = vld [vmem:[#allocation6 + $0xb70] sm:$0xff]
    %v1679 = vld [vmem:[#allocation6 + $0xb78] sm:$0xff]
    %v1680 = vld [vmem:[#allocation6 + $0xb80] sm:$0xff]
    %v1681 = vld [vmem:[#allocation6 + $0xb88] sm:$0xff]
    %v1682 = vld [vmem:[#allocation6 + $0xb90] sm:$0xff]
    %v1683 = vld [vmem:[#allocation6 + $0xb98] sm:$0xff]
    %v1684 = vld [vmem:[#allocation6 + $0xba0] sm:$0xff]
    %v1685 = vld [vmem:[#allocation6 + $0xba8] sm:$0xff]
    %v1686 = vld [vmem:[#allocation6 + $0xbb0] sm:$0xff]
    %v1687 = vld [vmem:[#allocation6 + $0xbb8] sm:$0xff]
    %v1688 = vld [vmem:[#allocation6 + $0xbc0] sm:$0xff]
    %v1689 = vld [vmem:[#allocation6 + $0xbc8] sm:$0xff]
    %v1690 = vld [vmem:[#allocation6 + $0xbd0] sm:$0xff]
    %v1691 = vld [vmem:[#allocation6 + $0xbd8] sm:$0xff]
    %v1692 = vld [vmem:[#allocation6 + $0xbe0] sm:$0xff]
    %v1693 = vld [vmem:[#allocation6 + $0xbe8] sm:$0xff]
    %v1694 = vld [vmem:[#allocation6 + $0xbf0] sm:$0xff]
    %v1695 = vld [vmem:[#allocation6 + $0xbf8] sm:$0xff]
    %v1696 = vld [vmem:[#allocation7] sm:$0xf]
    %v1698 = vlaneseq
    %v1699 = vshrl.u32 %v1698, 7
    %v1700 = vsub.s32 0, %v1699
    %v1701 = vrot.slane %v1696, %v1700
    %v1702 = vlaneseq
    %v1703 = vshrl.u32 %v1702, 7
    %v1704 = vsub.s32 1, %v1703
    %v1705 = vrot.slane %v1696, %v1704
    %v1706 = vlaneseq
    %v1707 = vshrl.u32 %v1706, 7
    %v1708 = vsub.s32 2, %v1707
    %v1709 = vrot.slane %v1696, %v1708
    %v1710 = vlaneseq
    %v1711 = vshrl.u32 %v1710, 7
    %v1712 = vsub.s32 3, %v1711
    %v1713 = vrot.slane %v1696, %v1712
    %1718 = vmatprep.subr.mxu0 %v1313
    %1719 = vmatpush1.msra.mxu0 %v1312
    %1720 = vmatprep.subr.mxu0 %v1317
    %1721 = vmatpush1.msra.mxu0 %v1316
    %1722 = vmatprep.subr.mxu0 %v1321
    %1723 = vmatpush1.msra.mxu0 %v1320
    %1724 = vmatprep.subr.mxu0 %v1325
    %1725 = vmatpush1.msra.mxu0 %v1324
    %1726 = vmatprep.subr.mxu0 %v1329
    %1727 = vmatpush1.msra.mxu0 %v1328
    %1728 = vmatprep.subr.mxu0 %v1333
    %1729 = vmatpush1.msra.mxu0 %v1332
    %1730 = vmatprep.subr.mxu0 %v1337
    %1731 = vmatpush1.msra.mxu0 %v1336
    %1732 = vmatprep.subr.mxu0 %v1341
    %1733 = vmatpush1.msra.mxu0 %v1340
    %1734 = vmatprep.subr.mxu0 %v1345
    %1735 = vmatpush1.msra.mxu0 %v1344
    %1736 = vmatprep.subr.mxu0 %v1349
    %1737 = vmatpush1.msra.mxu0 %v1348
    %1738 = vmatprep.subr.mxu0 %v1353
    %1739 = vmatpush1.msra.mxu0 %v1352
    %1740 = vmatprep.subr.mxu0 %v1357
    %1741 = vmatpush1.msra.mxu0 %v1356
    %1742 = vmatprep.subr.mxu0 %v1361
    %1743 = vmatpush1.msra.mxu0 %v1360
    %1744 = vmatprep.subr.mxu0 %v1365
    %1745 = vmatpush1.msra.mxu0 %v1364
    %1746 = vmatprep.subr.mxu0 %v1369
    %1747 = vmatpush1.msra.mxu0 %v1368
    %1748 = vmatprep.subr.mxu0 %v1373
    %1749 = vmatpush1.msra.mxu0 %v1372
    %1750 = vmatprep.subr.mxu0 %v1377
    %1751 = vmatpush1.msra.mxu0 %v1376
    %1752 = vmatprep.subr.mxu0 %v1381
    %1753 = vmatpush1.msra.mxu0 %v1380
    %1754 = vmatprep.subr.mxu0 %v1385
    %1755 = vmatpush1.msra.mxu0 %v1384
    %1756 = vmatprep.subr.mxu0 %v1389
    %1757 = vmatpush1.msra.mxu0 %v1388
    %1758 = vmatprep.subr.mxu0 %v1393
    %1759 = vmatpush1.msra.mxu0 %v1392
    %1760 = vmatprep.subr.mxu0 %v1397
    %1761 = vmatpush1.msra.mxu0 %v1396
    %1762 = vmatprep.subr.mxu0 %v1401
    %1763 = vmatpush1.msra.mxu0 %v1400
    %1764 = vmatprep.subr.mxu0 %v1405
    %1765 = vmatpush1.msra.mxu0 %v1404
    %1766 = vmatprep.subr.mxu0 %v1409
    %1767 = vmatpush1.msra.mxu0 %v1408
    %1768 = vmatprep.subr.mxu0 %v1413
    %1769 = vmatpush1.msra.mxu0 %v1412
    %1770 = vmatprep.subr.mxu0 %v1417
    %1771 = vmatpush1.msra.mxu0 %v1416
    %1772 = vmatprep.subr.mxu0 %v1421
    %1773 = vmatpush1.msra.mxu0 %v1420
    %1774 = vmatprep.subr.mxu0 %v1425
    %1775 = vmatpush1.msra.mxu0 %v1424
    %1776 = vmatprep.subr.mxu0 %v1429
    %1777 = vmatpush1.msra.mxu0 %v1428
    %1778 = vmatprep.subr.mxu0 %v1433
    %1779 = vmatpush1.msra.mxu0 %v1432
    %1780 = vmatprep.subr.mxu0 %v1437
    %1781 = vmatpush1.msra.mxu0 %v1436
    %1782 = vmatprep.mubr.f32.mxu0 %v1293
    %1783 = vmatmul.mubr.f32.gmra.mrb[0].mxu0 %v1292
    %v1784 = vpop.f32.mrb[0].mxu0
    %v1785 = vadd.f32 %v1701, %v1784
    %v1786 = vpop.f32.mrb[0].mxu0
    %v1787 = vadd.f32 %v1705, %v1786
    %1788 = vdwg.mxu0
    %1789 = vmatprep.subr.mxu0 %v1441
    %1790 = vmatpush1.msra.mxu0 %v1440
    %1791 = vmatprep.subr.mxu0 %v1445
    %1792 = vmatpush1.msra.mxu0 %v1444
    %1793 = vmatprep.subr.mxu0 %v1449
    %1794 = vmatpush1.msra.mxu0 %v1448
    %1795 = vmatprep.subr.mxu0 %v1453
    %1796 = vmatpush1.msra.mxu0 %v1452
    %1797 = vmatprep.subr.mxu0 %v1457
    %1798 = vmatpush1.msra.mxu0 %v1456
    %1799 = vmatprep.subr.mxu0 %v1461
    %1800 = vmatpush1.msra.mxu0 %v1460
    %1801 = vmatprep.subr.mxu0 %v1465
    %1802 = vmatpush1.msra.mxu0 %v1464
    %1803 = vmatprep.subr.mxu0 %v1469
    %1804 = vmatpush1.msra.mxu0 %v1468
    %1805 = vmatprep.subr.mxu0 %v1473
    %1806 = vmatpush1.msra.mxu0 %v1472
    %1807 = vmatprep.subr.mxu0 %v1477
    %1808 = vmatpush1.msra.mxu0 %v1476
    %1809 = vmatprep.subr.mxu0 %v1481
    %1810 = vmatpush1.msra.mxu0 %v1480
    %1811 = vmatprep.subr.mxu0 %v1485
    %1812 = vmatpush1.msra.mxu0 %v1484
    %1813 = vmatprep.subr.mxu0 %v1489
    %1814 = vmatpush1.msra.mxu0 %v1488
    %1815 = vmatprep.subr.mxu0 %v1493
    %1816 = vmatpush1.msra.mxu0 %v1492
    %1817 = vmatprep.subr.mxu0 %v1497
    %1818 = vmatpush1.msra.mxu0 %v1496
    %1819 = vmatprep.subr.mxu0 %v1501
    %1820 = vmatpush1.msra.mxu0 %v1500
    %1821 = vmatprep.subr.mxu0 %v1505
    %1822 = vmatpush1.msra.mxu0 %v1504
    %1823 = vmatprep.subr.mxu0 %v1509
    %1824 = vmatpush1.msra.mxu0 %v1508
    %1825 = vmatprep.subr.mxu0 %v1513
    %1826 = vmatpush1.msra.mxu0 %v1512
    %1827 = vmatprep.subr.mxu0 %v1517
    %1828 = vmatpush1.msra.mxu0 %v1516
    %1829 = vmatprep.subr.mxu0 %v1521
    %1830 = vmatpush1.msra.mxu0 %v1520
    %1831 = vmatprep.subr.mxu0 %v1525
    %1832 = vmatpush1.msra.mxu0 %v1524
    %1833 = vmatprep.subr.mxu0 %v1529
    %1834 = vmatpush1.msra.mxu0 %v1528
    %1835 = vmatprep.subr.mxu0 %v1533
    %1836 = vmatpush1.msra.mxu0 %v1532
    %1837 = vmatprep.subr.mxu0 %v1537
    %1838 = vmatpush1.msra.mxu0 %v1536
    %1839 = vmatprep.subr.mxu0 %v1541
    %1840 = vmatpush1.msra.mxu0 %v1540
    %1841 = vmatprep.subr.mxu0 %v1545
    %1842 = vmatpush1.msra.mxu0 %v1544
    %1843 = vmatprep.subr.mxu0 %v1549
    %1844 = vmatpush1.msra.mxu0 %v1548
    %1845 = vmatprep.subr.mxu0 %v1553
    %1846 = vmatpush1.msra.mxu0 %v1552
    %1847 = vmatprep.subr.mxu0 %v1557
    %1848 = vmatpush1.msra.mxu0 %v1556
    %1849 = vmatprep.subr.mxu0 %v1561
    %1850 = vmatpush1.msra.mxu0 %v1560
    %1851 = vmatprep.subr.mxu0 %v1565
    %1852 = vmatpush1.msra.mxu0 %v1564
    %1853 = vmatprep.mubr.f32.mxu0 %v1295
    %1854 = vmatmul.mubr.f32.gmra.mrb[0].mxu0 %v1294
    %v1855 = vpop.f32.mrb[0].mxu0
    %v1856 = vadd.f32 %v1785, %v1855
    %v1857 = vpop.f32.mrb[0].mxu0
    %v1858 = vadd.f32 %v1787, %v1857
    %1859 = vdwg.mxu0
    %1860 = vmatprep.subr.mxu0 %v1569
    %1861 = vmatpush1.msra.mxu0 %v1568
    %1862 = vmatprep.subr.mxu0 %v1573
    %1863 = vmatpush1.msra.mxu0 %v1572
    %1864 = vmatprep.subr.mxu0 %v1577
    %1865 = vmatpush1.msra.mxu0 %v1576
    %1866 = vmatprep.subr.mxu0 %v1581
    %1867 = vmatpush1.msra.mxu0 %v1580
    %1868 = vmatprep.subr.mxu0 %v1585
    %1869 = vmatpush1.msra.mxu0 %v1584
    %1870 = vmatprep.subr.mxu0 %v1589
    %1871 = vmatpush1.msra.mxu0 %v1588
    %1872 = vmatprep.subr.mxu0 %v1593
    %1873 = vmatpush1.msra.mxu0 %v1592
    %1874 = vmatprep.subr.mxu0 %v1597
    %1875 = vmatpush1.msra.mxu0 %v1596
    %1876 = vmatprep.subr.mxu0 %v1601
    %1877 = vmatpush1.msra.mxu0 %v1600
    %1878 = vmatprep.subr.mxu0 %v1605
    %1879 = vmatpush1.msra.mxu0 %v1604
    %1880 = vmatprep.subr.mxu0 %v1609
    %1881 = vmatpush1.msra.mxu0 %v1608
    %1882 = vmatprep.subr.mxu0 %v1613
    %1883 = vmatpush1.msra.mxu0 %v1612
    %1884 = vmatprep.subr.mxu0 %v1617
    %1885 = vmatpush1.msra.mxu0 %v1616
    %1886 = vmatprep.subr.mxu0 %v1621
    %1887 = vmatpush1.msra.mxu0 %v1620
    %1888 = vmatprep.subr.mxu0 %v1625
    %1889 = vmatpush1.msra.mxu0 %v1624
    %1890 = vmatprep.subr.mxu0 %v1629
    %1891 = vmatpush1.msra.mxu0 %v1628
    %1892 = vmatprep.subr.mxu0 %v1633
    %1893 = vmatpush1.msra.mxu0 %v1632
    %1894 = vmatprep.subr.mxu0 %v1637
    %1895 = vmatpush1.msra.mxu0 %v1636
    %1896 = vmatprep.subr.mxu0 %v1641
    %1897 = vmatpush1.msra.mxu0 %v1640
    %1898 = vmatprep.subr.mxu0 %v1645
    %1899 = vmatpush1.msra.mxu0 %v1644
    %1900 = vmatprep.subr.mxu0 %v1649
    %1901 = vmatpush1.msra.mxu0 %v1648
    %1902 = vmatprep.subr.mxu0 %v1653
    %1903 = vmatpush1.msra.mxu0 %v1652
    %1904 = vmatprep.subr.mxu0 %v1657
    %1905 = vmatpush1.msra.mxu0 %v1656
    %1906 = vmatprep.subr.mxu0 %v1661
    %1907 = vmatpush1.msra.mxu0 %v1660
    %1908 = vmatprep.subr.mxu0 %v1665
    %1909 = vmatpush1.msra.mxu0 %v1664
    %1910 = vmatprep.subr.mxu0 %v1669
    %1911 = vmatpush1.msra.mxu0 %v1668
    %1912 = vmatprep.subr.mxu0 %v1673
    %1913 = vmatpush1.msra.mxu0 %v1672
    %1914 = vmatprep.subr.mxu0 %v1677
    %1915 = vmatpush1.msra.mxu0 %v1676
    %1916 = vmatprep.subr.mxu0 %v1681
    %1917 = vmatpush1.msra.mxu0 %v1680
    %1918 = vmatprep.subr.mxu0 %v1685
    %1919 = vmatpush1.msra.mxu0 %v1684
    %1920 = vmatprep.subr.mxu0 %v1689
    %1921 = vmatpush1.msra.mxu0 %v1688
    %1922 = vmatprep.subr.mxu0 %v1693
    %1923 = vmatpush1.msra.mxu0 %v1692
    %1924 = vmatprep.mubr.f32.mxu0 %v1297
    %1925 = vmatmul.mubr.f32.gmra.mrb[0].mxu0 %v1296
    %v1926 = vpop.f32.mrb[0].mxu0
    %v1927 = vadd.f32 %v1856, %v1926
    %v1928 = vpop.f32.mrb[0].mxu0
    %v1929 = vadd.f32 %v1858, %v1928
    %1930 = vdwg.mxu0
    %1931 = vmatprep.subr.mxu0 %v1315
    %1932 = vmatpush1.msra.mxu0 %v1314
    %1933 = vmatprep.subr.mxu0 %v1319
    %1934 = vmatpush1.msra.mxu0 %v1318
    %1935 = vmatprep.subr.mxu0 %v1323
    %1936 = vmatpush1.msra.mxu0 %v1322
    %1937 = vmatprep.subr.mxu0 %v1327
    %1938 = vmatpush1.msra.mxu0 %v1326
    %1939 = vmatprep.subr.mxu0 %v1331
    %1940 = vmatpush1.msra.mxu0 %v1330
    %1941 = vmatprep.subr.mxu0 %v1335
    %1942 = vmatpush1.msra.mxu0 %v1334
    %1943 = vmatprep.subr.mxu0 %v1339
    %1944 = vmatpush1.msra.mxu0 %v1338
    %1945 = vmatprep.subr.mxu0 %v1343
    %1946 = vmatpush1.msra.mxu0 %v1342
    %1947 = vmatprep.subr.mxu0 %v1347
    %1948 = vmatpush1.msra.mxu0 %v1346
    %1949 = vmatprep.subr.mxu0 %v1351
    %1950 = vmatpush1.msra.mxu0 %v1350
    %1951 = vmatprep.subr.mxu0 %v1355
    %1952 = vmatpush1.msra.mxu0 %v1354
    %1953 = vmatprep.subr.mxu0 %v1359
    %1954 = vmatpush1.msra.mxu0 %v1358
    %1955 = vmatprep.subr.mxu0 %v1363
    %1956 = vmatpush1.msra.mxu0 %v1362
    %1957 = vmatprep.subr.mxu0 %v1367
    %1958 = vmatpush1.msra.mxu0 %v1366
    %1959 = vmatprep.subr.mxu0 %v1371
    %1960 = vmatpush1.msra.mxu0 %v1370
    %1961 = vmatprep.subr.mxu0 %v1375
    %1962 = vmatpush1.msra.mxu0 %v1374
    %1963 = vmatprep.subr.mxu0 %v1379
    %1964 = vmatpush1.msra.mxu0 %v1378
    %1965 = vmatprep.subr.mxu0 %v1383
    %1966 = vmatpush1.msra.mxu0 %v1382
    %1967 = vmatprep.subr.mxu0 %v1387
    %1968 = vmatpush1.msra.mxu0 %v1386
    %1969 = vmatprep.subr.mxu0 %v1391
    %1970 = vmatpush1.msra.mxu0 %v1390
    %1971 = vmatprep.subr.mxu0 %v1395
    %1972 = vmatpush1.msra.mxu0 %v1394
    %1973 = vmatprep.subr.mxu0 %v1399
    %1974 = vmatpush1.msra.mxu0 %v1398
    %1975 = vmatprep.subr.mxu0 %v1403
    %1976 = vmatpush1.msra.mxu0 %v1402
    %1977 = vmatprep.subr.mxu0 %v1407
    %1978 = vmatpush1.msra.mxu0 %v1406
    %1979 = vmatprep.subr.mxu0 %v1411
    %1980 = vmatpush1.msra.mxu0 %v1410
    %1981 = vmatprep.subr.mxu0 %v1415
    %1982 = vmatpush1.msra.mxu0 %v1414
    %1983 = vmatprep.subr.mxu0 %v1419
    %1984 = vmatpush1.msra.mxu0 %v1418
    %1985 = vmatprep.subr.mxu0 %v1423
    %1986 = vmatpush1.msra.mxu0 %v1422
    %1987 = vmatprep.subr.mxu0 %v1427
    %1988 = vmatpush1.msra.mxu0 %v1426
    %1989 = vmatprep.subr.mxu0 %v1431
    %1990 = vmatpush1.msra.mxu0 %v1430
    %1991 = vmatprep.subr.mxu0 %v1435
    %1992 = vmatpush1.msra.mxu0 %v1434
    %1993 = vmatprep.subr.mxu0 %v1439
    %1994 = vmatpush1.msra.mxu0 %v1438
    %1995 = vmatprep.mubr.f32.mxu0 %v1293
    %1996 = vmatmul.mubr.f32.gmra.mrb[0].mxu0 %v1292
    %v1997 = vpop.f32.mrb[0].mxu0
    %v1998 = vadd.f32 %v1709, %v1997
    %v1999 = vpop.f32.mrb[0].mxu0
    %v2000 = vadd.f32 %v1713, %v1999
    %2001 = vdwg.mxu0
    %2002 = vmatprep.subr.mxu0 %v1443
    %2003 = vmatpush1.msra.mxu0 %v1442
    %2004 = vmatprep.subr.mxu0 %v1447
    %2005 = vmatpush1.msra.mxu0 %v1446
    %2006 = vmatprep.subr.mxu0 %v1451
    %2007 = vmatpush1.msra.mxu0 %v1450
    %2008 = vmatprep.subr.mxu0 %v1455
    %2009 = vmatpush1.msra.mxu0 %v1454
    %2010 = vmatprep.subr.mxu0 %v1459
    %2011 = vmatpush1.msra.mxu0 %v1458
    %2012 = vmatprep.subr.mxu0 %v1463
    %2013 = vmatpush1.msra.mxu0 %v1462
    %2014 = vmatprep.subr.mxu0 %v1467
    %2015 = vmatpush1.msra.mxu0 %v1466
    %2016 = vmatprep.subr.mxu0 %v1471
    %2017 = vmatpush1.msra.mxu0 %v1470
    %2018 = vmatprep.subr.mxu0 %v1475
    %2019 = vmatpush1.msra.mxu0 %v1474
    %2020 = vmatprep.subr.mxu0 %v1479
    %2021 = vmatpush1.msra.mxu0 %v1478
    %2022 = vmatprep.subr.mxu0 %v1483
    %2023 = vmatpush1.msra.mxu0 %v1482
    %2024 = vmatprep.subr.mxu0 %v1487
    %2025 = vmatpush1.msra.mxu0 %v1486
    %2026 = vmatprep.subr.mxu0 %v1491
    %2027 = vmatpush1.msra.mxu0 %v1490
    %2028 = vmatprep.subr.mxu0 %v1495
    %2029 = vmatpush1.msra.mxu0 %v1494
    %2030 = vmatprep.subr.mxu0 %v1499
    %2031 = vmatpush1.msra.mxu0 %v1498
    %2032 = vmatprep.subr.mxu0 %v1503
    %2033 = vmatpush1.msra.mxu0 %v1502
    %2034 = vmatprep.subr.mxu0 %v1507
    %2035 = vmatpush1.msra.mxu0 %v1506
    %2036 = vmatprep.subr.mxu0 %v1511
    %2037 = vmatpush1.msra.mxu0 %v1510
    %2038 = vmatprep.subr.mxu0 %v1515
    %2039 = vmatpush1.msra.mxu0 %v1514
    %2040 = vmatprep.subr.mxu0 %v1519
    %2041 = vmatpush1.msra.mxu0 %v1518
    %2042 = vmatprep.subr.mxu0 %v1523
    %2043 = vmatpush1.msra.mxu0 %v1522
    %2044 = vmatprep.subr.mxu0 %v1527
    %2045 = vmatpush1.msra.mxu0 %v1526
    %2046 = vmatprep.subr.mxu0 %v1531
    %2047 = vmatpush1.msra.mxu0 %v1530
    %2048 = vmatprep.subr.mxu0 %v1535
    %2049 = vmatpush1.msra.mxu0 %v1534
    %2050 = vmatprep.subr.mxu0 %v1539
    %2051 = vmatpush1.msra.mxu0 %v1538
    %2052 = vmatprep.subr.mxu0 %v1543
    %2053 = vmatpush1.msra.mxu0 %v1542
    %2054 = vmatprep.subr.mxu0 %v1547
    %2055 = vmatpush1.msra.mxu0 %v1546
    %2056 = vmatprep.subr.mxu0 %v1551
    %2057 = vmatpush1.msra.mxu0 %v1550
    %2058 = vmatprep.subr.mxu0 %v1555
    %2059 = vmatpush1.msra.mxu0 %v1554
    %2060 = vmatprep.subr.mxu0 %v1559
    %2061 = vmatpush1.msra.mxu0 %v1558
    %2062 = vmatprep.subr.mxu0 %v1563
    %2063 = vmatpush1.msra.mxu0 %v1562
    %2064 = vmatprep.subr.mxu0 %v1567
    %2065 = vmatpush1.msra.mxu0 %v1566
    %2066 = vmatprep.mubr.f32.mxu0 %v1295
    %2067 = vmatmul.mubr.f32.gmra.mrb[0].mxu0 %v1294
    %v2068 = vpop.f32.mrb[0].mxu0
    %v2069 = vadd.f32 %v1998, %v2068
    %v2070 = vpop.f32.mrb[0].mxu0
    %v2071 = vadd.f32 %v2000, %v2070
    %2072 = vdwg.mxu0
    %2073 = vmatprep.subr.mxu0 %v1571
    %2074 = vmatpush1.msra.mxu0 %v1570
    %2075 = vmatprep.subr.mxu0 %v1575
    %2076 = vmatpush1.msra.mxu0 %v1574
    %2077 = vmatprep.subr.mxu0 %v1579
    %2078 = vmatpush1.msra.mxu0 %v1578
    %2079 = vmatprep.subr.mxu0 %v1583
    %2080 = vmatpush1.msra.mxu0 %v1582
    %2081 = vmatprep.subr.mxu0 %v1587
    %2082 = vmatpush1.msra.mxu0 %v1586
    %2083 = vmatprep.subr.mxu0 %v1591
    %2084 = vmatpush1.msra.mxu0 %v1590
    %2085 = vmatprep.subr.mxu0 %v1595
    %2086 = vmatpush1.msra.mxu0 %v1594
    %2087 = vmatprep.subr.mxu0 %v1599
    %2088 = vmatpush1.msra.mxu0 %v1598
    %2089 = vmatprep.subr.mxu0 %v1603
    %2090 = vmatpush1.msra.mxu0 %v1602
    %2091 = vmatprep.subr.mxu0 %v1607
    %2092 = vmatpush1.msra.mxu0 %v1606
    %2093 = vmatprep.subr.mxu0 %v1611
    %2094 = vmatpush1.msra.mxu0 %v1610
    %2095 = vmatprep.subr.mxu0 %v1615
    %2096 = vmatpush1.msra.mxu0 %v1614
    %2097 = vmatprep.subr.mxu0 %v1619
    %2098 = vmatpush1.msra.mxu0 %v1618
    %2099 = vmatprep.subr.mxu0 %v1623
    %2100 = vmatpush1.msra.mxu0 %v1622
    %2101 = vmatprep.subr.mxu0 %v1627
    %2102 = vmatpush1.msra.mxu0 %v1626
    %2103 = vmatprep.subr.mxu0 %v1631
    %2104 = vmatpush1.msra.mxu0 %v1630
    %2105 = vmatprep.subr.mxu0 %v1635
    %2106 = vmatpush1.msra.mxu0 %v1634
    %2107 = vmatprep.subr.mxu0 %v1639
    %2108 = vmatpush1.msra.mxu0 %v1638
    %2109 = vmatprep.subr.mxu0 %v1643
    %2110 = vmatpush1.msra.mxu0 %v1642
    %2111 = vmatprep.subr.mxu0 %v1647
    %2112 = vmatpush1.msra.mxu0 %v1646
    %2113 = vmatprep.subr.mxu0 %v1651
    %2114 = vmatpush1.msra.mxu0 %v1650
    %2115 = vmatprep.subr.mxu0 %v1655
    %2116 = vmatpush1.msra.mxu0 %v1654
    %2117 = vmatprep.subr.mxu0 %v1659
    %2118 = vmatpush1.msra.mxu0 %v1658
    %2119 = vmatprep.subr.mxu0 %v1663
    %2120 = vmatpush1.msra.mxu0 %v1662
    %2121 = vmatprep.subr.mxu0 %v1667
    %2122 = vmatpush1.msra.mxu0 %v1666
    %2123 = vmatprep.subr.mxu0 %v1671
    %2124 = vmatpush1.msra.mxu0 %v1670
    %2125 = vmatprep.subr.mxu0 %v1675
    %2126 = vmatpush1.msra.mxu0 %v1674
    %2127 = vmatprep.subr.mxu0 %v1679
    %2128 = vmatpush1.msra.mxu0 %v1678
    %2129 = vmatprep.subr.mxu0 %v1683
    %2130 = vmatpush1.msra.mxu0 %v1682
    %2131 = vmatprep.subr.mxu0 %v1687
    %2132 = vmatpush1.msra.mxu0 %v1686
    %2133 = vmatprep.subr.mxu0 %v1691
    %2134 = vmatpush1.msra.mxu0 %v1690
    %2135 = vmatprep.subr.mxu0 %v1695
    %2136 = vmatpush1.msra.mxu0 %v1694
    %2137 = vmatprep.mubr.f32.mxu0 %v1297
    %2138 = vmatmul.mubr.f32.gmra.mrb[0].mxu0 %v1296
    %v2139 = vpop.f32.mrb[0].mxu0
    %v2140 = vadd.f32 %v2069, %v2139
    %v2141 = vpop.f32.mrb[0].mxu0
    %v2142 = vadd.f32 %v2071, %v2141
    %2143 = vdwg.mxu0
    %v2144 = vmax.f32 %v1927, 0.0
    %v2145 = vmax.f32 %v1929, 0.0
    %v2146 = vmax.f32 %v2140, 0.0
    %v2147 = vmax.f32 %v2142, 0.0
    %2148 = vmatprep.subr.mxu0 %v1313
    %2149 = vmatpush1.msra.mxu0 %v1312
    %2150 = vmatprep.subr.mxu0 %v1317
    %2151 = vmatpush1.msra.mxu0 %v1316
    %2152 = vmatprep.subr.mxu0 %v1321
    %2153 = vmatpush1.msra.mxu0 %v1320
    %2154 = vmatprep.subr.mxu0 %v1325
    %2155 = vmatpush1.msra.mxu0 %v1324
    %2156 = vmatprep.subr.mxu0 %v1329
    %2157 = vmatpush1.msra.mxu0 %v1328
    %2158 = vmatprep.subr.mxu0 %v1333
    %2159 = vmatpush1.msra.mxu0 %v1332
    %2160 = vmatprep.subr.mxu0 %v1337
    %2161 = vmatpush1.msra.mxu0 %v1336
    %2162 = vmatprep.subr.mxu0 %v1341
    %2163 = vmatpush1.msra.mxu0 %v1340
    %2164 = vmatprep.subr.mxu0 %v1345
    %2165 = vmatpush1.msra.mxu0 %v1344
    %2166 = vmatprep.subr.mxu0 %v1349
    %2167 = vmatpush1.msra.mxu0 %v1348
    %2168 = vmatprep.subr.mxu0 %v1353
    %2169 = vmatpush1.msra.mxu0 %v1352
    %2170 = vmatprep.subr.mxu0 %v1357
    %2171 = vmatpush1.msra.mxu0 %v1356
    %2172 = vmatprep.subr.mxu0 %v1361
    %2173 = vmatpush1.msra.mxu0 %v1360
    %2174 = vmatprep.subr.mxu0 %v1365
    %2175 = vmatpush1.msra.mxu0 %v1364
    %2176 = vmatprep.subr.mxu0 %v1369
    %2177 = vmatpush1.msra.mxu0 %v1368
    %2178 = vmatprep.subr.mxu0 %v1373
    %2179 = vmatpush1.msra.mxu0 %v1372
    %2180 = vmatprep.subr.mxu0 %v1377
    %2181 = vmatpush1.msra.mxu0 %v1376
    %2182 = vmatprep.subr.mxu0 %v1381
    %2183 = vmatpush1.msra.mxu0 %v1380
    %2184 = vmatprep.subr.mxu0 %v1385
    %2185 = vmatpush1.msra.mxu0 %v1384
    %2186 = vmatprep.subr.mxu0 %v1389
    %2187 = vmatpush1.msra.mxu0 %v1388
    %2188 = vmatprep.subr.mxu0 %v1393
    %2189 = vmatpush1.msra.mxu0 %v1392
    %2190 = vmatprep.subr.mxu0 %v1397
    %2191 = vmatpush1.msra.mxu0 %v1396
    %2192 = vmatprep.subr.mxu0 %v1401
    %2193 = vmatpush1.msra.mxu0 %v1400
    %2194 = vmatprep.subr.mxu0 %v1405
    %2195 = vmatpush1.msra.mxu0 %v1404
    %2196 = vmatprep.subr.mxu0 %v1409
    %2197 = vmatpush1.msra.mxu0 %v1408
    %2198 = vmatprep.subr.mxu0 %v1413
    %2199 = vmatpush1.msra.mxu0 %v1412
    %2200 = vmatprep.subr.mxu0 %v1417
    %2201 = vmatpush1.msra.mxu0 %v1416
    %2202 = vmatprep.subr.mxu0 %v1421
    %2203 = vmatpush1.msra.mxu0 %v1420
    %2204 = vmatprep.subr.mxu0 %v1425
    %2205 = vmatpush1.msra.mxu0 %v1424
    %2206 = vmatprep.subr.mxu0 %v1429
    %2207 = vmatpush1.msra.mxu0 %v1428
    %2208 = vmatprep.subr.mxu0 %v1433
    %2209 = vmatpush1.msra.mxu0 %v1432
    %2210 = vmatprep.subr.mxu0 %v1437
    %2211 = vmatpush1.msra.mxu0 %v1436
    %2212 = vmatprep.mubr.f32.mxu0 %v1295
    %2213 = vmatmul.mubr.f32.gmra.mrb[0].mxu0 %v1294
    %v2214 = vpop.f32.mrb[0].mxu0
    %v2215 = vadd.f32 %v1701, %v2214
    %v2216 = vpop.f32.mrb[0].mxu0
    %v2217 = vadd.f32 %v1705, %v2216
    %2218 = vdwg.mxu0
    %2219 = vmatprep.subr.mxu0 %v1441
    %2220 = vmatpush1.msra.mxu0 %v1440
    %2221 = vmatprep.subr.mxu0 %v1445
    %2222 = vmatpush1.msra.mxu0 %v1444
    %2223 = vmatprep.subr.mxu0 %v1449
    %2224 = vmatpush1.msra.mxu0 %v1448
    %2225 = vmatprep.subr.mxu0 %v1453
    %2226 = vmatpush1.msra.mxu0 %v1452
    %2227 = vmatprep.subr.mxu0 %v1457
    %2228 = vmatpush1.msra.mxu0 %v1456
    %2229 = vmatprep.subr.mxu0 %v1461
    %2230 = vmatpush1.msra.mxu0 %v1460
    %2231 = vmatprep.subr.mxu0 %v1465
    %2232 = vmatpush1.msra.mxu0 %v1464
    %2233 = vmatprep.subr.mxu0 %v1469
    %2234 = vmatpush1.msra.mxu0 %v1468
    %2235 = vmatprep.subr.mxu0 %v1473
    %2236 = vmatpush1.msra.mxu0 %v1472
    %2237 = vmatprep.subr.mxu0 %v1477
    %2238 = vmatpush1.msra.mxu0 %v1476
    %2239 = vmatprep.subr.mxu0 %v1481
    %2240 = vmatpush1.msra.mxu0 %v1480
    %2241 = vmatprep.subr.mxu0 %v1485
    %2242 = vmatpush1.msra.mxu0 %v1484
    %2243 = vmatprep.subr.mxu0 %v1489
    %2244 = vmatpush1.msra.mxu0 %v1488
    %2245 = vmatprep.subr.mxu0 %v1493
    %2246 = vmatpush1.msra.mxu0 %v1492
    %2247 = vmatprep.subr.mxu0 %v1497
    %2248 = vmatpush1.msra.mxu0 %v1496
    %2249 = vmatprep.subr.mxu0 %v1501
    %2250 = vmatpush1.msra.mxu0 %v1500
    %2251 = vmatprep.subr.mxu0 %v1505
    %2252 = vmatpush1.msra.mxu0 %v1504
    %2253 = vmatprep.subr.mxu0 %v1509
    %2254 = vmatpush1.msra.mxu0 %v1508
    %2255 = vmatprep.subr.mxu0 %v1513
    %2256 = vmatpush1.msra.mxu0 %v1512
    %2257 = vmatprep.subr.mxu0 %v1517
    %2258 = vmatpush1.msra.mxu0 %v1516
    %2259 = vmatprep.subr.mxu0 %v1521
    %2260 = vmatpush1.msra.mxu0 %v1520
    %2261 = vmatprep.subr.mxu0 %v1525
    %2262 = vmatpush1.msra.mxu0 %v1524
    %2263 = vmatprep.subr.mxu0 %v1529
    %2264 = vmatpush1.msra.mxu0 %v1528
    %2265 = vmatprep.subr.mxu0 %v1533
    %2266 = vmatpush1.msra.mxu0 %v1532
    %2267 = vmatprep.subr.mxu0 %v1537
    %2268 = vmatpush1.msra.mxu0 %v1536
    %2269 = vmatprep.subr.mxu0 %v1541
    %2270 = vmatpush1.msra.mxu0 %v1540
    %2271 = vmatprep.subr.mxu0 %v1545
    %2272 = vmatpush1.msra.mxu0 %v1544
    %2273 = vmatprep.subr.mxu0 %v1549
    %2274 = vmatpush1.msra.mxu0 %v1548
    %2275 = vmatprep.subr.mxu0 %v1553
    %2276 = vmatpush1.msra.mxu0 %v1552
    %2277 = vmatprep.subr.mxu0 %v1557
    %2278 = vmatpush1.msra.mxu0 %v1556
    %2279 = vmatprep.subr.mxu0 %v1561
    %2280 = vmatpush1.msra.mxu0 %v1560
    %2281 = vmatprep.subr.mxu0 %v1565
    %2282 = vmatpush1.msra.mxu0 %v1564
    %2283 = vmatprep.mubr.f32.mxu0 %v1297
    %2284 = vmatmul.mubr.f32.gmra.mrb[0].mxu0 %v1296
    %v2285 = vpop.f32.mrb[0].mxu0
    %v2286 = vadd.f32 %v2215, %v2285
    %v2287 = vpop.f32.mrb[0].mxu0
    %v2288 = vadd.f32 %v2217, %v2287
    %2289 = vdwg.mxu0
    %2290 = vmatprep.subr.mxu0 %v1569
    %2291 = vmatpush1.msra.mxu0 %v1568
    %2292 = vmatprep.subr.mxu0 %v1573
    %2293 = vmatpush1.msra.mxu0 %v1572
    %2294 = vmatprep.subr.mxu0 %v1577
    %2295 = vmatpush1.msra.mxu0 %v1576
    %2296 = vmatprep.subr.mxu0 %v1581
    %2297 = vmatpush1.msra.mxu0 %v1580
    %2298 = vmatprep.subr.mxu0 %v1585
    %2299 = vmatpush1.msra.mxu0 %v1584
    %2300 = vmatprep.subr.mxu0 %v1589
    %2301 = vmatpush1.msra.mxu0 %v1588
    %2302 = vmatprep.subr.mxu0 %v1593
    %2303 = vmatpush1.msra.mxu0 %v1592
    %2304 = vmatprep.subr.mxu0 %v1597
    %2305 = vmatpush1.msra.mxu0 %v1596
    %2306 = vmatprep.subr.mxu0 %v1601
    %2307 = vmatpush1.msra.mxu0 %v1600
    %2308 = vmatprep.subr.mxu0 %v1605
    %2309 = vmatpush1.msra.mxu0 %v1604
    %2310 = vmatprep.subr.mxu0 %v1609
    %2311 = vmatpush1.msra.mxu0 %v1608
    %2312 = vmatprep.subr.mxu0 %v1613
    %2313 = vmatpush1.msra.mxu0 %v1612
    %2314 = vmatprep.subr.mxu0 %v1617
    %2315 = vmatpush1.msra.mxu0 %v1616
    %2316 = vmatprep.subr.mxu0 %v1621
    %2317 = vmatpush1.msra.mxu0 %v1620
    %2318 = vmatprep.subr.mxu0 %v1625
    %2319 = vmatpush1.msra.mxu0 %v1624
    %2320 = vmatprep.subr.mxu0 %v1629
    %2321 = vmatpush1.msra.mxu0 %v1628
    %2322 = vmatprep.subr.mxu0 %v1633
    %2323 = vmatpush1.msra.mxu0 %v1632
    %2324 = vmatprep.subr.mxu0 %v1637
    %2325 = vmatpush1.msra.mxu0 %v1636
    %2326 = vmatprep.subr.mxu0 %v1641
    %2327 = vmatpush1.msra.mxu0 %v1640
    %2328 = vmatprep.subr.mxu0 %v1645
    %2329 = vmatpush1.msra.mxu0 %v1644
    %2330 = vmatprep.subr.mxu0 %v1649
    %2331 = vmatpush1.msra.mxu0 %v1648
    %2332 = vmatprep.subr.mxu0 %v1653
    %2333 = vmatpush1.msra.mxu0 %v1652
    %2334 = vmatprep.subr.mxu0 %v1657
    %2335 = vmatpush1.msra.mxu0 %v1656
    %2336 = vmatprep.subr.mxu0 %v1661
    %2337 = vmatpush1.msra.mxu0 %v1660
    %2338 = vmatprep.subr.mxu0 %v1665
    %2339 = vmatpush1.msra.mxu0 %v1664
    %2340 = vmatprep.subr.mxu0 %v1669
    %2341 = vmatpush1.msra.mxu0 %v1668
    %2342 = vmatprep.subr.mxu0 %v1673
    %2343 = vmatpush1.msra.mxu0 %v1672
    %2344 = vmatprep.subr.mxu0 %v1677
    %2345 = vmatpush1.msra.mxu0 %v1676
    %2346 = vmatprep.subr.mxu0 %v1681
    %2347 = vmatpush1.msra.mxu0 %v1680
    %2348 = vmatprep.subr.mxu0 %v1685
    %2349 = vmatpush1.msra.mxu0 %v1684
    %2350 = vmatprep.subr.mxu0 %v1689
    %2351 = vmatpush1.msra.mxu0 %v1688
    %2352 = vmatprep.subr.mxu0 %v1693
    %2353 = vmatpush1.msra.mxu0 %v1692
    %2354 = vmatprep.mubr.f32.mxu0 %v1299
    %2355 = vmatmul.mubr.f32.gmra.mrb[0].mxu0 %v1298
    %v2356 = vpop.f32.mrb[0].mxu0
    %v2357 = vadd.f32 %v2286, %v2356
    %v2358 = vpop.f32.mrb[0].mxu0
    %v2359 = vadd.f32 %v2288, %v2358
    %2360 = vdwg.mxu0
    %2361 = vmatprep.subr.mxu0 %v1315
    %2362 = vmatpush1.msra.mxu0 %v1314
    %2363 = vmatprep.subr.mxu0 %v1319
    %2364 = vmatpush1.msra.mxu0 %v1318
    %2365 = vmatprep.subr.mxu0 %v1323
    %2366 = vmatpush1.msra.mxu0 %v1322
    %2367 = vmatprep.subr.mxu0 %v1327
    %2368 = vmatpush1.msra.mxu0 %v1326
    %2369 = vmatprep.subr.mxu0 %v1331
    %2370 = vmatpush1.msra.mxu0 %v1330
    %2371 = vmatprep.subr.mxu0 %v1335
    %2372 = vmatpush1.msra.mxu0 %v1334
    %2373 = vmatprep.subr.mxu0 %v1339
    %2374 = vmatpush1.msra.mxu0 %v1338
    %2375 = vmatprep.subr.mxu0 %v1343
    %2376 = vmatpush1.msra.mxu0 %v1342
    %2377 = vmatprep.subr.mxu0 %v1347
    %2378 = vmatpush1.msra.mxu0 %v1346
    %2379 = vmatprep.subr.mxu0 %v1351
    %2380 = vmatpush1.msra.mxu0 %v1350
    %2381 = vmatprep.subr.mxu0 %v1355
    %2382 = vmatpush1.msra.mxu0 %v1354
    %2383 = vmatprep.subr.mxu0 %v1359
    %2384 = vmatpush1.msra.mxu0 %v1358
    %2385 = vmatprep.subr.mxu0 %v1363
    %2386 = vmatpush1.msra.mxu0 %v1362
    %2387 = vmatprep.subr.mxu0 %v1367
    %2388 = vmatpush1.msra.mxu0 %v1366
    %2389 = vmatprep.subr.mxu0 %v1371
    %2390 = vmatpush1.msra.mxu0 %v1370
    %2391 = vmatprep.subr.mxu0 %v1375
    %2392 = vmatpush1.msra.mxu0 %v1374
    %2393 = vmatprep.subr.mxu0 %v1379
    %2394 = vmatpush1.msra.mxu0 %v1378
    %2395 = vmatprep.subr.mxu0 %v1383
    %2396 = vmatpush1.msra.mxu0 %v1382
    %2397 = vmatprep.subr.mxu0 %v1387
    %2398 = vmatpush1.msra.mxu0 %v1386
    %2399 = vmatprep.subr.mxu0 %v1391
    %2400 = vmatpush1.msra.mxu0 %v1390
    %2401 = vmatprep.subr.mxu0 %v1395
    %2402 = vmatpush1.msra.mxu0 %v1394
    %2403 = vmatprep.subr.mxu0 %v1399
    %2404 = vmatpush1.msra.mxu0 %v1398
    %2405 = vmatprep.subr.mxu0 %v1403
    %2406 = vmatpush1.msra.mxu0 %v1402
    %2407 = vmatprep.subr.mxu0 %v1407
    %2408 = vmatpush1.msra.mxu0 %v1406
    %2409 = vmatprep.subr.mxu0 %v1411
    %2410 = vmatpush1.msra.mxu0 %v1410
    %2411 = vmatprep.subr.mxu0 %v1415
    %2412 = vmatpush1.msra.mxu0 %v1414
    %2413 = vmatprep.subr.mxu0 %v1419
    %2414 = vmatpush1.msra.mxu0 %v1418
    %2415 = vmatprep.subr.mxu0 %v1423
    %2416 = vmatpush1.msra.mxu0 %v1422
    %2417 = vmatprep.subr.mxu0 %v1427
    %2418 = vmatpush1.msra.mxu0 %v1426
    %2419 = vmatprep.subr.mxu0 %v1431
    %2420 = vmatpush1.msra.mxu0 %v1430
    %2421 = vmatprep.subr.mxu0 %v1435
    %2422 = vmatpush1.msra.mxu0 %v1434
    %2423 = vmatprep.subr.mxu0 %v1439
    %2424 = vmatpush1.msra.mxu0 %v1438
    %2425 = vmatprep.mubr.f32.mxu0 %v1295
    %2426 = vmatmul.mubr.f32.gmra.mrb[0].mxu0 %v1294
    %v2427 = vpop.f32.mrb[0].mxu0
    %v2428 = vadd.f32 %v1709, %v2427
    %v2429 = vpop.f32.mrb[0].mxu0
    %v2430 = vadd.f32 %v1713, %v2429
    %2431 = vdwg.mxu0
    %2432 = vmatprep.subr.mxu0 %v1443
    %2433 = vmatpush1.msra.mxu0 %v1442
    %2434 = vmatprep.subr.mxu0 %v1447
    %2435 = vmatpush1.msra.mxu0 %v1446
    %2436 = vmatprep.subr.mxu0 %v1451
    %2437 = vmatpush1.msra.mxu0 %v1450
    %2438 = vmatprep.subr.mxu0 %v1455
    %2439 = vmatpush1.msra.mxu0 %v1454
    %2440 = vmatprep.subr.mxu0 %v1459
    %2441 = vmatpush1.msra.mxu0 %v1458
    %2442 = vmatprep.subr.mxu0 %v1463
    %2443 = vmatpush1.msra.mxu0 %v1462
    %2444 = vmatprep.subr.mxu0 %v1467
    %2445 = vmatpush1.msra.mxu0 %v1466
    %2446 = vmatprep.subr.mxu0 %v1471
    %2447 = vmatpush1.msra.mxu0 %v1470
    %2448 = vmatprep.subr.mxu0 %v1475
    %2449 = vmatpush1.msra.mxu0 %v1474
    %2450 = vmatprep.subr.mxu0 %v1479
    %2451 = vmatpush1.msra.mxu0 %v1478
    %2452 = vmatprep.subr.mxu0 %v1483
    %2453 = vmatpush1.msra.mxu0 %v1482
    %2454 = vmatprep.subr.mxu0 %v1487
    %2455 = vmatpush1.msra.mxu0 %v1486
    %2456 = vmatprep.subr.mxu0 %v1491
    %2457 = vmatpush1.msra.mxu0 %v1490
    %2458 = vmatprep.subr.mxu0 %v1495
    %2459 = vmatpush1.msra.mxu0 %v1494
    %2460 = vmatprep.subr.mxu0 %v1499
    %2461 = vmatpush1.msra.mxu0 %v1498
    %2462 = vmatprep.subr.mxu0 %v1503
    %2463 = vmatpush1.msra.mxu0 %v1502
    %2464 = vmatprep.subr.mxu0 %v1507
    %2465 = vmatpush1.msra.mxu0 %v1506
    %2466 = vmatprep.subr.mxu0 %v1511
    %2467 = vmatpush1.msra.mxu0 %v1510
    %2468 = vmatprep.subr.mxu0 %v1515
    %2469 = vmatpush1.msra.mxu0 %v1514
    %2470 = vmatprep.subr.mxu0 %v1519
    %2471 = vmatpush1.msra.mxu0 %v1518
    %2472 = vmatprep.subr.mxu0 %v1523
    %2473 = vmatpush1.msra.mxu0 %v1522
    %2474 = vmatprep.subr.mxu0 %v1527
    %2475 = vmatpush1.msra.mxu0 %v1526
    %2476 = vmatprep.subr.mxu0 %v1531
    %2477 = vmatpush1.msra.mxu0 %v1530
    %2478 = vmatprep.subr.mxu0 %v1535
    %2479 = vmatpush1.msra.mxu0 %v1534
    %2480 = vmatprep.subr.mxu0 %v1539
    %2481 = vmatpush1.msra.mxu0 %v1538
    %2482 = vmatprep.subr.mxu0 %v1543
    %2483 = vmatpush1.msra.mxu0 %v1542
    %2484 = vmatprep.subr.mxu0 %v1547
    %2485 = vmatpush1.msra.mxu0 %v1546
    %2486 = vmatprep.subr.mxu0 %v1551
    %2487 = vmatpush1.msra.mxu0 %v1550
    %2488 = vmatprep.subr.mxu0 %v1555
    %2489 = vmatpush1.msra.mxu0 %v1554
    %2490 = vmatprep.subr.mxu0 %v1559
    %2491 = vmatpush1.msra.mxu0 %v1558
    %2492 = vmatprep.subr.mxu0 %v1563
    %2493 = vmatpush1.msra.mxu0 %v1562
    %2494 = vmatprep.subr.mxu0 %v1567
    %2495 = vmatpush1.msra.mxu0 %v1566
    %2496 = vmatprep.mubr.f32.mxu0 %v1297
    %2497 = vmatmul.mubr.f32.gmra.mrb[0].mxu0 %v1296
    %v2498 = vpop.f32.mrb[0].mxu0
    %v2499 = vadd.f32 %v2428, %v2498
    %v2500 = vpop.f32.mrb[0].mxu0
    %v2501 = vadd.f32 %v2430, %v2500
    %2502 = vdwg.mxu0
    %2503 = vmatprep.subr.mxu0 %v1571
    %2504 = vmatpush1.msra.mxu0 %v1570
    %2505 = vmatprep.subr.mxu0 %v1575
    %2506 = vmatpush1.msra.mxu0 %v1574
    %2507 = vmatprep.subr.mxu0 %v1579
    %2508 = vmatpush1.msra.mxu0 %v1578
    %2509 = vmatprep.subr.mxu0 %v1583
    %2510 = vmatpush1.msra.mxu0 %v1582
    %2511 = vmatprep.subr.mxu0 %v1587
    %2512 = vmatpush1.msra.mxu0 %v1586
    %2513 = vmatprep.subr.mxu0 %v1591
    %2514 = vmatpush1.msra.mxu0 %v1590
    %2515 = vmatprep.subr.mxu0 %v1595
    %2516 = vmatpush1.msra.mxu0 %v1594
    %2517 = vmatprep.subr.mxu0 %v1599
    %2518 = vmatpush1.msra.mxu0 %v1598
    %2519 = vmatprep.subr.mxu0 %v1603
    %2520 = vmatpush1.msra.mxu0 %v1602
    %2521 = vmatprep.subr.mxu0 %v1607
    %2522 = vmatpush1.msra.mxu0 %v1606
    %2523 = vmatprep.subr.mxu0 %v1611
    %2524 = vmatpush1.msra.mxu0 %v1610
    %2525 = vmatprep.subr.mxu0 %v1615
    %2526 = vmatpush1.msra.mxu0 %v1614
    %2527 = vmatprep.subr.mxu0 %v1619
    %2528 = vmatpush1.msra.mxu0 %v1618
    %2529 = vmatprep.subr.mxu0 %v1623
    %2530 = vmatpush1.msra.mxu0 %v1622
    %2531 = vmatprep.subr.mxu0 %v1627
    %2532 = vmatpush1.msra.mxu0 %v1626
    %2533 = vmatprep.subr.mxu0 %v1631
    %2534 = vmatpush1.msra.mxu0 %v1630
    %2535 = vmatprep.subr.mxu0 %v1635
    %2536 = vmatpush1.msra.mxu0 %v1634
    %2537 = vmatprep.subr.mxu0 %v1639
    %2538 = vmatpush1.msra.mxu0 %v1638
    %2539 = vmatprep.subr.mxu0 %v1643
    %2540 = vmatpush1.msra.mxu0 %v1642
    %2541 = vmatprep.subr.mxu0 %v1647
    %2542 = vmatpush1.msra.mxu0 %v1646
    %2543 = vmatprep.subr.mxu0 %v1651
    %2544 = vmatpush1.msra.mxu0 %v1650
    %2545 = vmatprep.subr.mxu0 %v1655
    %2546 = vmatpush1.msra.mxu0 %v1654
    %2547 = vmatprep.subr.mxu0 %v1659
    %2548 = vmatpush1.msra.mxu0 %v1658
    %2549 = vmatprep.subr.mxu0 %v1663
    %2550 = vmatpush1.msra.mxu0 %v1662
    %2551 = vmatprep.subr.mxu0 %v1667
    %2552 = vmatpush1.msra.mxu0 %v1666
    %2553 = vmatprep.subr.mxu0 %v1671
    %2554 = vmatpush1.msra.mxu0 %v1670
    %2555 = vmatprep.subr.mxu0 %v1675
    %2556 = vmatpush1.msra.mxu0 %v1674
    %2557 = vmatprep.subr.mxu0 %v1679
    %2558 = vmatpush1.msra.mxu0 %v1678
    %2559 = vmatprep.subr.mxu0 %v1683
    %2560 = vmatpush1.msra.mxu0 %v1682
    %2561 = vmatprep.subr.mxu0 %v1687
    %2562 = vmatpush1.msra.mxu0 %v1686
    %2563 = vmatprep.subr.mxu0 %v1691
    %2564 = vmatpush1.msra.mxu0 %v1690
    %2565 = vmatprep.subr.mxu0 %v1695
    %2566 = vmatpush1.msra.mxu0 %v1694
    %2567 = vmatprep.mubr.f32.mxu0 %v1299
    %2568 = vmatmul.mubr.f32.gmra.mrb[0].mxu0 %v1298
    %v2569 = vpop.f32.mrb[0].mxu0
    %v2570 = vadd.f32 %v2499, %v2569
    %v2571 = vpop.f32.mrb[0].mxu0
    %v2572 = vadd.f32 %v2501, %v2571
    %2573 = vdwg.mxu0
    %v2574 = vmax.f32 %v2357, 0.0
    %v2575 = vmax.f32 %v2359, 0.0
    %v2576 = vmax.f32 %v2570, 0.0
    %v2577 = vmax.f32 %v2572, 0.0
    %v2578 = vmax.f32 %v2144, %v2574
    %v2579 = vmax.f32 %v2145, %v2575
    %v2580 = vmax.f32 %v2146, %v2576
    %v2581 = vmax.f32 %v2147, %v2577
    %v2582 = vmax.f32 %v2578, %v2580
    %v2583 = vmax.f32 %v2579, %v2581
    %v2584 = vld [vmem:[#allocation9] sm:$0xff]
    %v2585 = vld [vmem:[#allocation9 + $0x8] sm:$0xff]
    %v2586 = vld [vmem:[#allocation9 + $0x10] sm:$0xff]
    %v2587 = vld [vmem:[#allocation9 + $0x18] sm:$0xff]
    %v2588 = vld [vmem:[#allocation9 + $0x20] sm:$0xff]
    %v2589 = vld [vmem:[#allocation9 + $0x28] sm:$0xff]
    %v2590 = vld [vmem:[#allocation9 + $0x30] sm:$0xff]
    %v2591 = vld [vmem:[#allocation9 + $0x38] sm:$0xff]
    %v2592 = vld [vmem:[#allocation9 + $0x40] sm:$0xff]
    %v2593 = vld [vmem:[#allocation9 + $0x48] sm:$0xff]
    %v2594 = vld [vmem:[#allocation9 + $0x50] sm:$0xff]
    %v2595 = vld [vmem:[#allocation9 + $0x58] sm:$0xff]
    %v2596 = vld [vmem:[#allocation9 + $0x60] sm:$0xff]
    %v2597 = vld [vmem:[#allocation9 + $0x68] sm:$0xff]
    %v2598 = vld [vmem:[#allocation9 + $0x70] sm:$0xff]
    %v2599 = vld [vmem:[#allocation9 + $0x78] sm:$0xff]
    %v2600 = vld [vmem:[#allocation9 + $0x80] sm:$0xff]
    %v2601 = vld [vmem:[#allocation9 + $0x88] sm:$0xff]
    %v2602 = vld [vmem:[#allocation9 + $0x90] sm:$0xff]
    %v2603 = vld [vmem:[#allocation9 + $0x98] sm:$0xff]
    %v2604 = vld [vmem:[#allocation9 + $0xa0] sm:$0xff]
    %v2605 = vld [vmem:[#allocation9 + $0xa8] sm:$0xff]
    %v2606 = vld [vmem:[#allocation9 + $0xb0] sm:$0xff]
    %v2607 = vld [vmem:[#allocation9 + $0xb8] sm:$0xff]
    %v2608 = vld [vmem:[#allocation9 + $0xc0] sm:$0xff]
    %v2609 = vld [vmem:[#allocation9 + $0xc8] sm:$0xff]
    %v2610 = vld [vmem:[#allocation9 + $0xd0] sm:$0xff]
    %v2611 = vld [vmem:[#allocation9 + $0xd8] sm:$0xff]
    %v2612 = vld [vmem:[#allocation9 + $0xe0] sm:$0xff]
    %v2613 = vld [vmem:[#allocation9 + $0xe8] sm:$0xff]
    %v2614 = vld [vmem:[#allocation9 + $0xf0] sm:$0xff]
    %v2615 = vld [vmem:[#allocation9 + $0xf8] sm:$0xff]
    %2616 = vmatprep.subr.mxu0 %v1313
    %2617 = vmatpush1.msra.mxu0 %v1312
    %2618 = vmatprep.subr.mxu0 %v1317
    %2619 = vmatpush1.msra.mxu0 %v1316
    %2620 = vmatprep.subr.mxu0 %v1321
    %2621 = vmatpush1.msra.mxu0 %v1320
    %2622 = vmatprep.subr.mxu0 %v1325
    %2623 = vmatpush1.msra.mxu0 %v1324
    %2624 = vmatprep.subr.mxu0 %v1329
    %2625 = vmatpush1.msra.mxu0 %v1328
    %2626 = vmatprep.subr.mxu0 %v1333
    %2627 = vmatpush1.msra.mxu0 %v1332
    %2628 = vmatprep.subr.mxu0 %v1337
    %2629 = vmatpush1.msra.mxu0 %v1336
    %2630 = vmatprep.subr.mxu0 %v1341
    %2631 = vmatpush1.msra.mxu0 %v1340
    %2632 = vmatprep.subr.mxu0 %v1345
    %2633 = vmatpush1.msra.mxu0 %v1344
    %2634 = vmatprep.subr.mxu0 %v1349
    %2635 = vmatpush1.msra.mxu0 %v1348
    %2636 = vmatprep.subr.mxu0 %v1353
    %2637 = vmatpush1.msra.mxu0 %v1352
    %2638 = vmatprep.subr.mxu0 %v1357
    %2639 = vmatpush1.msra.mxu0 %v1356
    %2640 = vmatprep.subr.mxu0 %v1361
    %2641 = vmatpush1.msra.mxu0 %v1360
    %2642 = vmatprep.subr.mxu0 %v1365
    %2643 = vmatpush1.msra.mxu0 %v1364
    %2644 = vmatprep.subr.mxu0 %v1369
    %2645 = vmatpush1.msra.mxu0 %v1368
    %2646 = vmatprep.subr.mxu0 %v1373
    %2647 = vmatpush1.msra.mxu0 %v1372
    %2648 = vmatprep.subr.mxu0 %v1377
    %2649 = vmatpush1.msra.mxu0 %v1376
    %2650 = vmatprep.subr.mxu0 %v1381
    %2651 = vmatpush1.msra.mxu0 %v1380
    %2652 = vmatprep.subr.mxu0 %v1385
    %2653 = vmatpush1.msra.mxu0 %v1384
    %2654 = vmatprep.subr.mxu0 %v1389
    %2655 = vmatpush1.msra.mxu0 %v1388
    %2656 = vmatprep.subr.mxu0 %v1393
    %2657 = vmatpush1.msra.mxu0 %v1392
    %2658 = vmatprep.subr.mxu0 %v1397
    %2659 = vmatpush1.msra.mxu0 %v1396
    %2660 = vmatprep.subr.mxu0 %v1401
    %2661 = vmatpush1.msra.mxu0 %v1400
    %2662 = vmatprep.subr.mxu0 %v1405
    %2663 = vmatpush1.msra.mxu0 %v1404
    %2664 = vmatprep.subr.mxu0 %v1409
    %2665 = vmatpush1.msra.mxu0 %v1408
    %2666 = vmatprep.subr.mxu0 %v1413
    %2667 = vmatpush1.msra.mxu0 %v1412
    %2668 = vmatprep.subr.mxu0 %v1417
    %2669 = vmatpush1.msra.mxu0 %v1416
    %2670 = vmatprep.subr.mxu0 %v1421
    %2671 = vmatpush1.msra.mxu0 %v1420
    %2672 = vmatprep.subr.mxu0 %v1425
    %2673 = vmatpush1.msra.mxu0 %v1424
    %2674 = vmatprep.subr.mxu0 %v1429
    %2675 = vmatpush1.msra.mxu0 %v1428
    %2676 = vmatprep.subr.mxu0 %v1433
    %2677 = vmatpush1.msra.mxu0 %v1432
    %2678 = vmatprep.subr.mxu0 %v1437
    %2679 = vmatpush1.msra.mxu0 %v1436
    %2680 = vmatprep.mubr.f32.mxu0 %v1297
    %2681 = vmatmul.mubr.f32.gmra.mrb[0].mxu0 %v1296
    %v2682 = vpop.f32.mrb[0].mxu0
    %v2683 = vadd.f32 %v1701, %v2682
    %v2684 = vpop.f32.mrb[0].mxu0
    %v2685 = vadd.f32 %v1705, %v2684
    %2686 = vdwg.mxu0
    %2687 = vmatprep.subr.mxu0 %v1441
    %2688 = vmatpush1.msra.mxu0 %v1440
    %2689 = vmatprep.subr.mxu0 %v1445
    %2690 = vmatpush1.msra.mxu0 %v1444
    %2691 = vmatprep.subr.mxu0 %v1449
    %2692 = vmatpush1.msra.mxu0 %v1448
    %2693 = vmatprep.subr.mxu0 %v1453
    %2694 = vmatpush1.msra.mxu0 %v1452
    %2695 = vmatprep.subr.mxu0 %v1457
    %2696 = vmatpush1.msra.mxu0 %v1456
    %2697 = vmatprep.subr.mxu0 %v1461
    %2698 = vmatpush1.msra.mxu0 %v1460
    %2699 = vmatprep.subr.mxu0 %v1465
    %2700 = vmatpush1.msra.mxu0 %v1464
    %2701 = vmatprep.subr.mxu0 %v1469
    %2702 = vmatpush1.msra.mxu0 %v1468
    %2703 = vmatprep.subr.mxu0 %v1473
    %2704 = vmatpush1.msra.mxu0 %v1472
    %2705 = vmatprep.subr.mxu0 %v1477
    %2706 = vmatpush1.msra.mxu0 %v1476
    %2707 = vmatprep.subr.mxu0 %v1481
    %2708 = vmatpush1.msra.mxu0 %v1480
    %2709 = vmatprep.subr.mxu0 %v1485
    %2710 = vmatpush1.msra.mxu0 %v1484
    %2711 = vmatprep.subr.mxu0 %v1489
    %2712 = vmatpush1.msra.mxu0 %v1488
    %2713 = vmatprep.subr.mxu0 %v1493
    %2714 = vmatpush1.msra.mxu0 %v1492
    %2715 = vmatprep.subr.mxu0 %v1497
    %2716 = vmatpush1.msra.mxu0 %v1496
    %2717 = vmatprep.subr.mxu0 %v1501
    %2718 = vmatpush1.msra.mxu0 %v1500
    %2719 = vmatprep.subr.mxu0 %v1505
    %2720 = vmatpush1.msra.mxu0 %v1504
    %2721 = vmatprep.subr.mxu0 %v1509
    %2722 = vmatpush1.msra.mxu0 %v1508
    %2723 = vmatprep.subr.mxu0 %v1513
    %2724 = vmatpush1.msra.mxu0 %v1512
    %2725 = vmatprep.subr.mxu0 %v1517
    %2726 = vmatpush1.msra.mxu0 %v1516
    %2727 = vmatprep.subr.mxu0 %v1521
    %2728 = vmatpush1.msra.mxu0 %v1520
    %2729 = vmatprep.subr.mxu0 %v1525
    %2730 = vmatpush1.msra.mxu0 %v1524
    %2731 = vmatprep.subr.mxu0 %v1529
    %2732 = vmatpush1.msra.mxu0 %v1528
    %2733 = vmatprep.subr.mxu0 %v1533
    %2734 = vmatpush1.msra.mxu0 %v1532
    %2735 = vmatprep.subr.mxu0 %v1537
    %2736 = vmatpush1.msra.mxu0 %v1536
    %2737 = vmatprep.subr.mxu0 %v1541
    %2738 = vmatpush1.msra.mxu0 %v1540
    %2739 = vmatprep.subr.mxu0 %v1545
    %2740 = vmatpush1.msra.mxu0 %v1544
    %2741 = vmatprep.subr.mxu0 %v1549
    %2742 = vmatpush1.msra.mxu0 %v1548
    %2743 = vmatprep.subr.mxu0 %v1553
    %2744 = vmatpush1.msra.mxu0 %v1552
    %2745 = vmatprep.subr.mxu0 %v1557
    %2746 = vmatpush1.msra.mxu0 %v1556
    %2747 = vmatprep.subr.mxu0 %v1561
    %2748 = vmatpush1.msra.mxu0 %v1560
    %2749 = vmatprep.subr.mxu0 %v1565
    %2750 = vmatpush1.msra.mxu0 %v1564
    %2751 = vmatprep.mubr.f32.mxu0 %v1299
    %2752 = vmatmul.mubr.f32.gmra.mrb[0].mxu0 %v1298
    %v2753 = vpop.f32.mrb[0].mxu0
    %v2754 = vadd.f32 %v2683, %v2753
    %v2755 = vpop.f32.mrb[0].mxu0
    %v2756 = vadd.f32 %v2685, %v2755
    %2757 = vdwg.mxu0
    %2758 = vmatprep.subr.mxu0 %v1569
    %2759 = vmatpush1.msra.mxu0 %v1568
    %2760 = vmatprep.subr.mxu0 %v1573
    %2761 = vmatpush1.msra.mxu0 %v1572
    %2762 = vmatprep.subr.mxu0 %v1577
    %2763 = vmatpush1.msra.mxu0 %v1576
    %2764 = vmatprep.subr.mxu0 %v1581
    %2765 = vmatpush1.msra.mxu0 %v1580
    %2766 = vmatprep.subr.mxu0 %v1585
    %2767 = vmatpush1.msra.mxu0 %v1584
    %2768 = vmatprep.subr.mxu0 %v1589
    %2769 = vmatpush1.msra.mxu0 %v1588
    %2770 = vmatprep.subr.mxu0 %v1593
    %2771 = vmatpush1.msra.mxu0 %v1592
    %2772 = vmatprep.subr.mxu0 %v1597
    %2773 = vmatpush1.msra.mxu0 %v1596
    %2774 = vmatprep.subr.mxu0 %v1601
    %2775 = vmatpush1.msra.mxu0 %v1600
    %2776 = vmatprep.subr.mxu0 %v1605
    %2777 = vmatpush1.msra.mxu0 %v1604
    %2778 = vmatprep.subr.mxu0 %v1609
    %2779 = vmatpush1.msra.mxu0 %v1608
    %2780 = vmatprep.subr.mxu0 %v1613
    %2781 = vmatpush1.msra.mxu0 %v1612
    %2782 = vmatprep.subr.mxu0 %v1617
    %2783 = vmatpush1.msra.mxu0 %v1616
    %2784 = vmatprep.subr.mxu0 %v1621
    %2785 = vmatpush1.msra.mxu0 %v1620
    %2786 = vmatprep.subr.mxu0 %v1625
    %2787 = vmatpush1.msra.mxu0 %v1624
    %2788 = vmatprep.subr.mxu0 %v1629
    %2789 = vmatpush1.msra.mxu0 %v1628
    %2790 = vmatprep.subr.mxu0 %v1633
    %2791 = vmatpush1.msra.mxu0 %v1632
    %2792 = vmatprep.subr.mxu0 %v1637
    %2793 = vmatpush1.msra.mxu0 %v1636
    %2794 = vmatprep.subr.mxu0 %v1641
    %2795 = vmatpush1.msra.mxu0 %v1640
    %2796 = vmatprep.subr.mxu0 %v1645
    %2797 = vmatpush1.msra.mxu0 %v1644
    %2798 = vmatprep.subr.mxu0 %v1649
    %2799 = vmatpush1.msra.mxu0 %v1648
    %2800 = vmatprep.subr.mxu0 %v1653
    %2801 = vmatpush1.msra.mxu0 %v1652
    %2802 = vmatprep.subr.mxu0 %v1657
    %2803 = vmatpush1.msra.mxu0 %v1656
    %2804 = vmatprep.subr.mxu0 %v1661
    %2805 = vmatpush1.msra.mxu0 %v1660
    %2806 = vmatprep.subr.mxu0 %v1665
    %2807 = vmatpush1.msra.mxu0 %v1664
    %2808 = vmatprep.subr.mxu0 %v1669
    %2809 = vmatpush1.msra.mxu0 %v1668
    %2810 = vmatprep.subr.mxu0 %v1673
    %2811 = vmatpush1.msra.mxu0 %v1672
    %2812 = vmatprep.subr.mxu0 %v1677
    %2813 = vmatpush1.msra.mxu0 %v1676
    %2814 = vmatprep.subr.mxu0 %v1681
    %2815 = vmatpush1.msra.mxu0 %v1680
    %2816 = vmatprep.subr.mxu0 %v1685
    %2817 = vmatpush1.msra.mxu0 %v1684
    %2818 = vmatprep.subr.mxu0 %v1689
    %2819 = vmatpush1.msra.mxu0 %v1688
    %2820 = vmatprep.subr.mxu0 %v1693
    %2821 = vmatpush1.msra.mxu0 %v1692
    %2822 = vmatprep.mubr.f32.mxu0 %v1301
    %2823 = vmatmul.mubr.f32.gmra.mrb[0].mxu0 %v1300
    %v2824 = vpop.f32.mrb[0].mxu0
    %v2825 = vadd.f32 %v2754, %v2824
    %v2826 = vpop.f32.mrb[0].mxu0
    %v2827 = vadd.f32 %v2756, %v2826
    %2828 = vdwg.mxu0
    %2829 = vmatprep.subr.mxu0 %v1315
    %2830 = vmatpush1.msra.mxu0 %v1314
    %2831 = vmatprep.subr.mxu0 %v1319
    %2832 = vmatpush1.msra.mxu0 %v1318
    %2833 = vmatprep.subr.mxu0 %v1323
    %2834 = vmatpush1.msra.mxu0 %v1322
    %2835 = vmatprep.subr.mxu0 %v1327
    %2836 = vmatpush1.msra.mxu0 %v1326
    %2837 = vmatprep.subr.mxu0 %v1331
    %2838 = vmatpush1.msra.mxu0 %v1330
    %2839 = vmatprep.subr.mxu0 %v1335
    %2840 = vmatpush1.msra.mxu0 %v1334
    %2841 = vmatprep.subr.mxu0 %v1339
    %2842 = vmatpush1.msra.mxu0 %v1338
    %2843 = vmatprep.subr.mxu0 %v1343
    %2844 = vmatpush1.msra.mxu0 %v1342
    %2845 = vmatprep.subr.mxu0 %v1347
    %2846 = vmatpush1.msra.mxu0 %v1346
    %2847 = vmatprep.subr.mxu0 %v1351
    %2848 = vmatpush1.msra.mxu0 %v1350
    %2849 = vmatprep.subr.mxu0 %v1355
    %2850 = vmatpush1.msra.mxu0 %v1354
    %2851 = vmatprep.subr.mxu0 %v1359
    %2852 = vmatpush1.msra.mxu0 %v1358
    %2853 = vmatprep.subr.mxu0 %v1363
    %2854 = vmatpush1.msra.mxu0 %v1362
    %2855 = vmatprep.subr.mxu0 %v1367
    %2856 = vmatpush1.msra.mxu0 %v1366
    %2857 = vmatprep.subr.mxu0 %v1371
    %2858 = vmatpush1.msra.mxu0 %v1370
    %2859 = vmatprep.subr.mxu0 %v1375
    %2860 = vmatpush1.msra.mxu0 %v1374
    %2861 = vmatprep.subr.mxu0 %v1379
    %2862 = vmatpush1.msra.mxu0 %v1378
    %2863 = vmatprep.subr.mxu0 %v1383
    %2864 = vmatpush1.msra.mxu0 %v1382
    %2865 = vmatprep.subr.mxu0 %v1387
    %2866 = vmatpush1.msra.mxu0 %v1386
    %2867 = vmatprep.subr.mxu0 %v1391
    %2868 = vmatpush1.msra.mxu0 %v1390
    %2869 = vmatprep.subr.mxu0 %v1395
    %2870 = vmatpush1.msra.mxu0 %v1394
    %2871 = vmatprep.subr.mxu0 %v1399
    %2872 = vmatpush1.msra.mxu0 %v1398
    %2873 = vmatprep.subr.mxu0 %v1403
    %2874 = vmatpush1.msra.mxu0 %v1402
    %2875 = vmatprep.subr.mxu0 %v1407
    %2876 = vmatpush1.msra.mxu0 %v1406
    %2877 = vmatprep.subr.mxu0 %v1411
    %2878 = vmatpush1.msra.mxu0 %v1410
    %2879 = vmatprep.subr.mxu0 %v1415
    %2880 = vmatpush1.msra.mxu0 %v1414
    %2881 = vmatprep.subr.mxu0 %v1419
    %2882 = vmatpush1.msra.mxu0 %v1418
    %2883 = vmatprep.subr.mxu0 %v1423
    %2884 = vmatpush1.msra.mxu0 %v1422
    %2885 = vmatprep.subr.mxu0 %v1427
    %2886 = vmatpush1.msra.mxu0 %v1426
    %2887 = vmatprep.subr.mxu0 %v1431
    %2888 = vmatpush1.msra.mxu0 %v1430
    %2889 = vmatprep.subr.mxu0 %v1435
    %2890 = vmatpush1.msra.mxu0 %v1434
    %2891 = vmatprep.subr.mxu0 %v1439
    %2892 = vmatpush1.msra.mxu0 %v1438
    %2893 = vmatprep.mubr.f32.mxu0 %v1297
    %2894 = vmatmul.mubr.f32.gmra.mrb[0].mxu0 %v1296
    %v2895 = vpop.f32.mrb[0].mxu0
    %v2896 = vadd.f32 %v1709, %v2895
    %v2897 = vpop.f32.mrb[0].mxu0
    %v2898 = vadd.f32 %v1713, %v2897
    %2899 = vdwg.mxu0
    %2900 = vmatprep.subr.mxu0 %v1443
    %2901 = vmatpush1.msra.mxu0 %v1442
    %2902 = vmatprep.subr.mxu0 %v1447
    %2903 = vmatpush1.msra.mxu0 %v1446
    %2904 = vmatprep.subr.mxu0 %v1451
    %2905 = vmatpush1.msra.mxu0 %v1450
    %2906 = vmatprep.subr.mxu0 %v1455
    %2907 = vmatpush1.msra.mxu0 %v1454
    %2908 = vmatprep.subr.mxu0 %v1459
    %2909 = vmatpush1.msra.mxu0 %v1458
    %2910 = vmatprep.subr.mxu0 %v1463
    %2911 = vmatpush1.msra.mxu0 %v1462
    %2912 = vmatprep.subr.mxu0 %v1467
    %2913 = vmatpush1.msra.mxu0 %v1466
    %2914 = vmatprep.subr.mxu0 %v1471
    %2915 = vmatpush1.msra.mxu0 %v1470
    %2916 = vmatprep.subr.mxu0 %v1475
    %2917 = vmatpush1.msra.mxu0 %v1474
    %2918 = vmatprep.subr.mxu0 %v1479
    %2919 = vmatpush1.msra.mxu0 %v1478
    %2920 = vmatprep.subr.mxu0 %v1483
    %2921 = vmatpush1.msra.mxu0 %v1482
    %2922 = vmatprep.subr.mxu0 %v1487
    %2923 = vmatpush1.msra.mxu0 %v1486
    %2924 = vmatprep.subr.mxu0 %v1491
    %2925 = vmatpush1.msra.mxu0 %v1490
    %2926 = vmatprep.subr.mxu0 %v1495
    %2927 = vmatpush1.msra.mxu0 %v1494
    %2928 = vmatprep.subr.mxu0 %v1499
    %2929 = vmatpush1.msra.mxu0 %v1498
    %2930 = vmatprep.subr.mxu0 %v1503
    %2931 = vmatpush1.msra.mxu0 %v1502
    %2932 = vmatprep.subr.mxu0 %v1507
    %2933 = vmatpush1.msra.mxu0 %v1506
    %2934 = vmatprep.subr.mxu0 %v1511
    %2935 = vmatpush1.msra.mxu0 %v1510
    %2936 = vmatprep.subr.mxu0 %v1515
    %2937 = vmatpush1.msra.mxu0 %v1514
    %2938 = vmatprep.subr.mxu0 %v1519
    %2939 = vmatpush1.msra.mxu0 %v1518
    %2940 = vmatprep.subr.mxu0 %v1523
    %2941 = vmatpush1.msra.mxu0 %v1522
    %2942 = vmatprep.subr.mxu0 %v1527
    %2943 = vmatpush1.msra.mxu0 %v1526
    %2944 = vmatprep.subr.mxu0 %v1531
    %2945 = vmatpush1.msra.mxu0 %v1530
    %2946 = vmatprep.subr.mxu0 %v1535
    %2947 = vmatpush1.msra.mxu0 %v1534
    %2948 = vmatprep.subr.mxu0 %v1539
    %2949 = vmatpush1.msra.mxu0 %v1538
    %2950 = vmatprep.subr.mxu0 %v1543
    %2951 = vmatpush1.msra.mxu0 %v1542
    %2952 = vmatprep.subr.mxu0 %v1547
    %2953 = vmatpush1.msra.mxu0 %v1546
    %2954 = vmatprep.subr.mxu0 %v1551
    %2955 = vmatpush1.msra.mxu0 %v1550
    %2956 = vmatprep.subr.mxu0 %v1555
    %2957 = vmatpush1.msra.mxu0 %v1554
    %2958 = vmatprep.subr.mxu0 %v1559
    %2959 = vmatpush1.msra.mxu0 %v1558
    %2960 = vmatprep.subr.mxu0 %v1563
    %2961 = vmatpush1.msra.mxu0 %v1562
    %2962 = vmatprep.subr.mxu0 %v1567
    %2963 = vmatpush1.msra.mxu0 %v1566
    %2964 = vmatprep.mubr.f32.mxu0 %v1299
    %2965 = vmatmul.mubr.f32.gmra.mrb[0].mxu0 %v1298
    %v2966 = vpop.f32.mrb[0].mxu0
    %v2967 = vadd.f32 %v2896, %v2966
    %v2968 = vpop.f32.mrb[0].mxu0
    %v2969 = vadd.f32 %v2898, %v2968
    %2970 = vdwg.mxu0
    %2971 = vmatprep.subr.mxu0 %v1571
    %2972 = vmatpush1.msra.mxu0 %v1570
    %2973 = vmatprep.subr.mxu0 %v1575
    %2974 = vmatpush1.msra.mxu0 %v1574
    %2975 = vmatprep.subr.mxu0 %v1579
    %2976 = vmatpush1.msra.mxu0 %v1578
    %2977 = vmatprep.subr.mxu0 %v1583
    %2978 = vmatpush1.msra.mxu0 %v1582
    %2979 = vmatprep.subr.mxu0 %v1587
    %2980 = vmatpush1.msra.mxu0 %v1586
    %2981 = vmatprep.subr.mxu0 %v1591
    %2982 = vmatpush1.msra.mxu0 %v1590
    %2983 = vmatprep.subr.mxu0 %v1595
    %2984 = vmatpush1.msra.mxu0 %v1594
    %2985 = vmatprep.subr.mxu0 %v1599
    %2986 = vmatpush1.msra.mxu0 %v1598
    %2987 = vmatprep.subr.mxu0 %v1603
    %2988 = vmatpush1.msra.mxu0 %v1602
    %2989 = vmatprep.subr.mxu0 %v1607
    %2990 = vmatpush1.msra.mxu0 %v1606
    %2991 = vmatprep.subr.mxu0 %v1611
    %2992 = vmatpush1.msra.mxu0 %v1610
    %2993 = vmatprep.subr.mxu0 %v1615
    %2994 = vmatpush1.msra.mxu0 %v1614
    %2995 = vmatprep.subr.mxu0 %v1619
    %2996 = vmatpush1.msra.mxu0 %v1618
    %2997 = vmatprep.subr.mxu0 %v1623
    %2998 = vmatpush1.msra.mxu0 %v1622
    %2999 = vmatprep.subr.mxu0 %v1627
    %3000 = vmatpush1.msra.mxu0 %v1626
    %3001 = vmatprep.subr.mxu0 %v1631
    %3002 = vmatpush1.msra.mxu0 %v1630
    %3003 = vmatprep.subr.mxu0 %v1635
    %3004 = vmatpush1.msra.mxu0 %v1634
    %3005 = vmatprep.subr.mxu0 %v1639
    %3006 = vmatpush1.msra.mxu0 %v1638
    %3007 = vmatprep.subr.mxu0 %v1643
    %3008 = vmatpush1.msra.mxu0 %v1642
    %3009 = vmatprep.subr.mxu0 %v1647
    %3010 = vmatpush1.msra.mxu0 %v1646
    %3011 = vmatprep.subr.mxu0 %v1651
    %3012 = vmatpush1.msra.mxu0 %v1650
    %3013 = vmatprep.subr.mxu0 %v1655
    %3014 = vmatpush1.msra.mxu0 %v1654
    %3015 = vmatprep.subr.mxu0 %v1659
    %3016 = vmatpush1.msra.mxu0 %v1658
    %3017 = vmatprep.subr.mxu0 %v1663
    %3018 = vmatpush1.msra.mxu0 %v1662
    %3019 = vmatprep.subr.mxu0 %v1667
    %3020 = vmatpush1.msra.mxu0 %v1666
    %3021 = vmatprep.subr.mxu0 %v1671
    %3022 = vmatpush1.msra.mxu0 %v1670
    %3023 = vmatprep.subr.mxu0 %v1675
    %3024 = vmatpush1.msra.mxu0 %v1674
    %3025 = vmatprep.subr.mxu0 %v1679
    %3026 = vmatpush1.msra.mxu0 %v1678
    %3027 = vmatprep.subr.mxu0 %v1683
    %3028 = vmatpush1.msra.mxu0 %v1682
    %3029 = vmatprep.subr.mxu0 %v1687
    %3030 = vmatpush1.msra.mxu0 %v1686
    %3031 = vmatprep.subr.mxu0 %v1691
    %3032 = vmatpush1.msra.mxu0 %v1690
    %3033 = vmatprep.subr.mxu0 %v1695
    %3034 = vmatpush1.msra.mxu0 %v1694
    %3035 = vmatprep.mubr.f32.mxu0 %v1301
    %3036 = vmatmul.mubr.f32.gmra.mrb[0].mxu0 %v1300
    %v3037 = vpop.f32.mrb[0].mxu0
    %v3038 = vadd.f32 %v2967, %v3037
    %v3039 = vpop.f32.mrb[0].mxu0
    %v3040 = vadd.f32 %v2969, %v3039
    %3041 = vdwg.mxu0
    %v3042 = vmax.f32 %v2825, 0.0
    %v3043 = vmax.f32 %v2827, 0.0
    %v3044 = vmax.f32 %v3038, 0.0
    %v3045 = vmax.f32 %v3040, 0.0
    %3046 = vmatprep.subr.mxu0 %v1313
    %3047 = vmatpush1.msra.mxu0 %v1312
    %3048 = vmatprep.subr.mxu0 %v1317
    %3049 = vmatpush1.msra.mxu0 %v1316
    %3050 = vmatprep.subr.mxu0 %v1321
    %3051 = vmatpush1.msra.mxu0 %v1320
    %3052 = vmatprep.subr.mxu0 %v1325
    %3053 = vmatpush1.msra.mxu0 %v1324
    %3054 = vmatprep.subr.mxu0 %v1329
    %3055 = vmatpush1.msra.mxu0 %v1328
    %3056 = vmatprep.subr.mxu0 %v1333
    %3057 = vmatpush1.msra.mxu0 %v1332
    %3058 = vmatprep.subr.mxu0 %v1337
    %3059 = vmatpush1.msra.mxu0 %v1336
    %3060 = vmatprep.subr.mxu0 %v1341
    %3061 = vmatpush1.msra.mxu0 %v1340
    %3062 = vmatprep.subr.mxu0 %v1345
    %3063 = vmatpush1.msra.mxu0 %v1344
    %3064 = vmatprep.subr.mxu0 %v1349
    %3065 = vmatpush1.msra.mxu0 %v1348
    %3066 = vmatprep.subr.mxu0 %v1353
    %3067 = vmatpush1.msra.mxu0 %v1352
    %3068 = vmatprep.subr.mxu0 %v1357
    %3069 = vmatpush1.msra.mxu0 %v1356
    %3070 = vmatprep.subr.mxu0 %v1361
    %3071 = vmatpush1.msra.mxu0 %v1360
    %3072 = vmatprep.subr.mxu0 %v1365
    %3073 = vmatpush1.msra.mxu0 %v1364
    %3074 = vmatprep.subr.mxu0 %v1369
    %3075 = vmatpush1.msra.mxu0 %v1368
    %3076 = vmatprep.subr.mxu0 %v1373
    %3077 = vmatpush1.msra.mxu0 %v1372
    %3078 = vmatprep.subr.mxu0 %v1377
    %3079 = vmatpush1.msra.mxu0 %v1376
    %3080 = vmatprep.subr.mxu0 %v1381
    %3081 = vmatpush1.msra.mxu0 %v1380
    %3082 = vmatprep.subr.mxu0 %v1385
    %3083 = vmatpush1.msra.mxu0 %v1384
    %3084 = vmatprep.subr.mxu0 %v1389
    %3085 = vmatpush1.msra.mxu0 %v1388
    %3086 = vmatprep.subr.mxu0 %v1393
    %3087 = vmatpush1.msra.mxu0 %v1392
    %3088 = vmatprep.subr.mxu0 %v1397
    %3089 = vmatpush1.msra.mxu0 %v1396
    %3090 = vmatprep.subr.mxu0 %v1401
    %3091 = vmatpush1.msra.mxu0 %v1400
    %3092 = vmatprep.subr.mxu0 %v1405
    %3093 = vmatpush1.msra.mxu0 %v1404
    %3094 = vmatprep.subr.mxu0 %v1409
    %3095 = vmatpush1.msra.mxu0 %v1408
    %3096 = vmatprep.subr.mxu0 %v1413
    %3097 = vmatpush1.msra.mxu0 %v1412
    %3098 = vmatprep.subr.mxu0 %v1417
    %3099 = vmatpush1.msra.mxu0 %v1416
    %3100 = vmatprep.subr.mxu0 %v1421
    %3101 = vmatpush1.msra.mxu0 %v1420
    %3102 = vmatprep.subr.mxu0 %v1425
    %3103 = vmatpush1.msra.mxu0 %v1424
    %3104 = vmatprep.subr.mxu0 %v1429
    %3105 = vmatpush1.msra.mxu0 %v1428
    %3106 = vmatprep.subr.mxu0 %v1433
    %3107 = vmatpush1.msra.mxu0 %v1432
    %3108 = vmatprep.subr.mxu0 %v1437
    %3109 = vmatpush1.msra.mxu0 %v1436
    %3110 = vmatprep.mubr.f32.mxu0 %v1299
    %3111 = vmatmul.mubr.f32.gmra.mrb[0].mxu0 %v1298
    %v3112 = vpop.f32.mrb[0].mxu0
    %v3113 = vadd.f32 %v1701, %v3112
    %v3114 = vpop.f32.mrb[0].mxu0
    %v3115 = vadd.f32 %v1705, %v3114
    %3116 = vdwg.mxu0
    %3117 = vmatprep.subr.mxu0 %v1441
    %3118 = vmatpush1.msra.mxu0 %v1440
    %3119 = vmatprep.subr.mxu0 %v1445
    %3120 = vmatpush1.msra.mxu0 %v1444
    %3121 = vmatprep.subr.mxu0 %v1449
    %3122 = vmatpush1.msra.mxu0 %v1448
    %3123 = vmatprep.subr.mxu0 %v1453
    %3124 = vmatpush1.msra.mxu0 %v1452
    %3125 = vmatprep.subr.mxu0 %v1457
    %3126 = vmatpush1.msra.mxu0 %v1456
    %3127 = vmatprep.subr.mxu0 %v1461
    %3128 = vmatpush1.msra.mxu0 %v1460
    %3129 = vmatprep.subr.mxu0 %v1465
    %3130 = vmatpush1.msra.mxu0 %v1464
    %3131 = vmatprep.subr.mxu0 %v1469
    %3132 = vmatpush1.msra.mxu0 %v1468
    %3133 = vmatprep.subr.mxu0 %v1473
    %3134 = vmatpush1.msra.mxu0 %v1472
    %3135 = vmatprep.subr.mxu0 %v1477
    %3136 = vmatpush1.msra.mxu0 %v1476
    %3137 = vmatprep.subr.mxu0 %v1481
    %3138 = vmatpush1.msra.mxu0 %v1480
    %3139 = vmatprep.subr.mxu0 %v1485
    %3140 = vmatpush1.msra.mxu0 %v1484
    %3141 = vmatprep.subr.mxu0 %v1489
    %3142 = vmatpush1.msra.mxu0 %v1488
    %3143 = vmatprep.subr.mxu0 %v1493
    %3144 = vmatpush1.msra.mxu0 %v1492
    %3145 = vmatprep.subr.mxu0 %v1497
    %3146 = vmatpush1.msra.mxu0 %v1496
    %3147 = vmatprep.subr.mxu0 %v1501
    %3148 = vmatpush1.msra.mxu0 %v1500
    %3149 = vmatprep.subr.mxu0 %v1505
    %3150 = vmatpush1.msra.mxu0 %v1504
    %3151 = vmatprep.subr.mxu0 %v1509
    %3152 = vmatpush1.msra.mxu0 %v1508
    %3153 = vmatprep.subr.mxu0 %v1513
    %3154 = vmatpush1.msra.mxu0 %v1512
    %3155 = vmatprep.subr.mxu0 %v1517
    %3156 = vmatpush1.msra.mxu0 %v1516
    %3157 = vmatprep.subr.mxu0 %v1521
    %3158 = vmatpush1.msra.mxu0 %v1520
    %3159 = vmatprep.subr.mxu0 %v1525
    %3160 = vmatpush1.msra.mxu0 %v1524
    %3161 = vmatprep.subr.mxu0 %v1529
    %3162 = vmatpush1.msra.mxu0 %v1528
    %3163 = vmatprep.subr.mxu0 %v1533
    %3164 = vmatpush1.msra.mxu0 %v1532
    %3165 = vmatprep.subr.mxu0 %v1537
    %3166 = vmatpush1.msra.mxu0 %v1536
    %3167 = vmatprep.subr.mxu0 %v1541
    %3168 = vmatpush1.msra.mxu0 %v1540
    %3169 = vmatprep.subr.mxu0 %v1545
    %3170 = vmatpush1.msra.mxu0 %v1544
    %3171 = vmatprep.subr.mxu0 %v1549
    %3172 = vmatpush1.msra.mxu0 %v1548
    %3173 = vmatprep.subr.mxu0 %v1553
    %3174 = vmatpush1.msra.mxu0 %v1552
    %3175 = vmatprep.subr.mxu0 %v1557
    %3176 = vmatpush1.msra.mxu0 %v1556
    %3177 = vmatprep.subr.mxu0 %v1561
    %3178 = vmatpush1.msra.mxu0 %v1560
    %3179 = vmatprep.subr.mxu0 %v1565
    %3180 = vmatpush1.msra.mxu0 %v1564
    %3181 = vmatprep.mubr.f32.mxu0 %v1301
    %3182 = vmatmul.mubr.f32.gmra.mrb[0].mxu0 %v1300
    %v3183 = vpop.f32.mrb[0].mxu0
    %v3184 = vadd.f32 %v3113, %v3183
    %v3185 = vpop.f32.mrb[0].mxu0
    %v3186 = vadd.f32 %v3115, %v3185
    %3187 = vdwg.mxu0
    %3188 = vmatprep.subr.mxu0 %v1569
    %3189 = vmatpush1.msra.mxu0 %v1568
    %3190 = vmatprep.subr.mxu0 %v1573
    %3191 = vmatpush1.msra.mxu0 %v1572
    %3192 = vmatprep.subr.mxu0 %v1577
    %3193 = vmatpush1.msra.mxu0 %v1576
    %3194 = vmatprep.subr.mxu0 %v1581
    %3195 = vmatpush1.msra.mxu0 %v1580
    %3196 = vmatprep.subr.mxu0 %v1585
    %3197 = vmatpush1.msra.mxu0 %v1584
    %3198 = vmatprep.subr.mxu0 %v1589
    %3199 = vmatpush1.msra.mxu0 %v1588
    %3200 = vmatprep.subr.mxu0 %v1593
    %3201 = vmatpush1.msra.mxu0 %v1592
    %3202 = vmatprep.subr.mxu0 %v1597
    %3203 = vmatpush1.msra.mxu0 %v1596
    %3204 = vmatprep.subr.mxu0 %v1601
    %3205 = vmatpush1.msra.mxu0 %v1600
    %3206 = vmatprep.subr.mxu0 %v1605
    %3207 = vmatpush1.msra.mxu0 %v1604
    %3208 = vmatprep.subr.mxu0 %v1609
    %3209 = vmatpush1.msra.mxu0 %v1608
    %3210 = vmatprep.subr.mxu0 %v1613
    %3211 = vmatpush1.msra.mxu0 %v1612
    %3212 = vmatprep.subr.mxu0 %v1617
    %3213 = vmatpush1.msra.mxu0 %v1616
    %3214 = vmatprep.subr.mxu0 %v1621
    %3215 = vmatpush1.msra.mxu0 %v1620
    %3216 = vmatprep.subr.mxu0 %v1625
    %3217 = vmatpush1.msra.mxu0 %v1624
    %3218 = vmatprep.subr.mxu0 %v1629
    %3219 = vmatpush1.msra.mxu0 %v1628
    %3220 = vmatprep.subr.mxu0 %v1633
    %3221 = vmatpush1.msra.mxu0 %v1632
    %3222 = vmatprep.subr.mxu0 %v1637
    %3223 = vmatpush1.msra.mxu0 %v1636
    %3224 = vmatprep.subr.mxu0 %v1641
    %3225 = vmatpush1.msra.mxu0 %v1640
    %3226 = vmatprep.subr.mxu0 %v1645
    %3227 = vmatpush1.msra.mxu0 %v1644
    %3228 = vmatprep.subr.mxu0 %v1649
    %3229 = vmatpush1.msra.mxu0 %v1648
    %3230 = vmatprep.subr.mxu0 %v1653
    %3231 = vmatpush1.msra.mxu0 %v1652
    %3232 = vmatprep.subr.mxu0 %v1657
    %3233 = vmatpush1.msra.mxu0 %v1656
    %3234 = vmatprep.subr.mxu0 %v1661
    %3235 = vmatpush1.msra.mxu0 %v1660
    %3236 = vmatprep.subr.mxu0 %v1665
    %3237 = vmatpush1.msra.mxu0 %v1664
    %3238 = vmatprep.subr.mxu0 %v1669
    %3239 = vmatpush1.msra.mxu0 %v1668
    %3240 = vmatprep.subr.mxu0 %v1673
    %3241 = vmatpush1.msra.mxu0 %v1672
    %3242 = vmatprep.subr.mxu0 %v1677
    %3243 = vmatpush1.msra.mxu0 %v1676
    %3244 = vmatprep.subr.mxu0 %v1681
    %3245 = vmatpush1.msra.mxu0 %v1680
    %3246 = vmatprep.subr.mxu0 %v1685
    %3247 = vmatpush1.msra.mxu0 %v1684
    %3248 = vmatprep.subr.mxu0 %v1689
    %3249 = vmatpush1.msra.mxu0 %v1688
    %3250 = vmatprep.subr.mxu0 %v1693
    %3251 = vmatpush1.msra.mxu0 %v1692
    %3252 = vmatprep.mubr.f32.mxu0 %v1303
    %3253 = vmatmul.mubr.f32.gmra.mrb[0].mxu0 %v1302
    %v3254 = vpop.f32.mrb[0].mxu0
    %v3255 = vadd.f32 %v3184, %v3254
    %v3256 = vpop.f32.mrb[0].mxu0
    %v3257 = vadd.f32 %v3186, %v3256
    %3258 = vdwg.mxu0
    %3259 = vmatprep.subr.mxu0 %v1315
    %3260 = vmatpush1.msra.mxu0 %v1314
    %3261 = vmatprep.subr.mxu0 %v1319
    %3262 = vmatpush1.msra.mxu0 %v1318
    %3263 = vmatprep.subr.mxu0 %v1323
    %3264 = vmatpush1.msra.mxu0 %v1322
    %3265 = vmatprep.subr.mxu0 %v1327
    %3266 = vmatpush1.msra.mxu0 %v1326
    %3267 = vmatprep.subr.mxu0 %v1331
    %3268 = vmatpush1.msra.mxu0 %v1330
    %3269 = vmatprep.subr.mxu0 %v1335
    %3270 = vmatpush1.msra.mxu0 %v1334
    %3271 = vmatprep.subr.mxu0 %v1339
    %3272 = vmatpush1.msra.mxu0 %v1338
    %3273 = vmatprep.subr.mxu0 %v1343
    %3274 = vmatpush1.msra.mxu0 %v1342
    %3275 = vmatprep.subr.mxu0 %v1347
    %3276 = vmatpush1.msra.mxu0 %v1346
    %3277 = vmatprep.subr.mxu0 %v1351
    %3278 = vmatpush1.msra.mxu0 %v1350
    %3279 = vmatprep.subr.mxu0 %v1355
    %3280 = vmatpush1.msra.mxu0 %v1354
    %3281 = vmatprep.subr.mxu0 %v1359
    %3282 = vmatpush1.msra.mxu0 %v1358
    %3283 = vmatprep.subr.mxu0 %v1363
    %3284 = vmatpush1.msra.mxu0 %v1362
    %3285 = vmatprep.subr.mxu0 %v1367
    %3286 = vmatpush1.msra.mxu0 %v1366
    %3287 = vmatprep.subr.mxu0 %v1371
    %3288 = vmatpush1.msra.mxu0 %v1370
    %3289 = vmatprep.subr.mxu0 %v1375
    %3290 = vmatpush1.msra.mxu0 %v1374
    %3291 = vmatprep.subr.mxu0 %v1379
    %3292 = vmatpush1.msra.mxu0 %v1378
    %3293 = vmatprep.subr.mxu0 %v1383
    %3294 = vmatpush1.msra.mxu0 %v1382
    %3295 = vmatprep.subr.mxu0 %v1387
    %3296 = vmatpush1.msra.mxu0 %v1386
    %3297 = vmatprep.subr.mxu0 %v1391
    %3298 = vmatpush1.msra.mxu0 %v1390
    %3299 = vmatprep.subr.mxu0 %v1395
    %3300 = vmatpush1.msra.mxu0 %v1394
    %3301 = vmatprep.subr.mxu0 %v1399
    %3302 = vmatpush1.msra.mxu0 %v1398
    %3303 = vmatprep.subr.mxu0 %v1403
    %3304 = vmatpush1.msra.mxu0 %v1402
    %3305 = vmatprep.subr.mxu0 %v1407
    %3306 = vmatpush1.msra.mxu0 %v1406
    %3307 = vmatprep.subr.mxu0 %v1411
    %3308 = vmatpush1.msra.mxu0 %v1410
    %3309 = vmatprep.subr.mxu0 %v1415
    %3310 = vmatpush1.msra.mxu0 %v1414
    %3311 = vmatprep.subr.mxu0 %v1419
    %3312 = vmatpush1.msra.mxu0 %v1418
    %3313 = vmatprep.subr.mxu0 %v1423
    %3314 = vmatpush1.msra.mxu0 %v1422
    %3315 = vmatprep.subr.mxu0 %v1427
    %3316 = vmatpush1.msra.mxu0 %v1426
    %3317 = vmatprep.subr.mxu0 %v1431
    %3318 = vmatpush1.msra.mxu0 %v1430
    %3319 = vmatprep.subr.mxu0 %v1435
    %3320 = vmatpush1.msra.mxu0 %v1434
    %3321 = vmatprep.subr.mxu0 %v1439
    %3322 = vmatpush1.msra.mxu0 %v1438
    %3323 = vmatprep.mubr.f32.mxu0 %v1299
    %3324 = vmatmul.mubr.f32.gmra.mrb[0].mxu0 %v1298
    %v3325 = vpop.f32.mrb[0].mxu0
    %v3326 = vadd.f32 %v1709, %v3325
    %v3327 = vpop.f32.mrb[0].mxu0
    %v3328 = vadd.f32 %v1713, %v3327
    %3329 = vdwg.mxu0
    %3330 = vmatprep.subr.mxu0 %v1443
    %3331 = vmatpush1.msra.mxu0 %v1442
    %3332 = vmatprep.subr.mxu0 %v1447
    %3333 = vmatpush1.msra.mxu0 %v1446
    %3334 = vmatprep.subr.mxu0 %v1451
    %3335 = vmatpush1.msra.mxu0 %v1450
    %3336 = vmatprep.subr.mxu0 %v1455
    %3337 = vmatpush1.msra.mxu0 %v1454
    %3338 = vmatprep.subr.mxu0 %v1459
    %3339 = vmatpush1.msra.mxu0 %v1458
    %3340 = vmatprep.subr.mxu0 %v1463
    %3341 = vmatpush1.msra.mxu0 %v1462
    %3342 = vmatprep.subr.mxu0 %v1467
    %3343 = vmatpush1.msra.mxu0 %v1466
    %3344 = vmatprep.subr.mxu0 %v1471
    %3345 = vmatpush1.msra.mxu0 %v1470
    %3346 = vmatprep.subr.mxu0 %v1475
    %3347 = vmatpush1.msra.mxu0 %v1474
    %3348 = vmatprep.subr.mxu0 %v1479
    %3349 = vmatpush1.msra.mxu0 %v1478
    %3350 = vmatprep.subr.mxu0 %v1483
    %3351 = vmatpush1.msra.mxu0 %v1482
    %3352 = vmatprep.subr.mxu0 %v1487
    %3353 = vmatpush1.msra.mxu0 %v1486
    %3354 = vmatprep.subr.mxu0 %v1491
    %3355 = vmatpush1.msra.mxu0 %v1490
    %3356 = vmatprep.subr.mxu0 %v1495
    %3357 = vmatpush1.msra.mxu0 %v1494
    %3358 = vmatprep.subr.mxu0 %v1499
    %3359 = vmatpush1.msra.mxu0 %v1498
    %3360 = vmatprep.subr.mxu0 %v1503
    %3361 = vmatpush1.msra.mxu0 %v1502
    %3362 = vmatprep.subr.mxu0 %v1507
    %3363 = vmatpush1.msra.mxu0 %v1506
    %3364 = vmatprep.subr.mxu0 %v1511
    %3365 = vmatpush1.msra.mxu0 %v1510
    %3366 = vmatprep.subr.mxu0 %v1515
    %3367 = vmatpush1.msra.mxu0 %v1514
    %3368 = vmatprep.subr.mxu0 %v1519
    %3369 = vmatpush1.msra.mxu0 %v1518
    %3370 = vmatprep.subr.mxu0 %v1523
    %3371 = vmatpush1.msra.mxu0 %v1522
    %3372 = vmatprep.subr.mxu0 %v1527
    %3373 = vmatpush1.msra.mxu0 %v1526
    %3374 = vmatprep.subr.mxu0 %v1531
    %3375 = vmatpush1.msra.mxu0 %v1530
    %3376 = vmatprep.subr.mxu0 %v1535
    %3377 = vmatpush1.msra.mxu0 %v1534
    %3378 = vmatprep.subr.mxu0 %v1539
    %3379 = vmatpush1.msra.mxu0 %v1538
    %3380 = vmatprep.subr.mxu0 %v1543
    %3381 = vmatpush1.msra.mxu0 %v1542
    %3382 = vmatprep.subr.mxu0 %v1547
    %3383 = vmatpush1.msra.mxu0 %v1546
    %3384 = vmatprep.subr.mxu0 %v1551
    %3385 = vmatpush1.msra.mxu0 %v1550
    %3386 = vmatprep.subr.mxu0 %v1555
    %3387 = vmatpush1.msra.mxu0 %v1554
    %3388 = vmatprep.subr.mxu0 %v1559
    %3389 = vmatpush1.msra.mxu0 %v1558
    %3390 = vmatprep.subr.mxu0 %v1563
    %3391 = vmatpush1.msra.mxu0 %v1562
    %3392 = vmatprep.subr.mxu0 %v1567
    %3393 = vmatpush1.msra.mxu0 %v1566
    %3394 = vmatprep.mubr.f32.mxu0 %v1301
    %3395 = vmatmul.mubr.f32.gmra.mrb[0].mxu0 %v1300
    %v3396 = vpop.f32.mrb[0].mxu0
    %v3397 = vadd.f32 %v3326, %v3396
    %v3398 = vpop.f32.mrb[0].mxu0
    %v3399 = vadd.f32 %v3328, %v3398
    %3400 = vdwg.mxu0
    %3401 = vmatprep.subr.mxu0 %v1571
    %3402 = vmatpush1.msra.mxu0 %v1570
    %3403 = vmatprep.subr.mxu0 %v1575
    %3404 = vmatpush1.msra.mxu0 %v1574
    %3405 = vmatprep.subr.mxu0 %v1579
    %3406 = vmatpush1.msra.mxu0 %v1578
    %3407 = vmatprep.subr.mxu0 %v1583
    %3408 = vmatpush1.msra.mxu0 %v1582
    %3409 = vmatprep.subr.mxu0 %v1587
    %3410 = vmatpush1.msra.mxu0 %v1586
    %3411 = vmatprep.subr.mxu0 %v1591
    %3412 = vmatpush1.msra.mxu0 %v1590
    %3413 = vmatprep.subr.mxu0 %v1595
    %3414 = vmatpush1.msra.mxu0 %v1594
    %3415 = vmatprep.subr.mxu0 %v1599
    %3416 = vmatpush1.msra.mxu0 %v1598
    %3417 = vmatprep.subr.mxu0 %v1603
    %3418 = vmatpush1.msra.mxu0 %v1602
    %3419 = vmatprep.subr.mxu0 %v1607
    %3420 = vmatpush1.msra.mxu0 %v1606
    %3421 = vmatprep.subr.mxu0 %v1611
    %3422 = vmatpush1.msra.mxu0 %v1610
    %3423 = vmatprep.subr.mxu0 %v1615
    %3424 = vmatpush1.msra.mxu0 %v1614
    %3425 = vmatprep.subr.mxu0 %v1619
    %3426 = vmatpush1.msra.mxu0 %v1618
    %3427 = vmatprep.subr.mxu0 %v1623
    %3428 = vmatpush1.msra.mxu0 %v1622
    %3429 = vmatprep.subr.mxu0 %v1627
    %3430 = vmatpush1.msra.mxu0 %v1626
    %3431 = vmatprep.subr.mxu0 %v1631
    %3432 = vmatpush1.msra.mxu0 %v1630
    %3433 = vmatprep.subr.mxu0 %v1635
    %3434 = vmatpush1.msra.mxu0 %v1634
    %3435 = vmatprep.subr.mxu0 %v1639
    %3436 = vmatpush1.msra.mxu0 %v1638
    %3437 = vmatprep.subr.mxu0 %v1643
    %3438 = vmatpush1.msra.mxu0 %v1642
    %3439 = vmatprep.subr.mxu0 %v1647
    %3440 = vmatpush1.msra.mxu0 %v1646
    %3441 = vmatprep.subr.mxu0 %v1651
    %3442 = vmatpush1.msra.mxu0 %v1650
    %3443 = vmatprep.subr.mxu0 %v1655
    %3444 = vmatpush1.msra.mxu0 %v1654
    %3445 = vmatprep.subr.mxu0 %v1659
    %3446 = vmatpush1.msra.mxu0 %v1658
    %3447 = vmatprep.subr.mxu0 %v1663
    %3448 = vmatpush1.msra.mxu0 %v1662
    %3449 = vmatprep.subr.mxu0 %v1667
    %3450 = vmatpush1.msra.mxu0 %v1666
    %3451 = vmatprep.subr.mxu0 %v1671
    %3452 = vmatpush1.msra.mxu0 %v1670
    %3453 = vmatprep.subr.mxu0 %v1675
    %3454 = vmatpush1.msra.mxu0 %v1674
    %3455 = vmatprep.subr.mxu0 %v1679
    %3456 = vmatpush1.msra.mxu0 %v1678
    %3457 = vmatprep.subr.mxu0 %v1683
    %3458 = vmatpush1.msra.mxu0 %v1682
    %3459 = vmatprep.subr.mxu0 %v1687
    %3460 = vmatpush1.msra.mxu0 %v1686
    %3461 = vmatprep.subr.mxu0 %v1691
    %3462 = vmatpush1.msra.mxu0 %v1690
    %3463 = vmatprep.subr.mxu0 %v1695
    %3464 = vmatpush1.msra.mxu0 %v1694
    %3465 = vmatprep.mubr.f32.mxu0 %v1303
    %3466 = vmatmul.mubr.f32.gmra.mrb[0].mxu0 %v1302
    %v3467 = vpop.f32.mrb[0].mxu0
    %v3468 = vadd.f32 %v3397, %v3467
    %v3469 = vpop.f32.mrb[0].mxu0
    %v3470 = vadd.f32 %v3399, %v3469
    %3471 = vdwg.mxu0
    %v3472 = vmax.f32 %v3255, 0.0
    %v3473 = vmax.f32 %v3257, 0.0
    %v3474 = vmax.f32 %v3468, 0.0
    %v3475 = vmax.f32 %v3470, 0.0
    %v3476 = vmax.f32 %v3042, %v3472
    %v3477 = vmax.f32 %v3043, %v3473
    %v3478 = vmax.f32 %v3044, %v3474
    %v3479 = vmax.f32 %v3045, %v3475
    %v3480 = vmax.f32 %v3476, %v3478
    %v3481 = vmax.f32 %v3477, %v3479
    %s3482 = scalar_lea.vmem [#allocation9], 256
    %v3483 = vld [vmem:[%s3482] sm:$0xff]
    %v3484 = vld [vmem:[%s3482 + $0x8] sm:$0xff]
    %v3485 = vld [vmem:[%s3482 + $0x10] sm:$0xff]
    %v3486 = vld [vmem:[%s3482 + $0x18] sm:$0xff]
    %v3487 = vld [vmem:[%s3482 + $0x20] sm:$0xff]
    %v3488 = vld [vmem:[%s3482 + $0x28] sm:$0xff]
    %v3489 = vld [vmem:[%s3482 + $0x30] sm:$0xff]
    %v3490 = vld [vmem:[%s3482 + $0x38] sm:$0xff]
    %v3491 = vld [vmem:[%s3482 + $0x40] sm:$0xff]
    %v3492 = vld [vmem:[%s3482 + $0x48] sm:$0xff]
    %v3493 = vld [vmem:[%s3482 + $0x50] sm:$0xff]
    %v3494 = vld [vmem:[%s3482 + $0x58] sm:$0xff]
    %v3495 = vld [vmem:[%s3482 + $0x60] sm:$0xff]
    %v3496 = vld [vmem:[%s3482 + $0x68] sm:$0xff]
    %v3497 = vld [vmem:[%s3482 + $0x70] sm:$0xff]
    %v3498 = vld [vmem:[%s3482 + $0x78] sm:$0xff]
    %v3499 = vld [vmem:[%s3482 + $0x80] sm:$0xff]
    %v3500 = vld [vmem:[%s3482 + $0x88] sm:$0xff]
    %v3501 = vld [vmem:[%s3482 + $0x90] sm:$0xff]
    %v3502 = vld [vmem:[%s3482 + $0x98] sm:$0xff]
    %v3503 = vld [vmem:[%s3482 + $0xa0] sm:$0xff]
    %v3504 = vld [vmem:[%s3482 + $0xa8] sm:$0xff]
    %v3505 = vld [vmem:[%s3482 + $0xb0] sm:$0xff]
    %v3506 = vld [vmem:[%s3482 + $0xb8] sm:$0xff]
    %v3507 = vld [vmem:[%s3482 + $0xc0] sm:$0xff]
    %v3508 = vld [vmem:[%s3482 + $0xc8] sm:$0xff]
    %v3509 = vld [vmem:[%s3482 + $0xd0] sm:$0xff]
    %v3510 = vld [vmem:[%s3482 + $0xd8] sm:$0xff]
    %v3511 = vld [vmem:[%s3482 + $0xe0] sm:$0xff]
    %v3512 = vld [vmem:[%s3482 + $0xe8] sm:$0xff]
    %v3513 = vld [vmem:[%s3482 + $0xf0] sm:$0xff]
    %v3514 = vld [vmem:[%s3482 + $0xf8] sm:$0xff]
    %3515 = vmatprep.subr.mxu0 0.0
    %3516 = vmatpush1.msra.mxu0 %v3483
    %3517 = vmatprep.subr.mxu0 0.0
    %3518 = vmatpush1.msra.mxu0 %v3484
    %3519 = vmatprep.subr.mxu0 0.0
    %3520 = vmatpush1.msra.mxu0 %v3485
    %3521 = vmatprep.subr.mxu0 0.0
    %3522 = vmatpush1.msra.mxu0 %v3486
    %3523 = vmatprep.subr.mxu0 0.0
    %3524 = vmatpush1.msra.mxu0 %v3487
    %3525 = vmatprep.subr.mxu0 0.0
    %3526 = vmatpush1.msra.mxu0 %v3488
    %3527 = vmatprep.subr.mxu0 0.0
    %3528 = vmatpush1.msra.mxu0 %v3489
    %3529 = vmatprep.subr.mxu0 0.0
    %3530 = vmatpush1.msra.mxu0 %v3490
    %3531 = vmatprep.subr.mxu0 0.0
    %3532 = vmatpush1.msra.mxu0 %v3491
    %3533 = vmatprep.subr.mxu0 0.0
    %3534 = vmatpush1.msra.mxu0 %v3492
    %3535 = vmatprep.subr.mxu0 0.0
    %3536 = vmatpush1.msra.mxu0 %v3493
    %3537 = vmatprep.subr.mxu0 0.0
    %3538 = vmatpush1.msra.mxu0 %v3494
    %3539 = vmatprep.subr.mxu0 0.0
    %3540 = vmatpush1.msra.mxu0 %v3495
    %3541 = vmatprep.subr.mxu0 0.0
    %3542 = vmatpush1.msra.mxu0 %v3496
    %3543 = vmatprep.subr.mxu0 0.0
    %3544 = vmatpush1.msra.mxu0 %v3497
    %3545 = vmatprep.subr.mxu0 0.0
    %3546 = vmatpush1.msra.mxu0 %v3498
    %3547 = vmatprep.subr.mxu0 0.0
    %3548 = vmatpush1.msra.mxu0 %v3499
    %3549 = vmatprep.subr.mxu0 0.0
    %3550 = vmatpush1.msra.mxu0 %v3500
    %3551 = vmatprep.subr.mxu0 0.0
    %3552 = vmatpush1.msra.mxu0 %v3501
    %3553 = vmatprep.subr.mxu0 0.0
    %3554 = vmatpush1.msra.mxu0 %v3502
    %3555 = vmatprep.subr.mxu0 0.0
    %3556 = vmatpush1.msra.mxu0 %v3503
    %3557 = vmatprep.subr.mxu0 0.0
    %3558 = vmatpush1.msra.mxu0 %v3504
    %3559 = vmatprep.subr.mxu0 0.0
    %3560 = vmatpush1.msra.mxu0 %v3505
    %3561 = vmatprep.subr.mxu0 0.0
    %3562 = vmatpush1.msra.mxu0 %v3506
    %3563 = vmatprep.subr.mxu0 0.0
    %3564 = vmatpush1.msra.mxu0 %v3507
    %3565 = vmatprep.subr.mxu0 0.0
    %3566 = vmatpush1.msra.mxu0 %v3508
    %3567 = vmatprep.subr.mxu0 0.0
    %3568 = vmatpush1.msra.mxu0 %v3509
    %3569 = vmatprep.subr.mxu0 0.0
    %3570 = vmatpush1.msra.mxu0 %v3510
    %3571 = vmatprep.subr.mxu0 0.0
    %3572 = vmatpush1.msra.mxu0 %v3511
    %3573 = vmatprep.subr.mxu0 0.0
    %3574 = vmatpush1.msra.mxu0 %v3512
    %3575 = vmatprep.subr.mxu0 0.0
    %3576 = vmatpush1.msra.mxu0 %v3513
    %3577 = vmatprep.subr.mxu0 0.0
    %3578 = vmatpush1.msra.mxu0 %v3514
    %3579 = vmatprep.mubr.f32.mxu0 %v3481
    %3580 = vmatmul.mubr.f32.gmra.mrb[0].mxu0 %v3480
    %v3581 = vpop.f32.mrb[0].mxu0
    %v3582 = vadd.f32 0.0, %v3581
    %v3583 = vpop.f32.mrb[0].mxu0
    %3584 = vdwg.mxu0
    %3585 = vmatprep.subr.mxu0 0.0
    %3586 = vmatpush1.msra.mxu0 %v2584
    %3587 = vmatprep.subr.mxu0 0.0
    %3588 = vmatpush1.msra.mxu0 %v2585
    %3589 = vmatprep.subr.mxu0 0.0
    %3590 = vmatpush1.msra.mxu0 %v2586
    %3591 = vmatprep.subr.mxu0 0.0
    %3592 = vmatpush1.msra.mxu0 %v2587
    %3593 = vmatprep.subr.mxu0 0.0
    %3594 = vmatpush1.msra.mxu0 %v2588
    %3595 = vmatprep.subr.mxu0 0.0
    %3596 = vmatpush1.msra.mxu0 %v2589
    %3597 = vmatprep.subr.mxu0 0.0
    %3598 = vmatpush1.msra.mxu0 %v2590
    %3599 = vmatprep.subr.mxu0 0.0
    %3600 = vmatpush1.msra.mxu0 %v2591
    %3601 = vmatprep.subr.mxu0 0.0
    %3602 = vmatpush1.msra.mxu0 %v2592
    %3603 = vmatprep.subr.mxu0 0.0
    %3604 = vmatpush1.msra.mxu0 %v2593
    %3605 = vmatprep.subr.mxu0 0.0
    %3606 = vmatpush1.msra.mxu0 %v2594
    %3607 = vmatprep.subr.mxu0 0.0
    %3608 = vmatpush1.msra.mxu0 %v2595
    %3609 = vmatprep.subr.mxu0 0.0
    %3610 = vmatpush1.msra.mxu0 %v2596
    %3611 = vmatprep.subr.mxu0 0.0
    %3612 = vmatpush1.msra.mxu0 %v2597
    %3613 = vmatprep.subr.mxu0 0.0
    %3614 = vmatpush1.msra.mxu0 %v2598
    %3615 = vmatprep.subr.mxu0 0.0
    %3616 = vmatpush1.msra.mxu0 %v2599
    %3617 = vmatprep.subr.mxu0 0.0
    %3618 = vmatpush1.msra.mxu0 %v2600
    %3619 = vmatprep.subr.mxu0 0.0
    %3620 = vmatpush1.msra.mxu0 %v2601
    %3621 = vmatprep.subr.mxu0 0.0
    %3622 = vmatpush1.msra.mxu0 %v2602
    %3623 = vmatprep.subr.mxu0 0.0
    %3624 = vmatpush1.msra.mxu0 %v2603
    %3625 = vmatprep.subr.mxu0 0.0
    %3626 = vmatpush1.msra.mxu0 %v2604
    %3627 = vmatprep.subr.mxu0 0.0
    %3628 = vmatpush1.msra.mxu0 %v2605
    %3629 = vmatprep.subr.mxu0 0.0
    %3630 = vmatpush1.msra.mxu0 %v2606
    %3631 = vmatprep.subr.mxu0 0.0
    %3632 = vmatpush1.msra.mxu0 %v2607
    %3633 = vmatprep.subr.mxu0 0.0
    %3634 = vmatpush1.msra.mxu0 %v2608
    %3635 = vmatprep.subr.mxu0 0.0
    %3636 = vmatpush1.msra.mxu0 %v2609
    %3637 = vmatprep.subr.mxu0 0.0
    %3638 = vmatpush1.msra.mxu0 %v2610
    %3639 = vmatprep.subr.mxu0 0.0
    %3640 = vmatpush1.msra.mxu0 %v2611
    %3641 = vmatprep.subr.mxu0 0.0
    %3642 = vmatpush1.msra.mxu0 %v2612
    %3643 = vmatprep.subr.mxu0 0.0
    %3644 = vmatpush1.msra.mxu0 %v2613
    %3645 = vmatprep.subr.mxu0 0.0
    %3646 = vmatpush1.msra.mxu0 %v2614
    %3647 = vmatprep.subr.mxu0 0.0
    %3648 = vmatpush1.msra.mxu0 %v2615
    %3649 = vmatprep.mubr.f32.mxu0 %v2583
    %3650 = vmatmul.mubr.f32.gmra.mrb[0].mxu0 %v2582
    %v3651 = vpop.f32.mrb[0].mxu0
    %v3652 = vadd.f32 %v3582, %v3651
    %v3653 = vpop.f32.mrb[0].mxu0
    %3654 = vdwg.mxu0
    %3655 = vmatprep.subr.mxu0 %v1313
    %3656 = vmatpush1.msra.mxu0 %v1312
    %3657 = vmatprep.subr.mxu0 %v1317
    %3658 = vmatpush1.msra.mxu0 %v1316
    %3659 = vmatprep.subr.mxu0 %v1321
    %3660 = vmatpush1.msra.mxu0 %v1320
    %3661 = vmatprep.subr.mxu0 %v1325
    %3662 = vmatpush1.msra.mxu0 %v1324
    %3663 = vmatprep.subr.mxu0 %v1329
    %3664 = vmatpush1.msra.mxu0 %v1328
    %3665 = vmatprep.subr.mxu0 %v1333
    %3666 = vmatpush1.msra.mxu0 %v1332
    %3667 = vmatprep.subr.mxu0 %v1337
    %3668 = vmatpush1.msra.mxu0 %v1336
    %3669 = vmatprep.subr.mxu0 %v1341
    %3670 = vmatpush1.msra.mxu0 %v1340
    %3671 = vmatprep.subr.mxu0 %v1345
    %3672 = vmatpush1.msra.mxu0 %v1344
    %3673 = vmatprep.subr.mxu0 %v1349
    %3674 = vmatpush1.msra.mxu0 %v1348
    %3675 = vmatprep.subr.mxu0 %v1353
    %3676 = vmatpush1.msra.mxu0 %v1352
    %3677 = vmatprep.subr.mxu0 %v1357
    %3678 = vmatpush1.msra.mxu0 %v1356
    %3679 = vmatprep.subr.mxu0 %v1361
    %3680 = vmatpush1.msra.mxu0 %v1360
    %3681 = vmatprep.subr.mxu0 %v1365
    %3682 = vmatpush1.msra.mxu0 %v1364
    %3683 = vmatprep.subr.mxu0 %v1369
    %3684 = vmatpush1.msra.mxu0 %v1368
    %3685 = vmatprep.subr.mxu0 %v1373
    %3686 = vmatpush1.msra.mxu0 %v1372
    %3687 = vmatprep.subr.mxu0 %v1377
    %3688 = vmatpush1.msra.mxu0 %v1376
    %3689 = vmatprep.subr.mxu0 %v1381
    %3690 = vmatpush1.msra.mxu0 %v1380
    %3691 = vmatprep.subr.mxu0 %v1385
    %3692 = vmatpush1.msra.mxu0 %v1384
    %3693 = vmatprep.subr.mxu0 %v1389
    %3694 = vmatpush1.msra.mxu0 %v1388
    %3695 = vmatprep.subr.mxu0 %v1393
    %3696 = vmatpush1.msra.mxu0 %v1392
    %3697 = vmatprep.subr.mxu0 %v1397
    %3698 = vmatpush1.msra.mxu0 %v1396
    %3699 = vmatprep.subr.mxu0 %v1401
    %3700 = vmatpush1.msra.mxu0 %v1400
    %3701 = vmatprep.subr.mxu0 %v1405
    %3702 = vmatpush1.msra.mxu0 %v1404
    %3703 = vmatprep.subr.mxu0 %v1409
    %3704 = vmatpush1.msra.mxu0 %v1408
    %3705 = vmatprep.subr.mxu0 %v1413
    %3706 = vmatpush1.msra.mxu0 %v1412
    %3707 = vmatprep.subr.mxu0 %v1417
    %3708 = vmatpush1.msra.mxu0 %v1416
    %3709 = vmatprep.subr.mxu0 %v1421
    %3710 = vmatpush1.msra.mxu0 %v1420
    %3711 = vmatprep.subr.mxu0 %v1425
    %3712 = vmatpush1.msra.mxu0 %v1424
    %3713 = vmatprep.subr.mxu0 %v1429
    %3714 = vmatpush1.msra.mxu0 %v1428
    %3715 = vmatprep.subr.mxu0 %v1433
    %3716 = vmatpush1.msra.mxu0 %v1432
    %3717 = vmatprep.subr.mxu0 %v1437
    %3718 = vmatpush1.msra.mxu0 %v1436
    %3719 = vmatprep.mubr.f32.mxu0 %v1301
    %3720 = vmatmul.mubr.f32.gmra.mrb[0].mxu0 %v1300
    %v3721 = vpop.f32.mrb[0].mxu0
    %v3722 = vadd.f32 %v1701, %v3721
    %v3723 = vpop.f32.mrb[0].mxu0
    %v3724 = vadd.f32 %v1705, %v3723
    %3725 = vdwg.mxu0
    %3726 = vmatprep.subr.mxu0 %v1441
    %3727 = vmatpush1.msra.mxu0 %v1440
    %3728 = vmatprep.subr.mxu0 %v1445
    %3729 = vmatpush1.msra.mxu0 %v1444
    %3730 = vmatprep.subr.mxu0 %v1449
    %3731 = vmatpush1.msra.mxu0 %v1448
    %3732 = vmatprep.subr.mxu0 %v1453
    %3733 = vmatpush1.msra.mxu0 %v1452
    %3734 = vmatprep.subr.mxu0 %v1457
    %3735 = vmatpush1.msra.mxu0 %v1456
    %3736 = vmatprep.subr.mxu0 %v1461
    %3737 = vmatpush1.msra.mxu0 %v1460
    %3738 = vmatprep.subr.mxu0 %v1465
    %3739 = vmatpush1.msra.mxu0 %v1464
    %3740 = vmatprep.subr.mxu0 %v1469
    %3741 = vmatpush1.msra.mxu0 %v1468
    %3742 = vmatprep.subr.mxu0 %v1473
    %3743 = vmatpush1.msra.mxu0 %v1472
    %3744 = vmatprep.subr.mxu0 %v1477
    %3745 = vmatpush1.msra.mxu0 %v1476
    %3746 = vmatprep.subr.mxu0 %v1481
    %3747 = vmatpush1.msra.mxu0 %v1480
    %3748 = vmatprep.subr.mxu0 %v1485
    %3749 = vmatpush1.msra.mxu0 %v1484
    %3750 = vmatprep.subr.mxu0 %v1489
    %3751 = vmatpush1.msra.mxu0 %v1488
    %3752 = vmatprep.subr.mxu0 %v1493
    %3753 = vmatpush1.msra.mxu0 %v1492
    %3754 = vmatprep.subr.mxu0 %v1497
    %3755 = vmatpush1.msra.mxu0 %v1496
    %3756 = vmatprep.subr.mxu0 %v1501
    %3757 = vmatpush1.msra.mxu0 %v1500
    %3758 = vmatprep.subr.mxu0 %v1505
    %3759 = vmatpush1.msra.mxu0 %v1504
    %3760 = vmatprep.subr.mxu0 %v1509
    %3761 = vmatpush1.msra.mxu0 %v1508
    %3762 = vmatprep.subr.mxu0 %v1513
    %3763 = vmatpush1.msra.mxu0 %v1512
    %3764 = vmatprep.subr.mxu0 %v1517
    %3765 = vmatpush1.msra.mxu0 %v1516
    %3766 = vmatprep.subr.mxu0 %v1521
    %3767 = vmatpush1.msra.mxu0 %v1520
    %3768 = vmatprep.subr.mxu0 %v1525
    %3769 = vmatpush1.msra.mxu0 %v1524
    %3770 = vmatprep.subr.mxu0 %v1529
    %3771 = vmatpush1.msra.mxu0 %v1528
    %3772 = vmatprep.subr.mxu0 %v1533
    %3773 = vmatpush1.msra.mxu0 %v1532
    %3774 = vmatprep.subr.mxu0 %v1537
    %3775 = vmatpush1.msra.mxu0 %v1536
    %3776 = vmatprep.subr.mxu0 %v1541
    %3777 = vmatpush1.msra.mxu0 %v1540
    %3778 = vmatprep.subr.mxu0 %v1545
    %3779 = vmatpush1.msra.mxu0 %v1544
    %3780 = vmatprep.subr.mxu0 %v1549
    %3781 = vmatpush1.msra.mxu0 %v1548
    %3782 = vmatprep.subr.mxu0 %v1553
    %3783 = vmatpush1.msra.mxu0 %v1552
    %3784 = vmatprep.subr.mxu0 %v1557
    %3785 = vmatpush1.msra.mxu0 %v1556
    %3786 = vmatprep.subr.mxu0 %v1561
    %3787 = vmatpush1.msra.mxu0 %v1560
    %3788 = vmatprep.subr.mxu0 %v1565
    %3789 = vmatpush1.msra.mxu0 %v1564
    %3790 = vmatprep.mubr.f32.mxu0 %v1303
    %3791 = vmatmul.mubr.f32.gmra.mrb[0].mxu0 %v1302
    %v3792 = vpop.f32.mrb[0].mxu0
    %v3793 = vadd.f32 %v3722, %v3792
    %v3794 = vpop.f32.mrb[0].mxu0
    %v3795 = vadd.f32 %v3724, %v3794
    %3796 = vdwg.mxu0
    %3797 = vmatprep.subr.mxu0 %v1569
    %3798 = vmatpush1.msra.mxu0 %v1568
    %3799 = vmatprep.subr.mxu0 %v1573
    %3800 = vmatpush1.msra.mxu0 %v1572
    %3801 = vmatprep.subr.mxu0 %v1577
    %3802 = vmatpush1.msra.mxu0 %v1576
    %3803 = vmatprep.subr.mxu0 %v1581
    %3804 = vmatpush1.msra.mxu0 %v1580
    %3805 = vmatprep.subr.mxu0 %v1585
    %3806 = vmatpush1.msra.mxu0 %v1584
    %3807 = vmatprep.subr.mxu0 %v1589
    %3808 = vmatpush1.msra.mxu0 %v1588
    %3809 = vmatprep.subr.mxu0 %v1593
    %3810 = vmatpush1.msra.mxu0 %v1592
    %3811 = vmatprep.subr.mxu0 %v1597
    %3812 = vmatpush1.msra.mxu0 %v1596
    %3813 = vmatprep.subr.mxu0 %v1601
    %3814 = vmatpush1.msra.mxu0 %v1600
    %3815 = vmatprep.subr.mxu0 %v1605
    %3816 = vmatpush1.msra.mxu0 %v1604
    %3817 = vmatprep.subr.mxu0 %v1609
    %3818 = vmatpush1.msra.mxu0 %v1608
    %3819 = vmatprep.subr.mxu0 %v1613
    %3820 = vmatpush1.msra.mxu0 %v1612
    %3821 = vmatprep.subr.mxu0 %v1617
    %3822 = vmatpush1.msra.mxu0 %v1616
    %3823 = vmatprep.subr.mxu0 %v1621
    %3824 = vmatpush1.msra.mxu0 %v1620
    %3825 = vmatprep.subr.mxu0 %v1625
    %3826 = vmatpush1.msra.mxu0 %v1624
    %3827 = vmatprep.subr.mxu0 %v1629
    %3828 = vmatpush1.msra.mxu0 %v1628
    %3829 = vmatprep.subr.mxu0 %v1633
    %3830 = vmatpush1.msra.mxu0 %v1632
    %3831 = vmatprep.subr.mxu0 %v1637
    %3832 = vmatpush1.msra.mxu0 %v1636
    %3833 = vmatprep.subr.mxu0 %v1641
    %3834 = vmatpush1.msra.mxu0 %v1640
    %3835 = vmatprep.subr.mxu0 %v1645
    %3836 = vmatpush1.msra.mxu0 %v1644
    %3837 = vmatprep.subr.mxu0 %v1649
    %3838 = vmatpush1.msra.mxu0 %v1648
    %3839 = vmatprep.subr.mxu0 %v1653
    %3840 = vmatpush1.msra.mxu0 %v1652
    %3841 = vmatprep.subr.mxu0 %v1657
    %3842 = vmatpush1.msra.mxu0 %v1656
    %3843 = vmatprep.subr.mxu0 %v1661
    %3844 = vmatpush1.msra.mxu0 %v1660
    %3845 = vmatprep.subr.mxu0 %v1665
    %3846 = vmatpush1.msra.mxu0 %v1664
    %3847 = vmatprep.subr.mxu0 %v1669
    %3848 = vmatpush1.msra.mxu0 %v1668
    %3849 = vmatprep.subr.mxu0 %v1673
    %3850 = vmatpush1.msra.mxu0 %v1672
    %3851 = vmatprep.subr.mxu0 %v1677
    %3852 = vmatpush1.msra.mxu0 %v1676
    %3853 = vmatprep.subr.mxu0 %v1681
    %3854 = vmatpush1.msra.mxu0 %v1680
    %3855 = vmatprep.subr.mxu0 %v1685
    %3856 = vmatpush1.msra.mxu0 %v1684
    %3857 = vmatprep.subr.mxu0 %v1689
    %3858 = vmatpush1.msra.mxu0 %v1688
    %3859 = vmatprep.subr.mxu0 %v1693
    %3860 = vmatpush1.msra.mxu0 %v1692
    %3861 = vmatprep.mubr.f32.mxu0 %v1305
    %3862 = vmatmul.mubr.f32.gmra.mrb[0].mxu0 %v1304
    %v3863 = vpop.f32.mrb[0].mxu0
    %v3864 = vadd.f32 %v3793, %v3863
    %v3865 = vpop.f32.mrb[0].mxu0
    %v3866 = vadd.f32 %v3795, %v3865
    %3867 = vdwg.mxu0
    %3868 = vmatprep.subr.mxu0 %v1315
    %3869 = vmatpush1.msra.mxu0 %v1314
    %3870 = vmatprep.subr.mxu0 %v1319
    %3871 = vmatpush1.msra.mxu0 %v1318
    %3872 = vmatprep.subr.mxu0 %v1323
    %3873 = vmatpush1.msra.mxu0 %v1322
    %3874 = vmatprep.subr.mxu0 %v1327
    %3875 = vmatpush1.msra.mxu0 %v1326
    %3876 = vmatprep.subr.mxu0 %v1331
    %3877 = vmatpush1.msra.mxu0 %v1330
    %3878 = vmatprep.subr.mxu0 %v1335
    %3879 = vmatpush1.msra.mxu0 %v1334
    %3880 = vmatprep.subr.mxu0 %v1339
    %3881 = vmatpush1.msra.mxu0 %v1338
    %3882 = vmatprep.subr.mxu0 %v1343
    %3883 = vmatpush1.msra.mxu0 %v1342
    %3884 = vmatprep.subr.mxu0 %v1347
    %3885 = vmatpush1.msra.mxu0 %v1346
    %3886 = vmatprep.subr.mxu0 %v1351
    %3887 = vmatpush1.msra.mxu0 %v1350
    %3888 = vmatprep.subr.mxu0 %v1355
    %3889 = vmatpush1.msra.mxu0 %v1354
    %3890 = vmatprep.subr.mxu0 %v1359
    %3891 = vmatpush1.msra.mxu0 %v1358
    %3892 = vmatprep.subr.mxu0 %v1363
    %3893 = vmatpush1.msra.mxu0 %v1362
    %3894 = vmatprep.subr.mxu0 %v1367
    %3895 = vmatpush1.msra.mxu0 %v1366
    %3896 = vmatprep.subr.mxu0 %v1371
    %3897 = vmatpush1.msra.mxu0 %v1370
    %3898 = vmatprep.subr.mxu0 %v1375
    %3899 = vmatpush1.msra.mxu0 %v1374
    %3900 = vmatprep.subr.mxu0 %v1379
    %3901 = vmatpush1.msra.mxu0 %v1378
    %3902 = vmatprep.subr.mxu0 %v1383
    %3903 = vmatpush1.msra.mxu0 %v1382
    %3904 = vmatprep.subr.mxu0 %v1387
    %3905 = vmatpush1.msra.mxu0 %v1386
    %3906 = vmatprep.subr.mxu0 %v1391
    %3907 = vmatpush1.msra.mxu0 %v1390
    %3908 = vmatprep.subr.mxu0 %v1395
    %3909 = vmatpush1.msra.mxu0 %v1394
    %3910 = vmatprep.subr.mxu0 %v1399
    %3911 = vmatpush1.msra.mxu0 %v1398
    %3912 = vmatprep.subr.mxu0 %v1403
    %3913 = vmatpush1.msra.mxu0 %v1402
    %3914 = vmatprep.subr.mxu0 %v1407
    %3915 = vmatpush1.msra.mxu0 %v1406
    %3916 = vmatprep.subr.mxu0 %v1411
    %3917 = vmatpush1.msra.mxu0 %v1410
    %3918 = vmatprep.subr.mxu0 %v1415
    %3919 = vmatpush1.msra.mxu0 %v1414
    %3920 = vmatprep.subr.mxu0 %v1419
    %3921 = vmatpush1.msra.mxu0 %v1418
    %3922 = vmatprep.subr.mxu0 %v1423
    %3923 = vmatpush1.msra.mxu0 %v1422
    %3924 = vmatprep.subr.mxu0 %v1427
    %3925 = vmatpush1.msra.mxu0 %v1426
    %3926 = vmatprep.subr.mxu0 %v1431
    %3927 = vmatpush1.msra.mxu0 %v1430
    %3928 = vmatprep.subr.mxu0 %v1435
    %3929 = vmatpush1.msra.mxu0 %v1434
    %3930 = vmatprep.subr.mxu0 %v1439
    %3931 = vmatpush1.msra.mxu0 %v1438
    %3932 = vmatprep.mubr.f32.mxu0 %v1301
    %3933 = vmatmul.mubr.f32.gmra.mrb[0].mxu0 %v1300
    %v3934 = vpop.f32.mrb[0].mxu0
    %v3935 = vadd.f32 %v1709, %v3934
    %v3936 = vpop.f32.mrb[0].mxu0
    %v3937 = vadd.f32 %v1713, %v3936
    %3938 = vdwg.mxu0
    %3939 = vmatprep.subr.mxu0 %v1443
    %3940 = vmatpush1.msra.mxu0 %v1442
    %3941 = vmatprep.subr.mxu0 %v1447
    %3942 = vmatpush1.msra.mxu0 %v1446
    %3943 = vmatprep.subr.mxu0 %v1451
    %3944 = vmatpush1.msra.mxu0 %v1450
    %3945 = vmatprep.subr.mxu0 %v1455
    %3946 = vmatpush1.msra.mxu0 %v1454
    %3947 = vmatprep.subr.mxu0 %v1459
    %3948 = vmatpush1.msra.mxu0 %v1458
    %3949 = vmatprep.subr.mxu0 %v1463
    %3950 = vmatpush1.msra.mxu0 %v1462
    %3951 = vmatprep.subr.mxu0 %v1467
    %3952 = vmatpush1.msra.mxu0 %v1466
    %3953 = vmatprep.subr.mxu0 %v1471
    %3954 = vmatpush1.msra.mxu0 %v1470
    %3955 = vmatprep.subr.mxu0 %v1475
    %3956 = vmatpush1.msra.mxu0 %v1474
    %3957 = vmatprep.subr.mxu0 %v1479
    %3958 = vmatpush1.msra.mxu0 %v1478
    %3959 = vmatprep.subr.mxu0 %v1483
    %3960 = vmatpush1.msra.mxu0 %v1482
    %3961 = vmatprep.subr.mxu0 %v1487
    %3962 = vmatpush1.msra.mxu0 %v1486
    %3963 = vmatprep.subr.mxu0 %v1491
    %3964 = vmatpush1.msra.mxu0 %v1490
    %3965 = vmatprep.subr.mxu0 %v1495
    %3966 = vmatpush1.msra.mxu0 %v1494
    %3967 = vmatprep.subr.mxu0 %v1499
    %3968 = vmatpush1.msra.mxu0 %v1498
    %3969 = vmatprep.subr.mxu0 %v1503
    %3970 = vmatpush1.msra.mxu0 %v1502
    %3971 = vmatprep.subr.mxu0 %v1507
    %3972 = vmatpush1.msra.mxu0 %v1506
    %3973 = vmatprep.subr.mxu0 %v1511
    %3974 = vmatpush1.msra.mxu0 %v1510
    %3975 = vmatprep.subr.mxu0 %v1515
    %3976 = vmatpush1.msra.mxu0 %v1514
    %3977 = vmatprep.subr.mxu0 %v1519
    %3978 = vmatpush1.msra.mxu0 %v1518
    %3979 = vmatprep.subr.mxu0 %v1523
    %3980 = vmatpush1.msra.mxu0 %v1522
    %3981 = vmatprep.subr.mxu0 %v1527
    %3982 = vmatpush1.msra.mxu0 %v1526
    %3983 = vmatprep.subr.mxu0 %v1531
    %3984 = vmatpush1.msra.mxu0 %v1530
    %3985 = vmatprep.subr.mxu0 %v1535
    %3986 = vmatpush1.msra.mxu0 %v1534
    %3987 = vmatprep.subr.mxu0 %v1539
    %3988 = vmatpush1.msra.mxu0 %v1538
    %3989 = vmatprep.subr.mxu0 %v1543
    %3990 = vmatpush1.msra.mxu0 %v1542
    %3991 = vmatprep.subr.mxu0 %v1547
    %3992 = vmatpush1.msra.mxu0 %v1546
    %3993 = vmatprep.subr.mxu0 %v1551
    %3994 = vmatpush1.msra.mxu0 %v1550
    %3995 = vmatprep.subr.mxu0 %v1555
    %3996 = vmatpush1.msra.mxu0 %v1554
    %3997 = vmatprep.subr.mxu0 %v1559
    %3998 = vmatpush1.msra.mxu0 %v1558
    %3999 = vmatprep.subr.mxu0 %v1563
    %4000 = vmatpush1.msra.mxu0 %v1562
    %4001 = vmatprep.subr.mxu0 %v1567
    %4002 = vmatpush1.msra.mxu0 %v1566
    %4003 = vmatprep.mubr.f32.mxu0 %v1303
    %4004 = vmatmul.mubr.f32.gmra.mrb[0].mxu0 %v1302
    %v4005 = vpop.f32.mrb[0].mxu0
    %v4006 = vadd.f32 %v3935, %v4005
    %v4007 = vpop.f32.mrb[0].mxu0
    %v4008 = vadd.f32 %v3937, %v4007
    %4009 = vdwg.mxu0
    %4010 = vmatprep.subr.mxu0 %v1571
    %4011 = vmatpush1.msra.mxu0 %v1570
    %4012 = vmatprep.subr.mxu0 %v1575
    %4013 = vmatpush1.msra.mxu0 %v1574
    %4014 = vmatprep.subr.mxu0 %v1579
    %4015 = vmatpush1.msra.mxu0 %v1578
    %4016 = vmatprep.subr.mxu0 %v1583
    %4017 = vmatpush1.msra.mxu0 %v1582
    %4018 = vmatprep.subr.mxu0 %v1587
    %4019 = vmatpush1.msra.mxu0 %v1586
    %4020 = vmatprep.subr.mxu0 %v1591
    %4021 = vmatpush1.msra.mxu0 %v1590
    %4022 = vmatprep.subr.mxu0 %v1595
    %4023 = vmatpush1.msra.mxu0 %v1594
    %4024 = vmatprep.subr.mxu0 %v1599
    %4025 = vmatpush1.msra.mxu0 %v1598
    %4026 = vmatprep.subr.mxu0 %v1603
    %4027 = vmatpush1.msra.mxu0 %v1602
    %4028 = vmatprep.subr.mxu0 %v1607
    %4029 = vmatpush1.msra.mxu0 %v1606
    %4030 = vmatprep.subr.mxu0 %v1611
    %4031 = vmatpush1.msra.mxu0 %v1610
    %4032 = vmatprep.subr.mxu0 %v1615
    %4033 = vmatpush1.msra.mxu0 %v1614
    %4034 = vmatprep.subr.mxu0 %v1619
    %4035 = vmatpush1.msra.mxu0 %v1618
    %4036 = vmatprep.subr.mxu0 %v1623
    %4037 = vmatpush1.msra.mxu0 %v1622
    %4038 = vmatprep.subr.mxu0 %v1627
    %4039 = vmatpush1.msra.mxu0 %v1626
    %4040 = vmatprep.subr.mxu0 %v1631
    %4041 = vmatpush1.msra.mxu0 %v1630
    %4042 = vmatprep.subr.mxu0 %v1635
    %4043 = vmatpush1.msra.mxu0 %v1634
    %4044 = vmatprep.subr.mxu0 %v1639
    %4045 = vmatpush1.msra.mxu0 %v1638
    %4046 = vmatprep.subr.mxu0 %v1643
    %4047 = vmatpush1.msra.mxu0 %v1642
    %4048 = vmatprep.subr.mxu0 %v1647
    %4049 = vmatpush1.msra.mxu0 %v1646
    %4050 = vmatprep.subr.mxu0 %v1651
    %4051 = vmatpush1.msra.mxu0 %v1650
    %4052 = vmatprep.subr.mxu0 %v1655
    %4053 = vmatpush1.msra.mxu0 %v1654
    %4054 = vmatprep.subr.mxu0 %v1659
    %4055 = vmatpush1.msra.mxu0 %v1658
    %4056 = vmatprep.subr.mxu0 %v1663
    %4057 = vmatpush1.msra.mxu0 %v1662
    %4058 = vmatprep.subr.mxu0 %v1667
    %4059 = vmatpush1.msra.mxu0 %v1666
    %4060 = vmatprep.subr.mxu0 %v1671
    %4061 = vmatpush1.msra.mxu0 %v1670
    %4062 = vmatprep.subr.mxu0 %v1675
    %4063 = vmatpush1.msra.mxu0 %v1674
    %4064 = vmatprep.subr.mxu0 %v1679
    %4065 = vmatpush1.msra.mxu0 %v1678
    %4066 = vmatprep.subr.mxu0 %v1683
    %4067 = vmatpush1.msra.mxu0 %v1682
    %4068 = vmatprep.subr.mxu0 %v1687
    %4069 = vmatpush1.msra.mxu0 %v1686
    %4070 = vmatprep.subr.mxu0 %v1691
    %4071 = vmatpush1.msra.mxu0 %v1690
    %4072 = vmatprep.subr.mxu0 %v1695
    %4073 = vmatpush1.msra.mxu0 %v1694
    %4074 = vmatprep.mubr.f32.mxu0 %v1305
    %4075 = vmatmul.mubr.f32.gmra.mrb[0].mxu0 %v1304
    %v4076 = vpop.f32.mrb[0].mxu0
    %v4077 = vadd.f32 %v4006, %v4076
    %v4078 = vpop.f32.mrb[0].mxu0
    %v4079 = vadd.f32 %v4008, %v4078
    %4080 = vdwg.mxu0
    %v4081 = vmax.f32 %v3864, 0.0
    %v4082 = vmax.f32 %v3866, 0.0
    %v4083 = vmax.f32 %v4077, 0.0
    %v4084 = vmax.f32 %v4079, 0.0
    %4085 = vmatprep.subr.mxu0 %v1313
    %4086 = vmatpush1.msra.mxu0 %v1312
    %4087 = vmatprep.subr.mxu0 %v1317
    %4088 = vmatpush1.msra.mxu0 %v1316
    %4089 = vmatprep.subr.mxu0 %v1321
    %4090 = vmatpush1.msra.mxu0 %v1320
    %4091 = vmatprep.subr.mxu0 %v1325
    %4092 = vmatpush1.msra.mxu0 %v1324
    %4093 = vmatprep.subr.mxu0 %v1329
    %4094 = vmatpush1.msra.mxu0 %v1328
    %4095 = vmatprep.subr.mxu0 %v1333
    %4096 = vmatpush1.msra.mxu0 %v1332
    %4097 = vmatprep.subr.mxu0 %v1337
    %4098 = vmatpush1.msra.mxu0 %v1336
    %4099 = vmatprep.subr.mxu0 %v1341
    %4100 = vmatpush1.msra.mxu0 %v1340
    %4101 = vmatprep.subr.mxu0 %v1345
    %4102 = vmatpush1.msra.mxu0 %v1344
    %4103 = vmatprep.subr.mxu0 %v1349
    %4104 = vmatpush1.msra.mxu0 %v1348
    %4105 = vmatprep.subr.mxu0 %v1353
    %4106 = vmatpush1.msra.mxu0 %v1352
    %4107 = vmatprep.subr.mxu0 %v1357
    %4108 = vmatpush1.msra.mxu0 %v1356
    %4109 = vmatprep.subr.mxu0 %v1361
    %4110 = vmatpush1.msra.mxu0 %v1360
    %4111 = vmatprep.subr.mxu0 %v1365
    %4112 = vmatpush1.msra.mxu0 %v1364
    %4113 = vmatprep.subr.mxu0 %v1369
    %4114 = vmatpush1.msra.mxu0 %v1368
    %4115 = vmatprep.subr.mxu0 %v1373
    %4116 = vmatpush1.msra.mxu0 %v1372
    %4117 = vmatprep.subr.mxu0 %v1377
    %4118 = vmatpush1.msra.mxu0 %v1376
    %4119 = vmatprep.subr.mxu0 %v1381
    %4120 = vmatpush1.msra.mxu0 %v1380
    %4121 = vmatprep.subr.mxu0 %v1385
    %4122 = vmatpush1.msra.mxu0 %v1384
    %4123 = vmatprep.subr.mxu0 %v1389
    %4124 = vmatpush1.msra.mxu0 %v1388
    %4125 = vmatprep.subr.mxu0 %v1393
    %4126 = vmatpush1.msra.mxu0 %v1392
    %4127 = vmatprep.subr.mxu0 %v1397
    %4128 = vmatpush1.msra.mxu0 %v1396
    %4129 = vmatprep.subr.mxu0 %v1401
    %4130 = vmatpush1.msra.mxu0 %v1400
    %4131 = vmatprep.subr.mxu0 %v1405
    %4132 = vmatpush1.msra.mxu0 %v1404
    %4133 = vmatprep.subr.mxu0 %v1409
    %4134 = vmatpush1.msra.mxu0 %v1408
    %4135 = vmatprep.subr.mxu0 %v1413
    %4136 = vmatpush1.msra.mxu0 %v1412
    %4137 = vmatprep.subr.mxu0 %v1417
    %4138 = vmatpush1.msra.mxu0 %v1416
    %4139 = vmatprep.subr.mxu0 %v1421
    %4140 = vmatpush1.msra.mxu0 %v1420
    %4141 = vmatprep.subr.mxu0 %v1425
    %4142 = vmatpush1.msra.mxu0 %v1424
    %4143 = vmatprep.subr.mxu0 %v1429
    %4144 = vmatpush1.msra.mxu0 %v1428
    %4145 = vmatprep.subr.mxu0 %v1433
    %4146 = vmatpush1.msra.mxu0 %v1432
    %4147 = vmatprep.subr.mxu0 %v1437
    %4148 = vmatpush1.msra.mxu0 %v1436
    %4149 = vmatprep.mubr.f32.mxu0 %v1303
    %4150 = vmatmul.mubr.f32.gmra.mrb[0].mxu0 %v1302
    %v4151 = vpop.f32.mrb[0].mxu0
    %v4152 = vadd.f32 %v1701, %v4151
    %v4153 = vpop.f32.mrb[0].mxu0
    %v4154 = vadd.f32 %v1705, %v4153
    %4155 = vdwg.mxu0
    %4156 = vmatprep.subr.mxu0 %v1441
    %4157 = vmatpush1.msra.mxu0 %v1440
    %4158 = vmatprep.subr.mxu0 %v1445
    %4159 = vmatpush1.msra.mxu0 %v1444
    %4160 = vmatprep.subr.mxu0 %v1449
    %4161 = vmatpush1.msra.mxu0 %v1448
    %4162 = vmatprep.subr.mxu0 %v1453
    %4163 = vmatpush1.msra.mxu0 %v1452
    %4164 = vmatprep.subr.mxu0 %v1457
    %4165 = vmatpush1.msra.mxu0 %v1456
    %4166 = vmatprep.subr.mxu0 %v1461
    %4167 = vmatpush1.msra.mxu0 %v1460
    %4168 = vmatprep.subr.mxu0 %v1465
    %4169 = vmatpush1.msra.mxu0 %v1464
    %4170 = vmatprep.subr.mxu0 %v1469
    %4171 = vmatpush1.msra.mxu0 %v1468
    %4172 = vmatprep.subr.mxu0 %v1473
    %4173 = vmatpush1.msra.mxu0 %v1472
    %4174 = vmatprep.subr.mxu0 %v1477
    %4175 = vmatpush1.msra.mxu0 %v1476
    %4176 = vmatprep.subr.mxu0 %v1481
    %4177 = vmatpush1.msra.mxu0 %v1480
    %4178 = vmatprep.subr.mxu0 %v1485
    %4179 = vmatpush1.msra.mxu0 %v1484
    %4180 = vmatprep.subr.mxu0 %v1489
    %4181 = vmatpush1.msra.mxu0 %v1488
    %4182 = vmatprep.subr.mxu0 %v1493
    %4183 = vmatpush1.msra.mxu0 %v1492
    %4184 = vmatprep.subr.mxu0 %v1497
    %4185 = vmatpush1.msra.mxu0 %v1496
    %4186 = vmatprep.subr.mxu0 %v1501
    %4187 = vmatpush1.msra.mxu0 %v1500
    %4188 = vmatprep.subr.mxu0 %v1505
    %4189 = vmatpush1.msra.mxu0 %v1504
    %4190 = vmatprep.subr.mxu0 %v1509
    %4191 = vmatpush1.msra.mxu0 %v1508
    %4192 = vmatprep.subr.mxu0 %v1513
    %4193 = vmatpush1.msra.mxu0 %v1512
    %4194 = vmatprep.subr.mxu0 %v1517
    %4195 = vmatpush1.msra.mxu0 %v1516
    %4196 = vmatprep.subr.mxu0 %v1521
    %4197 = vmatpush1.msra.mxu0 %v1520
    %4198 = vmatprep.subr.mxu0 %v1525
    %4199 = vmatpush1.msra.mxu0 %v1524
    %4200 = vmatprep.subr.mxu0 %v1529
    %4201 = vmatpush1.msra.mxu0 %v1528
    %4202 = vmatprep.subr.mxu0 %v1533
    %4203 = vmatpush1.msra.mxu0 %v1532
    %4204 = vmatprep.subr.mxu0 %v1537
    %4205 = vmatpush1.msra.mxu0 %v1536
    %4206 = vmatprep.subr.mxu0 %v1541
    %4207 = vmatpush1.msra.mxu0 %v1540
    %4208 = vmatprep.subr.mxu0 %v1545
    %4209 = vmatpush1.msra.mxu0 %v1544
    %4210 = vmatprep.subr.mxu0 %v1549
    %4211 = vmatpush1.msra.mxu0 %v1548
    %4212 = vmatprep.subr.mxu0 %v1553
    %4213 = vmatpush1.msra.mxu0 %v1552
    %4214 = vmatprep.subr.mxu0 %v1557
    %4215 = vmatpush1.msra.mxu0 %v1556
    %4216 = vmatprep.subr.mxu0 %v1561
    %4217 = vmatpush1.msra.mxu0 %v1560
    %4218 = vmatprep.subr.mxu0 %v1565
    %4219 = vmatpush1.msra.mxu0 %v1564
    %4220 = vmatprep.mubr.f32.mxu0 %v1305
    %4221 = vmatmul.mubr.f32.gmra.mrb[0].mxu0 %v1304
    %v4222 = vpop.f32.mrb[0].mxu0
    %v4223 = vadd.f32 %v4152, %v4222
    %v4224 = vpop.f32.mrb[0].mxu0
    %v4225 = vadd.f32 %v4154, %v4224
    %4226 = vdwg.mxu0
    %4227 = vmatprep.subr.mxu0 %v1569
    %4228 = vmatpush1.msra.mxu0 %v1568
    %4229 = vmatprep.subr.mxu0 %v1573
    %4230 = vmatpush1.msra.mxu0 %v1572
    %4231 = vmatprep.subr.mxu0 %v1577
    %4232 = vmatpush1.msra.mxu0 %v1576
    %4233 = vmatprep.subr.mxu0 %v1581
    %4234 = vmatpush1.msra.mxu0 %v1580
    %4235 = vmatprep.subr.mxu0 %v1585
    %4236 = vmatpush1.msra.mxu0 %v1584
    %4237 = vmatprep.subr.mxu0 %v1589
    %4238 = vmatpush1.msra.mxu0 %v1588
    %4239 = vmatprep.subr.mxu0 %v1593
    %4240 = vmatpush1.msra.mxu0 %v1592
    %4241 = vmatprep.subr.mxu0 %v1597
    %4242 = vmatpush1.msra.mxu0 %v1596
    %4243 = vmatprep.subr.mxu0 %v1601
    %4244 = vmatpush1.msra.mxu0 %v1600
    %4245 = vmatprep.subr.mxu0 %v1605
    %4246 = vmatpush1.msra.mxu0 %v1604
    %4247 = vmatprep.subr.mxu0 %v1609
    %4248 = vmatpush1.msra.mxu0 %v1608
    %4249 = vmatprep.subr.mxu0 %v1613
    %4250 = vmatpush1.msra.mxu0 %v1612
    %4251 = vmatprep.subr.mxu0 %v1617
    %4252 = vmatpush1.msra.mxu0 %v1616
    %4253 = vmatprep.subr.mxu0 %v1621
    %4254 = vmatpush1.msra.mxu0 %v1620
    %4255 = vmatprep.subr.mxu0 %v1625
    %4256 = vmatpush1.msra.mxu0 %v1624
    %4257 = vmatprep.subr.mxu0 %v1629
    %4258 = vmatpush1.msra.mxu0 %v1628
    %4259 = vmatprep.subr.mxu0 %v1633
    %4260 = vmatpush1.msra.mxu0 %v1632
    %4261 = vmatprep.subr.mxu0 %v1637
    %4262 = vmatpush1.msra.mxu0 %v1636
    %4263 = vmatprep.subr.mxu0 %v1641
    %4264 = vmatpush1.msra.mxu0 %v1640
    %4265 = vmatprep.subr.mxu0 %v1645
    %4266 = vmatpush1.msra.mxu0 %v1644
    %4267 = vmatprep.subr.mxu0 %v1649
    %4268 = vmatpush1.msra.mxu0 %v1648
    %4269 = vmatprep.subr.mxu0 %v1653
    %4270 = vmatpush1.msra.mxu0 %v1652
    %4271 = vmatprep.subr.mxu0 %v1657
    %4272 = vmatpush1.msra.mxu0 %v1656
    %4273 = vmatprep.subr.mxu0 %v1661
    %4274 = vmatpush1.msra.mxu0 %v1660
    %4275 = vmatprep.subr.mxu0 %v1665
    %4276 = vmatpush1.msra.mxu0 %v1664
    %4277 = vmatprep.subr.mxu0 %v1669
    %4278 = vmatpush1.msra.mxu0 %v1668
    %4279 = vmatprep.subr.mxu0 %v1673
    %4280 = vmatpush1.msra.mxu0 %v1672
    %4281 = vmatprep.subr.mxu0 %v1677
    %4282 = vmatpush1.msra.mxu0 %v1676
    %4283 = vmatprep.subr.mxu0 %v1681
    %4284 = vmatpush1.msra.mxu0 %v1680
    %4285 = vmatprep.subr.mxu0 %v1685
    %4286 = vmatpush1.msra.mxu0 %v1684
    %4287 = vmatprep.subr.mxu0 %v1689
    %4288 = vmatpush1.msra.mxu0 %v1688
    %4289 = vmatprep.subr.mxu0 %v1693
    %4290 = vmatpush1.msra.mxu0 %v1692
    %4291 = vmatprep.mubr.f32.mxu0 %v1307
    %4292 = vmatmul.mubr.f32.gmra.mrb[0].mxu0 %v1306
    %v4293 = vpop.f32.mrb[0].mxu0
    %v4294 = vadd.f32 %v4223, %v4293
    %v4295 = vpop.f32.mrb[0].mxu0
    %v4296 = vadd.f32 %v4225, %v4295
    %4297 = vdwg.mxu0
    %4298 = vmatprep.subr.mxu0 %v1315
    %4299 = vmatpush1.msra.mxu0 %v1314
    %4300 = vmatprep.subr.mxu0 %v1319
    %4301 = vmatpush1.msra.mxu0 %v1318
    %4302 = vmatprep.subr.mxu0 %v1323
    %4303 = vmatpush1.msra.mxu0 %v1322
    %4304 = vmatprep.subr.mxu0 %v1327
    %4305 = vmatpush1.msra.mxu0 %v1326
    %4306 = vmatprep.subr.mxu0 %v1331
    %4307 = vmatpush1.msra.mxu0 %v1330
    %4308 = vmatprep.subr.mxu0 %v1335
    %4309 = vmatpush1.msra.mxu0 %v1334
    %4310 = vmatprep.subr.mxu0 %v1339
    %4311 = vmatpush1.msra.mxu0 %v1338
    %4312 = vmatprep.subr.mxu0 %v1343
    %4313 = vmatpush1.msra.mxu0 %v1342
    %4314 = vmatprep.subr.mxu0 %v1347
    %4315 = vmatpush1.msra.mxu0 %v1346
    %4316 = vmatprep.subr.mxu0 %v1351
    %4317 = vmatpush1.msra.mxu0 %v1350
    %4318 = vmatprep.subr.mxu0 %v1355
    %4319 = vmatpush1.msra.mxu0 %v1354
    %4320 = vmatprep.subr.mxu0 %v1359
    %4321 = vmatpush1.msra.mxu0 %v1358
    %4322 = vmatprep.subr.mxu0 %v1363
    %4323 = vmatpush1.msra.mxu0 %v1362
    %4324 = vmatprep.subr.mxu0 %v1367
    %4325 = vmatpush1.msra.mxu0 %v1366
    %4326 = vmatprep.subr.mxu0 %v1371
    %4327 = vmatpush1.msra.mxu0 %v1370
    %4328 = vmatprep.subr.mxu0 %v1375
    %4329 = vmatpush1.msra.mxu0 %v1374
    %4330 = vmatprep.subr.mxu0 %v1379
    %4331 = vmatpush1.msra.mxu0 %v1378
    %4332 = vmatprep.subr.mxu0 %v1383
    %4333 = vmatpush1.msra.mxu0 %v1382
    %4334 = vmatprep.subr.mxu0 %v1387
    %4335 = vmatpush1.msra.mxu0 %v1386
    %4336 = vmatprep.subr.mxu0 %v1391
    %4337 = vmatpush1.msra.mxu0 %v1390
    %4338 = vmatprep.subr.mxu0 %v1395
    %4339 = vmatpush1.msra.mxu0 %v1394
    %4340 = vmatprep.subr.mxu0 %v1399
    %4341 = vmatpush1.msra.mxu0 %v1398
    %4342 = vmatprep.subr.mxu0 %v1403
    %4343 = vmatpush1.msra.mxu0 %v1402
    %4344 = vmatprep.subr.mxu0 %v1407
    %4345 = vmatpush1.msra.mxu0 %v1406
    %4346 = vmatprep.subr.mxu0 %v1411
    %4347 = vmatpush1.msra.mxu0 %v1410
    %4348 = vmatprep.subr.mxu0 %v1415
    %4349 = vmatpush1.msra.mxu0 %v1414
    %4350 = vmatprep.subr.mxu0 %v1419
    %4351 = vmatpush1.msra.mxu0 %v1418
    %4352 = vmatprep.subr.mxu0 %v1423
    %4353 = vmatpush1.msra.mxu0 %v1422
    %4354 = vmatprep.subr.mxu0 %v1427
    %4355 = vmatpush1.msra.mxu0 %v1426
    %4356 = vmatprep.subr.mxu0 %v1431
    %4357 = vmatpush1.msra.mxu0 %v1430
    %4358 = vmatprep.subr.mxu0 %v1435
    %4359 = vmatpush1.msra.mxu0 %v1434
    %4360 = vmatprep.subr.mxu0 %v1439
    %4361 = vmatpush1.msra.mxu0 %v1438
    %4362 = vmatprep.mubr.f32.mxu0 %v1303
    %4363 = vmatmul.mubr.f32.gmra.mrb[0].mxu0 %v1302
    %v4364 = vpop.f32.mrb[0].mxu0
    %v4365 = vadd.f32 %v1709, %v4364
    %v4366 = vpop.f32.mrb[0].mxu0
    %v4367 = vadd.f32 %v1713, %v4366
    %4368 = vdwg.mxu0
    %4369 = vmatprep.subr.mxu0 %v1443
    %4370 = vmatpush1.msra.mxu0 %v1442
    %4371 = vmatprep.subr.mxu0 %v1447
    %4372 = vmatpush1.msra.mxu0 %v1446
    %4373 = vmatprep.subr.mxu0 %v1451
    %4374 = vmatpush1.msra.mxu0 %v1450
    %4375 = vmatprep.subr.mxu0 %v1455
    %4376 = vmatpush1.msra.mxu0 %v1454
    %4377 = vmatprep.subr.mxu0 %v1459
    %4378 = vmatpush1.msra.mxu0 %v1458
    %4379 = vmatprep.subr.mxu0 %v1463
    %4380 = vmatpush1.msra.mxu0 %v1462
    %4381 = vmatprep.subr.mxu0 %v1467
    %4382 = vmatpush1.msra.mxu0 %v1466
    %4383 = vmatprep.subr.mxu0 %v1471
    %4384 = vmatpush1.msra.mxu0 %v1470
    %4385 = vmatprep.subr.mxu0 %v1475
    %4386 = vmatpush1.msra.mxu0 %v1474
    %4387 = vmatprep.subr.mxu0 %v1479
    %4388 = vmatpush1.msra.mxu0 %v1478
    %4389 = vmatprep.subr.mxu0 %v1483
    %4390 = vmatpush1.msra.mxu0 %v1482
    %4391 = vmatprep.subr.mxu0 %v1487
    %4392 = vmatpush1.msra.mxu0 %v1486
    %4393 = vmatprep.subr.mxu0 %v1491
    %4394 = vmatpush1.msra.mxu0 %v1490
    %4395 = vmatprep.subr.mxu0 %v1495
    %4396 = vmatpush1.msra.mxu0 %v1494
    %4397 = vmatprep.subr.mxu0 %v1499
    %4398 = vmatpush1.msra.mxu0 %v1498
    %4399 = vmatprep.subr.mxu0 %v1503
    %4400 = vmatpush1.msra.mxu0 %v1502
    %4401 = vmatprep.subr.mxu0 %v1507
    %4402 = vmatpush1.msra.mxu0 %v1506
    %4403 = vmatprep.subr.mxu0 %v1511
    %4404 = vmatpush1.msra.mxu0 %v1510
    %4405 = vmatprep.subr.mxu0 %v1515
    %4406 = vmatpush1.msra.mxu0 %v1514
    %4407 = vmatprep.subr.mxu0 %v1519
    %4408 = vmatpush1.msra.mxu0 %v1518
    %4409 = vmatprep.subr.mxu0 %v1523
    %4410 = vmatpush1.msra.mxu0 %v1522
    %4411 = vmatprep.subr.mxu0 %v1527
    %4412 = vmatpush1.msra.mxu0 %v1526
    %4413 = vmatprep.subr.mxu0 %v1531
    %4414 = vmatpush1.msra.mxu0 %v1530
    %4415 = vmatprep.subr.mxu0 %v1535
    %4416 = vmatpush1.msra.mxu0 %v1534
    %4417 = vmatprep.subr.mxu0 %v1539
    %4418 = vmatpush1.msra.mxu0 %v1538
    %4419 = vmatprep.subr.mxu0 %v1543
    %4420 = vmatpush1.msra.mxu0 %v1542
    %4421 = vmatprep.subr.mxu0 %v1547
    %4422 = vmatpush1.msra.mxu0 %v1546
    %4423 = vmatprep.subr.mxu0 %v1551
    %4424 = vmatpush1.msra.mxu0 %v1550
    %4425 = vmatprep.subr.mxu0 %v1555
    %4426 = vmatpush1.msra.mxu0 %v1554
    %4427 = vmatprep.subr.mxu0 %v1559
    %4428 = vmatpush1.msra.mxu0 %v1558
    %4429 = vmatprep.subr.mxu0 %v1563
    %4430 = vmatpush1.msra.mxu0 %v1562
    %4431 = vmatprep.subr.mxu0 %v1567
    %4432 = vmatpush1.msra.mxu0 %v1566
    %4433 = vmatprep.mubr.f32.mxu0 %v1305
    %4434 = vmatmul.mubr.f32.gmra.mrb[0].mxu0 %v1304
    %v4435 = vpop.f32.mrb[0].mxu0
    %v4436 = vadd.f32 %v4365, %v4435
    %v4437 = vpop.f32.mrb[0].mxu0
    %v4438 = vadd.f32 %v4367, %v4437
    %4439 = vdwg.mxu0
    %4440 = vmatprep.subr.mxu0 %v1571
    %4441 = vmatpush1.msra.mxu0 %v1570
    %4442 = vmatprep.subr.mxu0 %v1575
    %4443 = vmatpush1.msra.mxu0 %v1574
    %4444 = vmatprep.subr.mxu0 %v1579
    %4445 = vmatpush1.msra.mxu0 %v1578
    %4446 = vmatprep.subr.mxu0 %v1583
    %4447 = vmatpush1.msra.mxu0 %v1582
    %4448 = vmatprep.subr.mxu0 %v1587
    %4449 = vmatpush1.msra.mxu0 %v1586
    %4450 = vmatprep.subr.mxu0 %v1591
    %4451 = vmatpush1.msra.mxu0 %v1590
    %4452 = vmatprep.subr.mxu0 %v1595
    %4453 = vmatpush1.msra.mxu0 %v1594
    %4454 = vmatprep.subr.mxu0 %v1599
    %4455 = vmatpush1.msra.mxu0 %v1598
    %4456 = vmatprep.subr.mxu0 %v1603
    %4457 = vmatpush1.msra.mxu0 %v1602
    %4458 = vmatprep.subr.mxu0 %v1607
    %4459 = vmatpush1.msra.mxu0 %v1606
    %4460 = vmatprep.subr.mxu0 %v1611
    %4461 = vmatpush1.msra.mxu0 %v1610
    %4462 = vmatprep.subr.mxu0 %v1615
    %4463 = vmatpush1.msra.mxu0 %v1614
    %4464 = vmatprep.subr.mxu0 %v1619
    %4465 = vmatpush1.msra.mxu0 %v1618
    %4466 = vmatprep.subr.mxu0 %v1623
    %4467 = vmatpush1.msra.mxu0 %v1622
    %4468 = vmatprep.subr.mxu0 %v1627
    %4469 = vmatpush1.msra.mxu0 %v1626
    %4470 = vmatprep.subr.mxu0 %v1631
    %4471 = vmatpush1.msra.mxu0 %v1630
    %4472 = vmatprep.subr.mxu0 %v1635
    %4473 = vmatpush1.msra.mxu0 %v1634
    %4474 = vmatprep.subr.mxu0 %v1639
    %4475 = vmatpush1.msra.mxu0 %v1638
    %4476 = vmatprep.subr.mxu0 %v1643
    %4477 = vmatpush1.msra.mxu0 %v1642
    %4478 = vmatprep.subr.mxu0 %v1647
    %4479 = vmatpush1.msra.mxu0 %v1646
    %4480 = vmatprep.subr.mxu0 %v1651
    %4481 = vmatpush1.msra.mxu0 %v1650
    %4482 = vmatprep.subr.mxu0 %v1655
    %4483 = vmatpush1.msra.mxu0 %v1654
    %4484 = vmatprep.subr.mxu0 %v1659
    %4485 = vmatpush1.msra.mxu0 %v1658
    %4486 = vmatprep.subr.mxu0 %v1663
    %4487 = vmatpush1.msra.mxu0 %v1662
    %4488 = vmatprep.subr.mxu0 %v1667
    %4489 = vmatpush1.msra.mxu0 %v1666
    %4490 = vmatprep.subr.mxu0 %v1671
    %4491 = vmatpush1.msra.mxu0 %v1670
    %4492 = vmatprep.subr.mxu0 %v1675
    %4493 = vmatpush1.msra.mxu0 %v1674
    %4494 = vmatprep.subr.mxu0 %v1679
    %4495 = vmatpush1.msra.mxu0 %v1678
    %4496 = vmatprep.subr.mxu0 %v1683
    %4497 = vmatpush1.msra.mxu0 %v1682
    %4498 = vmatprep.subr.mxu0 %v1687
    %4499 = vmatpush1.msra.mxu0 %v1686
    %4500 = vmatprep.subr.mxu0 %v1691
    %4501 = vmatpush1.msra.mxu0 %v1690
    %4502 = vmatprep.subr.mxu0 %v1695
    %4503 = vmatpush1.msra.mxu0 %v1694
    %4504 = vmatprep.mubr.f32.mxu0 %v1307
    %4505 = vmatmul.mubr.f32.gmra.mrb[0].mxu0 %v1306
    %v4506 = vpop.f32.mrb[0].mxu0
    %v4507 = vadd.f32 %v4436, %v4506
    %v4508 = vpop.f32.mrb[0].mxu0
    %v4509 = vadd.f32 %v4438, %v4508
    %4510 = vdwg.mxu0
    %v4511 = vmax.f32 %v4294, 0.0
    %v4512 = vmax.f32 %v4296, 0.0
    %v4513 = vmax.f32 %v4507, 0.0
    %v4514 = vmax.f32 %v4509, 0.0
    %v4515 = vmax.f32 %v4081, %v4511
    %v4516 = vmax.f32 %v4082, %v4512
    %v4517 = vmax.f32 %v4083, %v4513
    %v4518 = vmax.f32 %v4084, %v4514
    %v4519 = vmax.f32 %v4515, %v4517
    %v4520 = vmax.f32 %v4516, %v4518
    %s4521 = scalar_lea.vmem [#allocation9], 512
    %v4522 = vld [vmem:[%s4521] sm:$0xff]
    %v4523 = vld [vmem:[%s4521 + $0x8] sm:$0xff]
    %v4524 = vld [vmem:[%s4521 + $0x10] sm:$0xff]
    %v4525 = vld [vmem:[%s4521 + $0x18] sm:$0xff]
    %v4526 = vld [vmem:[%s4521 + $0x20] sm:$0xff]
    %v4527 = vld [vmem:[%s4521 + $0x28] sm:$0xff]
    %v4528 = vld [vmem:[%s4521 + $0x30] sm:$0xff]
    %v4529 = vld [vmem:[%s4521 + $0x38] sm:$0xff]
    %v4530 = vld [vmem:[%s4521 + $0x40] sm:$0xff]
    %v4531 = vld [vmem:[%s4521 + $0x48] sm:$0xff]
    %v4532 = vld [vmem:[%s4521 + $0x50] sm:$0xff]
    %v4533 = vld [vmem:[%s4521 + $0x58] sm:$0xff]
    %v4534 = vld [vmem:[%s4521 + $0x60] sm:$0xff]
    %v4535 = vld [vmem:[%s4521 + $0x68] sm:$0xff]
    %v4536 = vld [vmem:[%s4521 + $0x70] sm:$0xff]
    %v4537 = vld [vmem:[%s4521 + $0x78] sm:$0xff]
    %v4538 = vld [vmem:[%s4521 + $0x80] sm:$0xff]
    %v4539 = vld [vmem:[%s4521 + $0x88] sm:$0xff]
    %v4540 = vld [vmem:[%s4521 + $0x90] sm:$0xff]
    %v4541 = vld [vmem:[%s4521 + $0x98] sm:$0xff]
    %v4542 = vld [vmem:[%s4521 + $0xa0] sm:$0xff]
    %v4543 = vld [vmem:[%s4521 + $0xa8] sm:$0xff]
    %v4544 = vld [vmem:[%s4521 + $0xb0] sm:$0xff]
    %v4545 = vld [vmem:[%s4521 + $0xb8] sm:$0xff]
    %v4546 = vld [vmem:[%s4521 + $0xc0] sm:$0xff]
    %v4547 = vld [vmem:[%s4521 + $0xc8] sm:$0xff]
    %v4548 = vld [vmem:[%s4521 + $0xd0] sm:$0xff]
    %v4549 = vld [vmem:[%s4521 + $0xd8] sm:$0xff]
    %v4550 = vld [vmem:[%s4521 + $0xe0] sm:$0xff]
    %v4551 = vld [vmem:[%s4521 + $0xe8] sm:$0xff]
    %v4552 = vld [vmem:[%s4521 + $0xf0] sm:$0xff]
    %v4553 = vld [vmem:[%s4521 + $0xf8] sm:$0xff]
    %4554 = vmatprep.subr.mxu0 0.0
    %4555 = vmatpush1.msra.mxu0 %v4522
    %4556 = vmatprep.subr.mxu0 0.0
    %4557 = vmatpush1.msra.mxu0 %v4523
    %4558 = vmatprep.subr.mxu0 0.0
    %4559 = vmatpush1.msra.mxu0 %v4524
    %4560 = vmatprep.subr.mxu0 0.0
    %4561 = vmatpush1.msra.mxu0 %v4525
    %4562 = vmatprep.subr.mxu0 0.0
    %4563 = vmatpush1.msra.mxu0 %v4526
    %4564 = vmatprep.subr.mxu0 0.0
    %4565 = vmatpush1.msra.mxu0 %v4527
    %4566 = vmatprep.subr.mxu0 0.0
    %4567 = vmatpush1.msra.mxu0 %v4528
    %4568 = vmatprep.subr.mxu0 0.0
    %4569 = vmatpush1.msra.mxu0 %v4529
    %4570 = vmatprep.subr.mxu0 0.0
    %4571 = vmatpush1.msra.mxu0 %v4530
    %4572 = vmatprep.subr.mxu0 0.0
    %4573 = vmatpush1.msra.mxu0 %v4531
    %4574 = vmatprep.subr.mxu0 0.0
    %4575 = vmatpush1.msra.mxu0 %v4532
    %4576 = vmatprep.subr.mxu0 0.0
    %4577 = vmatpush1.msra.mxu0 %v4533
    %4578 = vmatprep.subr.mxu0 0.0
    %4579 = vmatpush1.msra.mxu0 %v4534
    %4580 = vmatprep.subr.mxu0 0.0
    %4581 = vmatpush1.msra.mxu0 %v4535
    %4582 = vmatprep.subr.mxu0 0.0
    %4583 = vmatpush1.msra.mxu0 %v4536
    %4584 = vmatprep.subr.mxu0 0.0
    %4585 = vmatpush1.msra.mxu0 %v4537
    %4586 = vmatprep.subr.mxu0 0.0
    %4587 = vmatpush1.msra.mxu0 %v4538
    %4588 = vmatprep.subr.mxu0 0.0
    %4589 = vmatpush1.msra.mxu0 %v4539
    %4590 = vmatprep.subr.mxu0 0.0
    %4591 = vmatpush1.msra.mxu0 %v4540
    %4592 = vmatprep.subr.mxu0 0.0
    %4593 = vmatpush1.msra.mxu0 %v4541
    %4594 = vmatprep.subr.mxu0 0.0
    %4595 = vmatpush1.msra.mxu0 %v4542
    %4596 = vmatprep.subr.mxu0 0.0
    %4597 = vmatpush1.msra.mxu0 %v4543
    %4598 = vmatprep.subr.mxu0 0.0
    %4599 = vmatpush1.msra.mxu0 %v4544
    %4600 = vmatprep.subr.mxu0 0.0
    %4601 = vmatpush1.msra.mxu0 %v4545
    %4602 = vmatprep.subr.mxu0 0.0
    %4603 = vmatpush1.msra.mxu0 %v4546
    %4604 = vmatprep.subr.mxu0 0.0
    %4605 = vmatpush1.msra.mxu0 %v4547
    %4606 = vmatprep.subr.mxu0 0.0
    %4607 = vmatpush1.msra.mxu0 %v4548
    %4608 = vmatprep.subr.mxu0 0.0
    %4609 = vmatpush1.msra.mxu0 %v4549
    %4610 = vmatprep.subr.mxu0 0.0
    %4611 = vmatpush1.msra.mxu0 %v4550
    %4612 = vmatprep.subr.mxu0 0.0
    %4613 = vmatpush1.msra.mxu0 %v4551
    %4614 = vmatprep.subr.mxu0 0.0
    %4615 = vmatpush1.msra.mxu0 %v4552
    %4616 = vmatprep.subr.mxu0 0.0
    %4617 = vmatpush1.msra.mxu0 %v4553
    %4618 = vmatprep.mubr.f32.mxu0 %v4520
    %4619 = vmatmul.mubr.f32.gmra.mrb[0].mxu0 %v4519
    %v4620 = vpop.f32.mrb[0].mxu0
    %v4621 = vadd.f32 0.0, %v4620
    %v4622 = vpop.f32.mrb[0].mxu0
    %4623 = vdwg.mxu0
    %v4624 = vadd.f32 %v3652, %v4621
    %4625 = vmatprep.subr.mxu0 %v1313
    %4626 = vmatpush1.msra.mxu0 %v1312
    %4627 = vmatprep.subr.mxu0 %v1317
    %4628 = vmatpush1.msra.mxu0 %v1316
    %4629 = vmatprep.subr.mxu0 %v1321
    %4630 = vmatpush1.msra.mxu0 %v1320
    %4631 = vmatprep.subr.mxu0 %v1325
    %4632 = vmatpush1.msra.mxu0 %v1324
    %4633 = vmatprep.subr.mxu0 %v1329
    %4634 = vmatpush1.msra.mxu0 %v1328
    %4635 = vmatprep.subr.mxu0 %v1333
    %4636 = vmatpush1.msra.mxu0 %v1332
    %4637 = vmatprep.subr.mxu0 %v1337
    %4638 = vmatpush1.msra.mxu0 %v1336
    %4639 = vmatprep.subr.mxu0 %v1341
    %4640 = vmatpush1.msra.mxu0 %v1340
    %4641 = vmatprep.subr.mxu0 %v1345
    %4642 = vmatpush1.msra.mxu0 %v1344
    %4643 = vmatprep.subr.mxu0 %v1349
    %4644 = vmatpush1.msra.mxu0 %v1348
    %4645 = vmatprep.subr.mxu0 %v1353
    %4646 = vmatpush1.msra.mxu0 %v1352
    %4647 = vmatprep.subr.mxu0 %v1357
    %4648 = vmatpush1.msra.mxu0 %v1356
    %4649 = vmatprep.subr.mxu0 %v1361
    %4650 = vmatpush1.msra.mxu0 %v1360
    %4651 = vmatprep.subr.mxu0 %v1365
    %4652 = vmatpush1.msra.mxu0 %v1364
    %4653 = vmatprep.subr.mxu0 %v1369
    %4654 = vmatpush1.msra.mxu0 %v1368
    %4655 = vmatprep.subr.mxu0 %v1373
    %4656 = vmatpush1.msra.mxu0 %v1372
    %4657 = vmatprep.subr.mxu0 %v1377
    %4658 = vmatpush1.msra.mxu0 %v1376
    %4659 = vmatprep.subr.mxu0 %v1381
    %4660 = vmatpush1.msra.mxu0 %v1380
    %4661 = vmatprep.subr.mxu0 %v1385
    %4662 = vmatpush1.msra.mxu0 %v1384
    %4663 = vmatprep.subr.mxu0 %v1389
    %4664 = vmatpush1.msra.mxu0 %v1388
    %4665 = vmatprep.subr.mxu0 %v1393
    %4666 = vmatpush1.msra.mxu0 %v1392
    %4667 = vmatprep.subr.mxu0 %v1397
    %4668 = vmatpush1.msra.mxu0 %v1396
    %4669 = vmatprep.subr.mxu0 %v1401
    %4670 = vmatpush1.msra.mxu0 %v1400
    %4671 = vmatprep.subr.mxu0 %v1405
    %4672 = vmatpush1.msra.mxu0 %v1404
    %4673 = vmatprep.subr.mxu0 %v1409
    %4674 = vmatpush1.msra.mxu0 %v1408
    %4675 = vmatprep.subr.mxu0 %v1413
    %4676 = vmatpush1.msra.mxu0 %v1412
    %4677 = vmatprep.subr.mxu0 %v1417
    %4678 = vmatpush1.msra.mxu0 %v1416
    %4679 = vmatprep.subr.mxu0 %v1421
    %4680 = vmatpush1.msra.mxu0 %v1420
    %4681 = vmatprep.subr.mxu0 %v1425
    %4682 = vmatpush1.msra.mxu0 %v1424
    %4683 = vmatprep.subr.mxu0 %v1429
    %4684 = vmatpush1.msra.mxu0 %v1428
    %4685 = vmatprep.subr.mxu0 %v1433
    %4686 = vmatpush1.msra.mxu0 %v1432
    %4687 = vmatprep.subr.mxu0 %v1437
    %4688 = vmatpush1.msra.mxu0 %v1436
    %4689 = vmatprep.mubr.f32.mxu0 %v1305
    %4690 = vmatmul.mubr.f32.gmra.mrb[0].mxu0 %v1304
    %v4691 = vpop.f32.mrb[0].mxu0
    %v4692 = vadd.f32 %v1701, %v4691
    %v4693 = vpop.f32.mrb[0].mxu0
    %v4694 = vadd.f32 %v1705, %v4693
    %4695 = vdwg.mxu0
    %4696 = vmatprep.subr.mxu0 %v1441
    %4697 = vmatpush1.msra.mxu0 %v1440
    %4698 = vmatprep.subr.mxu0 %v1445
    %4699 = vmatpush1.msra.mxu0 %v1444
    %4700 = vmatprep.subr.mxu0 %v1449
    %4701 = vmatpush1.msra.mxu0 %v1448
    %4702 = vmatprep.subr.mxu0 %v1453
    %4703 = vmatpush1.msra.mxu0 %v1452
    %4704 = vmatprep.subr.mxu0 %v1457
    %4705 = vmatpush1.msra.mxu0 %v1456
    %4706 = vmatprep.subr.mxu0 %v1461
    %4707 = vmatpush1.msra.mxu0 %v1460
    %4708 = vmatprep.subr.mxu0 %v1465
    %4709 = vmatpush1.msra.mxu0 %v1464
    %4710 = vmatprep.subr.mxu0 %v1469
    %4711 = vmatpush1.msra.mxu0 %v1468
    %4712 = vmatprep.subr.mxu0 %v1473
    %4713 = vmatpush1.msra.mxu0 %v1472
    %4714 = vmatprep.subr.mxu0 %v1477
    %4715 = vmatpush1.msra.mxu0 %v1476
    %4716 = vmatprep.subr.mxu0 %v1481
    %4717 = vmatpush1.msra.mxu0 %v1480
    %4718 = vmatprep.subr.mxu0 %v1485
    %4719 = vmatpush1.msra.mxu0 %v1484
    %4720 = vmatprep.subr.mxu0 %v1489
    %4721 = vmatpush1.msra.mxu0 %v1488
    %4722 = vmatprep.subr.mxu0 %v1493
    %4723 = vmatpush1.msra.mxu0 %v1492
    %4724 = vmatprep.subr.mxu0 %v1497
    %4725 = vmatpush1.msra.mxu0 %v1496
    %4726 = vmatprep.subr.mxu0 %v1501
    %4727 = vmatpush1.msra.mxu0 %v1500
    %4728 = vmatprep.subr.mxu0 %v1505
    %4729 = vmatpush1.msra.mxu0 %v1504
    %4730 = vmatprep.subr.mxu0 %v1509
    %4731 = vmatpush1.msra.mxu0 %v1508
    %4732 = vmatprep.subr.mxu0 %v1513
    %4733 = vmatpush1.msra.mxu0 %v1512
    %4734 = vmatprep.subr.mxu0 %v1517
    %4735 = vmatpush1.msra.mxu0 %v1516
    %4736 = vmatprep.subr.mxu0 %v1521
    %4737 = vmatpush1.msra.mxu0 %v1520
    %4738 = vmatprep.subr.mxu0 %v1525
    %4739 = vmatpush1.msra.mxu0 %v1524
    %4740 = vmatprep.subr.mxu0 %v1529
    %4741 = vmatpush1.msra.mxu0 %v1528
    %4742 = vmatprep.subr.mxu0 %v1533
    %4743 = vmatpush1.msra.mxu0 %v1532
    %4744 = vmatprep.subr.mxu0 %v1537
    %4745 = vmatpush1.msra.mxu0 %v1536
    %4746 = vmatprep.subr.mxu0 %v1541
    %4747 = vmatpush1.msra.mxu0 %v1540
    %4748 = vmatprep.subr.mxu0 %v1545
    %4749 = vmatpush1.msra.mxu0 %v1544
    %4750 = vmatprep.subr.mxu0 %v1549
    %4751 = vmatpush1.msra.mxu0 %v1548
    %4752 = vmatprep.subr.mxu0 %v1553
    %4753 = vmatpush1.msra.mxu0 %v1552
    %4754 = vmatprep.subr.mxu0 %v1557
    %4755 = vmatpush1.msra.mxu0 %v1556
    %4756 = vmatprep.subr.mxu0 %v1561
    %4757 = vmatpush1.msra.mxu0 %v1560
    %4758 = vmatprep.subr.mxu0 %v1565
    %4759 = vmatpush1.msra.mxu0 %v1564
    %4760 = vmatprep.mubr.f32.mxu0 %v1307
    %4761 = vmatmul.mubr.f32.gmra.mrb[0].mxu0 %v1306
    %v4762 = vpop.f32.mrb[0].mxu0
    %v4763 = vadd.f32 %v4692, %v4762
    %v4764 = vpop.f32.mrb[0].mxu0
    %v4765 = vadd.f32 %v4694, %v4764
    %4766 = vdwg.mxu0
    %4767 = vmatprep.subr.mxu0 %v1569
    %4768 = vmatpush1.msra.mxu0 %v1568
    %4769 = vmatprep.subr.mxu0 %v1573
    %4770 = vmatpush1.msra.mxu0 %v1572
    %4771 = vmatprep.subr.mxu0 %v1577
    %4772 = vmatpush1.msra.mxu0 %v1576
    %4773 = vmatprep.subr.mxu0 %v1581
    %4774 = vmatpush1.msra.mxu0 %v1580
    %4775 = vmatprep.subr.mxu0 %v1585
    %4776 = vmatpush1.msra.mxu0 %v1584
    %4777 = vmatprep.subr.mxu0 %v1589
    %4778 = vmatpush1.msra.mxu0 %v1588
    %4779 = vmatprep.subr.mxu0 %v1593
    %4780 = vmatpush1.msra.mxu0 %v1592
    %4781 = vmatprep.subr.mxu0 %v1597
    %4782 = vmatpush1.msra.mxu0 %v1596
    %4783 = vmatprep.subr.mxu0 %v1601
    %4784 = vmatpush1.msra.mxu0 %v1600
    %4785 = vmatprep.subr.mxu0 %v1605
    %4786 = vmatpush1.msra.mxu0 %v1604
    %4787 = vmatprep.subr.mxu0 %v1609
    %4788 = vmatpush1.msra.mxu0 %v1608
    %4789 = vmatprep.subr.mxu0 %v1613
    %4790 = vmatpush1.msra.mxu0 %v1612
    %4791 = vmatprep.subr.mxu0 %v1617
    %4792 = vmatpush1.msra.mxu0 %v1616
    %4793 = vmatprep.subr.mxu0 %v1621
    %4794 = vmatpush1.msra.mxu0 %v1620
    %4795 = vmatprep.subr.mxu0 %v1625
    %4796 = vmatpush1.msra.mxu0 %v1624
    %4797 = vmatprep.subr.mxu0 %v1629
    %4798 = vmatpush1.msra.mxu0 %v1628
    %4799 = vmatprep.subr.mxu0 %v1633
    %4800 = vmatpush1.msra.mxu0 %v1632
    %4801 = vmatprep.subr.mxu0 %v1637
    %4802 = vmatpush1.msra.mxu0 %v1636
    %4803 = vmatprep.subr.mxu0 %v1641
    %4804 = vmatpush1.msra.mxu0 %v1640
    %4805 = vmatprep.subr.mxu0 %v1645
    %4806 = vmatpush1.msra.mxu0 %v1644
    %4807 = vmatprep.subr.mxu0 %v1649
    %4808 = vmatpush1.msra.mxu0 %v1648
    %4809 = vmatprep.subr.mxu0 %v1653
    %4810 = vmatpush1.msra.mxu0 %v1652
    %4811 = vmatprep.subr.mxu0 %v1657
    %4812 = vmatpush1.msra.mxu0 %v1656
    %4813 = vmatprep.subr.mxu0 %v1661
    %4814 = vmatpush1.msra.mxu0 %v1660
    %4815 = vmatprep.subr.mxu0 %v1665
    %4816 = vmatpush1.msra.mxu0 %v1664
    %4817 = vmatprep.subr.mxu0 %v1669
    %4818 = vmatpush1.msra.mxu0 %v1668
    %4819 = vmatprep.subr.mxu0 %v1673
    %4820 = vmatpush1.msra.mxu0 %v1672
    %4821 = vmatprep.subr.mxu0 %v1677
    %4822 = vmatpush1.msra.mxu0 %v1676
    %4823 = vmatprep.subr.mxu0 %v1681
    %4824 = vmatpush1.msra.mxu0 %v1680
    %4825 = vmatprep.subr.mxu0 %v1685
    %4826 = vmatpush1.msra.mxu0 %v1684
    %4827 = vmatprep.subr.mxu0 %v1689
    %4828 = vmatpush1.msra.mxu0 %v1688
    %4829 = vmatprep.subr.mxu0 %v1693
    %4830 = vmatpush1.msra.mxu0 %v1692
    %4831 = vmatprep.mubr.f32.mxu0 %v1309
    %4832 = vmatmul.mubr.f32.gmra.mrb[0].mxu0 %v1308
    %v4833 = vpop.f32.mrb[0].mxu0
    %v4834 = vadd.f32 %v4763, %v4833
    %v4835 = vpop.f32.mrb[0].mxu0
    %v4836 = vadd.f32 %v4765, %v4835
    %4837 = vdwg.mxu0
    %4838 = vmatprep.subr.mxu0 %v1315
    %4839 = vmatpush1.msra.mxu0 %v1314
    %4840 = vmatprep.subr.mxu0 %v1319
    %4841 = vmatpush1.msra.mxu0 %v1318
    %4842 = vmatprep.subr.mxu0 %v1323
    %4843 = vmatpush1.msra.mxu0 %v1322
    %4844 = vmatprep.subr.mxu0 %v1327
    %4845 = vmatpush1.msra.mxu0 %v1326
    %4846 = vmatprep.subr.mxu0 %v1331
    %4847 = vmatpush1.msra.mxu0 %v1330
    %4848 = vmatprep.subr.mxu0 %v1335
    %4849 = vmatpush1.msra.mxu0 %v1334
    %4850 = vmatprep.subr.mxu0 %v1339
    %4851 = vmatpush1.msra.mxu0 %v1338
    %4852 = vmatprep.subr.mxu0 %v1343
    %4853 = vmatpush1.msra.mxu0 %v1342
    %4854 = vmatprep.subr.mxu0 %v1347
    %4855 = vmatpush1.msra.mxu0 %v1346
    %4856 = vmatprep.subr.mxu0 %v1351
    %4857 = vmatpush1.msra.mxu0 %v1350
    %4858 = vmatprep.subr.mxu0 %v1355
    %4859 = vmatpush1.msra.mxu0 %v1354
    %4860 = vmatprep.subr.mxu0 %v1359
    %4861 = vmatpush1.msra.mxu0 %v1358
    %4862 = vmatprep.subr.mxu0 %v1363
    %4863 = vmatpush1.msra.mxu0 %v1362
    %4864 = vmatprep.subr.mxu0 %v1367
    %4865 = vmatpush1.msra.mxu0 %v1366
    %4866 = vmatprep.subr.mxu0 %v1371
    %4867 = vmatpush1.msra.mxu0 %v1370
    %4868 = vmatprep.subr.mxu0 %v1375
    %4869 = vmatpush1.msra.mxu0 %v1374
    %4870 = vmatprep.subr.mxu0 %v1379
    %4871 = vmatpush1.msra.mxu0 %v1378
    %4872 = vmatprep.subr.mxu0 %v1383
    %4873 = vmatpush1.msra.mxu0 %v1382
    %4874 = vmatprep.subr.mxu0 %v1387
    %4875 = vmatpush1.msra.mxu0 %v1386
    %4876 = vmatprep.subr.mxu0 %v1391
    %4877 = vmatpush1.msra.mxu0 %v1390
    %4878 = vmatprep.subr.mxu0 %v1395
    %4879 = vmatpush1.msra.mxu0 %v1394
    %4880 = vmatprep.subr.mxu0 %v1399
    %4881 = vmatpush1.msra.mxu0 %v1398
    %4882 = vmatprep.subr.mxu0 %v1403
    %4883 = vmatpush1.msra.mxu0 %v1402
    %4884 = vmatprep.subr.mxu0 %v1407
    %4885 = vmatpush1.msra.mxu0 %v1406
    %4886 = vmatprep.subr.mxu0 %v1411
    %4887 = vmatpush1.msra.mxu0 %v1410
    %4888 = vmatprep.subr.mxu0 %v1415
    %4889 = vmatpush1.msra.mxu0 %v1414
    %4890 = vmatprep.subr.mxu0 %v1419
    %4891 = vmatpush1.msra.mxu0 %v1418
    %4892 = vmatprep.subr.mxu0 %v1423
    %4893 = vmatpush1.msra.mxu0 %v1422
    %4894 = vmatprep.subr.mxu0 %v1427
    %4895 = vmatpush1.msra.mxu0 %v1426
    %4896 = vmatprep.subr.mxu0 %v1431
    %4897 = vmatpush1.msra.mxu0 %v1430
    %4898 = vmatprep.subr.mxu0 %v1435
    %4899 = vmatpush1.msra.mxu0 %v1434
    %4900 = vmatprep.subr.mxu0 %v1439
    %4901 = vmatpush1.msra.mxu0 %v1438
    %4902 = vmatprep.mubr.f32.mxu0 %v1305
    %4903 = vmatmul.mubr.f32.gmra.mrb[0].mxu0 %v1304
    %v4904 = vpop.f32.mrb[0].mxu0
    %v4905 = vadd.f32 %v1709, %v4904
    %v4906 = vpop.f32.mrb[0].mxu0
    %v4907 = vadd.f32 %v1713, %v4906
    %4908 = vdwg.mxu0
    %4909 = vmatprep.subr.mxu0 %v1443
    %4910 = vmatpush1.msra.mxu0 %v1442
    %4911 = vmatprep.subr.mxu0 %v1447
    %4912 = vmatpush1.msra.mxu0 %v1446
    %4913 = vmatprep.subr.mxu0 %v1451
    %4914 = vmatpush1.msra.mxu0 %v1450
    %4915 = vmatprep.subr.mxu0 %v1455
    %4916 = vmatpush1.msra.mxu0 %v1454
    %4917 = vmatprep.subr.mxu0 %v1459
    %4918 = vmatpush1.msra.mxu0 %v1458
    %4919 = vmatprep.subr.mxu0 %v1463
    %4920 = vmatpush1.msra.mxu0 %v1462
    %4921 = vmatprep.subr.mxu0 %v1467
    %4922 = vmatpush1.msra.mxu0 %v1466
    %4923 = vmatprep.subr.mxu0 %v1471
    %4924 = vmatpush1.msra.mxu0 %v1470
    %4925 = vmatprep.subr.mxu0 %v1475
    %4926 = vmatpush1.msra.mxu0 %v1474
    %4927 = vmatprep.subr.mxu0 %v1479
    %4928 = vmatpush1.msra.mxu0 %v1478
    %4929 = vmatprep.subr.mxu0 %v1483
    %4930 = vmatpush1.msra.mxu0 %v1482
    %4931 = vmatprep.subr.mxu0 %v1487
    %4932 = vmatpush1.msra.mxu0 %v1486
    %4933 = vmatprep.subr.mxu0 %v1491
    %4934 = vmatpush1.msra.mxu0 %v1490
    %4935 = vmatprep.subr.mxu0 %v1495
    %4936 = vmatpush1.msra.mxu0 %v1494
    %4937 = vmatprep.subr.mxu0 %v1499
    %4938 = vmatpush1.msra.mxu0 %v1498
    %4939 = vmatprep.subr.mxu0 %v1503
    %4940 = vmatpush1.msra.mxu0 %v1502
    %4941 = vmatprep.subr.mxu0 %v1507
    %4942 = vmatpush1.msra.mxu0 %v1506
    %4943 = vmatprep.subr.mxu0 %v1511
    %4944 = vmatpush1.msra.mxu0 %v1510
    %4945 = vmatprep.subr.mxu0 %v1515
    %4946 = vmatpush1.msra.mxu0 %v1514
    %4947 = vmatprep.subr.mxu0 %v1519
    %4948 = vmatpush1.msra.mxu0 %v1518
    %4949 = vmatprep.subr.mxu0 %v1523
    %4950 = vmatpush1.msra.mxu0 %v1522
    %4951 = vmatprep.subr.mxu0 %v1527
    %4952 = vmatpush1.msra.mxu0 %v1526
    %4953 = vmatprep.subr.mxu0 %v1531
    %4954 = vmatpush1.msra.mxu0 %v1530
    %4955 = vmatprep.subr.mxu0 %v1535
    %4956 = vmatpush1.msra.mxu0 %v1534
    %4957 = vmatprep.subr.mxu0 %v1539
    %4958 = vmatpush1.msra.mxu0 %v1538
    %4959 = vmatprep.subr.mxu0 %v1543
    %4960 = vmatpush1.msra.mxu0 %v1542
    %4961 = vmatprep.subr.mxu0 %v1547
    %4962 = vmatpush1.msra.mxu0 %v1546
    %4963 = vmatprep.subr.mxu0 %v1551
    %4964 = vmatpush1.msra.mxu0 %v1550
    %4965 = vmatprep.subr.mxu0 %v1555
    %4966 = vmatpush1.msra.mxu0 %v1554
    %4967 = vmatprep.subr.mxu0 %v1559
    %4968 = vmatpush1.msra.mxu0 %v1558
    %4969 = vmatprep.subr.mxu0 %v1563
    %4970 = vmatpush1.msra.mxu0 %v1562
    %4971 = vmatprep.subr.mxu0 %v1567
    %4972 = vmatpush1.msra.mxu0 %v1566
    %4973 = vmatprep.mubr.f32.mxu0 %v1307
    %4974 = vmatmul.mubr.f32.gmra.mrb[0].mxu0 %v1306
    %v4975 = vpop.f32.mrb[0].mxu0
    %v4976 = vadd.f32 %v4905, %v4975
    %v4977 = vpop.f32.mrb[0].mxu0
    %v4978 = vadd.f32 %v4907, %v4977
    %4979 = vdwg.mxu0
    %4980 = vmatprep.subr.mxu0 %v1571
    %4981 = vmatpush1.msra.mxu0 %v1570
    %4982 = vmatprep.subr.mxu0 %v1575
    %4983 = vmatpush1.msra.mxu0 %v1574
    %4984 = vmatprep.subr.mxu0 %v1579
    %4985 = vmatpush1.msra.mxu0 %v1578
    %4986 = vmatprep.subr.mxu0 %v1583
    %4987 = vmatpush1.msra.mxu0 %v1582
    %4988 = vmatprep.subr.mxu0 %v1587
    %4989 = vmatpush1.msra.mxu0 %v1586
    %4990 = vmatprep.subr.mxu0 %v1591
    %4991 = vmatpush1.msra.mxu0 %v1590
    %4992 = vmatprep.subr.mxu0 %v1595
    %4993 = vmatpush1.msra.mxu0 %v1594
    %4994 = vmatprep.subr.mxu0 %v1599
    %4995 = vmatpush1.msra.mxu0 %v1598
    %4996 = vmatprep.subr.mxu0 %v1603
    %4997 = vmatpush1.msra.mxu0 %v1602
    %4998 = vmatprep.subr.mxu0 %v1607
    %4999 = vmatpush1.msra.mxu0 %v1606
    %5000 = vmatprep.subr.mxu0 %v1611
    %5001 = vmatpush1.msra.mxu0 %v1610
    %5002 = vmatprep.subr.mxu0 %v1615
    %5003 = vmatpush1.msra.mxu0 %v1614
    %5004 = vmatprep.subr.mxu0 %v1619
    %5005 = vmatpush1.msra.mxu0 %v1618
    %5006 = vmatprep.subr.mxu0 %v1623
    %5007 = vmatpush1.msra.mxu0 %v1622
    %5008 = vmatprep.subr.mxu0 %v1627
    %5009 = vmatpush1.msra.mxu0 %v1626
    %5010 = vmatprep.subr.mxu0 %v1631
    %5011 = vmatpush1.msra.mxu0 %v1630
    %5012 = vmatprep.subr.mxu0 %v1635
    %5013 = vmatpush1.msra.mxu0 %v1634
    %5014 = vmatprep.subr.mxu0 %v1639
    %5015 = vmatpush1.msra.mxu0 %v1638
    %5016 = vmatprep.subr.mxu0 %v1643
    %5017 = vmatpush1.msra.mxu0 %v1642
    %5018 = vmatprep.subr.mxu0 %v1647
    %5019 = vmatpush1.msra.mxu0 %v1646
    %5020 = vmatprep.subr.mxu0 %v1651
    %5021 = vmatpush1.msra.mxu0 %v1650
    %5022 = vmatprep.subr.mxu0 %v1655
    %5023 = vmatpush1.msra.mxu0 %v1654
    %5024 = vmatprep.subr.mxu0 %v1659
    %5025 = vmatpush1.msra.mxu0 %v1658
    %5026 = vmatprep.subr.mxu0 %v1663
    %5027 = vmatpush1.msra.mxu0 %v1662
    %5028 = vmatprep.subr.mxu0 %v1667
    %5029 = vmatpush1.msra.mxu0 %v1666
    %5030 = vmatprep.subr.mxu0 %v1671
    %5031 = vmatpush1.msra.mxu0 %v1670
    %5032 = vmatprep.subr.mxu0 %v1675
    %5033 = vmatpush1.msra.mxu0 %v1674
    %5034 = vmatprep.subr.mxu0 %v1679
    %5035 = vmatpush1.msra.mxu0 %v1678
    %5036 = vmatprep.subr.mxu0 %v1683
    %5037 = vmatpush1.msra.mxu0 %v1682
    %5038 = vmatprep.subr.mxu0 %v1687
    %5039 = vmatpush1.msra.mxu0 %v1686
    %5040 = vmatprep.subr.mxu0 %v1691
    %5041 = vmatpush1.msra.mxu0 %v1690
    %5042 = vmatprep.subr.mxu0 %v1695
    %5043 = vmatpush1.msra.mxu0 %v1694
    %5044 = vmatprep.mubr.f32.mxu0 %v1309
    %5045 = vmatmul.mubr.f32.gmra.mrb[0].mxu0 %v1308
    %v5046 = vpop.f32.mrb[0].mxu0
    %v5047 = vadd.f32 %v4976, %v5046
    %v5048 = vpop.f32.mrb[0].mxu0
    %v5049 = vadd.f32 %v4978, %v5048
    %5050 = vdwg.mxu0
    %v5051 = vmax.f32 %v4834, 0.0
    %v5052 = vmax.f32 %v4836, 0.0
    %v5053 = vmax.f32 %v5047, 0.0
    %v5054 = vmax.f32 %v5049, 0.0
    %5055 = vmatprep.subr.mxu0 %v1313
    %5056 = vmatpush1.msra.mxu0 %v1312
    %5057 = vmatprep.subr.mxu0 %v1317
    %5058 = vmatpush1.msra.mxu0 %v1316
    %5059 = vmatprep.subr.mxu0 %v1321
    %5060 = vmatpush1.msra.mxu0 %v1320
    %5061 = vmatprep.subr.mxu0 %v1325
    %5062 = vmatpush1.msra.mxu0 %v1324
    %5063 = vmatprep.subr.mxu0 %v1329
    %5064 = vmatpush1.msra.mxu0 %v1328
    %5065 = vmatprep.subr.mxu0 %v1333
    %5066 = vmatpush1.msra.mxu0 %v1332
    %5067 = vmatprep.subr.mxu0 %v1337
    %5068 = vmatpush1.msra.mxu0 %v1336
    %5069 = vmatprep.subr.mxu0 %v1341
    %5070 = vmatpush1.msra.mxu0 %v1340
    %5071 = vmatprep.subr.mxu0 %v1345
    %5072 = vmatpush1.msra.mxu0 %v1344
    %5073 = vmatprep.subr.mxu0 %v1349
    %5074 = vmatpush1.msra.mxu0 %v1348
    %5075 = vmatprep.subr.mxu0 %v1353
    %5076 = vmatpush1.msra.mxu0 %v1352
    %5077 = vmatprep.subr.mxu0 %v1357
    %5078 = vmatpush1.msra.mxu0 %v1356
    %5079 = vmatprep.subr.mxu0 %v1361
    %5080 = vmatpush1.msra.mxu0 %v1360
    %5081 = vmatprep.subr.mxu0 %v1365
    %5082 = vmatpush1.msra.mxu0 %v1364
    %5083 = vmatprep.subr.mxu0 %v1369
    %5084 = vmatpush1.msra.mxu0 %v1368
    %5085 = vmatprep.subr.mxu0 %v1373
    %5086 = vmatpush1.msra.mxu0 %v1372
    %5087 = vmatprep.subr.mxu0 %v1377
    %5088 = vmatpush1.msra.mxu0 %v1376
    %5089 = vmatprep.subr.mxu0 %v1381
    %5090 = vmatpush1.msra.mxu0 %v1380
    %5091 = vmatprep.subr.mxu0 %v1385
    %5092 = vmatpush1.msra.mxu0 %v1384
    %5093 = vmatprep.subr.mxu0 %v1389
    %5094 = vmatpush1.msra.mxu0 %v1388
    %5095 = vmatprep.subr.mxu0 %v1393
    %5096 = vmatpush1.msra.mxu0 %v1392
    %5097 = vmatprep.subr.mxu0 %v1397
    %5098 = vmatpush1.msra.mxu0 %v1396
    %5099 = vmatprep.subr.mxu0 %v1401
    %5100 = vmatpush1.msra.mxu0 %v1400
    %5101 = vmatprep.subr.mxu0 %v1405
    %5102 = vmatpush1.msra.mxu0 %v1404
    %5103 = vmatprep.subr.mxu0 %v1409
    %5104 = vmatpush1.msra.mxu0 %v1408
    %5105 = vmatprep.subr.mxu0 %v1413
    %5106 = vmatpush1.msra.mxu0 %v1412
    %5107 = vmatprep.subr.mxu0 %v1417
    %5108 = vmatpush1.msra.mxu0 %v1416
    %5109 = vmatprep.subr.mxu0 %v1421
    %5110 = vmatpush1.msra.mxu0 %v1420
    %5111 = vmatprep.subr.mxu0 %v1425
    %5112 = vmatpush1.msra.mxu0 %v1424
    %5113 = vmatprep.subr.mxu0 %v1429
    %5114 = vmatpush1.msra.mxu0 %v1428
    %5115 = vmatprep.subr.mxu0 %v1433
    %5116 = vmatpush1.msra.mxu0 %v1432
    %5117 = vmatprep.subr.mxu0 %v1437
    %5118 = vmatpush1.msra.mxu0 %v1436
    %5119 = vmatprep.mubr.f32.mxu0 %v1307
    %5120 = vmatmul.mubr.f32.gmra.mrb[0].mxu0 %v1306
    %v5121 = vpop.f32.mrb[0].mxu0
    %v5122 = vadd.f32 %v1701, %v5121
    %v5123 = vpop.f32.mrb[0].mxu0
    %v5124 = vadd.f32 %v1705, %v5123
    %5125 = vdwg.mxu0
    %5126 = vmatprep.subr.mxu0 %v1441
    %5127 = vmatpush1.msra.mxu0 %v1440
    %5128 = vmatprep.subr.mxu0 %v1445
    %5129 = vmatpush1.msra.mxu0 %v1444
    %5130 = vmatprep.subr.mxu0 %v1449
    %5131 = vmatpush1.msra.mxu0 %v1448
    %5132 = vmatprep.subr.mxu0 %v1453
    %5133 = vmatpush1.msra.mxu0 %v1452
    %5134 = vmatprep.subr.mxu0 %v1457
    %5135 = vmatpush1.msra.mxu0 %v1456
    %5136 = vmatprep.subr.mxu0 %v1461
    %5137 = vmatpush1.msra.mxu0 %v1460
    %5138 = vmatprep.subr.mxu0 %v1465
    %5139 = vmatpush1.msra.mxu0 %v1464
    %5140 = vmatprep.subr.mxu0 %v1469
    %5141 = vmatpush1.msra.mxu0 %v1468
    %5142 = vmatprep.subr.mxu0 %v1473
    %5143 = vmatpush1.msra.mxu0 %v1472
    %5144 = vmatprep.subr.mxu0 %v1477
    %5145 = vmatpush1.msra.mxu0 %v1476
    %5146 = vmatprep.subr.mxu0 %v1481
    %5147 = vmatpush1.msra.mxu0 %v1480
    %5148 = vmatprep.subr.mxu0 %v1485
    %5149 = vmatpush1.msra.mxu0 %v1484
    %5150 = vmatprep.subr.mxu0 %v1489
    %5151 = vmatpush1.msra.mxu0 %v1488
    %5152 = vmatprep.subr.mxu0 %v1493
    %5153 = vmatpush1.msra.mxu0 %v1492
    %5154 = vmatprep.subr.mxu0 %v1497
    %5155 = vmatpush1.msra.mxu0 %v1496
    %5156 = vmatprep.subr.mxu0 %v1501
    %5157 = vmatpush1.msra.mxu0 %v1500
    %5158 = vmatprep.subr.mxu0 %v1505
    %5159 = vmatpush1.msra.mxu0 %v1504
    %5160 = vmatprep.subr.mxu0 %v1509
    %5161 = vmatpush1.msra.mxu0 %v1508
    %5162 = vmatprep.subr.mxu0 %v1513
    %5163 = vmatpush1.msra.mxu0 %v1512
    %5164 = vmatprep.subr.mxu0 %v1517
    %5165 = vmatpush1.msra.mxu0 %v1516
    %5166 = vmatprep.subr.mxu0 %v1521
    %5167 = vmatpush1.msra.mxu0 %v1520
    %5168 = vmatprep.subr.mxu0 %v1525
    %5169 = vmatpush1.msra.mxu0 %v1524
    %5170 = vmatprep.subr.mxu0 %v1529
    %5171 = vmatpush1.msra.mxu0 %v1528
    %5172 = vmatprep.subr.mxu0 %v1533
    %5173 = vmatpush1.msra.mxu0 %v1532
    %5174 = vmatprep.subr.mxu0 %v1537
    %5175 = vmatpush1.msra.mxu0 %v1536
    %5176 = vmatprep.subr.mxu0 %v1541
    %5177 = vmatpush1.msra.mxu0 %v1540
    %5178 = vmatprep.subr.mxu0 %v1545
    %5179 = vmatpush1.msra.mxu0 %v1544
    %5180 = vmatprep.subr.mxu0 %v1549
    %5181 = vmatpush1.msra.mxu0 %v1548
    %5182 = vmatprep.subr.mxu0 %v1553
    %5183 = vmatpush1.msra.mxu0 %v1552
    %5184 = vmatprep.subr.mxu0 %v1557
    %5185 = vmatpush1.msra.mxu0 %v1556
    %5186 = vmatprep.subr.mxu0 %v1561
    %5187 = vmatpush1.msra.mxu0 %v1560
    %5188 = vmatprep.subr.mxu0 %v1565
    %5189 = vmatpush1.msra.mxu0 %v1564
    %5190 = vmatprep.mubr.f32.mxu0 %v1309
    %5191 = vmatmul.mubr.f32.gmra.mrb[0].mxu0 %v1308
    %v5192 = vpop.f32.mrb[0].mxu0
    %v5193 = vadd.f32 %v5122, %v5192
    %v5194 = vpop.f32.mrb[0].mxu0
    %v5195 = vadd.f32 %v5124, %v5194
    %5196 = vdwg.mxu0
    %5197 = vmatprep.subr.mxu0 %v1569
    %5198 = vmatpush1.msra.mxu0 %v1568
    %5199 = vmatprep.subr.mxu0 %v1573
    %5200 = vmatpush1.msra.mxu0 %v1572
    %5201 = vmatprep.subr.mxu0 %v1577
    %5202 = vmatpush1.msra.mxu0 %v1576
    %5203 = vmatprep.subr.mxu0 %v1581
    %5204 = vmatpush1.msra.mxu0 %v1580
    %5205 = vmatprep.subr.mxu0 %v1585
    %5206 = vmatpush1.msra.mxu0 %v1584
    %5207 = vmatprep.subr.mxu0 %v1589
    %5208 = vmatpush1.msra.mxu0 %v1588
    %5209 = vmatprep.subr.mxu0 %v1593
    %5210 = vmatpush1.msra.mxu0 %v1592
    %5211 = vmatprep.subr.mxu0 %v1597
    %5212 = vmatpush1.msra.mxu0 %v1596
    %5213 = vmatprep.subr.mxu0 %v1601
    %5214 = vmatpush1.msra.mxu0 %v1600
    %5215 = vmatprep.subr.mxu0 %v1605
    %5216 = vmatpush1.msra.mxu0 %v1604
    %5217 = vmatprep.subr.mxu0 %v1609
    %5218 = vmatpush1.msra.mxu0 %v1608
    %5219 = vmatprep.subr.mxu0 %v1613
    %5220 = vmatpush1.msra.mxu0 %v1612
    %5221 = vmatprep.subr.mxu0 %v1617
    %5222 = vmatpush1.msra.mxu0 %v1616
    %5223 = vmatprep.subr.mxu0 %v1621
    %5224 = vmatpush1.msra.mxu0 %v1620
    %5225 = vmatprep.subr.mxu0 %v1625
    %5226 = vmatpush1.msra.mxu0 %v1624
    %5227 = vmatprep.subr.mxu0 %v1629
    %5228 = vmatpush1.msra.mxu0 %v1628
    %5229 = vmatprep.subr.mxu0 %v1633
    %5230 = vmatpush1.msra.mxu0 %v1632
    %5231 = vmatprep.subr.mxu0 %v1637
    %5232 = vmatpush1.msra.mxu0 %v1636
    %5233 = vmatprep.subr.mxu0 %v1641
    %5234 = vmatpush1.msra.mxu0 %v1640
    %5235 = vmatprep.subr.mxu0 %v1645
    %5236 = vmatpush1.msra.mxu0 %v1644
    %5237 = vmatprep.subr.mxu0 %v1649
    %5238 = vmatpush1.msra.mxu0 %v1648
    %5239 = vmatprep.subr.mxu0 %v1653
    %5240 = vmatpush1.msra.mxu0 %v1652
    %5241 = vmatprep.subr.mxu0 %v1657
    %5242 = vmatpush1.msra.mxu0 %v1656
    %5243 = vmatprep.subr.mxu0 %v1661
    %5244 = vmatpush1.msra.mxu0 %v1660
    %5245 = vmatprep.subr.mxu0 %v1665
    %5246 = vmatpush1.msra.mxu0 %v1664
    %5247 = vmatprep.subr.mxu0 %v1669
    %5248 = vmatpush1.msra.mxu0 %v1668
    %5249 = vmatprep.subr.mxu0 %v1673
    %5250 = vmatpush1.msra.mxu0 %v1672
    %5251 = vmatprep.subr.mxu0 %v1677
    %5252 = vmatpush1.msra.mxu0 %v1676
    %5253 = vmatprep.subr.mxu0 %v1681
    %5254 = vmatpush1.msra.mxu0 %v1680
    %5255 = vmatprep.subr.mxu0 %v1685
    %5256 = vmatpush1.msra.mxu0 %v1684
    %5257 = vmatprep.subr.mxu0 %v1689
    %5258 = vmatpush1.msra.mxu0 %v1688
    %5259 = vmatprep.subr.mxu0 %v1693
    %5260 = vmatpush1.msra.mxu0 %v1692
    %5261 = vmatprep.mubr.f32.mxu0 %v1311
    %5262 = vmatmul.mubr.f32.gmra.mrb[0].mxu0 %v1310
    %v5263 = vpop.f32.mrb[0].mxu0
    %v5264 = vadd.f32 %v5193, %v5263
    %v5265 = vpop.f32.mrb[0].mxu0
    %v5266 = vadd.f32 %v5195, %v5265
    %5267 = vdwg.mxu0
    %5268 = vmatprep.subr.mxu0 %v1315
    %5269 = vmatpush1.msra.mxu0 %v1314
    %5270 = vmatprep.subr.mxu0 %v1319
    %5271 = vmatpush1.msra.mxu0 %v1318
    %5272 = vmatprep.subr.mxu0 %v1323
    %5273 = vmatpush1.msra.mxu0 %v1322
    %5274 = vmatprep.subr.mxu0 %v1327
    %5275 = vmatpush1.msra.mxu0 %v1326
    %5276 = vmatprep.subr.mxu0 %v1331
    %5277 = vmatpush1.msra.mxu0 %v1330
    %5278 = vmatprep.subr.mxu0 %v1335
    %5279 = vmatpush1.msra.mxu0 %v1334
    %5280 = vmatprep.subr.mxu0 %v1339
    %5281 = vmatpush1.msra.mxu0 %v1338
    %5282 = vmatprep.subr.mxu0 %v1343
    %5283 = vmatpush1.msra.mxu0 %v1342
    %5284 = vmatprep.subr.mxu0 %v1347
    %5285 = vmatpush1.msra.mxu0 %v1346
    %5286 = vmatprep.subr.mxu0 %v1351
    %5287 = vmatpush1.msra.mxu0 %v1350
    %5288 = vmatprep.subr.mxu0 %v1355
    %5289 = vmatpush1.msra.mxu0 %v1354
    %5290 = vmatprep.subr.mxu0 %v1359
    %5291 = vmatpush1.msra.mxu0 %v1358
    %5292 = vmatprep.subr.mxu0 %v1363
    %5293 = vmatpush1.msra.mxu0 %v1362
    %5294 = vmatprep.subr.mxu0 %v1367
    %5295 = vmatpush1.msra.mxu0 %v1366
    %5296 = vmatprep.subr.mxu0 %v1371
    %5297 = vmatpush1.msra.mxu0 %v1370
    %5298 = vmatprep.subr.mxu0 %v1375
    %5299 = vmatpush1.msra.mxu0 %v1374
    %5300 = vmatprep.subr.mxu0 %v1379
    %5301 = vmatpush1.msra.mxu0 %v1378
    %5302 = vmatprep.subr.mxu0 %v1383
    %5303 = vmatpush1.msra.mxu0 %v1382
    %5304 = vmatprep.subr.mxu0 %v1387
    %5305 = vmatpush1.msra.mxu0 %v1386
    %5306 = vmatprep.subr.mxu0 %v1391
    %5307 = vmatpush1.msra.mxu0 %v1390
    %5308 = vmatprep.subr.mxu0 %v1395
    %5309 = vmatpush1.msra.mxu0 %v1394
    %5310 = vmatprep.subr.mxu0 %v1399
    %5311 = vmatpush1.msra.mxu0 %v1398
    %5312 = vmatprep.subr.mxu0 %v1403
    %5313 = vmatpush1.msra.mxu0 %v1402
    %5314 = vmatprep.subr.mxu0 %v1407
    %5315 = vmatpush1.msra.mxu0 %v1406
    %5316 = vmatprep.subr.mxu0 %v1411
    %5317 = vmatpush1.msra.mxu0 %v1410
    %5318 = vmatprep.subr.mxu0 %v1415
    %5319 = vmatpush1.msra.mxu0 %v1414
    %5320 = vmatprep.subr.mxu0 %v1419
    %5321 = vmatpush1.msra.mxu0 %v1418
    %5322 = vmatprep.subr.mxu0 %v1423
    %5323 = vmatpush1.msra.mxu0 %v1422
    %5324 = vmatprep.subr.mxu0 %v1427
    %5325 = vmatpush1.msra.mxu0 %v1426
    %5326 = vmatprep.subr.mxu0 %v1431
    %5327 = vmatpush1.msra.mxu0 %v1430
    %5328 = vmatprep.subr.mxu0 %v1435
    %5329 = vmatpush1.msra.mxu0 %v1434
    %5330 = vmatprep.subr.mxu0 %v1439
    %5331 = vmatpush1.msra.mxu0 %v1438
    %5332 = vmatprep.mubr.f32.mxu0 %v1307
    %5333 = vmatmul.mubr.f32.gmra.mrb[0].mxu0 %v1306
    %v5334 = vpop.f32.mrb[0].mxu0
    %v5335 = vadd.f32 %v1709, %v5334
    %v5336 = vpop.f32.mrb[0].mxu0
    %v5337 = vadd.f32 %v1713, %v5336
    %5338 = vdwg.mxu0
    %5339 = vmatprep.subr.mxu0 %v1443
    %5340 = vmatpush1.msra.mxu0 %v1442
    %5341 = vmatprep.subr.mxu0 %v1447
    %5342 = vmatpush1.msra.mxu0 %v1446
    %5343 = vmatprep.subr.mxu0 %v1451
    %5344 = vmatpush1.msra.mxu0 %v1450
    %5345 = vmatprep.subr.mxu0 %v1455
    %5346 = vmatpush1.msra.mxu0 %v1454
    %5347 = vmatprep.subr.mxu0 %v1459
    %5348 = vmatpush1.msra.mxu0 %v1458
    %5349 = vmatprep.subr.mxu0 %v1463
    %5350 = vmatpush1.msra.mxu0 %v1462
    %5351 = vmatprep.subr.mxu0 %v1467
    %5352 = vmatpush1.msra.mxu0 %v1466
    %5353 = vmatprep.subr.mxu0 %v1471
    %5354 = vmatpush1.msra.mxu0 %v1470
    %5355 = vmatprep.subr.mxu0 %v1475
    %5356 = vmatpush1.msra.mxu0 %v1474
    %5357 = vmatprep.subr.mxu0 %v1479
    %5358 = vmatpush1.msra.mxu0 %v1478
    %5359 = vmatprep.subr.mxu0 %v1483
    %5360 = vmatpush1.msra.mxu0 %v1482
    %5361 = vmatprep.subr.mxu0 %v1487
    %5362 = vmatpush1.msra.mxu0 %v1486
    %5363 = vmatprep.subr.mxu0 %v1491
    %5364 = vmatpush1.msra.mxu0 %v1490
    %5365 = vmatprep.subr.mxu0 %v1495
    %5366 = vmatpush1.msra.mxu0 %v1494
    %5367 = vmatprep.subr.mxu0 %v1499
    %5368 = vmatpush1.msra.mxu0 %v1498
    %5369 = vmatprep.subr.mxu0 %v1503
    %5370 = vmatpush1.msra.mxu0 %v1502
    %5371 = vmatprep.subr.mxu0 %v1507
    %5372 = vmatpush1.msra.mxu0 %v1506
    %5373 = vmatprep.subr.mxu0 %v1511
    %5374 = vmatpush1.msra.mxu0 %v1510
    %5375 = vmatprep.subr.mxu0 %v1515
    %5376 = vmatpush1.msra.mxu0 %v1514
    %5377 = vmatprep.subr.mxu0 %v1519
    %5378 = vmatpush1.msra.mxu0 %v1518
    %5379 = vmatprep.subr.mxu0 %v1523
    %5380 = vmatpush1.msra.mxu0 %v1522
    %5381 = vmatprep.subr.mxu0 %v1527
    %5382 = vmatpush1.msra.mxu0 %v1526
    %5383 = vmatprep.subr.mxu0 %v1531
    %5384 = vmatpush1.msra.mxu0 %v1530
    %5385 = vmatprep.subr.mxu0 %v1535
    %5386 = vmatpush1.msra.mxu0 %v1534
    %5387 = vmatprep.subr.mxu0 %v1539
    %5388 = vmatpush1.msra.mxu0 %v1538
    %5389 = vmatprep.subr.mxu0 %v1543
    %5390 = vmatpush1.msra.mxu0 %v1542
    %5391 = vmatprep.subr.mxu0 %v1547
    %5392 = vmatpush1.msra.mxu0 %v1546
    %5393 = vmatprep.subr.mxu0 %v1551
    %5394 = vmatpush1.msra.mxu0 %v1550
    %5395 = vmatprep.subr.mxu0 %v1555
    %5396 = vmatpush1.msra.mxu0 %v1554
    %5397 = vmatprep.subr.mxu0 %v1559
    %5398 = vmatpush1.msra.mxu0 %v1558
    %5399 = vmatprep.subr.mxu0 %v1563
    %5400 = vmatpush1.msra.mxu0 %v1562
    %5401 = vmatprep.subr.mxu0 %v1567
    %5402 = vmatpush1.msra.mxu0 %v1566
    %5403 = vmatprep.mubr.f32.mxu0 %v1309
    %5404 = vmatmul.mubr.f32.gmra.mrb[0].mxu0 %v1308
    %v5405 = vpop.f32.mrb[0].mxu0
    %v5406 = vadd.f32 %v5335, %v5405
    %v5407 = vpop.f32.mrb[0].mxu0
    %v5408 = vadd.f32 %v5337, %v5407
    %5409 = vdwg.mxu0
    %5410 = vmatprep.subr.mxu0 %v1571
    %5411 = vmatpush1.msra.mxu0 %v1570
    %5412 = vmatprep.subr.mxu0 %v1575
    %5413 = vmatpush1.msra.mxu0 %v1574
    %5414 = vmatprep.subr.mxu0 %v1579
    %5415 = vmatpush1.msra.mxu0 %v1578
    %5416 = vmatprep.subr.mxu0 %v1583
    %5417 = vmatpush1.msra.mxu0 %v1582
    %5418 = vmatprep.subr.mxu0 %v1587
    %5419 = vmatpush1.msra.mxu0 %v1586
    %5420 = vmatprep.subr.mxu0 %v1591
    %5421 = vmatpush1.msra.mxu0 %v1590
    %5422 = vmatprep.subr.mxu0 %v1595
    %5423 = vmatpush1.msra.mxu0 %v1594
    %5424 = vmatprep.subr.mxu0 %v1599
    %5425 = vmatpush1.msra.mxu0 %v1598
    %5426 = vmatprep.subr.mxu0 %v1603
    %5427 = vmatpush1.msra.mxu0 %v1602
    %5428 = vmatprep.subr.mxu0 %v1607
    %5429 = vmatpush1.msra.mxu0 %v1606
    %5430 = vmatprep.subr.mxu0 %v1611
    %5431 = vmatpush1.msra.mxu0 %v1610
    %5432 = vmatprep.subr.mxu0 %v1615
    %5433 = vmatpush1.msra.mxu0 %v1614
    %5434 = vmatprep.subr.mxu0 %v1619
    %5435 = vmatpush1.msra.mxu0 %v1618
    %5436 = vmatprep.subr.mxu0 %v1623
    %5437 = vmatpush1.msra.mxu0 %v1622
    %5438 = vmatprep.subr.mxu0 %v1627
    %5439 = vmatpush1.msra.mxu0 %v1626
    %5440 = vmatprep.subr.mxu0 %v1631
    %5441 = vmatpush1.msra.mxu0 %v1630
    %5442 = vmatprep.subr.mxu0 %v1635
    %5443 = vmatpush1.msra.mxu0 %v1634
    %5444 = vmatprep.subr.mxu0 %v1639
    %5445 = vmatpush1.msra.mxu0 %v1638
    %5446 = vmatprep.subr.mxu0 %v1643
    %5447 = vmatpush1.msra.mxu0 %v1642
    %5448 = vmatprep.subr.mxu0 %v1647
    %5449 = vmatpush1.msra.mxu0 %v1646
    %5450 = vmatprep.subr.mxu0 %v1651
    %5451 = vmatpush1.msra.mxu0 %v1650
    %5452 = vmatprep.subr.mxu0 %v1655
    %5453 = vmatpush1.msra.mxu0 %v1654
    %5454 = vmatprep.subr.mxu0 %v1659
    %5455 = vmatpush1.msra.mxu0 %v1658
    %5456 = vmatprep.subr.mxu0 %v1663
    %5457 = vmatpush1.msra.mxu0 %v1662
    %5458 = vmatprep.subr.mxu0 %v1667
    %5459 = vmatpush1.msra.mxu0 %v1666
    %5460 = vmatprep.subr.mxu0 %v1671
    %5461 = vmatpush1.msra.mxu0 %v1670
    %5462 = vmatprep.subr.mxu0 %v1675
    %5463 = vmatpush1.msra.mxu0 %v1674
    %5464 = vmatprep.subr.mxu0 %v1679
    %5465 = vmatpush1.msra.mxu0 %v1678
    %5466 = vmatprep.subr.mxu0 %v1683
    %5467 = vmatpush1.msra.mxu0 %v1682
    %5468 = vmatprep.subr.mxu0 %v1687
    %5469 = vmatpush1.msra.mxu0 %v1686
    %5470 = vmatprep.subr.mxu0 %v1691
    %5471 = vmatpush1.msra.mxu0 %v1690
    %5472 = vmatprep.subr.mxu0 %v1695
    %5473 = vmatpush1.msra.mxu0 %v1694
    %5474 = vmatprep.mubr.f32.mxu0 %v1311
    %5475 = vmatmul.mubr.f32.gmra.mrb[0].mxu0 %v1310
    %v5476 = vpop.f32.mrb[0].mxu0
    %v5477 = vadd.f32 %v5406, %v5476
    %v5478 = vpop.f32.mrb[0].mxu0
    %v5479 = vadd.f32 %v5408, %v5478
    %5480 = vdwg.mxu0
    %v5481 = vmax.f32 %v5264, 0.0
    %v5482 = vmax.f32 %v5266, 0.0
    %v5483 = vmax.f32 %v5477, 0.0
    %v5484 = vmax.f32 %v5479, 0.0
    %v5485 = vmax.f32 %v5051, %v5481
    %v5486 = vmax.f32 %v5052, %v5482
    %v5487 = vmax.f32 %v5053, %v5483
    %v5488 = vmax.f32 %v5054, %v5484
    %v5489 = vmax.f32 %v5485, %v5487
    %v5490 = vmax.f32 %v5486, %v5488
    %s5491 = scalar_lea.vmem [#allocation9], 768
    %v5492 = vld [vmem:[%s5491] sm:$0xff]
    %v5493 = vld [vmem:[%s5491 + $0x8] sm:$0xff]
    %v5494 = vld [vmem:[%s5491 + $0x10] sm:$0xff]
    %v5495 = vld [vmem:[%s5491 + $0x18] sm:$0xff]
    %v5496 = vld [vmem:[%s5491 + $0x20] sm:$0xff]
    %v5497 = vld [vmem:[%s5491 + $0x28] sm:$0xff]
    %v5498 = vld [vmem:[%s5491 + $0x30] sm:$0xff]
    %v5499 = vld [vmem:[%s5491 + $0x38] sm:$0xff]
    %v5500 = vld [vmem:[%s5491 + $0x40] sm:$0xff]
    %v5501 = vld [vmem:[%s5491 + $0x48] sm:$0xff]
    %v5502 = vld [vmem:[%s5491 + $0x50] sm:$0xff]
    %v5503 = vld [vmem:[%s5491 + $0x58] sm:$0xff]
    %v5504 = vld [vmem:[%s5491 + $0x60] sm:$0xff]
    %v5505 = vld [vmem:[%s5491 + $0x68] sm:$0xff]
    %v5506 = vld [vmem:[%s5491 + $0x70] sm:$0xff]
    %v5507 = vld [vmem:[%s5491 + $0x78] sm:$0xff]
    %v5508 = vld [vmem:[%s5491 + $0x80] sm:$0xff]
    %v5509 = vld [vmem:[%s5491 + $0x88] sm:$0xff]
    %v5510 = vld [vmem:[%s5491 + $0x90] sm:$0xff]
    %v5511 = vld [vmem:[%s5491 + $0x98] sm:$0xff]
    %v5512 = vld [vmem:[%s5491 + $0xa0] sm:$0xff]
    %v5513 = vld [vmem:[%s5491 + $0xa8] sm:$0xff]
    %v5514 = vld [vmem:[%s5491 + $0xb0] sm:$0xff]
    %v5515 = vld [vmem:[%s5491 + $0xb8] sm:$0xff]
    %v5516 = vld [vmem:[%s5491 + $0xc0] sm:$0xff]
    %v5517 = vld [vmem:[%s5491 + $0xc8] sm:$0xff]
    %v5518 = vld [vmem:[%s5491 + $0xd0] sm:$0xff]
    %v5519 = vld [vmem:[%s5491 + $0xd8] sm:$0xff]
    %v5520 = vld [vmem:[%s5491 + $0xe0] sm:$0xff]
    %v5521 = vld [vmem:[%s5491 + $0xe8] sm:$0xff]
    %v5522 = vld [vmem:[%s5491 + $0xf0] sm:$0xff]
    %v5523 = vld [vmem:[%s5491 + $0xf8] sm:$0xff]
    %5524 = vmatprep.subr.mxu0 0.0
    %5525 = vmatpush1.msra.mxu0 %v5492
    %5526 = vmatprep.subr.mxu0 0.0
    %5527 = vmatpush1.msra.mxu0 %v5493
    %5528 = vmatprep.subr.mxu0 0.0
    %5529 = vmatpush1.msra.mxu0 %v5494
    %5530 = vmatprep.subr.mxu0 0.0
    %5531 = vmatpush1.msra.mxu0 %v5495
    %5532 = vmatprep.subr.mxu0 0.0
    %5533 = vmatpush1.msra.mxu0 %v5496
    %5534 = vmatprep.subr.mxu0 0.0
    %5535 = vmatpush1.msra.mxu0 %v5497
    %5536 = vmatprep.subr.mxu0 0.0
    %5537 = vmatpush1.msra.mxu0 %v5498
    %5538 = vmatprep.subr.mxu0 0.0
    %5539 = vmatpush1.msra.mxu0 %v5499
    %5540 = vmatprep.subr.mxu0 0.0
    %5541 = vmatpush1.msra.mxu0 %v5500
    %5542 = vmatprep.subr.mxu0 0.0
    %5543 = vmatpush1.msra.mxu0 %v5501
    %5544 = vmatprep.subr.mxu0 0.0
    %5545 = vmatpush1.msra.mxu0 %v5502
    %5546 = vmatprep.subr.mxu0 0.0
    %5547 = vmatpush1.msra.mxu0 %v5503
    %5548 = vmatprep.subr.mxu0 0.0
    %5549 = vmatpush1.msra.mxu0 %v5504
    %5550 = vmatprep.subr.mxu0 0.0
    %5551 = vmatpush1.msra.mxu0 %v5505
    %5552 = vmatprep.subr.mxu0 0.0
    %5553 = vmatpush1.msra.mxu0 %v5506
    %5554 = vmatprep.subr.mxu0 0.0
    %5555 = vmatpush1.msra.mxu0 %v5507
    %5556 = vmatprep.subr.mxu0 0.0
    %5557 = vmatpush1.msra.mxu0 %v5508
    %5558 = vmatprep.subr.mxu0 0.0
    %5559 = vmatpush1.msra.mxu0 %v5509
    %5560 = vmatprep.subr.mxu0 0.0
    %5561 = vmatpush1.msra.mxu0 %v5510
    %5562 = vmatprep.subr.mxu0 0.0
    %5563 = vmatpush1.msra.mxu0 %v5511
    %5564 = vmatprep.subr.mxu0 0.0
    %5565 = vmatpush1.msra.mxu0 %v5512
    %5566 = vmatprep.subr.mxu0 0.0
    %5567 = vmatpush1.msra.mxu0 %v5513
    %5568 = vmatprep.subr.mxu0 0.0
    %5569 = vmatpush1.msra.mxu0 %v5514
    %5570 = vmatprep.subr.mxu0 0.0
    %5571 = vmatpush1.msra.mxu0 %v5515
    %5572 = vmatprep.subr.mxu0 0.0
    %5573 = vmatpush1.msra.mxu0 %v5516
    %5574 = vmatprep.subr.mxu0 0.0
    %5575 = vmatpush1.msra.mxu0 %v5517
    %5576 = vmatprep.subr.mxu0 0.0
    %5577 = vmatpush1.msra.mxu0 %v5518
    %5578 = vmatprep.subr.mxu0 0.0
    %5579 = vmatpush1.msra.mxu0 %v5519
    %5580 = vmatprep.subr.mxu0 0.0
    %5581 = vmatpush1.msra.mxu0 %v5520
    %5582 = vmatprep.subr.mxu0 0.0
    %5583 = vmatpush1.msra.mxu0 %v5521
    %5584 = vmatprep.subr.mxu0 0.0
    %5585 = vmatpush1.msra.mxu0 %v5522
    %5586 = vmatprep.subr.mxu0 0.0
    %5587 = vmatpush1.msra.mxu0 %v5523
    %5588 = vmatprep.mubr.f32.mxu0 %v5490
    %5589 = vmatmul.mubr.f32.gmra.mrb[0].mxu0 %v5489
    %v5590 = vpop.f32.mrb[0].mxu0
    %v5591 = vadd.f32 0.0, %v5590
    %v5592 = vpop.f32.mrb[0].mxu0
    %5593 = vdwg.mxu0
    %v5594 = vadd.f32 %v4624, %v5591
    %v5595 = vld [vmem:[#allocation10] sm:$0x1]
    %v5597 = vlaneseq
    %v5598 = vshrl.u32 %v5597, 7
    %v5599 = vsub.s32 0, %v5598
    %v5600 = vrot.slane %v5595, %v5599
    %v5602 = vadd.f32 %v5594, %v5600
    %v5603 = vmax.f32 %v5602, 0.0
    %v5604 = vld [vmem:[%s7] sm:$0xff]
    %v5605 = vld [vmem:[%s7 + $0x8] sm:$0xff]
    %v5606 = vld [vmem:[%s7 + $0x10] sm:$0xff]
    %v5607 = vld [vmem:[%s7 + $0x18] sm:$0xff]
    %v5608 = vld [vmem:[%s7 + $0x20] sm:$0xff]
    %v5609 = vld [vmem:[%s7 + $0x28] sm:$0xff]
    %v5610 = vld [vmem:[%s7 + $0x30] sm:$0xff]
    %v5611 = vld [vmem:[%s7 + $0x38] sm:$0xff]
    %v5612 = vld [vmem:[%s7 + $0x40] sm:$0xff]
    %v5613 = vld [vmem:[%s7 + $0x48] sm:$0xff]
    %v5614 = vld [vmem:[%s7 + $0x50] sm:$0xff]
    %v5615 = vld [vmem:[%s7 + $0x58] sm:$0xff]
    %v5616 = vld [vmem:[%s7 + $0x60] sm:$0xff]
    %v5617 = vld [vmem:[%s7 + $0x68] sm:$0xff]
    %v5618 = vld [vmem:[%s7 + $0x70] sm:$0xff]
    %v5619 = vld [vmem:[%s7 + $0x78] sm:$0xff]
    %v5620 = vld [vmem:[#allocation12] sm:$0x1]
    %v5622 = vlaneseq
    %v5623 = vshrl.u32 %v5622, 7
    %v5624 = vsub.s32 0, %v5623
    %v5625 = vrot.slane %v5620, %v5624
    %5627 = vmatprep.subr.mxu0 0.0
    %5628 = vmatpush1.msra.mxu0 %v5604
    %5629 = vmatprep.subr.mxu0 0.0
    %5630 = vmatpush1.msra.mxu0 %v5605
    %5631 = vmatprep.subr.mxu0 0.0
    %5632 = vmatpush1.msra.mxu0 %v5606
    %5633 = vmatprep.subr.mxu0 0.0
    %5634 = vmatpush1.msra.mxu0 %v5607
    %5635 = vmatprep.subr.mxu0 0.0
    %5636 = vmatpush1.msra.mxu0 %v5608
    %5637 = vmatprep.subr.mxu0 0.0
    %5638 = vmatpush1.msra.mxu0 %v5609
    %5639 = vmatprep.subr.mxu0 0.0
    %5640 = vmatpush1.msra.mxu0 %v5610
    %5641 = vmatprep.subr.mxu0 0.0
    %5642 = vmatpush1.msra.mxu0 %v5611
    %5643 = vmatprep.subr.mxu0 0.0
    %5644 = vmatpush1.msra.mxu0 %v5612
    %5645 = vmatprep.subr.mxu0 0.0
    %5646 = vmatpush1.msra.mxu0 %v5613
    %5647 = vmatprep.subr.mxu0 0.0
    %5648 = vmatpush1.msra.mxu0 %v5614
    %5649 = vmatprep.subr.mxu0 0.0
    %5650 = vmatpush1.msra.mxu0 %v5615
    %5651 = vmatprep.subr.mxu0 0.0
    %5652 = vmatpush1.msra.mxu0 %v5616
    %5653 = vmatprep.subr.mxu0 0.0
    %5654 = vmatpush1.msra.mxu0 %v5617
    %5655 = vmatprep.subr.mxu0 0.0
    %5656 = vmatpush1.msra.mxu0 %v5618
    %5657 = vmatprep.subr.mxu0 0.0
    %5658 = vmatpush1.msra.mxu0 %v5619
    %5659 = vmatprep.subr.mxu0 0.0
    %5660 = vmatpush1.msra.mxu0 0.0
    %5661 = vmatprep.subr.mxu0 0.0
    %5662 = vmatpush1.msra.mxu0 0.0
    %5663 = vmatprep.subr.mxu0 0.0
    %5664 = vmatpush1.msra.mxu0 0.0
    %5665 = vmatprep.subr.mxu0 0.0
    %5666 = vmatpush1.msra.mxu0 0.0
    %5667 = vmatprep.subr.mxu0 0.0
    %5668 = vmatpush1.msra.mxu0 0.0
    %5669 = vmatprep.subr.mxu0 0.0
    %5670 = vmatpush1.msra.mxu0 0.0
    %5671 = vmatprep.subr.mxu0 0.0
    %5672 = vmatpush1.msra.mxu0 0.0
    %5673 = vmatprep.subr.mxu0 0.0
    %5674 = vmatpush1.msra.mxu0 0.0
    %5675 = vmatprep.subr.mxu0 0.0
    %5676 = vmatpush1.msra.mxu0 0.0
    %5677 = vmatprep.subr.mxu0 0.0
    %5678 = vmatpush1.msra.mxu0 0.0
    %5679 = vmatprep.subr.mxu0 0.0
    %5680 = vmatpush1.msra.mxu0 0.0
    %5681 = vmatprep.subr.mxu0 0.0
    %5682 = vmatpush1.msra.mxu0 0.0
    %5683 = vmatprep.subr.mxu0 0.0
    %5684 = vmatpush1.msra.mxu0 0.0
    %5685 = vmatprep.subr.mxu0 0.0
    %5686 = vmatpush1.msra.mxu0 0.0
    %5687 = vmatprep.subr.mxu0 0.0
    %5688 = vmatpush1.msra.mxu0 0.0
    %5689 = vmatprep.subr.mxu0 0.0
    %5690 = vmatpush1.msra.mxu0 0.0
    %5691 = vmatprep.mubr.f32.mxu0 0.0
    %5692 = vmatmul.mubr.f32.gmra.mrb[0].mxu0 %v5603
    %v5693 = vpop.f32.mrb[0].mxu0
    %v5694 = vadd.f32 %v5625, %v5693
    %v5695 = vpop.f32.mrb[0].mxu0
    %5696 = vdwg.mxu0
    %v5697 = vmax.f32 %v5694, 0.0
    %v5698 = vld [vmem:[#allocation13] sm:$0xff]
    %v5699 = vld [vmem:[#allocation13 + $0x8] sm:$0xff]
    %v5700 = vld [vmem:[#allocation13 + $0x10] sm:$0xff]
    %v5701 = vld [vmem:[#allocation13 + $0x18] sm:$0xff]
    %v5702 = vld [vmem:[#allocation13 + $0x20] sm:$0xff]
    %v5703 = vld [vmem:[#allocation13 + $0x28] sm:$0xff]
    %v5704 = vld [vmem:[#allocation13 + $0x30] sm:$0xff]
    %v5705 = vld [vmem:[#allocation13 + $0x38] sm:$0xff]
    %v5706 = vld [vmem:[#allocation15] sm:$0x1]
    %v5708 = vlaneseq
    %v5709 = vshrl.u32 %v5708, 7
    %v5710 = vsub.s32 0, %v5709
    %v5711 = vrot.slane %v5706, %v5710
    %vm5713 = vcmask 523264
    %v5715 = vsel %vm5713, %v5697, 0
    %5717 = vmatprep.subr.mxu0 0.0
    %5718 = vmatpush1.msra.mxu0 %v5698
    %5719 = vmatprep.subr.mxu0 0.0
    %5720 = vmatpush1.msra.mxu0 %v5699
    %5721 = vmatprep.subr.mxu0 0.0
    %5722 = vmatpush1.msra.mxu0 %v5700
    %5723 = vmatprep.subr.mxu0 0.0
    %5724 = vmatpush1.msra.mxu0 %v5701
    %5725 = vmatprep.subr.mxu0 0.0
    %5726 = vmatpush1.msra.mxu0 %v5702
    %5727 = vmatprep.subr.mxu0 0.0
    %5728 = vmatpush1.msra.mxu0 %v5703
    %5729 = vmatprep.subr.mxu0 0.0
    %5730 = vmatpush1.msra.mxu0 %v5704
    %5731 = vmatprep.subr.mxu0 0.0
    %5732 = vmatpush1.msra.mxu0 %v5705
    %5733 = vmatprep.subr.mxu0 0.0
    %5734 = vmatpush1.msra.mxu0 0.0
    %5735 = vmatprep.subr.mxu0 0.0
    %5736 = vmatpush1.msra.mxu0 0.0
    %5737 = vmatprep.subr.mxu0 0.0
    %5738 = vmatpush1.msra.mxu0 0.0
    %5739 = vmatprep.subr.mxu0 0.0
    %5740 = vmatpush1.msra.mxu0 0.0
    %5741 = vmatprep.subr.mxu0 0.0
    %5742 = vmatpush1.msra.mxu0 0.0
    %5743 = vmatprep.subr.mxu0 0.0
    %5744 = vmatpush1.msra.mxu0 0.0
    %5745 = vmatprep.subr.mxu0 0.0
    %5746 = vmatpush1.msra.mxu0 0.0
    %5747 = vmatprep.subr.mxu0 0.0
    %5748 = vmatpush1.msra.mxu0 0.0
    %5749 = vmatprep.subr.mxu0 0.0
    %5750 = vmatpush1.msra.mxu0 0.0
    %5751 = vmatprep.subr.mxu0 0.0
    %5752 = vmatpush1.msra.mxu0 0.0
    %5753 = vmatprep.subr.mxu0 0.0
    %5754 = vmatpush1.msra.mxu0 0.0
    %5755 = vmatprep.subr.mxu0 0.0
    %5756 = vmatpush1.msra.mxu0 0.0
    %5757 = vmatprep.subr.mxu0 0.0
    %5758 = vmatpush1.msra.mxu0 0.0
    %5759 = vmatprep.subr.mxu0 0.0
    %5760 = vmatpush1.msra.mxu0 0.0
    %5761 = vmatprep.subr.mxu0 0.0
    %5762 = vmatpush1.msra.mxu0 0.0
    %5763 = vmatprep.subr.mxu0 0.0
    %5764 = vmatpush1.msra.mxu0 0.0
    %5765 = vmatprep.subr.mxu0 0.0
    %5766 = vmatpush1.msra.mxu0 0.0
    %5767 = vmatprep.subr.mxu0 0.0
    %5768 = vmatpush1.msra.mxu0 0.0
    %5769 = vmatprep.subr.mxu0 0.0
    %5770 = vmatpush1.msra.mxu0 0.0
    %5771 = vmatprep.subr.mxu0 0.0
    %5772 = vmatpush1.msra.mxu0 0.0
    %5773 = vmatprep.subr.mxu0 0.0
    %5774 = vmatpush1.msra.mxu0 0.0
    %5775 = vmatprep.subr.mxu0 0.0
    %5776 = vmatpush1.msra.mxu0 0.0
    %5777 = vmatprep.subr.mxu0 0.0
    %5778 = vmatpush1.msra.mxu0 0.0
    %5779 = vmatprep.subr.mxu0 0.0
    %5780 = vmatpush1.msra.mxu0 0.0
    %5781 = vmatprep.mubr.f32.mxu0 0.0
    %5782 = vmatmul.mubr.f32.gmra.mrb[0].mxu0 %v5715
    %v5783 = vpop.f32.mrb[0].mxu0
    %v5784 = vadd.f32 %v5711, %v5783
    %v5785 = vpop.f32.mrb[0].mxu0
    %5786 = vdwg.mxu0
    %5787 = vst [vmem:[%s11] sm:$0xff] %v5784
    // Predicated region
    $region82: #{model_sl1_forward.1} parent=1 // pred_check
      _
    $region83: #{model_sl1_forward.1} parent=1 // pred_check_branch
      %5789 = sbr.rel (0) target = $region85
    $region84: #{model_sl1_forward.1} parent=1 // pred_region
      _
    $region85: #{model_sl1_forward.1} parent=1 // pred_fallthru
      _
    // Predicated region
    $region86: #{model_sl1_forward.1} parent=1 // pred_check
      _
    $region87: #{model_sl1_forward.1} parent=1 // pred_check_branch
      %5791 = sbr.rel (0) target = $region89
    $region88: #{model_sl1_forward.1} parent=1 // pred_region
      _
    $region89: #{model_sl1_forward.1} parent=1 // pred_fallthru
      _
    %5792 = vsyncpa [#allocation3], 1
    %5793 = vsyncpa [#allocation5], 1
    %5794 = vsyncpa [#allocation8], 1
    %5795 = vsyncpa [#allocation11], 1
    %5796 = vsyncpa [#allocation14], 1

</llo_original>
